<compile_context>
chip_gen: v5e
topology: v5e:2x2
jax: 0.10.0
libtpu: 0.0.40
codegen_flags: <defaults>
</compile_context>

<pallas_src>
import functools

import jax
import jax.numpy as jnp
from jax.experimental import pallas as pl
from jax.experimental.pallas import tpu as pltpu

BN_EPS = 1e-5
LEAKY = 0.1
VMEM_LIMIT = 32 * 1024 * 1024


def _round_up(n, m):
    return ((n + m - 1) // m) * m


def _lrelu(h):
    return jnp.where(h > 0, h, LEAKY * h)


# ----------------------------------------------------------------------------
# Kernels (one per BatchNorm boundary)
# ----------------------------------------------------------------------------
def _enc1_kernel(x_ref, w_ref, b_ref, y_ref, s_ref, q_ref):
    """x @ W1 + b1; accumulate per-column sum / sum-of-squares for BN1."""
    @pl.when(pl.program_id(0) == 0)
    def _():
        s_ref[...] = jnp.zeros_like(s_ref)
        q_ref[...] = jnp.zeros_like(q_ref)

    y = jnp.dot(x_ref[...].astype(jnp.bfloat16), w_ref[...],
                preferred_element_type=jnp.float32) + b_ref[...]
    y_ref[...] = y
    s_ref[...] += jnp.sum(y, axis=0, keepdims=True)
    q_ref[...] += jnp.sum(y * y, axis=0, keepdims=True)


def _enc2_kernel(y1_ref, sc_ref, sh_ref, w_ref, b_ref, y_ref, s_ref, q_ref):
    """Folded BN1 -> LeakyReLU -> Linear2; accumulate BN2 stats."""
    @pl.when(pl.program_id(0) == 0)
    def _():
        s_ref[...] = jnp.zeros_like(s_ref)
        q_ref[...] = jnp.zeros_like(q_ref)

    h = _lrelu(y1_ref[...] * sc_ref[...] + sh_ref[...])
    y = jnp.dot(h.astype(jnp.bfloat16), w_ref[...],
                preferred_element_type=jnp.float32) + b_ref[...]
    y_ref[...] = y
    s_ref[...] += jnp.sum(y, axis=0, keepdims=True)
    q_ref[...] += jnp.sum(y * y, axis=0, keepdims=True)


def _heads_dec1_kernel(y2_ref, eps_ref, sc_ref, sh_ref,
                       wmu_ref, bmu_ref, wlv_ref, blv_ref, wd1_ref, bd1_ref,
                       mu_ref, z_ref, lv_ref, y3_ref, s_ref, q_ref):
    """Folded BN2 -> LeakyReLU -> (mu, logvar) heads -> sample z -> decoder
    layer 1 on the stacked [mu ; z] batch.  BN(dec1) stats are accumulated
    separately per path (index 0 = mu path, index 1 = z path)."""
    @pl.when(pl.program_id(0) == 0)
    def _():
        s_ref[...] = jnp.zeros_like(s_ref)
        q_ref[...] = jnp.zeros_like(q_ref)

    h = _lrelu(y2_ref[...] * sc_ref[...] + sh_ref[...])

    # z heads stay f32 (they feed exp / are returned directly)
    mu = jnp.dot(h, wmu_ref[...], preferred_element_type=jnp.float32) + bmu_ref[...]
    lv = jnp.dot(h, wlv_ref[...], preferred_element_type=jnp.float32) + blv_ref[...]
    z = mu + eps_ref[...] * jnp.exp(0.5 * lv)
    mu_ref[...] = mu
    z_ref[...] = z
    lv_ref[...] = lv

    tb = mu.shape[0]
    stacked = jnp.concatenate((mu, z), axis=0).astype(jnp.bfloat16)   # (2*tb, n_z)
    y3 = jnp.dot(stacked, wd1_ref[...], preferred_element_type=jnp.float32) + bd1_ref[...]
    y3_mu = y3[:tb]
    y3_z = y3[tb:]
    y3_ref[0] = y3_mu
    y3_ref[1] = y3_z
    s_ref[0] += jnp.sum(y3_mu, axis=0, keepdims=True)
    s_ref[1] += jnp.sum(y3_z, axis=0, keepdims=True)
    q_ref[0] += jnp.sum(y3_mu * y3_mu, axis=0, keepdims=True)
    q_ref[1] += jnp.sum(y3_z * y3_z, axis=0, keepdims=True)


def _dec2_kernel(y3_ref, sc_ref, sh_ref, w_ref, b_ref, y4_ref, s_ref, q_ref):
    """Per-path folded BN(dec1) -> LeakyReLU -> decoder layer 2 on the stacked
    [mu ; z] batch; accumulate per-path BN(dec2) stats."""
    @pl.when(pl.program_id(0) == 0)
    def _():
        s_ref[...] = jnp.zeros_like(s_ref)
        q_ref[...] = jnp.zeros_like(q_ref)

    h_mu = _lrelu(y3_ref[0] * sc_ref[0] + sh_ref[0])
    h_z = _lrelu(y3_ref[1] * sc_ref[1] + sh_ref[1])

    tb = h_mu.shape[0]
    stacked = jnp.concatenate((h_mu, h_z), axis=0).astype(jnp.bfloat16)  # (2*tb, C1)
    y4 = jnp.dot(stacked, w_ref[...], preferred_element_type=jnp.float32) + b_ref[...]
    y4_mu = y4[:tb]
    y4_z = y4[tb:]
    y4_ref[0] = y4_mu
    y4_ref[1] = y4_z
    s_ref[0] += jnp.sum(y4_mu, axis=0, keepdims=True)
    s_ref[1] += jnp.sum(y4_z, axis=0, keepdims=True)
    q_ref[0] += jnp.sum(y4_mu * y4_mu, axis=0, keepdims=True)
    q_ref[1] += jnp.sum(y4_z * y4_z, axis=0, keepdims=True)


def _recon_kernel(y4_ref, sc_ref, sh_ref, w_ref, b_ref, xbar_ref, xbar1_ref):
    """Per-path folded BN(dec2) -> LeakyReLU -> reconstruction head on the
    stacked [mu ; z] batch.  Path 0 -> x_bar1, path 1 -> x_bar."""
    h_mu = _lrelu(y4_ref[0] * sc_ref[0] + sh_ref[0])
    h_z = _lrelu(y4_ref[1] * sc_ref[1] + sh_ref[1])

    tb = h_mu.shape[0]
    stacked = jnp.concatenate((h_mu, h_z), axis=0).astype(jnp.bfloat16)  # (2*tb, C2)
    xb = jnp.dot(stacked, w_ref[...], preferred_element_type=jnp.float32) + b_ref[...]
    xbar1_ref[...] = xb[:tb]   # decoder(mu)
    xbar_ref[...] = xb[tb:]    # decoder(z)


# ----------------------------------------------------------------------------
# Spec / param helpers
# ----------------------------------------------------------------------------
def _res_spec(shape):
    """Full-array block with a constant index map -> stays VMEM-resident."""
    zero = (0,) * len(shape)
    return pl.BlockSpec(shape, lambda i: zero)


def _batch_spec(tb, *trailing):
    """Tile the leading (batch) axis, keep trailing axes whole."""
    n_trailing = len(trailing)
    return pl.BlockSpec((tb,) + tuple(trailing), lambda i: (i,) + (0,) * n_trailing)


def _path_batch_spec(tb, cols):
    """(2, B, cols) path-stacked activations: tile the middle (batch) axis."""
    return pl.BlockSpec((2, tb, cols), lambda i: (0, i, 0))


def _cparams(parallel):
    return pltpu.CompilerParams(
        dimension_semantics=("parallel" if parallel else "arbitrary",),
        vmem_limit_bytes=VMEM_LIMIT)


def _cost(flops, bytes_accessed, transcendentals=0):
    return pl.CostEstimate(flops=int(flops), transcendentals=int(transcendentals),
                           bytes_accessed=int(bytes_accessed))


def _bn_fold(s, q, gamma, beta, count):
    """Fold training-mode BatchNorm1d (batch mean, biased batch var) into a
    per-column affine: y*scale + shift."""
    mean = s / count
    var = jnp.maximum(q / count - mean * mean, 0.0)
    scale = gamma * jax.lax.rsqrt(var + BN_EPS)
    shift = beta - mean * scale
    return scale, shift


# ----------------------------------------------------------------------------
# Wrapper: full DualVAE forward
# ----------------------------------------------------------------------------
def dualvae_forward(x, eps, params, *, tb=128):
    """x: (B, n_input) f32, eps: (B, n_z) f32, params: 22 arrays (see make_params).
    Returns (x_bar, z, mu, log_var, x_bar1) exactly like the PyTorch module."""
    (w1, b1, g1, bb1,
     w2, b2, g2, bb2,
     wmu, bmu, wlv, blv,
     wd1, bd1, gd1, bbd1,
     wd2, bd2, gd2, bbd2,
     wxb, bxb) = params

    f32 = jnp.float32
    bf16 = jnp.bfloat16

    B, n_input = x.shape
    n_z = eps.shape[1]
    n_enc_1 = w1.shape[1]
    n_enc_2 = w2.shape[1]
    n_dec_1 = wd1.shape[1]
    n_dec_2 = wd2.shape[1]

    # Pick a batch tile: multiple of 8 that divides B.
    tb = max(8, (min(tb, B) // 8) * 8)
    while tb > 8 and B % tb != 0:
        tb -= 8
    # TODO(synk): support ragged batches (pad rows and mask them out of the BN stats).
    if B % tb != 0:
        raise ValueError(f"batch {B} must be a multiple of 8 (got tile {tb})")
    nb = B // tb

    # Pad the feature axis to a multiple of 128 lanes (unmasked loads/stores).
    n_in_pad = _round_up(n_input, 128)
    pad = n_in_pad - n_input
    if pad:
        x_p = jnp.pad(x, ((0, 0), (0, pad)))
        w1_p = jnp.pad(w1, ((0, pad), (0, 0)))
        wxb_p = jnp.pad(wxb, ((0, 0), (0, pad)))
        bxb_p = jnp.pad(bxb, ((0, 0), (0, pad)))
    else:
        x_p, w1_p, wxb_p, bxb_p = x, w1, wxb, bxb

    # bf16 operands for the MXU (f32 accumulation); z-head weights stay f32.
    x_b = x_p.astype(bf16)          # stream the big input at half bandwidth
    w1_b = w1_p.astype(bf16)
    w2_b = w2.astype(bf16)
    wd1_b = wd1.astype(bf16)
    wd2_b = wd2.astype(bf16)
    wxb_b = wxb_p.astype(bf16)

    # ---- stage 1: encoder linear 1 + BN1 stats --------------------------------
    y1, s1, q1 = pl.pallas_call(
        _enc1_kernel,
        out_shape=(jax.ShapeDtypeStruct((B, n_enc_1), f32),
                   jax.ShapeDtypeStruct((1, n_enc_1), f32),
                   jax.ShapeDtypeStruct((1, n_enc_1), f32)),
        grid_spec=pltpu.PrefetchScalarGridSpec(
            num_scalar_prefetch=0, grid=(nb,),
            in_specs=[_batch_spec(tb, n_in_pad),
                      _res_spec((n_in_pad, n_enc_1)),
                      _res_spec((1, n_enc_1))],
            out_specs=(_batch_spec(tb, n_enc_1),
                       _res_spec((1, n_enc_1)),
                       _res_spec((1, n_enc_1)))),
        compiler_params=_cparams(parallel=False),
        cost_estimate=_cost(2 * B * n_in_pad * n_enc_1,
                            2 * B * n_in_pad + 4 * B * n_enc_1 + 2 * n_in_pad * n_enc_1),
    )(x_b, w1_b, b1)
    sc1, sh1 = _bn_fold(s1, q1, g1, bb1, B)

    # ---- stage 2: BN1 + act + encoder linear 2 + BN2 stats --------------------
    y2, s2, q2 = pl.pallas_call(
        _enc2_kernel,
        out_shape=(jax.ShapeDtypeStruct((B, n_enc_2), f32),
                   jax.ShapeDtypeStruct((1, n_enc_2), f32),
                   jax.ShapeDtypeStruct((1, n_enc_2), f32)),
        grid_spec=pltpu.PrefetchScalarGridSpec(
            num_scalar_prefetch=0, grid=(nb,),
            in_specs=[_batch_spec(tb, n_enc_1),
                      _res_spec((1, n_enc_1)), _res_spec((1, n_enc_1)),
                      _res_spec((n_enc_1, n_enc_2)), _res_spec((1, n_enc_2))],
            out_specs=(_batch_spec(tb, n_enc_2),
                       _res_spec((1, n_enc_2)), _res_spec((1, n_enc_2)))),
        compiler_params=_cparams(parallel=False),
        cost_estimate=_cost(2 * B * n_enc_1 * n_enc_2,
                            4 * B * (n_enc_1 + n_enc_2) + 2 * n_enc_1 * n_enc_2),
    )(y1, sc1, sh1, w2_b, b2)
    sc2, sh2 = _bn_fold(s2, q2, g2, bb2, B)

    # ---- stage 3: BN2 + act + heads + sampling + decoder linear 1 -------------
    mu, z, lv, y3, s3, q3 = pl.pallas_call(
        _heads_dec1_kernel,
        out_shape=(jax.ShapeDtypeStruct((B, n_z), f32),
                   jax.ShapeDtypeStruct((B, n_z), f32),
                   jax.ShapeDtypeStruct((B, n_z), f32),
                   jax.ShapeDtypeStruct((2, B, n_dec_1), f32),
                   jax.ShapeDtypeStruct((2, 1, n_dec_1), f32),
                   jax.ShapeDtypeStruct((2, 1, n_dec_1), f32)),
        grid_spec=pltpu.PrefetchScalarGridSpec(
            num_scalar_prefetch=0, grid=(nb,),
            in_specs=[_batch_spec(tb, n_enc_2),
                      _batch_spec(tb, n_z),
                      _res_spec((1, n_enc_2)), _res_spec((1, n_enc_2)),
                      _res_spec((n_enc_2, n_z)), _res_spec((1, n_z)),
                      _res_spec((n_enc_2, n_z)), _res_spec((1, n_z)),
                      _res_spec((n_z, n_dec_1)), _res_spec((1, n_dec_1))],
            out_specs=(_batch_spec(tb, n_z), _batch_spec(tb, n_z), _batch_spec(tb, n_z),
                       _path_batch_spec(tb, n_dec_1),
                       _res_spec((2, 1, n_dec_1)), _res_spec((2, 1, n_dec_1)))),
        compiler_params=_cparams(parallel=False),
        cost_estimate=_cost(4 * B * n_enc_2 * n_z + 4 * B * n_z * n_dec_1,
                            4 * B * (n_enc_2 + 4 * n_z + 2 * n_dec_1),
                            transcendentals=B * n_z),
    )(y2, eps, sc2, sh2, wmu, bmu, wlv, blv, wd1_b, bd1)
    sc3, sh3 = _bn_fold(s3, q3, gd1, bbd1, B)

    # ---- stage 4: BN(dec1) + act + decoder linear 2 (stacked mu/z paths) ------
    y4, s4, q4 = pl.pallas_call(
        _dec2_kernel,
        out_shape=(jax.ShapeDtypeStruct((2, B, n_dec_2), f32),
                   jax.ShapeDtypeStruct((2, 1, n_dec_2), f32),
                   jax.ShapeDtypeStruct((2, 1, n_dec_2), f32)),
        grid_spec=pltpu.PrefetchScalarGridSpec(
            num_scalar_prefetch=0, grid=(nb,),
            in_specs=[_path_batch_spec(tb, n_dec_1),
                      _res_spec((2, 1, n_dec_1)), _res_spec((2, 1, n_dec_1)),
                      _res_spec((n_dec_1, n_dec_2)), _res_spec((1, n_dec_2))],
            out_specs=(_path_batch_spec(tb, n_dec_2),
                       _res_spec((2, 1, n_dec_2)), _res_spec((2, 1, n_dec_2)))),
        compiler_params=_cparams(parallel=False),
        cost_estimate=_cost(4 * B * n_dec_1 * n_dec_2,
                            8 * B * (n_dec_1 + n_dec_2) + 2 * n_dec_1 * n_dec_2),
    )(y3, sc3, sh3, wd2_b, bd2)
    sc4, sh4 = _bn_fold(s4, q4, gd2, bbd2, B)

    # ---- stage 5: BN(dec2) + act + reconstruction head ------------------------
    xbar_p, xbar1_p = pl.pallas_call(
        _recon_kernel,
        out_shape=(jax.ShapeDtypeStruct((B, n_in_pad), f32),
                   jax.ShapeDtypeStruct((B, n_in_pad), f32)),
        grid_spec=pltpu.PrefetchScalarGridSpec(
            num_scalar_prefetch=0, grid=(nb,),
            in_specs=[_path_batch_spec(tb, n_dec_2),
                      _res_spec((2, 1, n_dec_2)), _res_spec((2, 1, n_dec_2)),
                      _res_spec((n_dec_2, n_in_pad)), _res_spec((1, n_in_pad))],
            out_specs=(_batch_spec(tb, n_in_pad), _batch_spec(tb, n_in_pad))),
        compiler_params=_cparams(parallel=True),
        cost_estimate=_cost(4 * B * n_dec_2 * n_in_pad,
                            8 * B * (n_dec_2 + n_in_pad) + 2 * n_dec_2 * n_in_pad),
    )(y4, sc4, sh4, wxb_b, bxb_p)

    x_bar = xbar_p[:, :n_input]
    x_bar1 = xbar1_p[:, :n_input]
    return x_bar, z, mu, lv, x_bar1


# ----------------------------------------------------------------------------
# Deterministic parameter init (kaiming-uniform weights, zero bias, BN gamma=1)
# ----------------------------------------------------------------------------
def kaiming_uniform(key, fan_in, fan_out):
    bound = (6.0 / fan_in) ** 0.5   # nn.init.kaiming_uniform_ with a=0
    return jax.random.uniform(key, (fan_in, fan_out), jnp.float32, -bound, bound)


def make_params(key, n_input, n_enc_1, n_enc_2, n_z):
    n_dec_1, n_dec_2 = n_enc_2, n_enc_1
    keys = jax.random.split(key, 7)

    def zeros(n):
        return jnp.zeros((1, n), jnp.float32)

    def ones(n):
        return jnp.ones((1, n), jnp.float32)

    return [
        kaiming_uniform(keys[0], n_input, n_enc_1), zeros(n_enc_1), ones(n_enc_1), zeros(n_enc_1),
        kaiming_uniform(keys[1], n_enc_1, n_enc_2), zeros(n_enc_2), ones(n_enc_2), zeros(n_enc_2),
        kaiming_uniform(keys[2], n_enc_2, n_z), zeros(n_z),
        kaiming_uniform(keys[3], n_enc_2, n_z), zeros(n_z),
        kaiming_uniform(keys[4], n_z, n_dec_1), zeros(n_dec_1), ones(n_dec_1), zeros(n_dec_1),
        kaiming_uniform(keys[5], n_dec_1, n_dec_2), zeros(n_dec_2), ones(n_dec_2), zeros(n_dec_2),
        kaiming_uniform(keys[6], n_dec_2, n_input), zeros(n_input),
    ]


# ----------------------------------------------------------------------------
# Pure-JAX reference (PyTorch semantics; bf16 casts match the kernel's MXU dots,
# f32 head dots pinned to HIGHEST precision)
# ----------------------------------------------------------------------------
def reference_forward(x, eps, params):
    (w1, b1, g1, bb1, w2, b2, g2, bb2, wmu, bmu, wlv, blv,
     wd1, bd1, gd1, bbd1, wd2, bd2, gd2, bbd2, wxb, bxb) = params

    def lin16(h, w, b):
        return jnp.dot(h.astype(jnp.bfloat16), w.astype(jnp.bfloat16),
                       preferred_element_type=jnp.float32) + b

    def lin32(h, w, b):
        return jnp.dot(h, w, preferred_element_type=jnp.float32,
                       precision=jax.lax.Precision.HIGHEST) + b

    def bn(h, g, beta):
        m = jnp.mean(h, axis=0, keepdims=True)
        v = jnp.mean((h - m) ** 2, axis=0, keepdims=True)
        return g * (h - m) / jnp.sqrt(v + BN_EPS) + beta

    def lrelu(h):
        return jnp.where(h > 0, h, LEAKY * h)

    h = lrelu(bn(lin16(x, w1, b1), g1, bb1))
    h_e = lrelu(bn(lin16(h, w2, b2), g2, bb2))
    mu = lin32(h_e, wmu, bmu)
    lv = lin32(h_e, wlv, blv)

    def dec(zz):
        d = lrelu(bn(lin16(zz, wd1, bd1), gd1, bbd1))
        d = lrelu(bn(lin16(d, wd2, bd2), gd2, bbd2))
        return lin16(d, wxb, bxb)

    x_bar1 = dec(mu)
    z = mu + eps * jnp.exp(0.5 * lv)
    x_bar = dec(z)
    return x_bar, z, mu, lv, x_bar1


if __name__ == "__main__":
    # Small shapes consistent with the module (real model: 2500/512/128/32).
    # B=256 with tb=128 exercises the multi-tile BN-stat accumulation path and
    # n_input=250 exercises the lane padding path (250 -> 256).
    B, n_input, n_enc_1, n_enc_2, n_z = 256, 250, 256, 128, 32

    key = jax.random.PRNGKey(0)
    kx, keps, kp = jax.random.split(key, 3)

    x = jax.random.normal(kx, (B, n_input), jnp.float32)
    eps = jax.random.normal(keps, (B, n_z), jnp.float32)  # deterministic randn_like
    params = make_params(kp, n_input, n_enc_1, n_enc_2, n_z)

    fwd = jax.jit(functools.partial(dualvae_forward, tb=128))
    outs = jax.block_until_ready(fwd(x, eps, params))

    refs = reference_forward(x, eps, params)
    names = ("x_bar", "z", "mu", "log_var", "x_bar1")
    # bf16 MXU quantization makes deep outputs chaotic at the element level;
    # use relative Frobenius error (stable) with per-output budgets.
    tols = {"x_bar": 3e-2, "x_bar1": 3e-2, "z": 1e-2, "mu": 1e-2, "log_var": 1e-2}
    for name, o, r in zip(names, outs, refs):
        assert o.shape == r.shape and o.dtype == r.dtype, f"{name} shape/dtype mismatch"
        num = jnp.linalg.norm((o - r).astype(jnp.float32))
        den = jnp.linalg.norm(r.astype(jnp.float32)) + 1e-12
        rel = float(num / den)
        assert rel < tols[name], f"{name} relative error {rel:.3e} exceeds {tols[name]:.1e}"

    print("KERNEL_OK")
</pallas_src>

<mosaic_0001>
module attributes {stable_mosaic.version = 11 : i64} {
  func.func @_enc2_kernel(%arg0: i32, %arg1: memref<128x256xf32, #tpu.memory_space<vmem>>, %arg2: memref<1x256xf32, #tpu.memory_space<vmem>>, %arg3: memref<1x256xf32, #tpu.memory_space<vmem>>, %arg4: memref<256x128xbf16, #tpu.memory_space<vmem>>, %arg5: memref<1x128xf32, #tpu.memory_space<vmem>>, %arg6: memref<128x128xf32, #tpu.memory_space<vmem>>, %arg7: memref<1x128xf32, #tpu.memory_space<vmem>>, %arg8: memref<1x128xf32, #tpu.memory_space<vmem>>) attributes {dimension_semantics = [#tpu.dimension_semantics<arbitrary>], iteration_bounds = array<i64: 2>, scalar_prefetch = 0 : i64, scratch_operands = 0 : i64, tpu.core_type = #tpu.core_type<tc>, window_params = [{transform_indices = @transform_0, window_bounds = array<i64: 128, 256>}, {pipeline_mode = #tpu.pipeline_mode<synchronous>, transform_indices = @transform_1, window_bounds = array<i64: 1, 256>}, {pipeline_mode = #tpu.pipeline_mode<synchronous>, transform_indices = @transform_2, window_bounds = array<i64: 1, 256>}, {pipeline_mode = #tpu.pipeline_mode<synchronous>, transform_indices = @transform_3, window_bounds = array<i64: 256, 128>}, {pipeline_mode = #tpu.pipeline_mode<synchronous>, transform_indices = @transform_4, window_bounds = array<i64: 1, 128>}, {transform_indices = @transform_5, window_bounds = array<i64: 128, 128>}, {pipeline_mode = #tpu.pipeline_mode<synchronous>, transform_indices = @transform_6, window_bounds = array<i64: 1, 128>}, {pipeline_mode = #tpu.pipeline_mode<synchronous>, transform_indices = @transform_7, window_bounds = array<i64: 1, 128>}]} {
    %c0_i32 = arith.constant 0 : i32
    %0 = arith.cmpi eq, %arg0, %c0_i32 : i32
    %1 = arith.extui %0 : i1 to i32
    %c0_i32_0 = arith.constant 0 : i32
    %2 = arith.cmpi ne, %1, %c0_i32_0 : i32
    scf.if %2 {
      %cst_24 = arith.constant 0.000000e+00 : f32
      %33 = vector.broadcast %cst_24 : f32 to vector<1x128xf32>
      %c0_25 = arith.constant 0 : index
      %c0_26 = arith.constant 0 : index
      %34 = vector.load %arg7[%c0_25, %c0_26] : memref<1x128xf32, #tpu.memory_space<vmem>>, vector<1x128xf32>
      tpu.vector_store %arg7[%c0_25, %c0_26], %33 {strides = array<i32>} : memref<1x128xf32, #tpu.memory_space<vmem>>, vector<1x128xf32>,
      %cst_27 = arith.constant 0.000000e+00 : f32
      %35 = vector.broadcast %cst_27 : f32 to vector<1x128xf32>
      %c0_28 = arith.constant 0 : index
      %c0_29 = arith.constant 0 : index
      %36 = vector.load %arg8[%c0_28, %c0_29] : memref<1x128xf32, #tpu.memory_space<vmem>>, vector<1x128xf32>
      tpu.vector_store %arg8[%c0_28, %c0_29], %35 {strides = array<i32>} : memref<1x128xf32, #tpu.memory_space<vmem>>, vector<1x128xf32>,
    } else {
    }
    %c0 = arith.constant 0 : index
    %c0_1 = arith.constant 0 : index
    %3 = vector.load %arg1[%c0, %c0_1] : memref<128x256xf32, #tpu.memory_space<vmem>>, vector<128x256xf32>
    %c0_2 = arith.constant 0 : index
    %c0_3 = arith.constant 0 : index
    %4 = vector.load %arg2[%c0_2, %c0_3] : memref<1x256xf32, #tpu.memory_space<vmem>>, vector<1x256xf32>
    %5 = vector.broadcast %4 : vector<1x256xf32> to vector<128x256xf32>
    %6 = arith.mulf %3, %5 : vector<128x256xf32>
    %c0_4 = arith.constant 0 : index
    %c0_5 = arith.constant 0 : index
    %7 = vector.load %arg3[%c0_4, %c0_5] : memref<1x256xf32, #tpu.memory_space<vmem>>, vector<1x256xf32>
    %8 = vector.broadcast %7 : vector<1x256xf32> to vector<128x256xf32>
    %9 = arith.addf %6, %8 : vector<128x256xf32>
    %cst = arith.constant 0.000000e+00 : f32
    %10 = vector.broadcast %cst : f32 to vector<128x256xf32>
    %11 = arith.cmpf ogt, %9, %10 : vector<128x256xf32>
    %cst_6 = arith.constant 1.000000e-01 : f32
    %12 = vector.broadcast %cst_6 : f32 to vector<128x256xf32>
    %13 = arith.mulf %12, %9 : vector<128x256xf32>
    %14 = arith.select %11, %9, %13 : vector<128x256xi1>, vector<128x256xf32>
    %15 = arith.truncf %14 : vector<128x256xf32> to vector<128x256xbf16>
    %c0_7 = arith.constant 0 : index
    %c0_8 = arith.constant 0 : index
    %16 = vector.load %arg4[%c0_7, %c0_8] : memref<256x128xbf16, #tpu.memory_space<vmem>>, vector<256x128xbf16>
    %cst_9 = arith.constant dense<0.000000e+00> : vector<128x128xf32>
    %17 = tpu.matmul %15, %16, %cst_9 {dimension_numbers = #tpu.dot_dimension_numbers<[1], [0], [0], [1], [0, 0, 1, 1], [], []>} : vector<128x256xbf16>, vector<256x128xbf16>, vector<128x128xf32> -> vector<128x128xf32>
    %c0_10 = arith.constant 0 : index
    %c0_11 = arith.constant 0 : index
    %18 = vector.load %arg5[%c0_10, %c0_11] : memref<1x128xf32, #tpu.memory_space<vmem>>, vector<1x128xf32>
    %19 = vector.broadcast %18 : vector<1x128xf32> to vector<128x128xf32>
    %20 = arith.addf %17, %19 : vector<128x128xf32>
    %c0_12 = arith.constant 0 : index
    %c0_13 = arith.constant 0 : index
    %21 = vector.load %arg6[%c0_12, %c0_13] : memref<128x128xf32, #tpu.memory_space<vmem>>, vector<128x128xf32>
    tpu.vector_store %arg6[%c0_12, %c0_13], %20 {strides = array<i32>} : memref<128x128xf32, #tpu.memory_space<vmem>>, vector<128x128xf32>,
    %c0_14 = arith.constant 0 : index
    %c0_15 = arith.constant 0 : index
    %22 = vector.load %arg7[%c0_14, %c0_15] : memref<1x128xf32, #tpu.memory_space<vmem>>, vector<1x128xf32>
    %cst_16 = arith.constant dense<0.000000e+00> : vector<128xf32>
    %23 = vector.multi_reduction <add>, %20, %cst_16 [0] : vector<128x128xf32> to vector<128xf32>
    %24 = vector.shape_cast %23 : vector<128xf32> to vector<1x128xf32>
    %25 = arith.addf %22, %24 : vector<1x128xf32>
    %c0_17 = arith.constant 0 : index
    %c0_18 = arith.constant 0 : index
    %26 = vector.load %arg7[%c0_17, %c0_18] : memref<1x128xf32, #tpu.memory_space<vmem>>, vector<1x128xf32>
    tpu.vector_store %arg7[%c0_17, %c0_18], %25 {strides = array<i32>} : memref<1x128xf32, #tpu.memory_space<vmem>>, vector<1x128xf32>,
    %c0_19 = arith.constant 0 : index
    %c0_20 = arith.constant 0 : index
    %27 = vector.load %arg8[%c0_19, %c0_20] : memref<1x128xf32, #tpu.memory_space<vmem>>, vector<1x128xf32>
    %28 = arith.mulf %20, %20 : vector<128x128xf32>
    %cst_21 = arith.constant dense<0.000000e+00> : vector<128xf32>
    %29 = vector.multi_reduction <add>, %28, %cst_21 [0] : vector<128x128xf32> to vector<128xf32>
    %30 = vector.shape_cast %29 : vector<128xf32> to vector<1x128xf32>
    %31 = arith.addf %27, %30 : vector<1x128xf32>
    %c0_22 = arith.constant 0 : index
    %c0_23 = arith.constant 0 : index
    %32 = vector.load %arg8[%c0_22, %c0_23] : memref<1x128xf32, #tpu.memory_space<vmem>>, vector<1x128xf32>
    tpu.vector_store %arg8[%c0_22, %c0_23], %31 {strides = array<i32>} : memref<1x128xf32, #tpu.memory_space<vmem>>, vector<1x128xf32>,
    return
  }
  func.func @transform_0(%arg0: i32) -> (i32, i32) {
    %c0_i32 = arith.constant 0 : i32
    %c0_i32_0 = arith.constant 0 : i32
    return %arg0, %c0_i32 : i32, i32
  }
  func.func @transform_1(%arg0: i32) -> (i32, i32) {
    %c0_i32 = arith.constant 0 : i32
    %c0_i32_0 = arith.constant 0 : i32
    %c0_i32_1 = arith.constant 0 : i32
    return %c0_i32, %c0_i32_0 : i32, i32
  }
  func.func @transform_2(%arg0: i32) -> (i32, i32) {
    %c0_i32 = arith.constant 0 : i32
    %c0_i32_0 = arith.constant 0 : i32
    %c0_i32_1 = arith.constant 0 : i32
    return %c0_i32, %c0_i32_0 : i32, i32
  }
  func.func @transform_3(%arg0: i32) -> (i32, i32) {
    %c0_i32 = arith.constant 0 : i32
    %c0_i32_0 = arith.constant 0 : i32
    %c0_i32_1 = arith.constant 0 : i32
    return %c0_i32, %c0_i32_0 : i32, i32
  }
  func.func @transform_4(%arg0: i32) -> (i32, i32) {
    %c0_i32 = arith.constant 0 : i32
    %c0_i32_0 = arith.constant 0 : i32
    %c0_i32_1 = arith.constant 0 : i32
    return %c0_i32, %c0_i32_0 : i32, i32
  }
  func.func @transform_5(%arg0: i32) -> (i32, i32) {
    %c0_i32 = arith.constant 0 : i32
    %c0_i32_0 = arith.constant 0 : i32
    return %arg0, %c0_i32 : i32, i32
  }
  func.func @transform_6(%arg0: i32) -> (i32, i32) {
    %c0_i32 = arith.constant 0 : i32
    %c0_i32_0 = arith.constant 0 : i32
    %c0_i32_1 = arith.constant 0 : i32
    return %c0_i32, %c0_i32_0 : i32, i32
  }
  func.func @transform_7(%arg0: i32) -> (i32, i32) {
    %c0_i32 = arith.constant 0 : i32
    %c0_i32_0 = arith.constant 0 : i32
    %c0_i32_1 = arith.constant 0 : i32
    return %c0_i32, %c0_i32_0 : i32, i32
  }
}

module attributes {stable_mosaic.version = 11 : i64} {
  func.func @_enc1_kernel(%arg0: i32, %arg1: memref<128x256xbf16, #tpu.memory_space<vmem>>, %arg2: memref<256x256xbf16, #tpu.memory_space<vmem>>, %arg3: memref<1x256xf32, #tpu.memory_space<vmem>>, %arg4: memref<128x256xf32, #tpu.memory_space<vmem>>, %arg5: memref<1x256xf32, #tpu.memory_space<vmem>>, %arg6: memref<1x256xf32, #tpu.memory_space<vmem>>) attributes {dimension_semantics = [#tpu.dimension_semantics<arbitrary>], iteration_bounds = array<i64: 2>, scalar_prefetch = 0 : i64, scratch_operands = 0 : i64, tpu.core_type = #tpu.core_type<tc>, window_params = [{transform_indices = @transform_0, window_bounds = array<i64: 128, 256>}, {pipeline_mode = #tpu.pipeline_mode<synchronous>, transform_indices = @transform_1, window_bounds = array<i64: 256, 256>}, {pipeline_mode = #tpu.pipeline_mode<synchronous>, transform_indices = @transform_2, window_bounds = array<i64: 1, 256>}, {transform_indices = @transform_3, window_bounds = array<i64: 128, 256>}, {pipeline_mode = #tpu.pipeline_mode<synchronous>, transform_indices = @transform_4, window_bounds = array<i64: 1, 256>}, {pipeline_mode = #tpu.pipeline_mode<synchronous>, transform_indices = @transform_5, window_bounds = array<i64: 1, 256>}]} {
    %c0_i32 = arith.constant 0 : i32
    %0 = arith.cmpi eq, %arg0, %c0_i32 : i32
    %1 = arith.extui %0 : i1 to i32
    %c0_i32_0 = arith.constant 0 : i32
    %2 = arith.cmpi ne, %1, %c0_i32_0 : i32
    scf.if %2 {
      %cst_18 = arith.constant 0.000000e+00 : f32
      %21 = vector.broadcast %cst_18 : f32 to vector<1x256xf32>
      %c0_19 = arith.constant 0 : index
      %c0_20 = arith.constant 0 : index
      %22 = vector.load %arg5[%c0_19, %c0_20] : memref<1x256xf32, #tpu.memory_space<vmem>>, vector<1x256xf32>
      tpu.vector_store %arg5[%c0_19, %c0_20], %21 {strides = array<i32>} : memref<1x256xf32, #tpu.memory_space<vmem>>, vector<1x256xf32>,
      %cst_21 = arith.constant 0.000000e+00 : f32
      %23 = vector.broadcast %cst_21 : f32 to vector<1x256xf32>
      %c0_22 = arith.constant 0 : index
      %c0_23 = arith.constant 0 : index
      %24 = vector.load %arg6[%c0_22, %c0_23] : memref<1x256xf32, #tpu.memory_space<vmem>>, vector<1x256xf32>
      tpu.vector_store %arg6[%c0_22, %c0_23], %23 {strides = array<i32>} : memref<1x256xf32, #tpu.memory_space<vmem>>, vector<1x256xf32>,
    } else {
    }
    %c0 = arith.constant 0 : index
    %c0_1 = arith.constant 0 : index
    %3 = vector.load %arg1[%c0, %c0_1] : memref<128x256xbf16, #tpu.memory_space<vmem>>, vector<128x256xbf16>
    %c0_2 = arith.constant 0 : index
    %c0_3 = arith.constant 0 : index
    %4 = vector.load %arg2[%c0_2, %c0_3] : memref<256x256xbf16, #tpu.memory_space<vmem>>, vector<256x256xbf16>
    %cst = arith.constant dense<0.000000e+00> : vector<128x256xf32>
    %5 = tpu.matmul %3, %4, %cst {dimension_numbers = #tpu.dot_dimension_numbers<[1], [0], [0], [1], [0, 0, 1, 1], [], []>} : vector<128x256xbf16>, vector<256x256xbf16>, vector<128x256xf32> -> vector<128x256xf32>
    %c0_4 = arith.constant 0 : index
    %c0_5 = arith.constant 0 : index
    %6 = vector.load %arg3[%c0_4, %c0_5] : memref<1x256xf32, #tpu.memory_space<vmem>>, vector<1x256xf32>
    %7 = vector.broadcast %6 : vector<1x256xf32> to vector<128x256xf32>
    %8 = arith.addf %5, %7 : vector<128x256xf32>
    %c0_6 = arith.constant 0 : index
    %c0_7 = arith.constant 0 : index
    %9 = vector.load %arg4[%c0_6, %c0_7] : memref<128x256xf32, #tpu.memory_space<vmem>>, vector<128x256xf32>
    tpu.vector_store %arg4[%c0_6, %c0_7], %8 {strides = array<i32>} : memref<128x256xf32, #tpu.memory_space<vmem>>, vector<128x256xf32>,
    %c0_8 = arith.constant 0 : index
    %c0_9 = arith.constant 0 : index
    %10 = vector.load %arg5[%c0_8, %c0_9] : memref<1x256xf32, #tpu.memory_space<vmem>>, vector<1x256xf32>
    %cst_10 = arith.constant dense<0.000000e+00> : vector<256xf32>
    %11 = vector.multi_reduction <add>, %8, %cst_10 [0] : vector<128x256xf32> to vector<256xf32>
    %12 = vector.shape_cast %11 : vector<256xf32> to vector<1x256xf32>
    %13 = arith.addf %10, %12 : vector<1x256xf32>
    %c0_11 = arith.constant 0 : index
    %c0_12 = arith.constant 0 : index
    %14 = vector.load %arg5[%c0_11, %c0_12] : memref<1x256xf32, #tpu.memory_space<vmem>>, vector<1x256xf32>
    tpu.vector_store %arg5[%c0_11, %c0_12], %13 {strides = array<i32>} : memref<1x256xf32, #tpu.memory_space<vmem>>, vector<1x256xf32>,
    %c0_13 = arith.constant 0 : index
    %c0_14 = arith.constant 0 : index
    %15 = vector.load %arg6[%c0_13, %c0_14] : memref<1x256xf32, #tpu.memory_space<vmem>>, vector<1x256xf32>
    %16 = arith.mulf %8, %8 : vector<128x256xf32>
    %cst_15 = arith.constant dense<0.000000e+00> : vector<256xf32>
    %17 = vector.multi_reduction <add>, %16, %cst_15 [0] : vector<128x256xf32> to vector<256xf32>
    %18 = vector.shape_cast %17 : vector<256xf32> to vector<1x256xf32>
    %19 = arith.addf %15, %18 : vector<1x256xf32>
    %c0_16 = arith.constant 0 : index
    %c0_17 = arith.constant 0 : index
    %20 = vector.load %arg6[%c0_16, %c0_17] : memref<1x256xf32, #tpu.memory_space<vmem>>, vector<1x256xf32>
    tpu.vector_store %arg6[%c0_16, %c0_17], %19 {strides = array<i32>} : memref<1x256xf32, #tpu.memory_space<vmem>>, vector<1x256xf32>,
    return
  }
  func.func @transform_0(%arg0: i32) -> (i32, i32) {
    %c0_i32 = arith.constant 0 : i32
    %c0_i32_0 = arith.constant 0 : i32
    return %arg0, %c0_i32 : i32, i32
  }
  func.func @transform_1(%arg0: i32) -> (i32, i32) {
    %c0_i32 = arith.constant 0 : i32
    %c0_i32_0 = arith.constant 0 : i32
    %c0_i32_1 = arith.constant 0 : i32
    return %c0_i32, %c0_i32_0 : i32, i32
  }
  func.func @transform_2(%arg0: i32) -> (i32, i32) {
    %c0_i32 = arith.constant 0 : i32
    %c0_i32_0 = arith.constant 0 : i32
    %c0_i32_1 = arith.constant 0 : i32
    return %c0_i32, %c0_i32_0 : i32, i32
  }
  func.func @transform_3(%arg0: i32) -> (i32, i32) {
    %c0_i32 = arith.constant 0 : i32
    %c0_i32_0 = arith.constant 0 : i32
    return %arg0, %c0_i32 : i32, i32
  }
  func.func @transform_4(%arg0: i32) -> (i32, i32) {
    %c0_i32 = arith.constant 0 : i32
    %c0_i32_0 = arith.constant 0 : i32
    %c0_i32_1 = arith.constant 0 : i32
    return %c0_i32, %c0_i32_0 : i32, i32
  }
  func.func @transform_5(%arg0: i32) -> (i32, i32) {
    %c0_i32 = arith.constant 0 : i32
    %c0_i32_0 = arith.constant 0 : i32
    %c0_i32_1 = arith.constant 0 : i32
    return %c0_i32, %c0_i32_0 : i32, i32
  }
}

module attributes {stable_mosaic.version = 11 : i64} {
  func.func @_heads_dec1_kernel(%arg0: i32, %arg1: memref<128x128xf32, #tpu.memory_space<vmem>>, %arg2: memref<128x32xf32, #tpu.memory_space<vmem>>, %arg3: memref<1x128xf32, #tpu.memory_space<vmem>>, %arg4: memref<1x128xf32, #tpu.memory_space<vmem>>, %arg5: memref<128x32xf32, #tpu.memory_space<vmem>>, %arg6: memref<1x32xf32, #tpu.memory_space<vmem>>, %arg7: memref<128x32xf32, #tpu.memory_space<vmem>>, %arg8: memref<1x32xf32, #tpu.memory_space<vmem>>, %arg9: memref<32x128xbf16, #tpu.memory_space<vmem>>, %arg10: memref<1x128xf32, #tpu.memory_space<vmem>>, %arg11: memref<128x32xf32, #tpu.memory_space<vmem>>, %arg12: memref<128x32xf32, #tpu.memory_space<vmem>>, %arg13: memref<128x32xf32, #tpu.memory_space<vmem>>, %arg14: memref<2x128x128xf32, #tpu.memory_space<vmem>>, %arg15: memref<2x1x128xf32, #tpu.memory_space<vmem>>, %arg16: memref<2x1x128xf32, #tpu.memory_space<vmem>>) attributes {dimension_semantics = [#tpu.dimension_semantics<arbitrary>], iteration_bounds = array<i64: 2>, scalar_prefetch = 0 : i64, scratch_operands = 0 : i64, tpu.core_type = #tpu.core_type<tc>, window_params = [{transform_indices = @transform_0, window_bounds = array<i64: 128, 128>}, {transform_indices = @transform_1, window_bounds = array<i64: 128, 32>}, {pipeline_mode = #tpu.pipeline_mode<synchronous>, transform_indices = @transform_2, window_bounds = array<i64: 1, 128>}, {pipeline_mode = #tpu.pipeline_mode<synchronous>, transform_indices = @transform_3, window_bounds = array<i64: 1, 128>}, {pipeline_mode = #tpu.pipeline_mode<synchronous>, transform_indices = @transform_4, window_bounds = array<i64: 128, 32>}, {pipeline_mode = #tpu.pipeline_mode<synchronous>, transform_indices = @transform_5, window_bounds = array<i64: 1, 32>}, {pipeline_mode = #tpu.pipeline_mode<synchronous>, transform_indices = @transform_6, window_bounds = array<i64: 128, 32>}, {pipeline_mode = #tpu.pipeline_mode<synchronous>, transform_indices = @transform_7, window_bounds = array<i64: 1, 32>}, {pipeline_mode = #tpu.pipeline_mode<synchronous>, transform_indices = @transform_8, window_bounds = array<i64: 32, 128>}, {pipeline_mode = #tpu.pipeline_mode<synchronous>, transform_indices = @transform_9, window_bounds = array<i64: 1, 128>}, {transform_indices = @transform_10, window_bounds = array<i64: 128, 32>}, {transform_indices = @transform_11, window_bounds = array<i64: 128, 32>}, {transform_indices = @transform_12, window_bounds = array<i64: 128, 32>}, {transform_indices = @transform_13, window_bounds = array<i64: 2, 128, 128>}, {pipeline_mode = #tpu.pipeline_mode<synchronous>, transform_indices = @transform_14, window_bounds = array<i64: 2, 1, 128>}, {pipeline_mode = #tpu.pipeline_mode<synchronous>, transform_indices = @transform_15, window_bounds = array<i64: 2, 1, 128>}]} {
    %c0_i32 = arith.constant 0 : i32
    %0 = arith.cmpi eq, %arg0, %c0_i32 : i32
    %1 = arith.extui %0 : i1 to i32
    %c0_i32_0 = arith.constant 0 : i32
    %2 = arith.cmpi ne, %1, %c0_i32_0 : i32
    scf.if %2 {
      %cst_64 = arith.constant 0.000000e+00 : f32
      %83 = vector.broadcast %cst_64 : f32 to vector<2x1x128xf32>
      %c0_65 = arith.constant 0 : index
      %c0_66 = arith.constant 0 : index
      %c0_67 = arith.constant 0 : index
      %84 = vector.load %arg15[%c0_65, %c0_66, %c0_67] : memref<2x1x128xf32, #tpu.memory_space<vmem>>, vector<2x1x128xf32>
      tpu.vector_store %arg15[%c0_65, %c0_66, %c0_67], %83 {strides = array<i32>} : memref<2x1x128xf32, #tpu.memory_space<vmem>>, vector<2x1x128xf32>,
      %cst_68 = arith.constant 0.000000e+00 : f32
      %85 = vector.broadcast %cst_68 : f32 to vector<2x1x128xf32>
      %c0_69 = arith.constant 0 : index
      %c0_70 = arith.constant 0 : index
      %c0_71 = arith.constant 0 : index
      %86 = vector.load %arg16[%c0_69, %c0_70, %c0_71] : memref<2x1x128xf32, #tpu.memory_space<vmem>>, vector<2x1x128xf32>
      tpu.vector_store %arg16[%c0_69, %c0_70, %c0_71], %85 {strides = array<i32>} : memref<2x1x128xf32, #tpu.memory_space<vmem>>, vector<2x1x128xf32>,
    } else {
    }
    %c0 = arith.constant 0 : index
    %c0_1 = arith.constant 0 : index
    %3 = vector.load %arg1[%c0, %c0_1] : memref<128x128xf32, #tpu.memory_space<vmem>>, vector<128x128xf32>
    %c0_2 = arith.constant 0 : index
    %c0_3 = arith.constant 0 : index
    %4 = vector.load %arg3[%c0_2, %c0_3] : memref<1x128xf32, #tpu.memory_space<vmem>>, vector<1x128xf32>
    %5 = vector.broadcast %4 : vector<1x128xf32> to vector<128x128xf32>
    %6 = arith.mulf %3, %5 : vector<128x128xf32>
    %c0_4 = arith.constant 0 : index
    %c0_5 = arith.constant 0 : index
    %7 = vector.load %arg4[%c0_4, %c0_5] : memref<1x128xf32, #tpu.memory_space<vmem>>, vector<1x128xf32>
    %8 = vector.broadcast %7 : vector<1x128xf32> to vector<128x128xf32>
    %9 = arith.addf %6, %8 : vector<128x128xf32>
    %cst = arith.constant 0.000000e+00 : f32
    %10 = vector.broadcast %cst : f32 to vector<128x128xf32>
    %11 = arith.cmpf ogt, %9, %10 : vector<128x128xf32>
    %cst_6 = arith.constant 1.000000e-01 : f32
    %12 = vector.broadcast %cst_6 : f32 to vector<128x128xf32>
    %13 = arith.mulf %12, %9 : vector<128x128xf32>
    %14 = arith.select %11, %9, %13 : vector<128x128xi1>, vector<128x128xf32>
    %c0_7 = arith.constant 0 : index
    %c0_8 = arith.constant 0 : index
    %15 = vector.load %arg5[%c0_7, %c0_8] : memref<128x32xf32, #tpu.memory_space<vmem>>, vector<128x32xf32>
    %cst_9 = arith.constant dense<0.000000e+00> : vector<128x32xf32>
    %16 = tpu.matmul %14, %15, %cst_9 {dimension_numbers = #tpu.dot_dimension_numbers<[1], [0], [0], [1], [0, 0, 1, 1], [], []>} : vector<128x128xf32>, vector<128x32xf32>, vector<128x32xf32> -> vector<128x32xf32>
    %c0_10 = arith.constant 0 : index
    %c0_11 = arith.constant 0 : index
    %17 = vector.load %arg6[%c0_10, %c0_11] : memref<1x32xf32, #tpu.memory_space<vmem>>, vector<1x32xf32>
    %18 = vector.broadcast %17 : vector<1x32xf32> to vector<128x32xf32>
    %19 = arith.addf %16, %18 : vector<128x32xf32>
    %c0_12 = arith.constant 0 : index
    %c0_13 = arith.constant 0 : index
    %20 = vector.load %arg7[%c0_12, %c0_13] : memref<128x32xf32, #tpu.memory_space<vmem>>, vector<128x32xf32>
    %cst_14 = arith.constant dense<0.000000e+00> : vector<128x32xf32>
    %21 = tpu.matmul %14, %20, %cst_14 {dimension_numbers = #tpu.dot_dimension_numbers<[1], [0], [0], [1], [0, 0, 1, 1], [], []>} : vector<128x128xf32>, vector<128x32xf32>, vector<128x32xf32> -> vector<128x32xf32>
    %c0_15 = arith.constant 0 : index
    %c0_16 = arith.constant 0 : index
    %22 = vector.load %arg8[%c0_15, %c0_16] : memref<1x32xf32, #tpu.memory_space<vmem>>, vector<1x32xf32>
    %23 = vector.broadcast %22 : vector<1x32xf32> to vector<128x32xf32>
    %24 = arith.addf %21, %23 : vector<128x32xf32>
    %c0_17 = arith.constant 0 : index
    %c0_18 = arith.constant 0 : index
    %25 = vector.load %arg2[%c0_17, %c0_18] : memref<128x32xf32, #tpu.memory_space<vmem>>, vector<128x32xf32>
    %cst_19 = arith.constant 5.000000e-01 : f32
    %26 = vector.broadcast %cst_19 : f32 to vector<128x32xf32>
    %27 = arith.mulf %26, %24 : vector<128x32xf32>
    %28 = math.exp %27 : vector<128x32xf32>
    %29 = arith.mulf %25, %28 : vector<128x32xf32>
    %30 = arith.addf %19, %29 : vector<128x32xf32>
    %c0_20 = arith.constant 0 : index
    %c0_21 = arith.constant 0 : index
    %31 = vector.load %arg11[%c0_20, %c0_21] : memref<128x32xf32, #tpu.memory_space<vmem>>, vector<128x32xf32>
    tpu.vector_store %arg11[%c0_20, %c0_21], %19 {strides = array<i32>} : memref<128x32xf32, #tpu.memory_space<vmem>>, vector<128x32xf32>,
    %c0_22 = arith.constant 0 : index
    %c0_23 = arith.constant 0 : index
    %32 = vector.load %arg12[%c0_22, %c0_23] : memref<128x32xf32, #tpu.memory_space<vmem>>, vector<128x32xf32>
    tpu.vector_store %arg12[%c0_22, %c0_23], %30 {strides = array<i32>} : memref<128x32xf32, #tpu.memory_space<vmem>>, vector<128x32xf32>,
    %c0_24 = arith.constant 0 : index
    %c0_25 = arith.constant 0 : index
    %33 = vector.load %arg13[%c0_24, %c0_25] : memref<128x32xf32, #tpu.memory_space<vmem>>, vector<128x32xf32>
    tpu.vector_store %arg13[%c0_24, %c0_25], %24 {strides = array<i32>} : memref<128x32xf32, #tpu.memory_space<vmem>>, vector<128x32xf32>,
    %34 = tpu.concatenate %19, %30 in 0 : vector<128x32xf32>, vector<128x32xf32> -> vector<256x32xf32>
    %35 = arith.truncf %34 : vector<256x32xf32> to vector<256x32xbf16>
    %c0_26 = arith.constant 0 : index
    %c0_27 = arith.constant 0 : index
    %36 = vector.load %arg9[%c0_26, %c0_27] : memref<32x128xbf16, #tpu.memory_space<vmem>>, vector<32x128xbf16>
    %cst_28 = arith.constant dense<0.000000e+00> : vector<256x128xf32>
    %37 = tpu.matmul %35, %36, %cst_28 {dimension_numbers = #tpu.dot_dimension_numbers<[1], [0], [0], [1], [0, 0, 1, 1], [], []>} : vector<256x32xbf16>, vector<32x128xbf16>, vector<256x128xf32> -> vector<256x128xf32>
    %c0_29 = arith.constant 0 : index
    %c0_30 = arith.constant 0 : index
    %38 = vector.load %arg10[%c0_29, %c0_30] : memref<1x128xf32, #tpu.memory_space<vmem>>, vector<1x128xf32>
    %39 = vector.broadcast %38 : vector<1x128xf32> to vector<256x128xf32>
    %40 = arith.addf %37, %39 : vector<256x128xf32>
    %41 = vector.extract_strided_slice %40 {offsets = [0, 0], sizes = [128, 128], strides = [1, 1]} : vector<256x128xf32> to vector<128x128xf32>
    %42 = vector.extract_strided_slice %40 {offsets = [128, 0], sizes = [128, 128], strides = [1, 1]} : vector<256x128xf32> to vector<128x128xf32>
    %c0_31 = arith.constant 0 : index
    %c0_32 = arith.constant 0 : index
    %c0_33 = arith.constant 0 : index
    %43 = vector.load %arg14[%c0_31, %c0_32, %c0_33] : memref<2x128x128xf32, #tpu.memory_space<vmem>>, vector<1x128x128xf32>
    %44 = vector.shape_cast %43 : vector<1x128x128xf32> to vector<128x128xf32>
    %45 = vector.shape_cast %41 : vector<128x128xf32> to vector<1x128x128xf32>
    tpu.vector_store %arg14[%c0_31, %c0_32, %c0_33], %45 {strides = array<i32>} : memref<2x128x128xf32, #tpu.memory_space<vmem>>, vector<1x128x128xf32>,
    %c1 = arith.constant 1 : index
    %c0_34 = arith.constant 0 : index
    %c0_35 = arith.constant 0 : index
    %46 = vector.load %arg14[%c1, %c0_34, %c0_35] : memref<2x128x128xf32, #tpu.memory_space<vmem>>, vector<1x128x128xf32>
    %47 = vector.shape_cast %46 : vector<1x128x128xf32> to vector<128x128xf32>
    %48 = vector.shape_cast %42 : vector<128x128xf32> to vector<1x128x128xf32>
    tpu.vector_store %arg14[%c1, %c0_34, %c0_35], %48 {strides = array<i32>} : memref<2x128x128xf32, #tpu.memory_space<vmem>>, vector<1x128x128xf32>,
    %c0_36 = arith.constant 0 : index
    %c0_37 = arith.constant 0 : index
    %c0_38 = arith.constant 0 : index
    %49 = vector.load %arg15[%c0_36, %c0_37, %c0_38] : memref<2x1x128xf32, #tpu.memory_space<vmem>>, vector<1x1x128xf32>
    %50 = vector.shape_cast %49 : vector<1x1x128xf32> to vector<1x128xf32>
    %cst_39 = arith.constant dense<0.000000e+00> : vector<128xf32>
    %51 = vector.multi_reduction <add>, %41, %cst_39 [0] : vector<128x128xf32> to vector<128xf32>
    %52 = vector.shape_cast %51 : vector<128xf32> to vector<1x128xf32>
    %53 = arith.addf %50, %52 : vector<1x128xf32>
    %c0_40 = arith.constant 0 : index
    %c0_41 = arith.constant 0 : index
    %c0_42 = arith.constant 0 : index
    %54 = vector.load %arg15[%c0_40, %c0_41, %c0_42] : memref<2x1x128xf32, #tpu.memory_space<vmem>>, vector<1x1x128xf32>
    %55 = vector.shape_cast %54 : vector<1x1x128xf32> to vector<1x128xf32>
    %56 = vector.shape_cast %53 : vector<1x128xf32> to vector<1x1x128xf32>
    tpu.vector_store %arg15[%c0_40, %c0_41, %c0_42], %56 {strides = array<i32>} : memref<2x1x128xf32, #tpu.memory_space<vmem>>, vector<1x1x128xf32>,
    %c1_43 = arith.constant 1 : index
    %c0_44 = arith.constant 0 : index
    %c0_45 = arith.constant 0 : index
    %57 = vector.load %arg15[%c1_43, %c0_44, %c0_45] : memref<2x1x128xf32, #tpu.memory_space<vmem>>, vector<1x1x128xf32>
    %58 = vector.shape_cast %57 : vector<1x1x128xf32> to vector<1x128xf32>
    %cst_46 = arith.constant dense<0.000000e+00> : vector<128xf32>
    %59 = vector.multi_reduction <add>, %42, %cst_46 [0] : vector<128x128xf32> to vector<128xf32>
    %60 = vector.shape_cast %59 : vector<128xf32> to vector<1x128xf32>
    %61 = arith.addf %58, %60 : vector<1x128xf32>
    %c1_47 = arith.constant 1 : index
    %c0_48 = arith.constant 0 : index
    %c0_49 = arith.constant 0 : index
    %62 = vector.load %arg15[%c1_47, %c0_48, %c0_49] : memref<2x1x128xf32, #tpu.memory_space<vmem>>, vector<1x1x128xf32>
    %63 = vector.shape_cast %62 : vector<1x1x128xf32> to vector<1x128xf32>
    %64 = vector.shape_cast %61 : vector<1x128xf32> to vector<1x1x128xf32>
    tpu.vector_store %arg15[%c1_47, %c0_48, %c0_49], %64 {strides = array<i32>} : memref<2x1x128xf32, #tpu.memory_space<vmem>>, vector<1x1x128xf32>,
    %c0_50 = arith.constant 0 : index
    %c0_51 = arith.constant 0 : index
    %c0_52 = arith.constant 0 : index
    %65 = vector.load %arg16[%c0_50, %c0_51, %c0_52] : memref<2x1x128xf32, #tpu.memory_space<vmem>>, vector<1x1x128xf32>
    %66 = vector.shape_cast %65 : vector<1x1x128xf32> to vector<1x128xf32>
    %67 = arith.mulf %41, %41 : vector<128x128xf32>
    %cst_53 = arith.constant dense<0.000000e+00> : vector<128xf32>
    %68 = vector.multi_reduction <add>, %67, %cst_53 [0] : vector<128x128xf32> to vector<128xf32>
    %69 = vector.shape_cast %68 : vector<128xf32> to vector<1x128xf32>
    %70 = arith.addf %66, %69 : vector<1x128xf32>
    %c0_54 = arith.constant 0 : index
    %c0_55 = arith.constant 0 : index
    %c0_56 = arith.constant 0 : index
    %71 = vector.load %arg16[%c0_54, %c0_55, %c0_56] : memref<2x1x128xf32, #tpu.memory_space<vmem>>, vector<1x1x128xf32>
    %72 = vector.shape_cast %71 : vector<1x1x128xf32> to vector<1x128xf32>
    %73 = vector.shape_cast %70 : vector<1x128xf32> to vector<1x1x128xf32>
    tpu.vector_store %arg16[%c0_54, %c0_55, %c0_56], %73 {strides = array<i32>} : memref<2x1x128xf32, #tpu.memory_space<vmem>>, vector<1x1x128xf32>,
    %c1_57 = arith.constant 1 : index
    %c0_58 = arith.constant 0 : index
    %c0_59 = arith.constant 0 : index
    %74 = vector.load %arg16[%c1_57, %c0_58, %c0_59] : memref<2x1x128xf32, #tpu.memory_space<vmem>>, vector<1x1x128xf32>
    %75 = vector.shape_cast %74 : vector<1x1x128xf32> to vector<1x128xf32>
    %76 = arith.mulf %42, %42 : vector<128x128xf32>
    %cst_60 = arith.constant dense<0.000000e+00> : vector<128xf32>
    %77 = vector.multi_reduction <add>, %76, %cst_60 [0] : vector<128x128xf32> to vector<128xf32>
    %78 = vector.shape_cast %77 : vector<128xf32> to vector<1x128xf32>
    %79 = arith.addf %75, %78 : vector<1x128xf32>
    %c1_61 = arith.constant 1 : index
    %c0_62 = arith.constant 0 : index
    %c0_63 = arith.constant 0 : index
    %80 = vector.load %arg16[%c1_61, %c0_62, %c0_63] : memref<2x1x128xf32, #tpu.memory_space<vmem>>, vector<1x1x128xf32>
    %81 = vector.shape_cast %80 : vector<1x1x128xf32> to vector<1x128xf32>
    %82 = vector.shape_cast %79 : vector<1x128xf32> to vector<1x1x128xf32>
    tpu.vector_store %arg16[%c1_61, %c0_62, %c0_63], %82 {strides = array<i32>} : memref<2x1x128xf32, #tpu.memory_space<vmem>>, vector<1x1x128xf32>,
    return
  }
  func.func @transform_0(%arg0: i32) -> (i32, i32) {
    %c0_i32 = arith.constant 0 : i32
    %c0_i32_0 = arith.constant 0 : i32
    return %arg0, %c0_i32 : i32, i32
  }
  func.func @transform_1(%arg0: i32) -> (i32, i32) {
    %c0_i32 = arith.constant 0 : i32
    %c0_i32_0 = arith.constant 0 : i32
    return %arg0, %c0_i32 : i32, i32
  }
  func.func @transform_2(%arg0: i32) -> (i32, i32) {
    %c0_i32 = arith.constant 0 : i32
    %c0_i32_0 = arith.constant 0 : i32
    %c0_i32_1 = arith.constant 0 : i32
    return %c0_i32, %c0_i32_0 : i32, i32
  }
  func.func @transform_3(%arg0: i32) -> (i32, i32) {
    %c0_i32 = arith.constant 0 : i32
    %c0_i32_0 = arith.constant 0 : i32
    %c0_i32_1 = arith.constant 0 : i32
    return %c0_i32, %c0_i32_0 : i32, i32
  }
  func.func @transform_4(%arg0: i32) -> (i32, i32) {
    %c0_i32 = arith.constant 0 : i32
    %c0_i32_0 = arith.constant 0 : i32
    %c0_i32_1 = arith.constant 0 : i32
    return %c0_i32, %c0_i32_0 : i32, i32
  }
  func.func @transform_5(%arg0: i32) -> (i32, i32) {
    %c0_i32 = arith.constant 0 : i32
    %c0_i32_0 = arith.constant 0 : i32
    %c0_i32_1 = arith.constant 0 : i32
    return %c0_i32, %c0_i32_0 : i32, i32
  }
  func.func @transform_6(%arg0: i32) -> (i32, i32) {
    %c0_i32 = arith.constant 0 : i32
    %c0_i32_0 = arith.constant 0 : i32
    %c0_i32_1 = arith.constant 0 : i32
    return %c0_i32, %c0_i32_0 : i32, i32
  }
  func.func @transform_7(%arg0: i32) -> (i32, i32) {
    %c0_i32 = arith.constant 0 : i32
    %c0_i32_0 = arith.constant 0 : i32
    %c0_i32_1 = arith.constant 0 : i32
    return %c0_i32, %c0_i32_0 : i32, i32
  }
  func.func @transform_8(%arg0: i32) -> (i32, i32) {
    %c0_i32 = arith.constant 0 : i32
    %c0_i32_0 = arith.constant 0 : i32
    %c0_i32_1 = arith.constant 0 : i32
    return %c0_i32, %c0_i32_0 : i32, i32
  }
  func.func @transform_9(%arg0: i32) -> (i32, i32) {
    %c0_i32 = arith.constant 0 : i32
    %c0_i32_0 = arith.constant 0 : i32
    %c0_i32_1 = arith.constant 0 : i32
    return %c0_i32, %c0_i32_0 : i32, i32
  }
  func.func @transform_10(%arg0: i32) -> (i32, i32) {
    %c0_i32 = arith.constant 0 : i32
    %c0_i32_0 = arith.constant 0 : i32
    return %arg0, %c0_i32 : i32, i32
  }
  func.func @transform_11(%arg0: i32) -> (i32, i32) {
    %c0_i32 = arith.constant 0 : i32
    %c0_i32_0 = arith.constant 0 : i32
    return %arg0, %c0_i32 : i32, i32
  }
  func.func @transform_12(%arg0: i32) -> (i32, i32) {
    %c0_i32 = arith.constant 0 : i32
    %c0_i32_0 = arith.constant 0 : i32
    return %arg0, %c0_i32 : i32, i32
  }
  func.func @transform_13(%arg0: i32) -> (i32, i32, i32) {
    %c0_i32 = arith.constant 0 : i32
    %c0_i32_0 = arith.constant 0 : i32
    %c0_i32_1 = arith.constant 0 : i32
    return %c0_i32, %arg0, %c0_i32_0 : i32, i32, i32
  }
  func.func @transform_14(%arg0: i32) -> (i32, i32, i32) {
    %c0_i32 = arith.constant 0 : i32
    %c0_i32_0 = arith.constant 0 : i32
    %c0_i32_1 = arith.constant 0 : i32
    %c0_i32_2 = arith.constant 0 : i32
    return %c0_i32, %c0_i32_0, %c0_i32_1 : i32, i32, i32
  }
  func.func @transform_15(%arg0: i32) -> (i32, i32, i32) {
    %c0_i32 = arith.constant 0 : i32
    %c0_i32_0 = arith.constant 0 : i32
    %c0_i32_1 = arith.constant 0 : i32
    %c0_i32_2 = arith.constant 0 : i32
    return %c0_i32, %c0_i32_0, %c0_i32_1 : i32, i32, i32
  }
}

module attributes {stable_mosaic.version = 11 : i64} {
  func.func @_dec2_kernel(%arg0: i32, %arg1: memref<2x128x128xf32, #tpu.memory_space<vmem>>, %arg2: memref<2x1x128xf32, #tpu.memory_space<vmem>>, %arg3: memref<2x1x128xf32, #tpu.memory_space<vmem>>, %arg4: memref<128x256xbf16, #tpu.memory_space<vmem>>, %arg5: memref<1x256xf32, #tpu.memory_space<vmem>>, %arg6: memref<2x128x256xf32, #tpu.memory_space<vmem>>, %arg7: memref<2x1x256xf32, #tpu.memory_space<vmem>>, %arg8: memref<2x1x256xf32, #tpu.memory_space<vmem>>) attributes {dimension_semantics = [#tpu.dimension_semantics<arbitrary>], iteration_bounds = array<i64: 2>, scalar_prefetch = 0 : i64, scratch_operands = 0 : i64, tpu.core_type = #tpu.core_type<tc>, window_params = [{transform_indices = @transform_0, window_bounds = array<i64: 2, 128, 128>}, {pipeline_mode = #tpu.pipeline_mode<synchronous>, transform_indices = @transform_1, window_bounds = array<i64: 2, 1, 128>}, {pipeline_mode = #tpu.pipeline_mode<synchronous>, transform_indices = @transform_2, window_bounds = array<i64: 2, 1, 128>}, {pipeline_mode = #tpu.pipeline_mode<synchronous>, transform_indices = @transform_3, window_bounds = array<i64: 128, 256>}, {pipeline_mode = #tpu.pipeline_mode<synchronous>, transform_indices = @transform_4, window_bounds = array<i64: 1, 256>}, {transform_indices = @transform_5, window_bounds = array<i64: 2, 128, 256>}, {pipeline_mode = #tpu.pipeline_mode<synchronous>, transform_indices = @transform_6, window_bounds = array<i64: 2, 1, 256>}, {pipeline_mode = #tpu.pipeline_mode<synchronous>, transform_indices = @transform_7, window_bounds = array<i64: 2, 1, 256>}]} {
    %c0_i32 = arith.constant 0 : i32
    %0 = arith.cmpi eq, %arg0, %c0_i32 : i32
    %1 = arith.extui %0 : i1 to i32
    %c0_i32_0 = arith.constant 0 : i32
    %2 = arith.cmpi ne, %1, %c0_i32_0 : i32
    scf.if %2 {
      %cst_59 = arith.constant 0.000000e+00 : f32
      %82 = vector.broadcast %cst_59 : f32 to vector<2x1x256xf32>
      %c0_60 = arith.constant 0 : index
      %c0_61 = arith.constant 0 : index
      %c0_62 = arith.constant 0 : index
      %83 = vector.load %arg7[%c0_60, %c0_61, %c0_62] : memref<2x1x256xf32, #tpu.memory_space<vmem>>, vector<2x1x256xf32>
      tpu.vector_store %arg7[%c0_60, %c0_61, %c0_62], %82 {strides = array<i32>} : memref<2x1x256xf32, #tpu.memory_space<vmem>>, vector<2x1x256xf32>,
      %cst_63 = arith.constant 0.000000e+00 : f32
      %84 = vector.broadcast %cst_63 : f32 to vector<2x1x256xf32>
      %c0_64 = arith.constant 0 : index
      %c0_65 = arith.constant 0 : index
      %c0_66 = arith.constant 0 : index
      %85 = vector.load %arg8[%c0_64, %c0_65, %c0_66] : memref<2x1x256xf32, #tpu.memory_space<vmem>>, vector<2x1x256xf32>
      tpu.vector_store %arg8[%c0_64, %c0_65, %c0_66], %84 {strides = array<i32>} : memref<2x1x256xf32, #tpu.memory_space<vmem>>, vector<2x1x256xf32>,
    } else {
    }
    %c0 = arith.constant 0 : index
    %c0_1 = arith.constant 0 : index
    %c0_2 = arith.constant 0 : index
    %3 = vector.load %arg1[%c0, %c0_1, %c0_2] : memref<2x128x128xf32, #tpu.memory_space<vmem>>, vector<1x128x128xf32>
    %4 = vector.shape_cast %3 : vector<1x128x128xf32> to vector<128x128xf32>
    %c0_3 = arith.constant 0 : index
    %c0_4 = arith.constant 0 : index
    %c0_5 = arith.constant 0 : index
    %5 = vector.load %arg2[%c0_3, %c0_4, %c0_5] : memref<2x1x128xf32, #tpu.memory_space<vmem>>, vector<1x1x128xf32>
    %6 = vector.shape_cast %5 : vector<1x1x128xf32> to vector<1x128xf32>
    %7 = vector.broadcast %6 : vector<1x128xf32> to vector<128x128xf32>
    %8 = arith.mulf %4, %7 : vector<128x128xf32>
    %c0_6 = arith.constant 0 : index
    %c0_7 = arith.constant 0 : index
    %c0_8 = arith.constant 0 : index
    %9 = vector.load %arg3[%c0_6, %c0_7, %c0_8] : memref<2x1x128xf32, #tpu.memory_space<vmem>>, vector<1x1x128xf32>
    %10 = vector.shape_cast %9 : vector<1x1x128xf32> to vector<1x128xf32>
    %11 = vector.broadcast %10 : vector<1x128xf32> to vector<128x128xf32>
    %12 = arith.addf %8, %11 : vector<128x128xf32>
    %cst = arith.constant 0.000000e+00 : f32
    %13 = vector.broadcast %cst : f32 to vector<128x128xf32>
    %14 = arith.cmpf ogt, %12, %13 : vector<128x128xf32>
    %cst_9 = arith.constant 1.000000e-01 : f32
    %15 = vector.broadcast %cst_9 : f32 to vector<128x128xf32>
    %16 = arith.mulf %15, %12 : vector<128x128xf32>
    %17 = arith.select %14, %12, %16 : vector<128x128xi1>, vector<128x128xf32>
    %c1 = arith.constant 1 : index
    %c0_10 = arith.constant 0 : index
    %c0_11 = arith.constant 0 : index
    %18 = vector.load %arg1[%c1, %c0_10, %c0_11] : memref<2x128x128xf32, #tpu.memory_space<vmem>>, vector<1x128x128xf32>
    %19 = vector.shape_cast %18 : vector<1x128x128xf32> to vector<128x128xf32>
    %c1_12 = arith.constant 1 : index
    %c0_13 = arith.constant 0 : index
    %c0_14 = arith.constant 0 : index
    %20 = vector.load %arg2[%c1_12, %c0_13, %c0_14] : memref<2x1x128xf32, #tpu.memory_space<vmem>>, vector<1x1x128xf32>
    %21 = vector.shape_cast %20 : vector<1x1x128xf32> to vector<1x128xf32>
    %22 = vector.broadcast %21 : vector<1x128xf32> to vector<128x128xf32>
    %23 = arith.mulf %19, %22 : vector<128x128xf32>
    %c1_15 = arith.constant 1 : index
    %c0_16 = arith.constant 0 : index
    %c0_17 = arith.constant 0 : index
    %24 = vector.load %arg3[%c1_15, %c0_16, %c0_17] : memref<2x1x128xf32, #tpu.memory_space<vmem>>, vector<1x1x128xf32>
    %25 = vector.shape_cast %24 : vector<1x1x128xf32> to vector<1x128xf32>
    %26 = vector.broadcast %25 : vector<1x128xf32> to vector<128x128xf32>
    %27 = arith.addf %23, %26 : vector<128x128xf32>
    %cst_18 = arith.constant 0.000000e+00 : f32
    %28 = vector.broadcast %cst_18 : f32 to vector<128x128xf32>
    %29 = arith.cmpf ogt, %27, %28 : vector<128x128xf32>
    %cst_19 = arith.constant 1.000000e-01 : f32
    %30 = vector.broadcast %cst_19 : f32 to vector<128x128xf32>
    %31 = arith.mulf %30, %27 : vector<128x128xf32>
    %32 = arith.select %29, %27, %31 : vector<128x128xi1>, vector<128x128xf32>
    %33 = tpu.concatenate %17, %32 in 0 : vector<128x128xf32>, vector<128x128xf32> -> vector<256x128xf32>
    %34 = arith.truncf %33 : vector<256x128xf32> to vector<256x128xbf16>
    %c0_20 = arith.constant 0 : index
    %c0_21 = arith.constant 0 : index
    %35 = vector.load %arg4[%c0_20, %c0_21] : memref<128x256xbf16, #tpu.memory_space<vmem>>, vector<128x256xbf16>
    %cst_22 = arith.constant dense<0.000000e+00> : vector<256x256xf32>
    %36 = tpu.matmul %34, %35, %cst_22 {dimension_numbers = #tpu.dot_dimension_numbers<[1], [0], [0], [1], [0, 0, 1, 1], [], []>} : vector<256x128xbf16>, vector<128x256xbf16>, vector<256x256xf32> -> vector<256x256xf32>
    %c0_23 = arith.constant 0 : index
    %c0_24 = arith.constant 0 : index
    %37 = vector.load %arg5[%c0_23, %c0_24] : memref<1x256xf32, #tpu.memory_space<vmem>>, vector<1x256xf32>
    %38 = vector.broadcast %37 : vector<1x256xf32> to vector<256x256xf32>
    %39 = arith.addf %36, %38 : vector<256x256xf32>
    %40 = vector.extract_strided_slice %39 {offsets = [0, 0], sizes = [128, 256], strides = [1, 1]} : vector<256x256xf32> to vector<128x256xf32>
    %41 = vector.extract_strided_slice %39 {offsets = [128, 0], sizes = [128, 256], strides = [1, 1]} : vector<256x256xf32> to vector<128x256xf32>
    %c0_25 = arith.constant 0 : index
    %c0_26 = arith.constant 0 : index
    %c0_27 = arith.constant 0 : index
    %42 = vector.load %arg6[%c0_25, %c0_26, %c0_27] : memref<2x128x256xf32, #tpu.memory_space<vmem>>, vector<1x128x256xf32>
    %43 = vector.shape_cast %42 : vector<1x128x256xf32> to vector<128x256xf32>
    %44 = vector.shape_cast %40 : vector<128x256xf32> to vector<1x128x256xf32>
    tpu.vector_store %arg6[%c0_25, %c0_26, %c0_27], %44 {strides = array<i32>} : memref<2x128x256xf32, #tpu.memory_space<vmem>>, vector<1x128x256xf32>,
    %c1_28 = arith.constant 1 : index
    %c0_29 = arith.constant 0 : index
    %c0_30 = arith.constant 0 : index
    %45 = vector.load %arg6[%c1_28, %c0_29, %c0_30] : memref<2x128x256xf32, #tpu.memory_space<vmem>>, vector<1x128x256xf32>
    %46 = vector.shape_cast %45 : vector<1x128x256xf32> to vector<128x256xf32>
    %47 = vector.shape_cast %41 : vector<128x256xf32> to vector<1x128x256xf32>
    tpu.vector_store %arg6[%c1_28, %c0_29, %c0_30], %47 {strides = array<i32>} : memref<2x128x256xf32, #tpu.memory_space<vmem>>, vector<1x128x256xf32>,
    %c0_31 = arith.constant 0 : index
    %c0_32 = arith.constant 0 : index
    %c0_33 = arith.constant 0 : index
    %48 = vector.load %arg7[%c0_31, %c0_32, %c0_33] : memref<2x1x256xf32, #tpu.memory_space<vmem>>, vector<1x1x256xf32>
    %49 = vector.shape_cast %48 : vector<1x1x256xf32> to vector<1x256xf32>
    %cst_34 = arith.constant dense<0.000000e+00> : vector<256xf32>
    %50 = vector.multi_reduction <add>, %40, %cst_34 [0] : vector<128x256xf32> to vector<256xf32>
    %51 = vector.shape_cast %50 : vector<256xf32> to vector<1x256xf32>
    %52 = arith.addf %49, %51 : vector<1x256xf32>
    %c0_35 = arith.constant 0 : index
    %c0_36 = arith.constant 0 : index
    %c0_37 = arith.constant 0 : index
    %53 = vector.load %arg7[%c0_35, %c0_36, %c0_37] : memref<2x1x256xf32, #tpu.memory_space<vmem>>, vector<1x1x256xf32>
    %54 = vector.shape_cast %53 : vector<1x1x256xf32> to vector<1x256xf32>
    %55 = vector.shape_cast %52 : vector<1x256xf32> to vector<1x1x256xf32>
    tpu.vector_store %arg7[%c0_35, %c0_36, %c0_37], %55 {strides = array<i32>} : memref<2x1x256xf32, #tpu.memory_space<vmem>>, vector<1x1x256xf32>,
    %c1_38 = arith.constant 1 : index
    %c0_39 = arith.constant 0 : index
    %c0_40 = arith.constant 0 : index
    %56 = vector.load %arg7[%c1_38, %c0_39, %c0_40] : memref<2x1x256xf32, #tpu.memory_space<vmem>>, vector<1x1x256xf32>
    %57 = vector.shape_cast %56 : vector<1x1x256xf32> to vector<1x256xf32>
    %cst_41 = arith.constant dense<0.000000e+00> : vector<256xf32>
    %58 = vector.multi_reduction <add>, %41, %cst_41 [0] : vector<128x256xf32> to vector<256xf32>
    %59 = vector.shape_cast %58 : vector<256xf32> to vector<1x256xf32>
    %60 = arith.addf %57, %59 : vector<1x256xf32>
    %c1_42 = arith.constant 1 : index
    %c0_43 = arith.constant 0 : index
    %c0_44 = arith.constant 0 : index
    %61 = vector.load %arg7[%c1_42, %c0_43, %c0_44] : memref<2x1x256xf32, #tpu.memory_space<vmem>>, vector<1x1x256xf32>
    %62 = vector.shape_cast %61 : vector<1x1x256xf32> to vector<1x256xf32>
    %63 = vector.shape_cast %60 : vector<1x256xf32> to vector<1x1x256xf32>
    tpu.vector_store %arg7[%c1_42, %c0_43, %c0_44], %63 {strides = array<i32>} : memref<2x1x256xf32, #tpu.memory_space<vmem>>, vector<1x1x256xf32>,
    %c0_45 = arith.constant 0 : index
    %c0_46 = arith.constant 0 : index
    %c0_47 = arith.constant 0 : index
    %64 = vector.load %arg8[%c0_45, %c0_46, %c0_47] : memref<2x1x256xf32, #tpu.memory_space<vmem>>, vector<1x1x256xf32>
    %65 = vector.shape_cast %64 : vector<1x1x256xf32> to vector<1x256xf32>
    %66 = arith.mulf %40, %40 : vector<128x256xf32>
    %cst_48 = arith.constant dense<0.000000e+00> : vector<256xf32>
    %67 = vector.multi_reduction <add>, %66, %cst_48 [0] : vector<128x256xf32> to vector<256xf32>
    %68 = vector.shape_cast %67 : vector<256xf32> to vector<1x256xf32>
    %69 = arith.addf %65, %68 : vector<1x256xf32>
    %c0_49 = arith.constant 0 : index
    %c0_50 = arith.constant 0 : index
    %c0_51 = arith.constant 0 : index
    %70 = vector.load %arg8[%c0_49, %c0_50, %c0_51] : memref<2x1x256xf32, #tpu.memory_space<vmem>>, vector<1x1x256xf32>
    %71 = vector.shape_cast %70 : vector<1x1x256xf32> to vector<1x256xf32>
    %72 = vector.shape_cast %69 : vector<1x256xf32> to vector<1x1x256xf32>
    tpu.vector_store %arg8[%c0_49, %c0_50, %c0_51], %72 {strides = array<i32>} : memref<2x1x256xf32, #tpu.memory_space<vmem>>, vector<1x1x256xf32>,
    %c1_52 = arith.constant 1 : index
    %c0_53 = arith.constant 0 : index
    %c0_54 = arith.constant 0 : index
    %73 = vector.load %arg8[%c1_52, %c0_53, %c0_54] : memref<2x1x256xf32, #tpu.memory_space<vmem>>, vector<1x1x256xf32>
    %74 = vector.shape_cast %73 : vector<1x1x256xf32> to vector<1x256xf32>
    %75 = arith.mulf %41, %41 : vector<128x256xf32>
    %cst_55 = arith.constant dense<0.000000e+00> : vector<256xf32>
    %76 = vector.multi_reduction <add>, %75, %cst_55 [0] : vector<128x256xf32> to vector<256xf32>
    %77 = vector.shape_cast %76 : vector<256xf32> to vector<1x256xf32>
    %78 = arith.addf %74, %77 : vector<1x256xf32>
    %c1_56 = arith.constant 1 : index
    %c0_57 = arith.constant 0 : index
    %c0_58 = arith.constant 0 : index
    %79 = vector.load %arg8[%c1_56, %c0_57, %c0_58] : memref<2x1x256xf32, #tpu.memory_space<vmem>>, vector<1x1x256xf32>
    %80 = vector.shape_cast %79 : vector<1x1x256xf32> to vector<1x256xf32>
    %81 = vector.shape_cast %78 : vector<1x256xf32> to vector<1x1x256xf32>
    tpu.vector_store %arg8[%c1_56, %c0_57, %c0_58], %81 {strides = array<i32>} : memref<2x1x256xf32, #tpu.memory_space<vmem>>, vector<1x1x256xf32>,
    return
  }
  func.func @transform_0(%arg0: i32) -> (i32, i32, i32) {
    %c0_i32 = arith.constant 0 : i32
    %c0_i32_0 = arith.constant 0 : i32
    %c0_i32_1 = arith.constant 0 : i32
    return %c0_i32, %arg0, %c0_i32_0 : i32, i32, i32
  }
  func.func @transform_1(%arg0: i32) -> (i32, i32, i32) {
    %c0_i32 = arith.constant 0 : i32
    %c0_i32_0 = arith.constant 0 : i32
    %c0_i32_1 = arith.constant 0 : i32
    %c0_i32_2 = arith.constant 0 : i32
    return %c0_i32, %c0_i32_0, %c0_i32_1 : i32, i32, i32
  }
  func.func @transform_2(%arg0: i32) -> (i32, i32, i32) {
    %c0_i32 = arith.constant 0 : i32
    %c0_i32_0 = arith.constant 0 : i32
    %c0_i32_1 = arith.constant 0 : i32
    %c0_i32_2 = arith.constant 0 : i32
    return %c0_i32, %c0_i32_0, %c0_i32_1 : i32, i32, i32
  }
  func.func @transform_3(%arg0: i32) -> (i32, i32) {
    %c0_i32 = arith.constant 0 : i32
    %c0_i32_0 = arith.constant 0 : i32
    %c0_i32_1 = arith.constant 0 : i32
    return %c0_i32, %c0_i32_0 : i32, i32
  }
  func.func @transform_4(%arg0: i32) -> (i32, i32) {
    %c0_i32 = arith.constant 0 : i32
    %c0_i32_0 = arith.constant 0 : i32
    %c0_i32_1 = arith.constant 0 : i32
    return %c0_i32, %c0_i32_0 : i32, i32
  }
  func.func @transform_5(%arg0: i32) -> (i32, i32, i32) {
    %c0_i32 = arith.constant 0 : i32
    %c0_i32_0 = arith.constant 0 : i32
    %c0_i32_1 = arith.constant 0 : i32
    return %c0_i32, %arg0, %c0_i32_0 : i32, i32, i32
  }
  func.func @transform_6(%arg0: i32) -> (i32, i32, i32) {
    %c0_i32 = arith.constant 0 : i32
    %c0_i32_0 = arith.constant 0 : i32
    %c0_i32_1 = arith.constant 0 : i32
    %c0_i32_2 = arith.constant 0 : i32
    return %c0_i32, %c0_i32_0, %c0_i32_1 : i32, i32, i32
  }
  func.func @transform_7(%arg0: i32) -> (i32, i32, i32) {
    %c0_i32 = arith.constant 0 : i32
    %c0_i32_0 = arith.constant 0 : i32
    %c0_i32_1 = arith.constant 0 : i32
    %c0_i32_2 = arith.constant 0 : i32
    return %c0_i32, %c0_i32_0, %c0_i32_1 : i32, i32, i32
  }
}

module attributes {stable_mosaic.version = 11 : i64} {
  func.func @_recon_kernel(%arg0: i32, %arg1: memref<2x128x256xf32, #tpu.memory_space<vmem>>, %arg2: memref<2x1x256xf32, #tpu.memory_space<vmem>>, %arg3: memref<2x1x256xf32, #tpu.memory_space<vmem>>, %arg4: memref<256x256xbf16, #tpu.memory_space<vmem>>, %arg5: memref<1x256xf32, #tpu.memory_space<vmem>>, %arg6: memref<128x256xf32, #tpu.memory_space<vmem>>, %arg7: memref<128x256xf32, #tpu.memory_space<vmem>>) attributes {dimension_semantics = [#tpu.dimension_semantics<parallel>], iteration_bounds = array<i64: 2>, scalar_prefetch = 0 : i64, scratch_operands = 0 : i64, tpu.core_type = #tpu.core_type<tc>, window_params = [{transform_indices = @transform_0, window_bounds = array<i64: 2, 128, 256>}, {pipeline_mode = #tpu.pipeline_mode<synchronous>, transform_indices = @transform_1, window_bounds = array<i64: 2, 1, 256>}, {pipeline_mode = #tpu.pipeline_mode<synchronous>, transform_indices = @transform_2, window_bounds = array<i64: 2, 1, 256>}, {pipeline_mode = #tpu.pipeline_mode<synchronous>, transform_indices = @transform_3, window_bounds = array<i64: 256, 256>}, {pipeline_mode = #tpu.pipeline_mode<synchronous>, transform_indices = @transform_4, window_bounds = array<i64: 1, 256>}, {transform_indices = @transform_5, window_bounds = array<i64: 128, 256>}, {transform_indices = @transform_6, window_bounds = array<i64: 128, 256>}]} {
    %c0 = arith.constant 0 : index
    %c0_0 = arith.constant 0 : index
    %c0_1 = arith.constant 0 : index
    %0 = vector.load %arg1[%c0, %c0_0, %c0_1] : memref<2x128x256xf32, #tpu.memory_space<vmem>>, vector<1x128x256xf32>
    %1 = vector.shape_cast %0 : vector<1x128x256xf32> to vector<128x256xf32>
    %c0_2 = arith.constant 0 : index
    %c0_3 = arith.constant 0 : index
    %c0_4 = arith.constant 0 : index
    %2 = vector.load %arg2[%c0_2, %c0_3, %c0_4] : memref<2x1x256xf32, #tpu.memory_space<vmem>>, vector<1x1x256xf32>
    %3 = vector.shape_cast %2 : vector<1x1x256xf32> to vector<1x256xf32>
    %4 = vector.broadcast %3 : vector<1x256xf32> to vector<128x256xf32>
    %5 = arith.mulf %1, %4 : vector<128x256xf32>
    %c0_5 = arith.constant 0 : index
    %c0_6 = arith.constant 0 : index
    %c0_7 = arith.constant 0 : index
    %6 = vector.load %arg3[%c0_5, %c0_6, %c0_7] : memref<2x1x256xf32, #tpu.memory_space<vmem>>, vector<1x1x256xf32>
    %7 = vector.shape_cast %6 : vector<1x1x256xf32> to vector<1x256xf32>
    %8 = vector.broadcast %7 : vector<1x256xf32> to vector<128x256xf32>
    %9 = arith.addf %5, %8 : vector<128x256xf32>
    %cst = arith.constant 0.000000e+00 : f32
    %10 = vector.broadcast %cst : f32 to vector<128x256xf32>
    %11 = arith.cmpf ogt, %9, %10 : vector<128x256xf32>
    %cst_8 = arith.constant 1.000000e-01 : f32
    %12 = vector.broadcast %cst_8 : f32 to vector<128x256xf32>
    %13 = arith.mulf %12, %9 : vector<128x256xf32>
    %14 = arith.select %11, %9, %13 : vector<128x256xi1>, vector<128x256xf32>
    %c1 = arith.constant 1 : index
    %c0_9 = arith.constant 0 : index
    %c0_10 = arith.constant 0 : index
    %15 = vector.load %arg1[%c1, %c0_9, %c0_10] : memref<2x128x256xf32, #tpu.memory_space<vmem>>, vector<1x128x256xf32>
    %16 = vector.shape_cast %15 : vector<1x128x256xf32> to vector<128x256xf32>
    %c1_11 = arith.constant 1 : index
    %c0_12 = arith.constant 0 : index
    %c0_13 = arith.constant 0 : index
    %17 = vector.load %arg2[%c1_11, %c0_12, %c0_13] : memref<2x1x256xf32, #tpu.memory_space<vmem>>, vector<1x1x256xf32>
    %18 = vector.shape_cast %17 : vector<1x1x256xf32> to vector<1x256xf32>
    %19 = vector.broadcast %18 : vector<1x256xf32> to vector<128x256xf32>
    %20 = arith.mulf %16, %19 : vector<128x256xf32>
    %c1_14 = arith.constant 1 : index
    %c0_15 = arith.constant 0 : index
    %c0_16 = arith.constant 0 : index
    %21 = vector.load %arg3[%c1_14, %c0_15, %c0_16] : memref<2x1x256xf32, #tpu.memory_space<vmem>>, vector<1x1x256xf32>
    %22 = vector.shape_cast %21 : vector<1x1x256xf32> to vector<1x256xf32>
    %23 = vector.broadcast %22 : vector<1x256xf32> to vector<128x256xf32>
    %24 = arith.addf %20, %23 : vector<128x256xf32>
    %cst_17 = arith.constant 0.000000e+00 : f32
    %25 = vector.broadcast %cst_17 : f32 to vector<128x256xf32>
    %26 = arith.cmpf ogt, %24, %25 : vector<128x256xf32>
    %cst_18 = arith.constant 1.000000e-01 : f32
    %27 = vector.broadcast %cst_18 : f32 to vector<128x256xf32>
    %28 = arith.mulf %27, %24 : vector<128x256xf32>
    %29 = arith.select %26, %24, %28 : vector<128x256xi1>, vector<128x256xf32>
    %30 = tpu.concatenate %14, %29 in 0 : vector<128x256xf32>, vector<128x256xf32> -> vector<256x256xf32>
    %31 = arith.truncf %30 : vector<256x256xf32> to vector<256x256xbf16>
    %c0_19 = arith.constant 0 : index
    %c0_20 = arith.constant 0 : index
    %32 = vector.load %arg4[%c0_19, %c0_20] : memref<256x256xbf16, #tpu.memory_space<vmem>>, vector<256x256xbf16>
    %cst_21 = arith.constant dense<0.000000e+00> : vector<256x256xf32>
    %33 = tpu.matmul %31, %32, %cst_21 {dimension_numbers = #tpu.dot_dimension_numbers<[1], [0], [0], [1], [0, 0, 1, 1], [], []>} : vector<256x256xbf16>, vector<256x256xbf16>, vector<256x256xf32> -> vector<256x256xf32>
    %c0_22 = arith.constant 0 : index
    %c0_23 = arith.constant 0 : index
    %34 = vector.load %arg5[%c0_22, %c0_23] : memref<1x256xf32, #tpu.memory_space<vmem>>, vector<1x256xf32>
    %35 = vector.broadcast %34 : vector<1x256xf32> to vector<256x256xf32>
    %36 = arith.addf %33, %35 : vector<256x256xf32>
    %37 = vector.extract_strided_slice %36 {offsets = [0, 0], sizes = [128, 256], strides = [1, 1]} : vector<256x256xf32> to vector<128x256xf32>
    %c0_24 = arith.constant 0 : index
    %c0_25 = arith.constant 0 : index
    %38 = vector.load %arg7[%c0_24, %c0_25] : memref<128x256xf32, #tpu.memory_space<vmem>>, vector<128x256xf32>
    tpu.vector_store %arg7[%c0_24, %c0_25], %37 {strides = array<i32>} : memref<128x256xf32, #tpu.memory_space<vmem>>, vector<128x256xf32>,
    %39 = vector.extract_strided_slice %36 {offsets = [128, 0], sizes = [128, 256], strides = [1, 1]} : vector<256x256xf32> to vector<128x256xf32>
    %c0_26 = arith.constant 0 : index
    %c0_27 = arith.constant 0 : index
    %40 = vector.load %arg6[%c0_26, %c0_27] : memref<128x256xf32, #tpu.memory_space<vmem>>, vector<128x256xf32>
    tpu.vector_store %arg6[%c0_26, %c0_27], %39 {strides = array<i32>} : memref<128x256xf32, #tpu.memory_space<vmem>>, vector<128x256xf32>,
    return
  }
  func.func @transform_0(%arg0: i32) -> (i32, i32, i32) {
    %c0_i32 = arith.constant 0 : i32
    %c0_i32_0 = arith.constant 0 : i32
    %c0_i32_1 = arith.constant 0 : i32
    return %c0_i32, %arg0, %c0_i32_0 : i32, i32, i32
  }
  func.func @transform_1(%arg0: i32) -> (i32, i32, i32) {
    %c0_i32 = arith.constant 0 : i32
    %c0_i32_0 = arith.constant 0 : i32
    %c0_i32_1 = arith.constant 0 : i32
    %c0_i32_2 = arith.constant 0 : i32
    return %c0_i32, %c0_i32_0, %c0_i32_1 : i32, i32, i32
  }
  func.func @transform_2(%arg0: i32) -> (i32, i32, i32) {
    %c0_i32 = arith.constant 0 : i32
    %c0_i32_0 = arith.constant 0 : i32
    %c0_i32_1 = arith.constant 0 : i32
    %c0_i32_2 = arith.constant 0 : i32
    return %c0_i32, %c0_i32_0, %c0_i32_1 : i32, i32, i32
  }
  func.func @transform_3(%arg0: i32) -> (i32, i32) {
    %c0_i32 = arith.constant 0 : i32
    %c0_i32_0 = arith.constant 0 : i32
    %c0_i32_1 = arith.constant 0 : i32
    return %c0_i32, %c0_i32_0 : i32, i32
  }
  func.func @transform_4(%arg0: i32) -> (i32, i32) {
    %c0_i32 = arith.constant 0 : i32
    %c0_i32_0 = arith.constant 0 : i32
    %c0_i32_1 = arith.constant 0 : i32
    return %c0_i32, %c0_i32_0 : i32, i32
  }
  func.func @transform_5(%arg0: i32) -> (i32, i32) {
    %c0_i32 = arith.constant 0 : i32
    %c0_i32_0 = arith.constant 0 : i32
    return %arg0, %c0_i32 : i32, i32
  }
  func.func @transform_6(%arg0: i32) -> (i32, i32) {
    %c0_i32 = arith.constant 0 : i32
    %c0_i32_0 = arith.constant 0 : i32
    return %arg0, %c0_i32 : i32, i32
  }
}

</mosaic_0001>

<llo_original>
// kernel: dualvae_forward.5
$region0: #{dualvae_forward.5}
  #allocation0 [shape = 'u32[]', space=smem, size = 0x4, offset = 0x4, fixed_abs, tag = 'smem constant byte address 0x4 - core index']
  #allocation1 [shape = 'u32[72,128]{1,0:T(1,128)}', space=vmem, size = 0x9000, scoped, tag = 'internal scratch']
  %s0 = inlined_call_operand.vmem [shape: bf16[256,256], index: 0, kind: input, shape index: {}]
  %s1 = inlined_call_operand.vmem [shape: bf16[256,256], index: 1, kind: input, shape index: {}]
  %s2 = inlined_call_operand.vmem [shape: f32[1,256], index: 2, kind: input, shape index: {}]
  %s3 = inlined_call_operand.vmem [shape: f32[256,256], index: 3, kind: output, shape index: {0}]
  %s4 = inlined_call_operand.vmem [shape: f32[1,256], index: 4, kind: output, shape index: {1}]
  %s5 = inlined_call_operand.vmem [shape: f32[1,256], index: 5, kind: output, shape index: {2}]
  %6 = xla_tuple %s3, %s4, %s5
  %s7 = sld [smem:[#allocation0]]
  $region65: #{dualvae_forward.5} parent=0
    _
  %s9 = ssub.s32 1, %s7
  %s10 = scalar_select 0, %s9, %s7
  loop: start=0, step=1, limit=4
  $region2: #{dualvae_forward.5} parent=0 // loop_pre_header
    _
  $region3: #{dualvae_forward.5} parent=0 // loop_header
    %s12 = sphi 0, %s16
    %p13 = scmp.ge.s32.totalorder %s12, 4
    %s22 = sphi 0, %s24
    %s25 = sphi 0, %s22
    %s26 = sphi 0, %s25
    %s42 = sphi 0, %s26
    %s46 = sphi 0, %s46
    %s48 = sphi 0, %s46
    %s49 = sphi 0, %s48
    %s63 = sphi 0, %s49
    %s67 = sphi 0, %s67
    %s69 = sphi 0, %s67
    %s70 = sphi 0, %s69
    %s84 = sphi 0, %s70
    %s90 = sphi 0, %s92
    %s93 = sphi 0, %s90
    %s94 = sphi 0, %s93
    %s110 = sphi 0, %s94
    %s114 = sphi 0, %s114
    %s116 = sphi 0, %s114
    %s117 = sphi 0, %s116
    %s131 = sphi 0, %s117
    %s135 = sphi 0, %s135
    %s137 = sphi 0, %s135
    %s138 = sphi 0, %s137
    %s152 = sphi 0, %s138
  $region4: #{dualvae_forward.5} parent=0 // loop_header_branch
    %15 = sbr.rel (%p13) target = $region8
  $region5: #{dualvae_forward.5} parent=0 // loop_body
    %s17 = ssub.s32 %s12, 1
    %s18 = ssub.s32 %s12, 2
    %s19 = sadd.s32 %s12, 1
    %s20 = ssub.s32 %s12, %s19
    %p21 = scmp.eq.s32.totalorder %s20, 0
    %s23 = sadd.s32 %s22, 1
    %s24 = scalar_select %p21, %s22, %s23
    %p27 = pneg %p21
    %p28 = scmp.eq.s32.totalorder %s12, 1
    %p29 = por %p27, %p28
    %p30 = scmp.ne.s32.totalorder %s22, %s25
    %p31 = scmp.eq.s32.totalorder %s12, 0
    %p32 = por %p30, %p31
    %p33 = scmp.ne.s32.totalorder %s22, %s25
    %p34 = scmp.eq.s32.totalorder %s17, 1
    %p35 = por %p33, %p34
    %p36 = scmp.ne.s32.totalorder %s25, %s26
    %p37 = scmp.eq.s32.totalorder %s17, 0
    %p38 = por %p36, %p37
    %p39 = scmp.ne.s32.totalorder %s25, %s26
    %p40 = scmp.eq.s32.totalorder %s18, 1
    %p41 = por %p39, %p40
    %p43 = scmp.ne.s32.totalorder %s26, %s42
    %p44 = scmp.eq.s32.totalorder %s18, 0
    %p45 = por %p43, %p44
    %s47 = sadd.s32 %s46, 1
    %p50 = scmp.eq.s32.totalorder %s12, 1
    %p51 = scmp.ne.s32.totalorder %s46, %s48
    %p52 = scmp.eq.s32.totalorder %s12, 0
    %p53 = por %p51, %p52
    %p54 = scmp.ne.s32.totalorder %s46, %s48
    %p55 = scmp.eq.s32.totalorder %s17, 1
    %p56 = por %p54, %p55
    %p57 = scmp.ne.s32.totalorder %s48, %s49
    %p58 = scmp.eq.s32.totalorder %s17, 0
    %p59 = por %p57, %p58
    %p60 = scmp.ne.s32.totalorder %s48, %s49
    %p61 = scmp.eq.s32.totalorder %s18, 1
    %p62 = por %p60, %p61
    %p64 = scmp.ne.s32.totalorder %s49, %s63
    %p65 = scmp.eq.s32.totalorder %s18, 0
    %p66 = por %p64, %p65
    %s68 = sadd.s32 %s67, 1
    %p71 = scmp.eq.s32.totalorder %s12, 1
    %p72 = scmp.ne.s32.totalorder %s67, %s69
    %p73 = scmp.eq.s32.totalorder %s12, 0
    %p74 = por %p72, %p73
    %p75 = scmp.ne.s32.totalorder %s67, %s69
    %p76 = scmp.eq.s32.totalorder %s17, 1
    %p77 = por %p75, %p76
    %p78 = scmp.ne.s32.totalorder %s69, %s70
    %p79 = scmp.eq.s32.totalorder %s17, 0
    %p80 = por %p78, %p79
    %p81 = scmp.ne.s32.totalorder %s69, %s70
    %p82 = scmp.eq.s32.totalorder %s18, 1
    %p83 = por %p81, %p82
    %p85 = scmp.ne.s32.totalorder %s70, %s84
    %p86 = scmp.eq.s32.totalorder %s18, 0
    %p87 = por %p85, %p86
    %s88 = ssub.s32 %s12, %s19
    %p89 = scmp.eq.s32.totalorder %s88, 0
    %s91 = sadd.s32 %s90, 1
    %s92 = scalar_select %p89, %s90, %s91
    %p95 = pneg %p89
    %p96 = scmp.eq.s32.totalorder %s12, 1
    %p97 = por %p95, %p96
    %p98 = scmp.ne.s32.totalorder %s90, %s93
    %p99 = scmp.eq.s32.totalorder %s12, 0
    %p100 = por %p98, %p99
    %p101 = scmp.ne.s32.totalorder %s90, %s93
    %p102 = scmp.eq.s32.totalorder %s17, 1
    %p103 = por %p101, %p102
    %p104 = scmp.ne.s32.totalorder %s93, %s94
    %p105 = scmp.eq.s32.totalorder %s17, 0
    %p106 = por %p104, %p105
    %p107 = scmp.ne.s32.totalorder %s93, %s94
    %p108 = scmp.eq.s32.totalorder %s18, 1
    %p109 = por %p107, %p108
    %p111 = scmp.ne.s32.totalorder %s94, %s110
    %p112 = scmp.eq.s32.totalorder %s18, 0
    %p113 = por %p111, %p112
    %s115 = sadd.s32 %s114, 1
    %p118 = scmp.eq.s32.totalorder %s12, 1
    %p119 = scmp.ne.s32.totalorder %s114, %s116
    %p120 = scmp.eq.s32.totalorder %s12, 0
    %p121 = por %p119, %p120
    %p122 = scmp.ne.s32.totalorder %s114, %s116
    %p123 = scmp.eq.s32.totalorder %s17, 1
    %p124 = por %p122, %p123
    %p125 = scmp.ne.s32.totalorder %s116, %s117
    %p126 = scmp.eq.s32.totalorder %s17, 0
    %p127 = por %p125, %p126
    %p128 = scmp.ne.s32.totalorder %s116, %s117
    %p129 = scmp.eq.s32.totalorder %s18, 1
    %p130 = por %p128, %p129
    %p132 = scmp.ne.s32.totalorder %s117, %s131
    %p133 = scmp.eq.s32.totalorder %s18, 0
    %p134 = por %p132, %p133
    %s136 = sadd.s32 %s135, 1
    %p139 = scmp.eq.s32.totalorder %s12, 1
    %p140 = scmp.ne.s32.totalorder %s135, %s137
    %p141 = scmp.eq.s32.totalorder %s12, 0
    %p142 = por %p140, %p141
    %p143 = scmp.ne.s32.totalorder %s135, %s137
    %p144 = scmp.eq.s32.totalorder %s17, 1
    %p145 = por %p143, %p144
    %p146 = scmp.ne.s32.totalorder %s137, %s138
    %p147 = scmp.eq.s32.totalorder %s17, 0
    %p148 = por %p146, %p147
    %p149 = scmp.ne.s32.totalorder %s137, %s138
    %p150 = scmp.eq.s32.totalorder %s18, 1
    %p151 = por %p149, %p150
    %p153 = scmp.ne.s32.totalorder %s138, %s152
    %p154 = scmp.eq.s32.totalorder %s18, 0
    %p155 = por %p153, %p154
    %p156 = scmp.le.s32.totalorder 1, %s12
    %p157 = scmp.lt.s32.totalorder %s12, 3
    %p158 = pnand %p156, %p157
    %p159 = pneg %p158
    // Predicated region
    $region9: #{dualvae_forward.5} parent=5 // pred_check
      _
    $region10: #{dualvae_forward.5} parent=5 // pred_check_branch
      %161 = sbr.rel (%p158) target = $region12
    $region11: #{dualvae_forward.5} parent=5 // pred_region
      %s162 = ssub.s32 %s12, 1
      // Predicated region
      $region13: #{dualvae_forward.5} parent=11 // pred_check
        %p163 = pneg %p59
      $region14: #{dualvae_forward.5} parent=11 // pred_check_branch
        %165 = sbr.rel (%p163) target = $region16
      $region15: #{dualvae_forward.5} parent=11 // pred_region
        _
      $region16: #{dualvae_forward.5} parent=11 // pred_fallthru
        _
      // Predicated region
      $region17: #{dualvae_forward.5} parent=11 // pred_check
        %p166 = pneg %p80
      $region18: #{dualvae_forward.5} parent=11 // pred_check_branch
        %168 = sbr.rel (%p166) target = $region20
      $region19: #{dualvae_forward.5} parent=11 // pred_region
        _
      $region20: #{dualvae_forward.5} parent=11 // pred_fallthru
        _
    $region12: #{dualvae_forward.5} parent=5 // pred_fallthru
      _
    %p169 = scmp.lt.s32.totalorder %s12, 2
    // Predicated region
    $region21: #{dualvae_forward.5} parent=5 // pred_check
      %p170 = pneg %p169
    $region22: #{dualvae_forward.5} parent=5 // pred_check_branch
      %172 = sbr.rel (%p170) target = $region24
    $region23: #{dualvae_forward.5} parent=5 // pred_region
      // Predicated region
      $region25: #{dualvae_forward.5} parent=23 // pred_check
        %p173 = pneg %p32
      $region26: #{dualvae_forward.5} parent=23 // pred_check_branch
        %175 = sbr.rel (%p173) target = $region28
      $region27: #{dualvae_forward.5} parent=23 // pred_region
        %s176 = smul.u32 16, %s12
        %p177 = scmp.lt.s32.totalorder %s176, 31
        %s178 = scalar_select %p177, %s176, 31
        %s179 = smul.addr %s178, 2
        %s180 = smul.addr %s179, 4
        %s181 = scalar_lea.vmem %s0, %s180
        %s182 = smul.u32 16, %s12
      $region28: #{dualvae_forward.5} parent=23 // pred_fallthru
        _
    $region24: #{dualvae_forward.5} parent=5 // pred_fallthru
      _
    %p183 = scmp.le.s32.totalorder 1, %s12
    %p184 = scmp.lt.s32.totalorder %s12, 3
    %p185 = pnand %p183, %p184
    %p186 = pneg %p185
    // Predicated region
    $region29: #{dualvae_forward.5} parent=5 // pred_check
      _
    $region30: #{dualvae_forward.5} parent=5 // pred_check_branch
      %188 = sbr.rel (%p185) target = $region32
    $region31: #{dualvae_forward.5} parent=5 // pred_region
      %s189 = ssub.s32 %s12, 1
      %s190 = smul.u32 16, %s17
      %p191 = scmp.lt.s32.totalorder %s190, 31
      %s192 = scalar_select %p191, %s190, 31
      %s193 = smul.addr %s192, 2
      %s194 = smul.addr %s193, 4
      %s195 = scalar_lea.vmem %s0, %s194
      %p196 = pneg %p38
      %p197 = pneg %p35
      %p198 = pneg %p59
      %p199 = pneg %p56
      %p200 = pneg %p80
      %p201 = pneg %p77
      %p202 = pneg %p106
      %p203 = pneg %p103
      %s204 = smul.u32 16, %s17
      %p205 = scmp.lt.s32.totalorder %s204, 31
      %s206 = scalar_select %p205, %s204, 31
      %s207 = smul.addr %s206, 2
      %s208 = smul.addr %s207, 8
      %s209 = scalar_lea.vmem %s3, %s208
      %p210 = pneg %p127
      %p211 = pneg %p124
      %p212 = pneg %p148
      %p213 = pneg %p145
      %s214 = smul.u32 16, %s17
      %p215 = scmp.lt.s32.totalorder %s214, 31
      %s216 = scalar_select %p215, %s214, 31
      %s217 = smul.addr %s216, 2
      %s218 = smul.addr %s217, 4
      %s219 = scalar_lea.vmem %s0, %s218
      %s220 = smul.u32 16, %s17
      %s221 = smul.u32 16, %s17
      %p222 = scmp.lt.s32.totalorder %s221, 31
      %s223 = scalar_select %p222, %s221, 31
      %s224 = smul.addr %s223, 2
      %s225 = smul.addr %s224, 8
      %s226 = scalar_lea.vmem %s3, %s225
      %s227 = smul.u32 16, %s17
      %p228 = scmp.eq.s32.totalorder %s17, 0
      // Predicated region
      $region33: #{dualvae_forward.5} parent=31 // pred_check
        %p229 = pneg %p228
      $region34: #{dualvae_forward.5} parent=31 // pred_check_branch
        %231 = sbr.rel (%p229) target = $region36
      $region35: #{dualvae_forward.5} parent=31 // pred_region
        %v232 = vlaneseq
        %vm233 = vcmp.ge.s32.totalorder %v232, 0
        %vm234 = vcmp.lt.s32.totalorder %v232, 256
        %vm235 = vmand %vm233, %vm234
        %236 = vst.msk [vmem:[%s4] sm:$0x3] %vm235, 0.0
        %237 = vst.msk [vmem:[%s5] sm:$0x3] %vm235, 0.0
      $region36: #{dualvae_forward.5} parent=31 // pred_fallthru
        _
      %v238 = vld [vmem:[%s219] sm:$0xff]
      %v239 = vld [vmem:[%s219 + $0x8] sm:$0xff]
      %v240 = vld [vmem:[%s219 + $0x10] sm:$0xff]
      %v241 = vld [vmem:[%s219 + $0x18] sm:$0xff]
      %v242 = vld [vmem:[%s219 + $0x20] sm:$0xff]
      %v243 = vld [vmem:[%s219 + $0x28] sm:$0xff]
      %v244 = vld [vmem:[%s219 + $0x30] sm:$0xff]
      %v245 = vld [vmem:[%s219 + $0x38] sm:$0xff]
      %v246 = vld [vmem:[%s219 + $0x40] sm:$0xff]
      %v247 = vld [vmem:[%s219 + $0x48] sm:$0xff]
      %v248 = vld [vmem:[%s219 + $0x50] sm:$0xff]
      %v249 = vld [vmem:[%s219 + $0x58] sm:$0xff]
      %v250 = vld [vmem:[%s219 + $0x60] sm:$0xff]
      %v251 = vld [vmem:[%s219 + $0x68] sm:$0xff]
      %v252 = vld [vmem:[%s219 + $0x70] sm:$0xff]
      %v253 = vld [vmem:[%s219 + $0x78] sm:$0xff]
      %v254 = vld [vmem:[%s1] sm:$0xff]
      %v255 = vld [vmem:[%s1 + $0x8] sm:$0xff]
      %v256 = vld [vmem:[%s1 + $0x10] sm:$0xff]
      %v257 = vld [vmem:[%s1 + $0x18] sm:$0xff]
      %v258 = vld [vmem:[%s1 + $0x20] sm:$0xff]
      %v259 = vld [vmem:[%s1 + $0x28] sm:$0xff]
      %v260 = vld [vmem:[%s1 + $0x30] sm:$0xff]
      %v261 = vld [vmem:[%s1 + $0x38] sm:$0xff]
      %v262 = vld [vmem:[%s1 + $0x40] sm:$0xff]
      %v263 = vld [vmem:[%s1 + $0x48] sm:$0xff]
      %v264 = vld [vmem:[%s1 + $0x50] sm:$0xff]
      %v265 = vld [vmem:[%s1 + $0x58] sm:$0xff]
      %v266 = vld [vmem:[%s1 + $0x60] sm:$0xff]
      %v267 = vld [vmem:[%s1 + $0x68] sm:$0xff]
      %v268 = vld [vmem:[%s1 + $0x70] sm:$0xff]
      %v269 = vld [vmem:[%s1 + $0x78] sm:$0xff]
      %v270 = vld [vmem:[%s1 + $0x80] sm:$0xff]
      %v271 = vld [vmem:[%s1 + $0x88] sm:$0xff]
      %v272 = vld [vmem:[%s1 + $0x90] sm:$0xff]
      %v273 = vld [vmem:[%s1 + $0x98] sm:$0xff]
      %v274 = vld [vmem:[%s1 + $0xa0] sm:$0xff]
      %v275 = vld [vmem:[%s1 + $0xa8] sm:$0xff]
      %v276 = vld [vmem:[%s1 + $0xb0] sm:$0xff]
      %v277 = vld [vmem:[%s1 + $0xb8] sm:$0xff]
      %v278 = vld [vmem:[%s1 + $0xc0] sm:$0xff]
      %v279 = vld [vmem:[%s1 + $0xc8] sm:$0xff]
      %v280 = vld [vmem:[%s1 + $0xd0] sm:$0xff]
      %v281 = vld [vmem:[%s1 + $0xd8] sm:$0xff]
      %v282 = vld [vmem:[%s1 + $0xe0] sm:$0xff]
      %v283 = vld [vmem:[%s1 + $0xe8] sm:$0xff]
      %v284 = vld [vmem:[%s1 + $0xf0] sm:$0xff]
      %v285 = vld [vmem:[%s1 + $0xf8] sm:$0xff]
      %v286 = vld [vmem:[%s2] sm:$0x3]
      %v288 = vperm.slane %v286, 0
      %v289 = vperm.slane %v286, 1
      %v308 = vunpack.c.l.b16 %v238
      %v309 = vunpack.c.h.b16 %v238
      %v310 = vunpack.c.l.b16 %v239
      %v311 = vunpack.c.h.b16 %v239
      %v312 = vunpack.c.l.b16 %v240
      %v313 = vunpack.c.h.b16 %v240
      %v314 = vunpack.c.l.b16 %v241
      %v315 = vunpack.c.h.b16 %v241
      %v316 = vunpack.c.l.b16 %v242
      %v317 = vunpack.c.h.b16 %v242
      %v318 = vunpack.c.l.b16 %v243
      %v319 = vunpack.c.h.b16 %v243
      %v320 = vunpack.c.l.b16 %v244
      %v321 = vunpack.c.h.b16 %v244
      %v322 = vunpack.c.l.b16 %v245
      %v323 = vunpack.c.h.b16 %v245
      %v324 = vunpack.c.l.b16 %v246
      %v325 = vunpack.c.h.b16 %v246
      %v326 = vunpack.c.l.b16 %v247
      %v327 = vunpack.c.h.b16 %v247
      %v328 = vunpack.c.l.b16 %v248
      %v329 = vunpack.c.h.b16 %v248
      %v330 = vunpack.c.l.b16 %v249
      %v331 = vunpack.c.h.b16 %v249
      %v332 = vunpack.c.l.b16 %v250
      %v333 = vunpack.c.h.b16 %v250
      %v334 = vunpack.c.l.b16 %v251
      %v335 = vunpack.c.h.b16 %v251
      %v336 = vunpack.c.l.b16 %v252
      %v337 = vunpack.c.h.b16 %v252
      %v338 = vunpack.c.l.b16 %v253
      %v339 = vunpack.c.h.b16 %v253
      %v340 = vpack.c.b16 %v310, %v308
      %v341 = vpack.c.b16 %v311, %v309
      %v342 = vpack.c.b16 %v314, %v312
      %v343 = vpack.c.b16 %v315, %v313
      %v344 = vpack.c.b16 %v318, %v316
      %v345 = vpack.c.b16 %v319, %v317
      %v346 = vpack.c.b16 %v322, %v320
      %v347 = vpack.c.b16 %v323, %v321
      %v348 = vpack.c.b16 %v326, %v324
      %v349 = vpack.c.b16 %v327, %v325
      %v350 = vpack.c.b16 %v330, %v328
      %v351 = vpack.c.b16 %v331, %v329
      %v352 = vpack.c.b16 %v334, %v332
      %v353 = vpack.c.b16 %v335, %v333
      %v354 = vpack.c.b16 %v338, %v336
      %v355 = vpack.c.b16 %v339, %v337
      %v404 = vunpack.c.l.b16 %v254
      %v405 = vunpack.c.h.b16 %v254
      %v406 = vunpack.c.l.b16 %v255
      %v407 = vunpack.c.h.b16 %v255
      %v408 = vunpack.c.l.b16 %v256
      %v409 = vunpack.c.h.b16 %v256
      %v410 = vunpack.c.l.b16 %v257
      %v411 = vunpack.c.h.b16 %v257
      %v412 = vunpack.c.l.b16 %v258
      %v413 = vunpack.c.h.b16 %v258
      %v414 = vunpack.c.l.b16 %v259
      %v415 = vunpack.c.h.b16 %v259
      %v416 = vunpack.c.l.b16 %v260
      %v417 = vunpack.c.h.b16 %v260
      %v418 = vunpack.c.l.b16 %v261
      %v419 = vunpack.c.h.b16 %v261
      %v420 = vunpack.c.l.b16 %v262
      %v421 = vunpack.c.h.b16 %v262
      %v422 = vunpack.c.l.b16 %v263
      %v423 = vunpack.c.h.b16 %v263
      %v424 = vunpack.c.l.b16 %v264
      %v425 = vunpack.c.h.b16 %v264
      %v426 = vunpack.c.l.b16 %v265
      %v427 = vunpack.c.h.b16 %v265
      %v428 = vunpack.c.l.b16 %v266
      %v429 = vunpack.c.h.b16 %v266
      %v430 = vunpack.c.l.b16 %v267
      %v431 = vunpack.c.h.b16 %v267
      %v432 = vunpack.c.l.b16 %v268
      %v433 = vunpack.c.h.b16 %v268
      %v434 = vunpack.c.l.b16 %v269
      %v435 = vunpack.c.h.b16 %v269
      %v436 = vunpack.c.l.b16 %v270
      %v437 = vunpack.c.h.b16 %v270
      %v438 = vunpack.c.l.b16 %v271
      %v439 = vunpack.c.h.b16 %v271
      %v440 = vunpack.c.l.b16 %v272
      %v441 = vunpack.c.h.b16 %v272
      %v442 = vunpack.c.l.b16 %v273
      %v443 = vunpack.c.h.b16 %v273
      %v444 = vunpack.c.l.b16 %v274
      %v445 = vunpack.c.h.b16 %v274
      %v446 = vunpack.c.l.b16 %v275
      %v447 = vunpack.c.h.b16 %v275
      %v448 = vunpack.c.l.b16 %v276
      %v449 = vunpack.c.h.b16 %v276
      %v450 = vunpack.c.l.b16 %v277
      %v451 = vunpack.c.h.b16 %v277
      %v452 = vunpack.c.l.b16 %v278
      %v453 = vunpack.c.h.b16 %v278
      %v454 = vunpack.c.l.b16 %v279
      %v455 = vunpack.c.h.b16 %v279
      %v456 = vunpack.c.l.b16 %v280
      %v457 = vunpack.c.h.b16 %v280
      %v458 = vunpack.c.l.b16 %v281
      %v459 = vunpack.c.h.b16 %v281
      %v460 = vunpack.c.l.b16 %v282
      %v461 = vunpack.c.h.b16 %v282
      %v462 = vunpack.c.l.b16 %v283
      %v463 = vunpack.c.h.b16 %v283
      %v464 = vunpack.c.l.b16 %v284
      %v465 = vunpack.c.h.b16 %v284
      %v466 = vunpack.c.l.b16 %v285
      %v467 = vunpack.c.h.b16 %v285
      %v468 = vpack.c.b16 %v406, %v404
      %v469 = vpack.c.b16 %v407, %v405
      %v470 = vpack.c.b16 %v410, %v408
      %v471 = vpack.c.b16 %v411, %v409
      %v472 = vpack.c.b16 %v414, %v412
      %v473 = vpack.c.b16 %v415, %v413
      %v474 = vpack.c.b16 %v418, %v416
      %v475 = vpack.c.b16 %v419, %v417
      %v476 = vpack.c.b16 %v422, %v420
      %v477 = vpack.c.b16 %v423, %v421
      %v478 = vpack.c.b16 %v426, %v424
      %v479 = vpack.c.b16 %v427, %v425
      %v480 = vpack.c.b16 %v430, %v428
      %v481 = vpack.c.b16 %v431, %v429
      %v482 = vpack.c.b16 %v434, %v432
      %v483 = vpack.c.b16 %v435, %v433
      %v484 = vpack.c.b16 %v438, %v436
      %v485 = vpack.c.b16 %v439, %v437
      %v486 = vpack.c.b16 %v442, %v440
      %v487 = vpack.c.b16 %v443, %v441
      %v488 = vpack.c.b16 %v446, %v444
      %v489 = vpack.c.b16 %v447, %v445
      %v490 = vpack.c.b16 %v450, %v448
      %v491 = vpack.c.b16 %v451, %v449
      %v492 = vpack.c.b16 %v454, %v452
      %v493 = vpack.c.b16 %v455, %v453
      %v494 = vpack.c.b16 %v458, %v456
      %v495 = vpack.c.b16 %v459, %v457
      %v496 = vpack.c.b16 %v462, %v460
      %v497 = vpack.c.b16 %v463, %v461
      %v498 = vpack.c.b16 %v466, %v464
      %v499 = vpack.c.b16 %v467, %v465
      %532 = vmatpush.bf16.msra.mxu0 %v482
      %533 = vmatpush.bf16.msra.mxu0 %v480
      %534 = vmatpush.bf16.msra.mxu0 %v478
      %535 = vmatpush.bf16.msra.mxu0 %v476
      %536 = vmatpush.bf16.msra.mxu0 %v474
      %537 = vmatpush.bf16.msra.mxu0 %v472
      %538 = vmatpush.bf16.msra.mxu0 %v470
      %539 = vmatpush.bf16.msra.mxu0 %v468
      %540 = vmatmul.bf16.gmra.mxu0 %v340
      %v541 = vpop.f32.mrf.mxu0
      %v542 = vadd.f32 %v288, %v541
      %v543 = vpop.f32.mrf.mxu0
      %v544 = vadd.f32 %v288, %v543
      %545 = vmatmul.bf16.gmra.mxu0 %v342
      %v546 = vpop.f32.mrf.mxu0
      %v547 = vadd.f32 %v288, %v546
      %v548 = vpop.f32.mrf.mxu0
      %v549 = vadd.f32 %v288, %v548
      %550 = vmatmul.bf16.gmra.mxu0 %v344
      %v551 = vpop.f32.mrf.mxu0
      %v552 = vadd.f32 %v288, %v551
      %v553 = vpop.f32.mrf.mxu0
      %v554 = vadd.f32 %v288, %v553
      %555 = vmatmul.bf16.gmra.mxu0 %v346
      %v556 = vpop.f32.mrf.mxu0
      %v557 = vadd.f32 %v288, %v556
      %v558 = vpop.f32.mrf.mxu0
      %v559 = vadd.f32 %v288, %v558
      %560 = vmatmul.bf16.gmra.mxu0 %v348
      %v561 = vpop.f32.mrf.mxu0
      %v562 = vadd.f32 %v288, %v561
      %v563 = vpop.f32.mrf.mxu0
      %v564 = vadd.f32 %v288, %v563
      %565 = vmatmul.bf16.gmra.mxu0 %v350
      %v566 = vpop.f32.mrf.mxu0
      %v567 = vadd.f32 %v288, %v566
      %v568 = vpop.f32.mrf.mxu0
      %v569 = vadd.f32 %v288, %v568
      %570 = vmatmul.bf16.gmra.mxu0 %v352
      %v571 = vpop.f32.mrf.mxu0
      %v572 = vadd.f32 %v288, %v571
      %v573 = vpop.f32.mrf.mxu0
      %v574 = vadd.f32 %v288, %v573
      %575 = vmatmul.bf16.gmra.mxu0 %v354
      %v576 = vpop.f32.mrf.mxu0
      %v577 = vadd.f32 %v288, %v576
      %v578 = vpop.f32.mrf.mxu0
      %v579 = vadd.f32 %v288, %v578
      %580 = vdwg.mxu0
      %581 = vmatpush.bf16.msra.mxu0 %v498
      %582 = vmatpush.bf16.msra.mxu0 %v496
      %583 = vmatpush.bf16.msra.mxu0 %v494
      %584 = vmatpush.bf16.msra.mxu0 %v492
      %585 = vmatpush.bf16.msra.mxu0 %v490
      %586 = vmatpush.bf16.msra.mxu0 %v488
      %587 = vmatpush.bf16.msra.mxu0 %v486
      %588 = vmatpush.bf16.msra.mxu0 %v484
      %589 = vmatmul.bf16.gmra.mxu0 %v341
      %v590 = vpop.f32.mrf.mxu0
      %v591 = vadd.f32 %v542, %v590
      %v592 = vpop.f32.mrf.mxu0
      %v593 = vadd.f32 %v544, %v592
      %594 = vmatmul.bf16.gmra.mxu0 %v343
      %v595 = vpop.f32.mrf.mxu0
      %v596 = vadd.f32 %v547, %v595
      %v597 = vpop.f32.mrf.mxu0
      %v598 = vadd.f32 %v549, %v597
      %599 = vmatmul.bf16.gmra.mxu0 %v345
      %v600 = vpop.f32.mrf.mxu0
      %v601 = vadd.f32 %v552, %v600
      %v602 = vpop.f32.mrf.mxu0
      %v603 = vadd.f32 %v554, %v602
      %604 = vmatmul.bf16.gmra.mxu0 %v347
      %v605 = vpop.f32.mrf.mxu0
      %v606 = vadd.f32 %v557, %v605
      %v607 = vpop.f32.mrf.mxu0
      %v608 = vadd.f32 %v559, %v607
      %609 = vmatmul.bf16.gmra.mxu0 %v349
      %v610 = vpop.f32.mrf.mxu0
      %v611 = vadd.f32 %v562, %v610
      %v612 = vpop.f32.mrf.mxu0
      %v613 = vadd.f32 %v564, %v612
      %614 = vmatmul.bf16.gmra.mxu0 %v351
      %v615 = vpop.f32.mrf.mxu0
      %v616 = vadd.f32 %v567, %v615
      %v617 = vpop.f32.mrf.mxu0
      %v618 = vadd.f32 %v569, %v617
      %619 = vmatmul.bf16.gmra.mxu0 %v353
      %v620 = vpop.f32.mrf.mxu0
      %v621 = vadd.f32 %v572, %v620
      %v622 = vpop.f32.mrf.mxu0
      %v623 = vadd.f32 %v574, %v622
      %624 = vmatmul.bf16.gmra.mxu0 %v355
      %v625 = vpop.f32.mrf.mxu0
      %v626 = vadd.f32 %v577, %v625
      %v627 = vpop.f32.mrf.mxu0
      %v628 = vadd.f32 %v579, %v627
      %629 = vdwg.mxu0
      %630 = vmatpush.bf16.msra.mxu0 %v483
      %631 = vmatpush.bf16.msra.mxu0 %v481
      %632 = vmatpush.bf16.msra.mxu0 %v479
      %633 = vmatpush.bf16.msra.mxu0 %v477
      %634 = vmatpush.bf16.msra.mxu0 %v475
      %635 = vmatpush.bf16.msra.mxu0 %v473
      %636 = vmatpush.bf16.msra.mxu0 %v471
      %637 = vmatpush.bf16.msra.mxu0 %v469
      %638 = vmatmul.bf16.gmra.mxu0 %v340
      %v639 = vpop.f32.mrf.mxu0
      %v640 = vadd.f32 %v289, %v639
      %v641 = vpop.f32.mrf.mxu0
      %v642 = vadd.f32 %v289, %v641
      %643 = vmatmul.bf16.gmra.mxu0 %v342
      %v644 = vpop.f32.mrf.mxu0
      %v645 = vadd.f32 %v289, %v644
      %v646 = vpop.f32.mrf.mxu0
      %v647 = vadd.f32 %v289, %v646
      %648 = vmatmul.bf16.gmra.mxu0 %v344
      %v649 = vpop.f32.mrf.mxu0
      %v650 = vadd.f32 %v289, %v649
      %v651 = vpop.f32.mrf.mxu0
      %v652 = vadd.f32 %v289, %v651
      %653 = vmatmul.bf16.gmra.mxu0 %v346
      %v654 = vpop.f32.mrf.mxu0
      %v655 = vadd.f32 %v289, %v654
      %v656 = vpop.f32.mrf.mxu0
      %v657 = vadd.f32 %v289, %v656
      %658 = vmatmul.bf16.gmra.mxu0 %v348
      %v659 = vpop.f32.mrf.mxu0
      %v660 = vadd.f32 %v289, %v659
      %v661 = vpop.f32.mrf.mxu0
      %v662 = vadd.f32 %v289, %v661
      %663 = vmatmul.bf16.gmra.mxu0 %v350
      %v664 = vpop.f32.mrf.mxu0
      %v665 = vadd.f32 %v289, %v664
      %v666 = vpop.f32.mrf.mxu0
      %v667 = vadd.f32 %v289, %v666
      %668 = vmatmul.bf16.gmra.mxu0 %v352
      %v669 = vpop.f32.mrf.mxu0
      %v670 = vadd.f32 %v289, %v669
      %v671 = vpop.f32.mrf.mxu0
      %v672 = vadd.f32 %v289, %v671
      %673 = vmatmul.bf16.gmra.mxu0 %v354
      %v674 = vpop.f32.mrf.mxu0
      %v675 = vadd.f32 %v289, %v674
      %v676 = vpop.f32.mrf.mxu0
      %v677 = vadd.f32 %v289, %v676
      %678 = vdwg.mxu0
      %679 = vmatpush.bf16.msra.mxu0 %v499
      %680 = vmatpush.bf16.msra.mxu0 %v497
      %681 = vmatpush.bf16.msra.mxu0 %v495
      %682 = vmatpush.bf16.msra.mxu0 %v493
      %683 = vmatpush.bf16.msra.mxu0 %v491
      %684 = vmatpush.bf16.msra.mxu0 %v489
      %685 = vmatpush.bf16.msra.mxu0 %v487
      %686 = vmatpush.bf16.msra.mxu0 %v485
      %687 = vmatmul.bf16.gmra.mxu0 %v341
      %v688 = vpop.f32.mrf.mxu0
      %v689 = vadd.f32 %v640, %v688
      %v690 = vpop.f32.mrf.mxu0
      %v691 = vadd.f32 %v642, %v690
      %692 = vmatmul.bf16.gmra.mxu0 %v343
      %v693 = vpop.f32.mrf.mxu0
      %v694 = vadd.f32 %v645, %v693
      %v695 = vpop.f32.mrf.mxu0
      %v696 = vadd.f32 %v647, %v695
      %697 = vmatmul.bf16.gmra.mxu0 %v345
      %v698 = vpop.f32.mrf.mxu0
      %v699 = vadd.f32 %v650, %v698
      %v700 = vpop.f32.mrf.mxu0
      %v701 = vadd.f32 %v652, %v700
      %702 = vmatmul.bf16.gmra.mxu0 %v347
      %v703 = vpop.f32.mrf.mxu0
      %v704 = vadd.f32 %v655, %v703
      %v705 = vpop.f32.mrf.mxu0
      %v706 = vadd.f32 %v657, %v705
      %707 = vmatmul.bf16.gmra.mxu0 %v349
      %v708 = vpop.f32.mrf.mxu0
      %v709 = vadd.f32 %v660, %v708
      %v710 = vpop.f32.mrf.mxu0
      %v711 = vadd.f32 %v662, %v710
      %712 = vmatmul.bf16.gmra.mxu0 %v351
      %v713 = vpop.f32.mrf.mxu0
      %v714 = vadd.f32 %v665, %v713
      %v715 = vpop.f32.mrf.mxu0
      %v716 = vadd.f32 %v667, %v715
      %717 = vmatmul.bf16.gmra.mxu0 %v353
      %v718 = vpop.f32.mrf.mxu0
      %v719 = vadd.f32 %v670, %v718
      %v720 = vpop.f32.mrf.mxu0
      %v721 = vadd.f32 %v672, %v720
      %722 = vmatmul.bf16.gmra.mxu0 %v355
      %v723 = vpop.f32.mrf.mxu0
      %v724 = vadd.f32 %v675, %v723
      %v725 = vpop.f32.mrf.mxu0
      %v726 = vadd.f32 %v677, %v725
      %727 = vdwg.mxu0
      %728 = vst [vmem:[%s226] sm:$0xff] %v591
      %729 = vst [vmem:[%s226 + $0x8] sm:$0xff] %v689
      %730 = vst [vmem:[%s226 + $0x10] sm:$0xff] %v593
      %731 = vst [vmem:[%s226 + $0x18] sm:$0xff] %v691
      %732 = vst [vmem:[%s226 + $0x20] sm:$0xff] %v596
      %733 = vst [vmem:[%s226 + $0x28] sm:$0xff] %v694
      %734 = vst [vmem:[%s226 + $0x30] sm:$0xff] %v598
      %735 = vst [vmem:[%s226 + $0x38] sm:$0xff] %v696
      %736 = vst [vmem:[%s226 + $0x40] sm:$0xff] %v601
      %737 = vst [vmem:[%s226 + $0x48] sm:$0xff] %v699
      %738 = vst [vmem:[%s226 + $0x50] sm:$0xff] %v603
      %739 = vst [vmem:[%s226 + $0x58] sm:$0xff] %v701
      %740 = vst [vmem:[%s226 + $0x60] sm:$0xff] %v606
      %741 = vst [vmem:[%s226 + $0x68] sm:$0xff] %v704
      %742 = vst [vmem:[%s226 + $0x70] sm:$0xff] %v608
      %743 = vst [vmem:[%s226 + $0x78] sm:$0xff] %v706
      %744 = vst [vmem:[%s226 + $0x80] sm:$0xff] %v611
      %745 = vst [vmem:[%s226 + $0x88] sm:$0xff] %v709
      %746 = vst [vmem:[%s226 + $0x90] sm:$0xff] %v613
      %747 = vst [vmem:[%s226 + $0x98] sm:$0xff] %v711
      %748 = vst [vmem:[%s226 + $0xa0] sm:$0xff] %v616
      %749 = vst [vmem:[%s226 + $0xa8] sm:$0xff] %v714
      %750 = vst [vmem:[%s226 + $0xb0] sm:$0xff] %v618
      %751 = vst [vmem:[%s226 + $0xb8] sm:$0xff] %v716
      %752 = vst [vmem:[%s226 + $0xc0] sm:$0xff] %v621
      %753 = vst [vmem:[%s226 + $0xc8] sm:$0xff] %v719
      %754 = vst [vmem:[%s226 + $0xd0] sm:$0xff] %v623
      %755 = vst [vmem:[%s226 + $0xd8] sm:$0xff] %v721
      %756 = vst [vmem:[%s226 + $0xe0] sm:$0xff] %v626
      %757 = vst [vmem:[%s226 + $0xe8] sm:$0xff] %v724
      %758 = vst [vmem:[%s226 + $0xf0] sm:$0xff] %v628
      %759 = vst [vmem:[%s226 + $0xf8] sm:$0xff] %v726
      %v760 = vld [vmem:[%s4] sm:$0x3]
      %v761 = vadd.f32 %v591, %v593
      %v762 = vadd.f32 %v761, %v596
      %v763 = vadd.f32 %v762, %v598
      %v764 = vadd.f32 %v763, %v601
      %v765 = vadd.f32 %v764, %v603
      %v766 = vadd.f32 %v765, %v606
      %v767 = vadd.f32 %v766, %v608
      %v768 = vadd.f32 %v767, %v611
      %v769 = vadd.f32 %v768, %v613
      %v770 = vadd.f32 %v769, %v616
      %v771 = vadd.f32 %v770, %v618
      %v772 = vadd.f32 %v771, %v621
      %v773 = vadd.f32 %v772, %v623
      %v774 = vadd.f32 %v773, %v626
      %v775 = vadd.f32 %v774, %v628
      %v776 = vrot.slane %v775, 4
      %v777 = vadd.f32 %v775, %v776
      %v778 = vrot.slane %v777, 2
      %v779 = vadd.f32 %v777, %v778
      %v780 = vrot.slane %v779, 1
      %v781 = vadd.f32 %v779, %v780
      %v782 = vadd.f32 %v689, %v691
      %v783 = vadd.f32 %v782, %v694
      %v784 = vadd.f32 %v783, %v696
      %v785 = vadd.f32 %v784, %v699
      %v786 = vadd.f32 %v785, %v701
      %v787 = vadd.f32 %v786, %v704
      %v788 = vadd.f32 %v787, %v706
      %v789 = vadd.f32 %v788, %v709
      %v790 = vadd.f32 %v789, %v711
      %v791 = vadd.f32 %v790, %v714
      %v792 = vadd.f32 %v791, %v716
      %v793 = vadd.f32 %v792, %v719
      %v794 = vadd.f32 %v793, %v721
      %v795 = vadd.f32 %v794, %v724
      %v796 = vadd.f32 %v795, %v726
      %v797 = vrot.slane %v796, 4
      %v798 = vadd.f32 %v796, %v797
      %v799 = vrot.slane %v798, 2
      %v800 = vadd.f32 %v798, %v799
      %v801 = vrot.slane %v800, 1
      %v802 = vadd.f32 %v800, %v801
      %v805 = vrot.slane %v802, 7
      %vm806 = vcmask 1040384
      %v807 = vsel %vm806, %v781, %v805
      %v809 = vadd.f32 %v760, %v807
      %v810 = vlaneseq
      %vm811 = vcmp.ge.s32.totalorder %v810, 0
      %vm812 = vcmp.lt.s32.totalorder %v810, 256
      %vm813 = vmand %vm811, %vm812
      %814 = vst.msk [vmem:[%s4] sm:$0x3] %vm813, %v809
      %v815 = vld [vmem:[%s5] sm:$0x3]
      %v816 = vmul.f32 %v591, %v591
      %v817 = vmul.f32 %v689, %v689
      %v818 = vmul.f32 %v593, %v593
      %v819 = vmul.f32 %v691, %v691
      %v820 = vmul.f32 %v596, %v596
      %v821 = vmul.f32 %v694, %v694
      %v822 = vmul.f32 %v598, %v598
      %v823 = vmul.f32 %v696, %v696
      %v824 = vmul.f32 %v601, %v601
      %v825 = vmul.f32 %v699, %v699
      %v826 = vmul.f32 %v603, %v603
      %v827 = vmul.f32 %v701, %v701
      %v828 = vmul.f32 %v606, %v606
      %v829 = vmul.f32 %v704, %v704
      %v830 = vmul.f32 %v608, %v608
      %v831 = vmul.f32 %v706, %v706
      %v832 = vmul.f32 %v611, %v611
      %v833 = vmul.f32 %v709, %v709
      %v834 = vmul.f32 %v613, %v613
      %v835 = vmul.f32 %v711, %v711
      %v836 = vmul.f32 %v616, %v616
      %v837 = vmul.f32 %v714, %v714
      %v838 = vmul.f32 %v618, %v618
      %v839 = vmul.f32 %v716, %v716
      %v840 = vmul.f32 %v621, %v621
      %v841 = vmul.f32 %v719, %v719
      %v842 = vmul.f32 %v623, %v623
      %v843 = vmul.f32 %v721, %v721
      %v844 = vmul.f32 %v626, %v626
      %v845 = vmul.f32 %v724, %v724
      %v846 = vmul.f32 %v628, %v628
      %v847 = vmul.f32 %v726, %v726
      %v848 = vadd.f32 %v816, %v818
      %v849 = vadd.f32 %v848, %v820
      %v850 = vadd.f32 %v849, %v822
      %v851 = vadd.f32 %v850, %v824
      %v852 = vadd.f32 %v851, %v826
      %v853 = vadd.f32 %v852, %v828
      %v854 = vadd.f32 %v853, %v830
      %v855 = vadd.f32 %v854, %v832
      %v856 = vadd.f32 %v855, %v834
      %v857 = vadd.f32 %v856, %v836
      %v858 = vadd.f32 %v857, %v838
      %v859 = vadd.f32 %v858, %v840
      %v860 = vadd.f32 %v859, %v842
      %v861 = vadd.f32 %v860, %v844
      %v862 = vadd.f32 %v861, %v846
      %v863 = vrot.slane %v862, 4
      %v864 = vadd.f32 %v862, %v863
      %v865 = vrot.slane %v864, 2
      %v866 = vadd.f32 %v864, %v865
      %v867 = vrot.slane %v866, 1
      %v868 = vadd.f32 %v866, %v867
      %v869 = vadd.f32 %v817, %v819
      %v870 = vadd.f32 %v869, %v821
      %v871 = vadd.f32 %v870, %v823
      %v872 = vadd.f32 %v871, %v825
      %v873 = vadd.f32 %v872, %v827
      %v874 = vadd.f32 %v873, %v829
      %v875 = vadd.f32 %v874, %v831
      %v876 = vadd.f32 %v875, %v833
      %v877 = vadd.f32 %v876, %v835
      %v878 = vadd.f32 %v877, %v837
      %v879 = vadd.f32 %v878, %v839
      %v880 = vadd.f32 %v879, %v841
      %v881 = vadd.f32 %v880, %v843
      %v882 = vadd.f32 %v881, %v845
      %v883 = vadd.f32 %v882, %v847
      %v884 = vrot.slane %v883, 4
      %v885 = vadd.f32 %v883, %v884
      %v886 = vrot.slane %v885, 2
      %v887 = vadd.f32 %v885, %v886
      %v888 = vrot.slane %v887, 1
      %v889 = vadd.f32 %v887, %v888
      %v892 = vrot.slane %v889, 7
      %v893 = vsel %vm806, %v868, %v892
      %v895 = vadd.f32 %v815, %v893
      %896 = vst.msk [vmem:[%s5] sm:$0x3] %vm813, %v895
      %s897 = smul.u32 16, %s17
      %p898 = scmp.lt.s32.totalorder %s897, 31
      %s899 = scalar_select %p898, %s897, 31
      %s900 = smul.addr %s899, 2
      %s901 = smul.addr %s900, 8
      %s902 = scalar_lea.vmem %s3, %s901
      // Predicated region
      $region37: #{dualvae_forward.5} parent=31 // pred_check
        %p903 = pneg %p103
      $region38: #{dualvae_forward.5} parent=31 // pred_check_branch
        %905 = sbr.rel (%p903) target = $region40
      $region39: #{dualvae_forward.5} parent=31 // pred_region
        %s906 = smul.u32 16, %s17
      $region40: #{dualvae_forward.5} parent=31 // pred_fallthru
        _
      // Predicated region
      $region41: #{dualvae_forward.5} parent=31 // pred_check
        %p907 = pneg %p124
      $region42: #{dualvae_forward.5} parent=31 // pred_check_branch
        %909 = sbr.rel (%p907) target = $region44
      $region43: #{dualvae_forward.5} parent=31 // pred_region
        _
      $region44: #{dualvae_forward.5} parent=31 // pred_fallthru
        _
      // Predicated region
      $region45: #{dualvae_forward.5} parent=31 // pred_check
        %p910 = pneg %p145
      $region46: #{dualvae_forward.5} parent=31 // pred_check_branch
        %912 = sbr.rel (%p910) target = $region48
      $region47: #{dualvae_forward.5} parent=31 // pred_region
        _
      $region48: #{dualvae_forward.5} parent=31 // pred_fallthru
        _
      // Predicated region
      $region49: #{dualvae_forward.5} parent=31 // pred_check
        %p913 = pneg %p124
      $region50: #{dualvae_forward.5} parent=31 // pred_check_branch
        %915 = sbr.rel (%p913) target = $region52
      $region51: #{dualvae_forward.5} parent=31 // pred_region
        _
      $region52: #{dualvae_forward.5} parent=31 // pred_fallthru
        _
      // Predicated region
      $region53: #{dualvae_forward.5} parent=31 // pred_check
        %p916 = pneg %p145
      $region54: #{dualvae_forward.5} parent=31 // pred_check_branch
        %918 = sbr.rel (%p916) target = $region56
      $region55: #{dualvae_forward.5} parent=31 // pred_region
        _
      $region56: #{dualvae_forward.5} parent=31 // pred_fallthru
        _
    $region32: #{dualvae_forward.5} parent=5 // pred_fallthru
      _
    %p919 = scmp.le.s32.totalorder 2, %s12
    // Predicated region
    $region57: #{dualvae_forward.5} parent=5 // pred_check
      %p920 = pneg %p919
    $region58: #{dualvae_forward.5} parent=5 // pred_check_branch
      %922 = sbr.rel (%p920) target = $region60
    $region59: #{dualvae_forward.5} parent=5 // pred_region
      %s923 = ssub.s32 %s12, 2
      // Predicated region
      $region61: #{dualvae_forward.5} parent=59 // pred_check
        %p924 = pneg %p109
      $region62: #{dualvae_forward.5} parent=59 // pred_check_branch
        %926 = sbr.rel (%p924) target = $region64
      $region63: #{dualvae_forward.5} parent=59 // pred_region
        %s927 = smul.u32 16, %s18
        %p928 = scmp.lt.s32.totalorder %s927, 31
        %s929 = scalar_select %p928, %s927, 31
        %s930 = smul.addr %s929, 2
        %s931 = smul.addr %s930, 8
        %s932 = scalar_lea.vmem %s3, %s931
      $region64: #{dualvae_forward.5} parent=59 // pred_fallthru
        _
    $region60: #{dualvae_forward.5} parent=5 // pred_fallthru
      _
  $region6: #{dualvae_forward.5} parent=0 // loop_footer
    %s16 = sadd.s32 1, %s12
  $region7: #{dualvae_forward.5} parent=0 // loop_footer_branch
    %11 = sbr.rel target = $region3
  $region8: #{dualvae_forward.5} parent=0 // loop_exit
    _

// kernel: dualvae_forward.6
$region0: #{dualvae_forward.6}
  #allocation0 [shape = 'u32[]', space=smem, size = 0x4, offset = 0x4, fixed_abs, tag = 'smem constant byte address 0x4 - core index']
  #allocation1 [shape = 'u32[72,128]{1,0:T(1,128)}', space=vmem, size = 0x9000, scoped, tag = 'internal scratch']
  %s0 = inlined_call_operand.vmem [shape: f32[256,256], index: 0, kind: input, shape index: {}]
  %s1 = inlined_call_operand.vmem [shape: f32[1,256], index: 1, kind: input, shape index: {}]
  %s2 = inlined_call_operand.vmem [shape: f32[1,256], index: 2, kind: input, shape index: {}]
  %s3 = inlined_call_operand.vmem [shape: bf16[256,128], index: 3, kind: input, shape index: {}]
  %s4 = inlined_call_operand.vmem [shape: f32[1,128], index: 4, kind: input, shape index: {}]
  %s5 = inlined_call_operand.vmem [shape: f32[256,128], index: 5, kind: output, shape index: {0}]
  %s6 = inlined_call_operand.vmem [shape: f32[1,128], index: 6, kind: output, shape index: {1}]
  %s7 = inlined_call_operand.vmem [shape: f32[1,128], index: 7, kind: output, shape index: {2}]
  %8 = xla_tuple %s5, %s6, %s7
  %s9 = sld [smem:[#allocation0]]
  $region73: #{dualvae_forward.6} parent=0
    _
  %s11 = ssub.s32 1, %s9
  %s12 = scalar_select 0, %s11, %s9
  loop: start=0, step=1, limit=4
  $region2: #{dualvae_forward.6} parent=0 // loop_pre_header
    _
  $region3: #{dualvae_forward.6} parent=0 // loop_header
    %s14 = sphi 0, %s18
    %p15 = scmp.ge.s32.totalorder %s14, 4
    %s24 = sphi 0, %s26
    %s27 = sphi 0, %s24
    %s28 = sphi 0, %s27
    %s44 = sphi 0, %s28
    %s48 = sphi 0, %s48
    %s50 = sphi 0, %s48
    %s51 = sphi 0, %s50
    %s65 = sphi 0, %s51
    %s69 = sphi 0, %s69
    %s71 = sphi 0, %s69
    %s72 = sphi 0, %s71
    %s86 = sphi 0, %s72
    %s90 = sphi 0, %s90
    %s92 = sphi 0, %s90
    %s93 = sphi 0, %s92
    %s107 = sphi 0, %s93
    %s111 = sphi 0, %s111
    %s113 = sphi 0, %s111
    %s114 = sphi 0, %s113
    %s128 = sphi 0, %s114
    %s134 = sphi 0, %s136
    %s137 = sphi 0, %s134
    %s138 = sphi 0, %s137
    %s154 = sphi 0, %s138
    %s158 = sphi 0, %s158
    %s160 = sphi 0, %s158
    %s161 = sphi 0, %s160
    %s175 = sphi 0, %s161
    %s179 = sphi 0, %s179
    %s181 = sphi 0, %s179
    %s182 = sphi 0, %s181
    %s196 = sphi 0, %s182
  $region4: #{dualvae_forward.6} parent=0 // loop_header_branch
    %17 = sbr.rel (%p15) target = $region8
  $region5: #{dualvae_forward.6} parent=0 // loop_body
    %s19 = ssub.s32 %s14, 1
    %s20 = ssub.s32 %s14, 2
    %s21 = sadd.s32 %s14, 1
    %s22 = ssub.s32 %s14, %s21
    %p23 = scmp.eq.s32.totalorder %s22, 0
    %s25 = sadd.s32 %s24, 1
    %s26 = scalar_select %p23, %s24, %s25
    %p29 = pneg %p23
    %p30 = scmp.eq.s32.totalorder %s14, 1
    %p31 = por %p29, %p30
    %p32 = scmp.ne.s32.totalorder %s24, %s27
    %p33 = scmp.eq.s32.totalorder %s14, 0
    %p34 = por %p32, %p33
    %p35 = scmp.ne.s32.totalorder %s24, %s27
    %p36 = scmp.eq.s32.totalorder %s19, 1
    %p37 = por %p35, %p36
    %p38 = scmp.ne.s32.totalorder %s27, %s28
    %p39 = scmp.eq.s32.totalorder %s19, 0
    %p40 = por %p38, %p39
    %p41 = scmp.ne.s32.totalorder %s27, %s28
    %p42 = scmp.eq.s32.totalorder %s20, 1
    %p43 = por %p41, %p42
    %p45 = scmp.ne.s32.totalorder %s28, %s44
    %p46 = scmp.eq.s32.totalorder %s20, 0
    %p47 = por %p45, %p46
    %s49 = sadd.s32 %s48, 1
    %p52 = scmp.eq.s32.totalorder %s14, 1
    %p53 = scmp.ne.s32.totalorder %s48, %s50
    %p54 = scmp.eq.s32.totalorder %s14, 0
    %p55 = por %p53, %p54
    %p56 = scmp.ne.s32.totalorder %s48, %s50
    %p57 = scmp.eq.s32.totalorder %s19, 1
    %p58 = por %p56, %p57
    %p59 = scmp.ne.s32.totalorder %s50, %s51
    %p60 = scmp.eq.s32.totalorder %s19, 0
    %p61 = por %p59, %p60
    %p62 = scmp.ne.s32.totalorder %s50, %s51
    %p63 = scmp.eq.s32.totalorder %s20, 1
    %p64 = por %p62, %p63
    %p66 = scmp.ne.s32.totalorder %s51, %s65
    %p67 = scmp.eq.s32.totalorder %s20, 0
    %p68 = por %p66, %p67
    %s70 = sadd.s32 %s69, 1
    %p73 = scmp.eq.s32.totalorder %s14, 1
    %p74 = scmp.ne.s32.totalorder %s69, %s71
    %p75 = scmp.eq.s32.totalorder %s14, 0
    %p76 = por %p74, %p75
    %p77 = scmp.ne.s32.totalorder %s69, %s71
    %p78 = scmp.eq.s32.totalorder %s19, 1
    %p79 = por %p77, %p78
    %p80 = scmp.ne.s32.totalorder %s71, %s72
    %p81 = scmp.eq.s32.totalorder %s19, 0
    %p82 = por %p80, %p81
    %p83 = scmp.ne.s32.totalorder %s71, %s72
    %p84 = scmp.eq.s32.totalorder %s20, 1
    %p85 = por %p83, %p84
    %p87 = scmp.ne.s32.totalorder %s72, %s86
    %p88 = scmp.eq.s32.totalorder %s20, 0
    %p89 = por %p87, %p88
    %s91 = sadd.s32 %s90, 1
    %p94 = scmp.eq.s32.totalorder %s14, 1
    %p95 = scmp.ne.s32.totalorder %s90, %s92
    %p96 = scmp.eq.s32.totalorder %s14, 0
    %p97 = por %p95, %p96
    %p98 = scmp.ne.s32.totalorder %s90, %s92
    %p99 = scmp.eq.s32.totalorder %s19, 1
    %p100 = por %p98, %p99
    %p101 = scmp.ne.s32.totalorder %s92, %s93
    %p102 = scmp.eq.s32.totalorder %s19, 0
    %p103 = por %p101, %p102
    %p104 = scmp.ne.s32.totalorder %s92, %s93
    %p105 = scmp.eq.s32.totalorder %s20, 1
    %p106 = por %p104, %p105
    %p108 = scmp.ne.s32.totalorder %s93, %s107
    %p109 = scmp.eq.s32.totalorder %s20, 0
    %p110 = por %p108, %p109
    %s112 = sadd.s32 %s111, 1
    %p115 = scmp.eq.s32.totalorder %s14, 1
    %p116 = scmp.ne.s32.totalorder %s111, %s113
    %p117 = scmp.eq.s32.totalorder %s14, 0
    %p118 = por %p116, %p117
    %p119 = scmp.ne.s32.totalorder %s111, %s113
    %p120 = scmp.eq.s32.totalorder %s19, 1
    %p121 = por %p119, %p120
    %p122 = scmp.ne.s32.totalorder %s113, %s114
    %p123 = scmp.eq.s32.totalorder %s19, 0
    %p124 = por %p122, %p123
    %p125 = scmp.ne.s32.totalorder %s113, %s114
    %p126 = scmp.eq.s32.totalorder %s20, 1
    %p127 = por %p125, %p126
    %p129 = scmp.ne.s32.totalorder %s114, %s128
    %p130 = scmp.eq.s32.totalorder %s20, 0
    %p131 = por %p129, %p130
    %s132 = ssub.s32 %s14, %s21
    %p133 = scmp.eq.s32.totalorder %s132, 0
    %s135 = sadd.s32 %s134, 1
    %s136 = scalar_select %p133, %s134, %s135
    %p139 = pneg %p133
    %p140 = scmp.eq.s32.totalorder %s14, 1
    %p141 = por %p139, %p140
    %p142 = scmp.ne.s32.totalorder %s134, %s137
    %p143 = scmp.eq.s32.totalorder %s14, 0
    %p144 = por %p142, %p143
    %p145 = scmp.ne.s32.totalorder %s134, %s137
    %p146 = scmp.eq.s32.totalorder %s19, 1
    %p147 = por %p145, %p146
    %p148 = scmp.ne.s32.totalorder %s137, %s138
    %p149 = scmp.eq.s32.totalorder %s19, 0
    %p150 = por %p148, %p149
    %p151 = scmp.ne.s32.totalorder %s137, %s138
    %p152 = scmp.eq.s32.totalorder %s20, 1
    %p153 = por %p151, %p152
    %p155 = scmp.ne.s32.totalorder %s138, %s154
    %p156 = scmp.eq.s32.totalorder %s20, 0
    %p157 = por %p155, %p156
    %s159 = sadd.s32 %s158, 1
    %p162 = scmp.eq.s32.totalorder %s14, 1
    %p163 = scmp.ne.s32.totalorder %s158, %s160
    %p164 = scmp.eq.s32.totalorder %s14, 0
    %p165 = por %p163, %p164
    %p166 = scmp.ne.s32.totalorder %s158, %s160
    %p167 = scmp.eq.s32.totalorder %s19, 1
    %p168 = por %p166, %p167
    %p169 = scmp.ne.s32.totalorder %s160, %s161
    %p170 = scmp.eq.s32.totalorder %s19, 0
    %p171 = por %p169, %p170
    %p172 = scmp.ne.s32.totalorder %s160, %s161
    %p173 = scmp.eq.s32.totalorder %s20, 1
    %p174 = por %p172, %p173
    %p176 = scmp.ne.s32.totalorder %s161, %s175
    %p177 = scmp.eq.s32.totalorder %s20, 0
    %p178 = por %p176, %p177
    %s180 = sadd.s32 %s179, 1
    %p183 = scmp.eq.s32.totalorder %s14, 1
    %p184 = scmp.ne.s32.totalorder %s179, %s181
    %p185 = scmp.eq.s32.totalorder %s14, 0
    %p186 = por %p184, %p185
    %p187 = scmp.ne.s32.totalorder %s179, %s181
    %p188 = scmp.eq.s32.totalorder %s19, 1
    %p189 = por %p187, %p188
    %p190 = scmp.ne.s32.totalorder %s181, %s182
    %p191 = scmp.eq.s32.totalorder %s19, 0
    %p192 = por %p190, %p191
    %p193 = scmp.ne.s32.totalorder %s181, %s182
    %p194 = scmp.eq.s32.totalorder %s20, 1
    %p195 = por %p193, %p194
    %p197 = scmp.ne.s32.totalorder %s182, %s196
    %p198 = scmp.eq.s32.totalorder %s20, 0
    %p199 = por %p197, %p198
    %p200 = scmp.le.s32.totalorder 1, %s14
    %p201 = scmp.lt.s32.totalorder %s14, 3
    %p202 = pnand %p200, %p201
    %p203 = pneg %p202
    // Predicated region
    $region9: #{dualvae_forward.6} parent=5 // pred_check
      _
    $region10: #{dualvae_forward.6} parent=5 // pred_check_branch
      %205 = sbr.rel (%p202) target = $region12
    $region11: #{dualvae_forward.6} parent=5 // pred_region
      %s206 = ssub.s32 %s14, 1
      // Predicated region
      $region13: #{dualvae_forward.6} parent=11 // pred_check
        %p207 = pneg %p61
      $region14: #{dualvae_forward.6} parent=11 // pred_check_branch
        %209 = sbr.rel (%p207) target = $region16
      $region15: #{dualvae_forward.6} parent=11 // pred_region
        _
      $region16: #{dualvae_forward.6} parent=11 // pred_fallthru
        _
      // Predicated region
      $region17: #{dualvae_forward.6} parent=11 // pred_check
        %p210 = pneg %p82
      $region18: #{dualvae_forward.6} parent=11 // pred_check_branch
        %212 = sbr.rel (%p210) target = $region20
      $region19: #{dualvae_forward.6} parent=11 // pred_region
        _
      $region20: #{dualvae_forward.6} parent=11 // pred_fallthru
        _
      // Predicated region
      $region21: #{dualvae_forward.6} parent=11 // pred_check
        %p213 = pneg %p103
      $region22: #{dualvae_forward.6} parent=11 // pred_check_branch
        %215 = sbr.rel (%p213) target = $region24
      $region23: #{dualvae_forward.6} parent=11 // pred_region
        _
      $region24: #{dualvae_forward.6} parent=11 // pred_fallthru
        _
      // Predicated region
      $region25: #{dualvae_forward.6} parent=11 // pred_check
        %p216 = pneg %p124
      $region26: #{dualvae_forward.6} parent=11 // pred_check_branch
        %218 = sbr.rel (%p216) target = $region28
      $region27: #{dualvae_forward.6} parent=11 // pred_region
        _
      $region28: #{dualvae_forward.6} parent=11 // pred_fallthru
        _
    $region12: #{dualvae_forward.6} parent=5 // pred_fallthru
      _
    %p219 = scmp.lt.s32.totalorder %s14, 2
    // Predicated region
    $region29: #{dualvae_forward.6} parent=5 // pred_check
      %p220 = pneg %p219
    $region30: #{dualvae_forward.6} parent=5 // pred_check_branch
      %222 = sbr.rel (%p220) target = $region32
    $region31: #{dualvae_forward.6} parent=5 // pred_region
      // Predicated region
      $region33: #{dualvae_forward.6} parent=31 // pred_check
        %p223 = pneg %p34
      $region34: #{dualvae_forward.6} parent=31 // pred_check_branch
        %225 = sbr.rel (%p223) target = $region36
      $region35: #{dualvae_forward.6} parent=31 // pred_region
        %s226 = smul.u32 16, %s14
        %p227 = scmp.lt.s32.totalorder %s226, 31
        %s228 = scalar_select %p227, %s226, 31
        %s229 = smul.addr %s228, 2
        %s230 = smul.addr %s229, 8
        %s231 = scalar_lea.vmem %s0, %s230
        %s232 = smul.u32 16, %s14
      $region36: #{dualvae_forward.6} parent=31 // pred_fallthru
        _
    $region32: #{dualvae_forward.6} parent=5 // pred_fallthru
      _
    %p233 = scmp.le.s32.totalorder 1, %s14
    %p234 = scmp.lt.s32.totalorder %s14, 3
    %p235 = pnand %p233, %p234
    %p236 = pneg %p235
    // Predicated region
    $region37: #{dualvae_forward.6} parent=5 // pred_check
      _
    $region38: #{dualvae_forward.6} parent=5 // pred_check_branch
      %238 = sbr.rel (%p235) target = $region40
    $region39: #{dualvae_forward.6} parent=5 // pred_region
      %s239 = ssub.s32 %s14, 1
      %s240 = smul.u32 16, %s19
      %p241 = scmp.lt.s32.totalorder %s240, 31
      %s242 = scalar_select %p241, %s240, 31
      %s243 = smul.addr %s242, 2
      %s244 = smul.addr %s243, 8
      %s245 = scalar_lea.vmem %s0, %s244
      %p246 = pneg %p40
      %p247 = pneg %p37
      %p248 = pneg %p61
      %p249 = pneg %p58
      %p250 = pneg %p82
      %p251 = pneg %p79
      %p252 = pneg %p103
      %p253 = pneg %p100
      %p254 = pneg %p124
      %p255 = pneg %p121
      %p256 = pneg %p150
      %p257 = pneg %p147
      %s258 = smul.u32 16, %s19
      %p259 = scmp.lt.s32.totalorder %s258, 31
      %s260 = scalar_select %p259, %s258, 31
      %s261 = smul.addr %s260, 8
      %s262 = scalar_lea.vmem %s5, %s261
      %p263 = pneg %p171
      %p264 = pneg %p168
      %p265 = pneg %p192
      %p266 = pneg %p189
      %s267 = smul.u32 16, %s19
      %p268 = scmp.lt.s32.totalorder %s267, 31
      %s269 = scalar_select %p268, %s267, 31
      %s270 = smul.addr %s269, 2
      %s271 = smul.addr %s270, 8
      %s272 = scalar_lea.vmem %s0, %s271
      %s273 = smul.u32 16, %s19
      %s274 = smul.u32 16, %s19
      %p275 = scmp.lt.s32.totalorder %s274, 31
      %s276 = scalar_select %p275, %s274, 31
      %s277 = smul.addr %s276, 8
      %s278 = scalar_lea.vmem %s5, %s277
      %s279 = smul.u32 16, %s19
      %p280 = scmp.eq.s32.totalorder %s19, 0
      // Predicated region
      $region41: #{dualvae_forward.6} parent=39 // pred_check
        %p281 = pneg %p280
      $region42: #{dualvae_forward.6} parent=39 // pred_check_branch
        %283 = sbr.rel (%p281) target = $region44
      $region43: #{dualvae_forward.6} parent=39 // pred_region
        %284 = vst [vmem:[%s6] sm:$0x1] 0.0
        %285 = vst [vmem:[%s7] sm:$0x1] 0.0
      $region44: #{dualvae_forward.6} parent=39 // pred_fallthru
        _
      %v286 = vld [vmem:[%s272] sm:$0xff]
      %v287 = vld [vmem:[%s272 + $0x8] sm:$0xff]
      %v288 = vld [vmem:[%s272 + $0x10] sm:$0xff]
      %v289 = vld [vmem:[%s272 + $0x18] sm:$0xff]
      %v290 = vld [vmem:[%s272 + $0x20] sm:$0xff]
      %v291 = vld [vmem:[%s272 + $0x28] sm:$0xff]
      %v292 = vld [vmem:[%s272 + $0x30] sm:$0xff]
      %v293 = vld [vmem:[%s272 + $0x38] sm:$0xff]
      %v294 = vld [vmem:[%s272 + $0x40] sm:$0xff]
      %v295 = vld [vmem:[%s272 + $0x48] sm:$0xff]
      %v296 = vld [vmem:[%s272 + $0x50] sm:$0xff]
      %v297 = vld [vmem:[%s272 + $0x58] sm:$0xff]
      %v298 = vld [vmem:[%s272 + $0x60] sm:$0xff]
      %v299 = vld [vmem:[%s272 + $0x68] sm:$0xff]
      %v300 = vld [vmem:[%s272 + $0x70] sm:$0xff]
      %v301 = vld [vmem:[%s272 + $0x78] sm:$0xff]
      %v302 = vld [vmem:[%s272 + $0x80] sm:$0xff]
      %v303 = vld [vmem:[%s272 + $0x88] sm:$0xff]
      %v304 = vld [vmem:[%s272 + $0x90] sm:$0xff]
      %v305 = vld [vmem:[%s272 + $0x98] sm:$0xff]
      %v306 = vld [vmem:[%s272 + $0xa0] sm:$0xff]
      %v307 = vld [vmem:[%s272 + $0xa8] sm:$0xff]
      %v308 = vld [vmem:[%s272 + $0xb0] sm:$0xff]
      %v309 = vld [vmem:[%s272 + $0xb8] sm:$0xff]
      %v310 = vld [vmem:[%s272 + $0xc0] sm:$0xff]
      %v311 = vld [vmem:[%s272 + $0xc8] sm:$0xff]
      %v312 = vld [vmem:[%s272 + $0xd0] sm:$0xff]
      %v313 = vld [vmem:[%s272 + $0xd8] sm:$0xff]
      %v314 = vld [vmem:[%s272 + $0xe0] sm:$0xff]
      %v315 = vld [vmem:[%s272 + $0xe8] sm:$0xff]
      %v316 = vld [vmem:[%s272 + $0xf0] sm:$0xff]
      %v317 = vld [vmem:[%s272 + $0xf8] sm:$0xff]
      %v318 = vld [vmem:[%s1] sm:$0x3]
      %v320 = vperm.slane %v318, 0
      %v321 = vperm.slane %v318, 1
      %v324 = vmul.f32 %v286, %v320
      %v325 = vmul.f32 %v287, %v321
      %v326 = vmul.f32 %v288, %v320
      %v327 = vmul.f32 %v289, %v321
      %v328 = vmul.f32 %v290, %v320
      %v329 = vmul.f32 %v291, %v321
      %v330 = vmul.f32 %v292, %v320
      %v331 = vmul.f32 %v293, %v321
      %v332 = vmul.f32 %v294, %v320
      %v333 = vmul.f32 %v295, %v321
      %v334 = vmul.f32 %v296, %v320
      %v335 = vmul.f32 %v297, %v321
      %v336 = vmul.f32 %v298, %v320
      %v337 = vmul.f32 %v299, %v321
      %v338 = vmul.f32 %v300, %v320
      %v339 = vmul.f32 %v301, %v321
      %v340 = vmul.f32 %v302, %v320
      %v341 = vmul.f32 %v303, %v321
      %v342 = vmul.f32 %v304, %v320
      %v343 = vmul.f32 %v305, %v321
      %v344 = vmul.f32 %v306, %v320
      %v345 = vmul.f32 %v307, %v321
      %v346 = vmul.f32 %v308, %v320
      %v347 = vmul.f32 %v309, %v321
      %v348 = vmul.f32 %v310, %v320
      %v349 = vmul.f32 %v311, %v321
      %v350 = vmul.f32 %v312, %v320
      %v351 = vmul.f32 %v313, %v321
      %v352 = vmul.f32 %v314, %v320
      %v353 = vmul.f32 %v315, %v321
      %v354 = vmul.f32 %v316, %v320
      %v355 = vmul.f32 %v317, %v321
      %v356 = vld [vmem:[%s2] sm:$0x3]
      %v358 = vperm.slane %v356, 0
      %v359 = vperm.slane %v356, 1
      %v362 = vadd.f32 %v324, %v358
      %v363 = vadd.f32 %v325, %v359
      %v364 = vadd.f32 %v326, %v358
      %v365 = vadd.f32 %v327, %v359
      %v366 = vadd.f32 %v328, %v358
      %v367 = vadd.f32 %v329, %v359
      %v368 = vadd.f32 %v330, %v358
      %v369 = vadd.f32 %v331, %v359
      %v370 = vadd.f32 %v332, %v358
      %v371 = vadd.f32 %v333, %v359
      %v372 = vadd.f32 %v334, %v358
      %v373 = vadd.f32 %v335, %v359
      %v374 = vadd.f32 %v336, %v358
      %v375 = vadd.f32 %v337, %v359
      %v376 = vadd.f32 %v338, %v358
      %v377 = vadd.f32 %v339, %v359
      %v378 = vadd.f32 %v340, %v358
      %v379 = vadd.f32 %v341, %v359
      %v380 = vadd.f32 %v342, %v358
      %v381 = vadd.f32 %v343, %v359
      %v382 = vadd.f32 %v344, %v358
      %v383 = vadd.f32 %v345, %v359
      %v384 = vadd.f32 %v346, %v358
      %v385 = vadd.f32 %v347, %v359
      %v386 = vadd.f32 %v348, %v358
      %v387 = vadd.f32 %v349, %v359
      %v388 = vadd.f32 %v350, %v358
      %v389 = vadd.f32 %v351, %v359
      %v390 = vadd.f32 %v352, %v358
      %v391 = vadd.f32 %v353, %v359
      %v392 = vadd.f32 %v354, %v358
      %v393 = vadd.f32 %v355, %v359
      %vm394 = vcmp.gt.f32.partialorder %v362, 0.0
      %vm395 = vcmp.gt.f32.partialorder %v363, 0.0
      %vm396 = vcmp.gt.f32.partialorder %v364, 0.0
      %vm397 = vcmp.gt.f32.partialorder %v365, 0.0
      %vm398 = vcmp.gt.f32.partialorder %v366, 0.0
      %vm399 = vcmp.gt.f32.partialorder %v367, 0.0
      %vm400 = vcmp.gt.f32.partialorder %v368, 0.0
      %vm401 = vcmp.gt.f32.partialorder %v369, 0.0
      %vm402 = vcmp.gt.f32.partialorder %v370, 0.0
      %vm403 = vcmp.gt.f32.partialorder %v371, 0.0
      %vm404 = vcmp.gt.f32.partialorder %v372, 0.0
      %vm405 = vcmp.gt.f32.partialorder %v373, 0.0
      %vm406 = vcmp.gt.f32.partialorder %v374, 0.0
      %vm407 = vcmp.gt.f32.partialorder %v375, 0.0
      %vm408 = vcmp.gt.f32.partialorder %v376, 0.0
      %vm409 = vcmp.gt.f32.partialorder %v377, 0.0
      %vm410 = vcmp.gt.f32.partialorder %v378, 0.0
      %vm411 = vcmp.gt.f32.partialorder %v379, 0.0
      %vm412 = vcmp.gt.f32.partialorder %v380, 0.0
      %vm413 = vcmp.gt.f32.partialorder %v381, 0.0
      %vm414 = vcmp.gt.f32.partialorder %v382, 0.0
      %vm415 = vcmp.gt.f32.partialorder %v383, 0.0
      %vm416 = vcmp.gt.f32.partialorder %v384, 0.0
      %vm417 = vcmp.gt.f32.partialorder %v385, 0.0
      %vm418 = vcmp.gt.f32.partialorder %v386, 0.0
      %vm419 = vcmp.gt.f32.partialorder %v387, 0.0
      %vm420 = vcmp.gt.f32.partialorder %v388, 0.0
      %vm421 = vcmp.gt.f32.partialorder %v389, 0.0
      %vm422 = vcmp.gt.f32.partialorder %v390, 0.0
      %vm423 = vcmp.gt.f32.partialorder %v391, 0.0
      %vm424 = vcmp.gt.f32.partialorder %v392, 0.0
      %vm425 = vcmp.gt.f32.partialorder %v393, 0.0
      %v426 = vmul.f32 %v362, 0.1
      %v427 = vmul.f32 %v363, 0.1
      %v428 = vmul.f32 %v364, 0.1
      %v429 = vmul.f32 %v365, 0.1
      %v430 = vmul.f32 %v366, 0.1
      %v431 = vmul.f32 %v367, 0.1
      %v432 = vmul.f32 %v368, 0.1
      %v433 = vmul.f32 %v369, 0.1
      %v434 = vmul.f32 %v370, 0.1
      %v435 = vmul.f32 %v371, 0.1
      %v436 = vmul.f32 %v372, 0.1
      %v437 = vmul.f32 %v373, 0.1
      %v438 = vmul.f32 %v374, 0.1
      %v439 = vmul.f32 %v375, 0.1
      %v440 = vmul.f32 %v376, 0.1
      %v441 = vmul.f32 %v377, 0.1
      %v442 = vmul.f32 %v378, 0.1
      %v443 = vmul.f32 %v379, 0.1
      %v444 = vmul.f32 %v380, 0.1
      %v445 = vmul.f32 %v381, 0.1
      %v446 = vmul.f32 %v382, 0.1
      %v447 = vmul.f32 %v383, 0.1
      %v448 = vmul.f32 %v384, 0.1
      %v449 = vmul.f32 %v385, 0.1
      %v450 = vmul.f32 %v386, 0.1
      %v451 = vmul.f32 %v387, 0.1
      %v452 = vmul.f32 %v388, 0.1
      %v453 = vmul.f32 %v389, 0.1
      %v454 = vmul.f32 %v390, 0.1
      %v455 = vmul.f32 %v391, 0.1
      %v456 = vmul.f32 %v392, 0.1
      %v457 = vmul.f32 %v393, 0.1
      %v458 = vsel %vm394, %v362, %v426
      %v459 = vsel %vm395, %v363, %v427
      %v460 = vsel %vm396, %v364, %v428
      %v461 = vsel %vm397, %v365, %v429
      %v462 = vsel %vm398, %v366, %v430
      %v463 = vsel %vm399, %v367, %v431
      %v464 = vsel %vm400, %v368, %v432
      %v465 = vsel %vm401, %v369, %v433
      %v466 = vsel %vm402, %v370, %v434
      %v467 = vsel %vm403, %v371, %v435
      %v468 = vsel %vm404, %v372, %v436
      %v469 = vsel %vm405, %v373, %v437
      %v470 = vsel %vm406, %v374, %v438
      %v471 = vsel %vm407, %v375, %v439
      %v472 = vsel %vm408, %v376, %v440
      %v473 = vsel %vm409, %v377, %v441
      %v474 = vsel %vm410, %v378, %v442
      %v475 = vsel %vm411, %v379, %v443
      %v476 = vsel %vm412, %v380, %v444
      %v477 = vsel %vm413, %v381, %v445
      %v478 = vsel %vm414, %v382, %v446
      %v479 = vsel %vm415, %v383, %v447
      %v480 = vsel %vm416, %v384, %v448
      %v481 = vsel %vm417, %v385, %v449
      %v482 = vsel %vm418, %v386, %v450
      %v483 = vsel %vm419, %v387, %v451
      %v484 = vsel %vm420, %v388, %v452
      %v485 = vsel %vm421, %v389, %v453
      %v486 = vsel %vm422, %v390, %v454
      %v487 = vsel %vm423, %v391, %v455
      %v488 = vsel %vm424, %v392, %v456
      %v489 = vsel %vm425, %v393, %v457
      %v490 = vpack.c.bf16 %v460, %v458
      %v491 = vpack.c.bf16 %v461, %v459
      %v492 = vpack.c.bf16 %v464, %v462
      %v493 = vpack.c.bf16 %v465, %v463
      %v494 = vpack.c.bf16 %v468, %v466
      %v495 = vpack.c.bf16 %v469, %v467
      %v496 = vpack.c.bf16 %v472, %v470
      %v497 = vpack.c.bf16 %v473, %v471
      %v498 = vpack.c.bf16 %v476, %v474
      %v499 = vpack.c.bf16 %v477, %v475
      %v500 = vpack.c.bf16 %v480, %v478
      %v501 = vpack.c.bf16 %v481, %v479
      %v502 = vpack.c.bf16 %v484, %v482
      %v503 = vpack.c.bf16 %v485, %v483
      %v504 = vpack.c.bf16 %v488, %v486
      %v505 = vpack.c.bf16 %v489, %v487
      %v506 = vld [vmem:[%s3] sm:$0xf]
      %v507 = vld [vmem:[%s3 + $0x4] sm:$0xf]
      %v508 = vld [vmem:[%s3 + $0x8] sm:$0xf]
      %v509 = vld [vmem:[%s3 + $0xc] sm:$0xf]
      %v510 = vld [vmem:[%s3 + $0x10] sm:$0xf]
      %v511 = vld [vmem:[%s3 + $0x14] sm:$0xf]
      %v512 = vld [vmem:[%s3 + $0x18] sm:$0xf]
      %v513 = vld [vmem:[%s3 + $0x1c] sm:$0xf]
      %v514 = vld [vmem:[%s3 + $0x20] sm:$0xf]
      %v515 = vld [vmem:[%s3 + $0x24] sm:$0xf]
      %v516 = vld [vmem:[%s3 + $0x28] sm:$0xf]
      %v517 = vld [vmem:[%s3 + $0x2c] sm:$0xf]
      %v518 = vld [vmem:[%s3 + $0x30] sm:$0xf]
      %v519 = vld [vmem:[%s3 + $0x34] sm:$0xf]
      %v520 = vld [vmem:[%s3 + $0x38] sm:$0xf]
      %v521 = vld [vmem:[%s3 + $0x3c] sm:$0xf]
      %v522 = vld [vmem:[%s3 + $0x40] sm:$0xf]
      %v523 = vld [vmem:[%s3 + $0x44] sm:$0xf]
      %v524 = vld [vmem:[%s3 + $0x48] sm:$0xf]
      %v525 = vld [vmem:[%s3 + $0x4c] sm:$0xf]
      %v526 = vld [vmem:[%s3 + $0x50] sm:$0xf]
      %v527 = vld [vmem:[%s3 + $0x54] sm:$0xf]
      %v528 = vld [vmem:[%s3 + $0x58] sm:$0xf]
      %v529 = vld [vmem:[%s3 + $0x5c] sm:$0xf]
      %v530 = vld [vmem:[%s3 + $0x60] sm:$0xf]
      %v531 = vld [vmem:[%s3 + $0x64] sm:$0xf]
      %v532 = vld [vmem:[%s3 + $0x68] sm:$0xf]
      %v533 = vld [vmem:[%s3 + $0x6c] sm:$0xf]
      %v534 = vld [vmem:[%s3 + $0x70] sm:$0xf]
      %v535 = vld [vmem:[%s3 + $0x74] sm:$0xf]
      %v536 = vld [vmem:[%s3 + $0x78] sm:$0xf]
      %v537 = vld [vmem:[%s3 + $0x7c] sm:$0xf]
      %v538 = vld [vmem:[%s4] sm:$0x1]
      %v540 = vperm.slane %v538, 0
      %v574 = vunpack.c.l.b16 %v506
      %v575 = vunpack.c.l.b16 %v507
      %v576 = vunpack.c.l.b16 %v508
      %v577 = vunpack.c.l.b16 %v509
      %v578 = vunpack.c.l.b16 %v510
      %v579 = vunpack.c.l.b16 %v511
      %v580 = vunpack.c.l.b16 %v512
      %v581 = vunpack.c.l.b16 %v513
      %v582 = vunpack.c.l.b16 %v514
      %v583 = vunpack.c.l.b16 %v515
      %v584 = vunpack.c.l.b16 %v516
      %v585 = vunpack.c.l.b16 %v517
      %v586 = vunpack.c.l.b16 %v518
      %v587 = vunpack.c.l.b16 %v519
      %v588 = vunpack.c.l.b16 %v520
      %v589 = vunpack.c.l.b16 %v521
      %v590 = vunpack.c.l.b16 %v522
      %v591 = vunpack.c.l.b16 %v523
      %v592 = vunpack.c.l.b16 %v524
      %v593 = vunpack.c.l.b16 %v525
      %v594 = vunpack.c.l.b16 %v526
      %v595 = vunpack.c.l.b16 %v527
      %v596 = vunpack.c.l.b16 %v528
      %v597 = vunpack.c.l.b16 %v529
      %v598 = vunpack.c.l.b16 %v530
      %v599 = vunpack.c.l.b16 %v531
      %v600 = vunpack.c.l.b16 %v532
      %v601 = vunpack.c.l.b16 %v533
      %v602 = vunpack.c.l.b16 %v534
      %v603 = vunpack.c.l.b16 %v535
      %v604 = vunpack.c.l.b16 %v536
      %v605 = vunpack.c.l.b16 %v537
      %v606 = vpack.c.b16 %v575, %v574
      %v607 = vpack.c.b16 %v577, %v576
      %v608 = vpack.c.b16 %v579, %v578
      %v609 = vpack.c.b16 %v581, %v580
      %v610 = vpack.c.b16 %v583, %v582
      %v611 = vpack.c.b16 %v585, %v584
      %v612 = vpack.c.b16 %v587, %v586
      %v613 = vpack.c.b16 %v589, %v588
      %v614 = vpack.c.b16 %v591, %v590
      %v615 = vpack.c.b16 %v593, %v592
      %v616 = vpack.c.b16 %v595, %v594
      %v617 = vpack.c.b16 %v597, %v596
      %v618 = vpack.c.b16 %v599, %v598
      %v619 = vpack.c.b16 %v601, %v600
      %v620 = vpack.c.b16 %v603, %v602
      %v621 = vpack.c.b16 %v605, %v604
      %638 = vmatpush.bf16.msra.mxu0 %v613
      %639 = vmatpush.bf16.msra.mxu0 %v612
      %640 = vmatpush.bf16.msra.mxu0 %v611
      %641 = vmatpush.bf16.msra.mxu0 %v610
      %642 = vmatpush.bf16.msra.mxu0 %v609
      %643 = vmatpush.bf16.msra.mxu0 %v608
      %644 = vmatpush.bf16.msra.mxu0 %v607
      %645 = vmatpush.bf16.msra.mxu0 %v606
      %646 = vmatmul.bf16.gmra.mxu0 %v490
      %v647 = vpop.f32.mrf.mxu0
      %v648 = vadd.f32 %v540, %v647
      %v649 = vpop.f32.mrf.mxu0
      %v650 = vadd.f32 %v540, %v649
      %651 = vmatmul.bf16.gmra.mxu0 %v492
      %v652 = vpop.f32.mrf.mxu0
      %v653 = vadd.f32 %v540, %v652
      %v654 = vpop.f32.mrf.mxu0
      %v655 = vadd.f32 %v540, %v654
      %656 = vmatmul.bf16.gmra.mxu0 %v494
      %v657 = vpop.f32.mrf.mxu0
      %v658 = vadd.f32 %v540, %v657
      %v659 = vpop.f32.mrf.mxu0
      %v660 = vadd.f32 %v540, %v659
      %661 = vmatmul.bf16.gmra.mxu0 %v496
      %v662 = vpop.f32.mrf.mxu0
      %v663 = vadd.f32 %v540, %v662
      %v664 = vpop.f32.mrf.mxu0
      %v665 = vadd.f32 %v540, %v664
      %666 = vmatmul.bf16.gmra.mxu0 %v498
      %v667 = vpop.f32.mrf.mxu0
      %v668 = vadd.f32 %v540, %v667
      %v669 = vpop.f32.mrf.mxu0
      %v670 = vadd.f32 %v540, %v669
      %671 = vmatmul.bf16.gmra.mxu0 %v500
      %v672 = vpop.f32.mrf.mxu0
      %v673 = vadd.f32 %v540, %v672
      %v674 = vpop.f32.mrf.mxu0
      %v675 = vadd.f32 %v540, %v674
      %676 = vmatmul.bf16.gmra.mxu0 %v502
      %v677 = vpop.f32.mrf.mxu0
      %v678 = vadd.f32 %v540, %v677
      %v679 = vpop.f32.mrf.mxu0
      %v680 = vadd.f32 %v540, %v679
      %681 = vmatmul.bf16.gmra.mxu0 %v504
      %v682 = vpop.f32.mrf.mxu0
      %v683 = vadd.f32 %v540, %v682
      %v684 = vpop.f32.mrf.mxu0
      %v685 = vadd.f32 %v540, %v684
      %686 = vdwg.mxu0
      %687 = vmatpush.bf16.msra.mxu0 %v621
      %688 = vmatpush.bf16.msra.mxu0 %v620
      %689 = vmatpush.bf16.msra.mxu0 %v619
      %690 = vmatpush.bf16.msra.mxu0 %v618
      %691 = vmatpush.bf16.msra.mxu0 %v617
      %692 = vmatpush.bf16.msra.mxu0 %v616
      %693 = vmatpush.bf16.msra.mxu0 %v615
      %694 = vmatpush.bf16.msra.mxu0 %v614
      %695 = vmatmul.bf16.gmra.mxu0 %v491
      %v696 = vpop.f32.mrf.mxu0
      %v697 = vadd.f32 %v648, %v696
      %v698 = vpop.f32.mrf.mxu0
      %v699 = vadd.f32 %v650, %v698
      %700 = vmatmul.bf16.gmra.mxu0 %v493
      %v701 = vpop.f32.mrf.mxu0
      %v702 = vadd.f32 %v653, %v701
      %v703 = vpop.f32.mrf.mxu0
      %v704 = vadd.f32 %v655, %v703
      %705 = vmatmul.bf16.gmra.mxu0 %v495
      %v706 = vpop.f32.mrf.mxu0
      %v707 = vadd.f32 %v658, %v706
      %v708 = vpop.f32.mrf.mxu0
      %v709 = vadd.f32 %v660, %v708
      %710 = vmatmul.bf16.gmra.mxu0 %v497
      %v711 = vpop.f32.mrf.mxu0
      %v712 = vadd.f32 %v663, %v711
      %v713 = vpop.f32.mrf.mxu0
      %v714 = vadd.f32 %v665, %v713
      %715 = vmatmul.bf16.gmra.mxu0 %v499
      %v716 = vpop.f32.mrf.mxu0
      %v717 = vadd.f32 %v668, %v716
      %v718 = vpop.f32.mrf.mxu0
      %v719 = vadd.f32 %v670, %v718
      %720 = vmatmul.bf16.gmra.mxu0 %v501
      %v721 = vpop.f32.mrf.mxu0
      %v722 = vadd.f32 %v673, %v721
      %v723 = vpop.f32.mrf.mxu0
      %v724 = vadd.f32 %v675, %v723
      %725 = vmatmul.bf16.gmra.mxu0 %v503
      %v726 = vpop.f32.mrf.mxu0
      %v727 = vadd.f32 %v678, %v726
      %v728 = vpop.f32.mrf.mxu0
      %v729 = vadd.f32 %v680, %v728
      %730 = vmatmul.bf16.gmra.mxu0 %v505
      %v731 = vpop.f32.mrf.mxu0
      %v732 = vadd.f32 %v683, %v731
      %v733 = vpop.f32.mrf.mxu0
      %v734 = vadd.f32 %v685, %v733
      %735 = vdwg.mxu0
      %736 = vst [vmem:[%s278] sm:$0xff] %v697
      %737 = vst [vmem:[%s278 + $0x8] sm:$0xff] %v699
      %738 = vst [vmem:[%s278 + $0x10] sm:$0xff] %v702
      %739 = vst [vmem:[%s278 + $0x18] sm:$0xff] %v704
      %740 = vst [vmem:[%s278 + $0x20] sm:$0xff] %v707
      %741 = vst [vmem:[%s278 + $0x28] sm:$0xff] %v709
      %742 = vst [vmem:[%s278 + $0x30] sm:$0xff] %v712
      %743 = vst [vmem:[%s278 + $0x38] sm:$0xff] %v714
      %744 = vst [vmem:[%s278 + $0x40] sm:$0xff] %v717
      %745 = vst [vmem:[%s278 + $0x48] sm:$0xff] %v719
      %746 = vst [vmem:[%s278 + $0x50] sm:$0xff] %v722
      %747 = vst [vmem:[%s278 + $0x58] sm:$0xff] %v724
      %748 = vst [vmem:[%s278 + $0x60] sm:$0xff] %v727
      %749 = vst [vmem:[%s278 + $0x68] sm:$0xff] %v729
      %750 = vst [vmem:[%s278 + $0x70] sm:$0xff] %v732
      %751 = vst [vmem:[%s278 + $0x78] sm:$0xff] %v734
      %v752 = vld [vmem:[%s6] sm:$0x1]
      %v753 = vadd.f32 %v697, %v699
      %v754 = vadd.f32 %v753, %v702
      %v755 = vadd.f32 %v754, %v704
      %v756 = vadd.f32 %v755, %v707
      %v757 = vadd.f32 %v756, %v709
      %v758 = vadd.f32 %v757, %v712
      %v759 = vadd.f32 %v758, %v714
      %v760 = vadd.f32 %v759, %v717
      %v761 = vadd.f32 %v760, %v719
      %v762 = vadd.f32 %v761, %v722
      %v763 = vadd.f32 %v762, %v724
      %v764 = vadd.f32 %v763, %v727
      %v765 = vadd.f32 %v764, %v729
      %v766 = vadd.f32 %v765, %v732
      %v767 = vadd.f32 %v766, %v734
      %v768 = vrot.slane %v767, 4
      %v769 = vadd.f32 %v767, %v768
      %v770 = vrot.slane %v769, 2
      %v771 = vadd.f32 %v769, %v770
      %v772 = vrot.slane %v771, 1
      %v773 = vadd.f32 %v771, %v772
      %v774 = vadd.f32 %v752, %v773
      %775 = vst [vmem:[%s6] sm:$0x1] %v774
      %v776 = vld [vmem:[%s7] sm:$0x1]
      %v777 = vmul.f32 %v697, %v697
      %v778 = vmul.f32 %v699, %v699
      %v779 = vmul.f32 %v702, %v702
      %v780 = vmul.f32 %v704, %v704
      %v781 = vmul.f32 %v707, %v707
      %v782 = vmul.f32 %v709, %v709
      %v783 = vmul.f32 %v712, %v712
      %v784 = vmul.f32 %v714, %v714
      %v785 = vmul.f32 %v717, %v717
      %v786 = vmul.f32 %v719, %v719
      %v787 = vmul.f32 %v722, %v722
      %v788 = vmul.f32 %v724, %v724
      %v789 = vmul.f32 %v727, %v727
      %v790 = vmul.f32 %v729, %v729
      %v791 = vmul.f32 %v732, %v732
      %v792 = vmul.f32 %v734, %v734
      %v793 = vadd.f32 %v777, %v778
      %v794 = vadd.f32 %v793, %v779
      %v795 = vadd.f32 %v794, %v780
      %v796 = vadd.f32 %v795, %v781
      %v797 = vadd.f32 %v796, %v782
      %v798 = vadd.f32 %v797, %v783
      %v799 = vadd.f32 %v798, %v784
      %v800 = vadd.f32 %v799, %v785
      %v801 = vadd.f32 %v800, %v786
      %v802 = vadd.f32 %v801, %v787
      %v803 = vadd.f32 %v802, %v788
      %v804 = vadd.f32 %v803, %v789
      %v805 = vadd.f32 %v804, %v790
      %v806 = vadd.f32 %v805, %v791
      %v807 = vadd.f32 %v806, %v792
      %v808 = vrot.slane %v807, 4
      %v809 = vadd.f32 %v807, %v808
      %v810 = vrot.slane %v809, 2
      %v811 = vadd.f32 %v809, %v810
      %v812 = vrot.slane %v811, 1
      %v813 = vadd.f32 %v811, %v812
      %v814 = vadd.f32 %v776, %v813
      %815 = vst [vmem:[%s7] sm:$0x1] %v814
      %s816 = smul.u32 16, %s19
      %p817 = scmp.lt.s32.totalorder %s816, 31
      %s818 = scalar_select %p817, %s816, 31
      %s819 = smul.addr %s818, 8
      %s820 = scalar_lea.vmem %s5, %s819
      // Predicated region
      $region45: #{dualvae_forward.6} parent=39 // pred_check
        %p821 = pneg %p147
      $region46: #{dualvae_forward.6} parent=39 // pred_check_branch
        %823 = sbr.rel (%p821) target = $region48
      $region47: #{dualvae_forward.6} parent=39 // pred_region
        %s824 = smul.u32 16, %s19
      $region48: #{dualvae_forward.6} parent=39 // pred_fallthru
        _
      // Predicated region
      $region49: #{dualvae_forward.6} parent=39 // pred_check
        %p825 = pneg %p168
      $region50: #{dualvae_forward.6} parent=39 // pred_check_branch
        %827 = sbr.rel (%p825) target = $region52
      $region51: #{dualvae_forward.6} parent=39 // pred_region
        _
      $region52: #{dualvae_forward.6} parent=39 // pred_fallthru
        _
      // Predicated region
      $region53: #{dualvae_forward.6} parent=39 // pred_check
        %p828 = pneg %p189
      $region54: #{dualvae_forward.6} parent=39 // pred_check_branch
        %830 = sbr.rel (%p828) target = $region56
      $region55: #{dualvae_forward.6} parent=39 // pred_region
        _
      $region56: #{dualvae_forward.6} parent=39 // pred_fallthru
        _
      // Predicated region
      $region57: #{dualvae_forward.6} parent=39 // pred_check
        %p831 = pneg %p168
      $region58: #{dualvae_forward.6} parent=39 // pred_check_branch
        %833 = sbr.rel (%p831) target = $region60
      $region59: #{dualvae_forward.6} parent=39 // pred_region
        _
      $region60: #{dualvae_forward.6} parent=39 // pred_fallthru
        _
      // Predicated region
      $region61: #{dualvae_forward.6} parent=39 // pred_check
        %p834 = pneg %p189
      $region62: #{dualvae_forward.6} parent=39 // pred_check_branch
        %836 = sbr.rel (%p834) target = $region64
      $region63: #{dualvae_forward.6} parent=39 // pred_region
        _
      $region64: #{dualvae_forward.6} parent=39 // pred_fallthru
        _
    $region40: #{dualvae_forward.6} parent=5 // pred_fallthru
      _
    %p837 = scmp.le.s32.totalorder 2, %s14
    // Predicated region
    $region65: #{dualvae_forward.6} parent=5 // pred_check
      %p838 = pneg %p837
    $region66: #{dualvae_forward.6} parent=5 // pred_check_branch
      %840 = sbr.rel (%p838) target = $region68
    $region67: #{dualvae_forward.6} parent=5 // pred_region
      %s841 = ssub.s32 %s14, 2
      // Predicated region
      $region69: #{dualvae_forward.6} parent=67 // pred_check
        %p842 = pneg %p153
      $region70: #{dualvae_forward.6} parent=67 // pred_check_branch
        %844 = sbr.rel (%p842) target = $region72
      $region71: #{dualvae_forward.6} parent=67 // pred_region
        %s845 = smul.u32 16, %s20
        %p846 = scmp.lt.s32.totalorder %s845, 31
        %s847 = scalar_select %p846, %s845, 31
        %s848 = smul.addr %s847, 8
        %s849 = scalar_lea.vmem %s5, %s848
      $region72: #{dualvae_forward.6} parent=67 // pred_fallthru
        _
    $region68: #{dualvae_forward.6} parent=5 // pred_fallthru
      _
  $region6: #{dualvae_forward.6} parent=0 // loop_footer
    %s18 = sadd.s32 1, %s14
  $region7: #{dualvae_forward.6} parent=0 // loop_footer_branch
    %13 = sbr.rel target = $region3
  $region8: #{dualvae_forward.6} parent=0 // loop_exit
    _

// kernel: dualvae_forward.7
$region0: #{dualvae_forward.7}
  #allocation0 [shape = 'u32[]', space=smem, size = 0x4, offset = 0x4, fixed_abs, tag = 'smem constant byte address 0x4 - core index']
  #allocation1 [shape = 'u32[72,128]{1,0:T(1,128)}', space=vmem, size = 0x9000, scoped, tag = 'internal scratch']
  %s0 = inlined_call_operand.vmem [shape: f32[256,128], index: 0, kind: input, shape index: {}]
  %s1 = inlined_call_operand.vmem [shape: f32[256,32], index: 1, kind: input, shape index: {}]
  %s2 = inlined_call_operand.vmem [shape: f32[1,128], index: 2, kind: input, shape index: {}]
  %s3 = inlined_call_operand.vmem [shape: f32[1,128], index: 3, kind: input, shape index: {}]
  %s4 = inlined_call_operand.vmem [shape: f32[128,32], index: 4, kind: input, shape index: {}]
  %s5 = inlined_call_operand.vmem [shape: f32[1,32], index: 5, kind: input, shape index: {}]
  %s6 = inlined_call_operand.vmem [shape: f32[128,32], index: 6, kind: input, shape index: {}]
  %s7 = inlined_call_operand.vmem [shape: f32[1,32], index: 7, kind: input, shape index: {}]
  %s8 = inlined_call_operand.vmem [shape: bf16[32,128], index: 8, kind: input, shape index: {}]
  %s9 = inlined_call_operand.vmem [shape: f32[1,128], index: 9, kind: input, shape index: {}]
  %s10 = inlined_call_operand.vmem [shape: f32[256,32], index: 10, kind: output, shape index: {0}]
  %s11 = inlined_call_operand.vmem [shape: f32[256,32], index: 11, kind: output, shape index: {1}]
  %s12 = inlined_call_operand.vmem [shape: f32[256,32], index: 12, kind: output, shape index: {2}]
  %s13 = inlined_call_operand.vmem [shape: f32[2,256,128], index: 13, kind: output, shape index: {3}]
  %s14 = inlined_call_operand.vmem [shape: f32[2,1,128], index: 14, kind: output, shape index: {4}]
  %s15 = inlined_call_operand.vmem [shape: f32[2,1,128], index: 15, kind: output, shape index: {5}]
  %16 = xla_tuple %s10, %s11, %s12, %s13, %s14, %s15
  %s17 = sld [smem:[#allocation0]]
  $region151: #{dualvae_forward.7} parent=0
    _
  %s19 = ssub.s32 1, %s17
  %s20 = scalar_select 0, %s19, %s17
  $region1: #{dualvae_forward.7} parent=0
    #allocation2 [shape = 'u8[262144]{0}', space=vmem, size = 0x40000, scoped, tag = 'output window, operand 3']
    loop: start=0, step=1, limit=4
    $region2: #{dualvae_forward.7} parent=1 // loop_pre_header
      _
    $region3: #{dualvae_forward.7} parent=1 // loop_header
      %s22 = sphi 0, %s26
      %p23 = scmp.ge.s32.totalorder %s22, 4
      %s32 = sphi 0, %s34
      %s35 = sphi 0, %s32
      %s36 = sphi 0, %s35
      %s52 = sphi 0, %s36
      %s58 = sphi 0, %s60
      %s61 = sphi 0, %s58
      %s62 = sphi 0, %s61
      %s78 = sphi 0, %s62
      %s82 = sphi 0, %s82
      %s84 = sphi 0, %s82
      %s85 = sphi 0, %s84
      %s99 = sphi 0, %s85
      %s103 = sphi 0, %s103
      %s105 = sphi 0, %s103
      %s106 = sphi 0, %s105
      %s120 = sphi 0, %s106
      %s124 = sphi 0, %s124
      %s126 = sphi 0, %s124
      %s127 = sphi 0, %s126
      %s141 = sphi 0, %s127
      %s145 = sphi 0, %s145
      %s147 = sphi 0, %s145
      %s148 = sphi 0, %s147
      %s162 = sphi 0, %s148
      %s166 = sphi 0, %s166
      %s168 = sphi 0, %s166
      %s169 = sphi 0, %s168
      %s183 = sphi 0, %s169
      %s187 = sphi 0, %s187
      %s189 = sphi 0, %s187
      %s190 = sphi 0, %s189
      %s204 = sphi 0, %s190
      %s208 = sphi 0, %s208
      %s210 = sphi 0, %s208
      %s211 = sphi 0, %s210
      %s225 = sphi 0, %s211
      %s229 = sphi 0, %s229
      %s231 = sphi 0, %s229
      %s232 = sphi 0, %s231
      %s246 = sphi 0, %s232
      %s252 = sphi 0, %s254
      %s255 = sphi 0, %s252
      %s256 = sphi 0, %s255
      %s272 = sphi 0, %s256
      %s278 = sphi 0, %s280
      %s281 = sphi 0, %s278
      %s282 = sphi 0, %s281
      %s298 = sphi 0, %s282
      %s304 = sphi 0, %s306
      %s307 = sphi 0, %s304
      %s308 = sphi 0, %s307
      %s324 = sphi 0, %s308
      %s330 = sphi 0, %s332
      %s333 = sphi 0, %s330
      %s334 = sphi 0, %s333
      %s350 = sphi 0, %s334
      %s354 = sphi 0, %s354
      %s356 = sphi 0, %s354
      %s357 = sphi 0, %s356
      %s371 = sphi 0, %s357
      %s375 = sphi 0, %s375
      %s377 = sphi 0, %s375
      %s378 = sphi 0, %s377
      %s392 = sphi 0, %s378
    $region4: #{dualvae_forward.7} parent=1 // loop_header_branch
      %25 = sbr.rel (%p23) target = $region8
    $region5: #{dualvae_forward.7} parent=1 // loop_body
      %s27 = ssub.s32 %s22, 1
      %s28 = ssub.s32 %s22, 2
      %s29 = sadd.s32 %s22, 1
      %s30 = ssub.s32 %s22, %s29
      %p31 = scmp.eq.s32.totalorder %s30, 0
      %s33 = sadd.s32 %s32, 1
      %s34 = scalar_select %p31, %s32, %s33
      %p37 = pneg %p31
      %p38 = scmp.eq.s32.totalorder %s22, 1
      %p39 = por %p37, %p38
      %p40 = scmp.ne.s32.totalorder %s32, %s35
      %p41 = scmp.eq.s32.totalorder %s22, 0
      %p42 = por %p40, %p41
      %p43 = scmp.ne.s32.totalorder %s32, %s35
      %p44 = scmp.eq.s32.totalorder %s27, 1
      %p45 = por %p43, %p44
      %p46 = scmp.ne.s32.totalorder %s35, %s36
      %p47 = scmp.eq.s32.totalorder %s27, 0
      %p48 = por %p46, %p47
      %p49 = scmp.ne.s32.totalorder %s35, %s36
      %p50 = scmp.eq.s32.totalorder %s28, 1
      %p51 = por %p49, %p50
      %p53 = scmp.ne.s32.totalorder %s36, %s52
      %p54 = scmp.eq.s32.totalorder %s28, 0
      %p55 = por %p53, %p54
      %s56 = ssub.s32 %s22, %s29
      %p57 = scmp.eq.s32.totalorder %s56, 0
      %s59 = sadd.s32 %s58, 1
      %s60 = scalar_select %p57, %s58, %s59
      %p63 = pneg %p57
      %p64 = scmp.eq.s32.totalorder %s22, 1
      %p65 = por %p63, %p64
      %p66 = scmp.ne.s32.totalorder %s58, %s61
      %p67 = scmp.eq.s32.totalorder %s22, 0
      %p68 = por %p66, %p67
      %p69 = scmp.ne.s32.totalorder %s58, %s61
      %p70 = scmp.eq.s32.totalorder %s27, 1
      %p71 = por %p69, %p70
      %p72 = scmp.ne.s32.totalorder %s61, %s62
      %p73 = scmp.eq.s32.totalorder %s27, 0
      %p74 = por %p72, %p73
      %p75 = scmp.ne.s32.totalorder %s61, %s62
      %p76 = scmp.eq.s32.totalorder %s28, 1
      %p77 = por %p75, %p76
      %p79 = scmp.ne.s32.totalorder %s62, %s78
      %p80 = scmp.eq.s32.totalorder %s28, 0
      %p81 = por %p79, %p80
      %s83 = sadd.s32 %s82, 1
      %p86 = scmp.eq.s32.totalorder %s22, 1
      %p87 = scmp.ne.s32.totalorder %s82, %s84
      %p88 = scmp.eq.s32.totalorder %s22, 0
      %p89 = por %p87, %p88
      %p90 = scmp.ne.s32.totalorder %s82, %s84
      %p91 = scmp.eq.s32.totalorder %s27, 1
      %p92 = por %p90, %p91
      %p93 = scmp.ne.s32.totalorder %s84, %s85
      %p94 = scmp.eq.s32.totalorder %s27, 0
      %p95 = por %p93, %p94
      %p96 = scmp.ne.s32.totalorder %s84, %s85
      %p97 = scmp.eq.s32.totalorder %s28, 1
      %p98 = por %p96, %p97
      %p100 = scmp.ne.s32.totalorder %s85, %s99
      %p101 = scmp.eq.s32.totalorder %s28, 0
      %p102 = por %p100, %p101
      %s104 = sadd.s32 %s103, 1
      %p107 = scmp.eq.s32.totalorder %s22, 1
      %p108 = scmp.ne.s32.totalorder %s103, %s105
      %p109 = scmp.eq.s32.totalorder %s22, 0
      %p110 = por %p108, %p109
      %p111 = scmp.ne.s32.totalorder %s103, %s105
      %p112 = scmp.eq.s32.totalorder %s27, 1
      %p113 = por %p111, %p112
      %p114 = scmp.ne.s32.totalorder %s105, %s106
      %p115 = scmp.eq.s32.totalorder %s27, 0
      %p116 = por %p114, %p115
      %p117 = scmp.ne.s32.totalorder %s105, %s106
      %p118 = scmp.eq.s32.totalorder %s28, 1
      %p119 = por %p117, %p118
      %p121 = scmp.ne.s32.totalorder %s106, %s120
      %p122 = scmp.eq.s32.totalorder %s28, 0
      %p123 = por %p121, %p122
      %s125 = sadd.s32 %s124, 1
      %p128 = scmp.eq.s32.totalorder %s22, 1
      %p129 = scmp.ne.s32.totalorder %s124, %s126
      %p130 = scmp.eq.s32.totalorder %s22, 0
      %p131 = por %p129, %p130
      %p132 = scmp.ne.s32.totalorder %s124, %s126
      %p133 = scmp.eq.s32.totalorder %s27, 1
      %p134 = por %p132, %p133
      %p135 = scmp.ne.s32.totalorder %s126, %s127
      %p136 = scmp.eq.s32.totalorder %s27, 0
      %p137 = por %p135, %p136
      %p138 = scmp.ne.s32.totalorder %s126, %s127
      %p139 = scmp.eq.s32.totalorder %s28, 1
      %p140 = por %p138, %p139
      %p142 = scmp.ne.s32.totalorder %s127, %s141
      %p143 = scmp.eq.s32.totalorder %s28, 0
      %p144 = por %p142, %p143
      %s146 = sadd.s32 %s145, 1
      %p149 = scmp.eq.s32.totalorder %s22, 1
      %p150 = scmp.ne.s32.totalorder %s145, %s147
      %p151 = scmp.eq.s32.totalorder %s22, 0
      %p152 = por %p150, %p151
      %p153 = scmp.ne.s32.totalorder %s145, %s147
      %p154 = scmp.eq.s32.totalorder %s27, 1
      %p155 = por %p153, %p154
      %p156 = scmp.ne.s32.totalorder %s147, %s148
      %p157 = scmp.eq.s32.totalorder %s27, 0
      %p158 = por %p156, %p157
      %p159 = scmp.ne.s32.totalorder %s147, %s148
      %p160 = scmp.eq.s32.totalorder %s28, 1
      %p161 = por %p159, %p160
      %p163 = scmp.ne.s32.totalorder %s148, %s162
      %p164 = scmp.eq.s32.totalorder %s28, 0
      %p165 = por %p163, %p164
      %s167 = sadd.s32 %s166, 1
      %p170 = scmp.eq.s32.totalorder %s22, 1
      %p171 = scmp.ne.s32.totalorder %s166, %s168
      %p172 = scmp.eq.s32.totalorder %s22, 0
      %p173 = por %p171, %p172
      %p174 = scmp.ne.s32.totalorder %s166, %s168
      %p175 = scmp.eq.s32.totalorder %s27, 1
      %p176 = por %p174, %p175
      %p177 = scmp.ne.s32.totalorder %s168, %s169
      %p178 = scmp.eq.s32.totalorder %s27, 0
      %p179 = por %p177, %p178
      %p180 = scmp.ne.s32.totalorder %s168, %s169
      %p181 = scmp.eq.s32.totalorder %s28, 1
      %p182 = por %p180, %p181
      %p184 = scmp.ne.s32.totalorder %s169, %s183
      %p185 = scmp.eq.s32.totalorder %s28, 0
      %p186 = por %p184, %p185
      %s188 = sadd.s32 %s187, 1
      %p191 = scmp.eq.s32.totalorder %s22, 1
      %p192 = scmp.ne.s32.totalorder %s187, %s189
      %p193 = scmp.eq.s32.totalorder %s22, 0
      %p194 = por %p192, %p193
      %p195 = scmp.ne.s32.totalorder %s187, %s189
      %p196 = scmp.eq.s32.totalorder %s27, 1
      %p197 = por %p195, %p196
      %p198 = scmp.ne.s32.totalorder %s189, %s190
      %p199 = scmp.eq.s32.totalorder %s27, 0
      %p200 = por %p198, %p199
      %p201 = scmp.ne.s32.totalorder %s189, %s190
      %p202 = scmp.eq.s32.totalorder %s28, 1
      %p203 = por %p201, %p202
      %p205 = scmp.ne.s32.totalorder %s190, %s204
      %p206 = scmp.eq.s32.totalorder %s28, 0
      %p207 = por %p205, %p206
      %s209 = sadd.s32 %s208, 1
      %p212 = scmp.eq.s32.totalorder %s22, 1
      %p213 = scmp.ne.s32.totalorder %s208, %s210
      %p214 = scmp.eq.s32.totalorder %s22, 0
      %p215 = por %p213, %p214
      %p216 = scmp.ne.s32.totalorder %s208, %s210
      %p217 = scmp.eq.s32.totalorder %s27, 1
      %p218 = por %p216, %p217
      %p219 = scmp.ne.s32.totalorder %s210, %s211
      %p220 = scmp.eq.s32.totalorder %s27, 0
      %p221 = por %p219, %p220
      %p222 = scmp.ne.s32.totalorder %s210, %s211
      %p223 = scmp.eq.s32.totalorder %s28, 1
      %p224 = por %p222, %p223
      %p226 = scmp.ne.s32.totalorder %s211, %s225
      %p227 = scmp.eq.s32.totalorder %s28, 0
      %p228 = por %p226, %p227
      %s230 = sadd.s32 %s229, 1
      %p233 = scmp.eq.s32.totalorder %s22, 1
      %p234 = scmp.ne.s32.totalorder %s229, %s231
      %p235 = scmp.eq.s32.totalorder %s22, 0
      %p236 = por %p234, %p235
      %p237 = scmp.ne.s32.totalorder %s229, %s231
      %p238 = scmp.eq.s32.totalorder %s27, 1
      %p239 = por %p237, %p238
      %p240 = scmp.ne.s32.totalorder %s231, %s232
      %p241 = scmp.eq.s32.totalorder %s27, 0
      %p242 = por %p240, %p241
      %p243 = scmp.ne.s32.totalorder %s231, %s232
      %p244 = scmp.eq.s32.totalorder %s28, 1
      %p245 = por %p243, %p244
      %p247 = scmp.ne.s32.totalorder %s232, %s246
      %p248 = scmp.eq.s32.totalorder %s28, 0
      %p249 = por %p247, %p248
      %s250 = ssub.s32 %s22, %s29
      %p251 = scmp.eq.s32.totalorder %s250, 0
      %s253 = sadd.s32 %s252, 1
      %s254 = scalar_select %p251, %s252, %s253
      %p257 = pneg %p251
      %p258 = scmp.eq.s32.totalorder %s22, 1
      %p259 = por %p257, %p258
      %p260 = scmp.ne.s32.totalorder %s252, %s255
      %p261 = scmp.eq.s32.totalorder %s22, 0
      %p262 = por %p260, %p261
      %p263 = scmp.ne.s32.totalorder %s252, %s255
      %p264 = scmp.eq.s32.totalorder %s27, 1
      %p265 = por %p263, %p264
      %p266 = scmp.ne.s32.totalorder %s255, %s256
      %p267 = scmp.eq.s32.totalorder %s27, 0
      %p268 = por %p266, %p267
      %p269 = scmp.ne.s32.totalorder %s255, %s256
      %p270 = scmp.eq.s32.totalorder %s28, 1
      %p271 = por %p269, %p270
      %p273 = scmp.ne.s32.totalorder %s256, %s272
      %p274 = scmp.eq.s32.totalorder %s28, 0
      %p275 = por %p273, %p274
      %s276 = ssub.s32 %s22, %s29
      %p277 = scmp.eq.s32.totalorder %s276, 0
      %s279 = sadd.s32 %s278, 1
      %s280 = scalar_select %p277, %s278, %s279
      %p283 = pneg %p277
      %p284 = scmp.eq.s32.totalorder %s22, 1
      %p285 = por %p283, %p284
      %p286 = scmp.ne.s32.totalorder %s278, %s281
      %p287 = scmp.eq.s32.totalorder %s22, 0
      %p288 = por %p286, %p287
      %p289 = scmp.ne.s32.totalorder %s278, %s281
      %p290 = scmp.eq.s32.totalorder %s27, 1
      %p291 = por %p289, %p290
      %p292 = scmp.ne.s32.totalorder %s281, %s282
      %p293 = scmp.eq.s32.totalorder %s27, 0
      %p294 = por %p292, %p293
      %p295 = scmp.ne.s32.totalorder %s281, %s282
      %p296 = scmp.eq.s32.totalorder %s28, 1
      %p297 = por %p295, %p296
      %p299 = scmp.ne.s32.totalorder %s282, %s298
      %p300 = scmp.eq.s32.totalorder %s28, 0
      %p301 = por %p299, %p300
      %s302 = ssub.s32 %s22, %s29
      %p303 = scmp.eq.s32.totalorder %s302, 0
      %s305 = sadd.s32 %s304, 1
      %s306 = scalar_select %p303, %s304, %s305
      %p309 = pneg %p303
      %p310 = scmp.eq.s32.totalorder %s22, 1
      %p311 = por %p309, %p310
      %p312 = scmp.ne.s32.totalorder %s304, %s307
      %p313 = scmp.eq.s32.totalorder %s22, 0
      %p314 = por %p312, %p313
      %p315 = scmp.ne.s32.totalorder %s304, %s307
      %p316 = scmp.eq.s32.totalorder %s27, 1
      %p317 = por %p315, %p316
      %p318 = scmp.ne.s32.totalorder %s307, %s308
      %p319 = scmp.eq.s32.totalorder %s27, 0
      %p320 = por %p318, %p319
      %p321 = scmp.ne.s32.totalorder %s307, %s308
      %p322 = scmp.eq.s32.totalorder %s28, 1
      %p323 = por %p321, %p322
      %p325 = scmp.ne.s32.totalorder %s308, %s324
      %p326 = scmp.eq.s32.totalorder %s28, 0
      %p327 = por %p325, %p326
      %s328 = ssub.s32 %s22, %s29
      %p329 = scmp.eq.s32.totalorder %s328, 0
      %s331 = sadd.s32 %s330, 1
      %s332 = scalar_select %p329, %s330, %s331
      %p335 = pneg %p329
      %p336 = scmp.eq.s32.totalorder %s22, 1
      %p337 = por %p335, %p336
      %p338 = scmp.ne.s32.totalorder %s330, %s333
      %p339 = scmp.eq.s32.totalorder %s22, 0
      %p340 = por %p338, %p339
      %p341 = scmp.ne.s32.totalorder %s330, %s333
      %p342 = scmp.eq.s32.totalorder %s27, 1
      %p343 = por %p341, %p342
      %p344 = scmp.ne.s32.totalorder %s333, %s334
      %p345 = scmp.eq.s32.totalorder %s27, 0
      %p346 = por %p344, %p345
      %p347 = scmp.ne.s32.totalorder %s333, %s334
      %p348 = scmp.eq.s32.totalorder %s28, 1
      %p349 = por %p347, %p348
      %p351 = scmp.ne.s32.totalorder %s334, %s350
      %p352 = scmp.eq.s32.totalorder %s28, 0
      %p353 = por %p351, %p352
      %s355 = sadd.s32 %s354, 1
      %p358 = scmp.eq.s32.totalorder %s22, 1
      %p359 = scmp.ne.s32.totalorder %s354, %s356
      %p360 = scmp.eq.s32.totalorder %s22, 0
      %p361 = por %p359, %p360
      %p362 = scmp.ne.s32.totalorder %s354, %s356
      %p363 = scmp.eq.s32.totalorder %s27, 1
      %p364 = por %p362, %p363
      %p365 = scmp.ne.s32.totalorder %s356, %s357
      %p366 = scmp.eq.s32.totalorder %s27, 0
      %p367 = por %p365, %p366
      %p368 = scmp.ne.s32.totalorder %s356, %s357
      %p369 = scmp.eq.s32.totalorder %s28, 1
      %p370 = por %p368, %p369
      %p372 = scmp.ne.s32.totalorder %s357, %s371
      %p373 = scmp.eq.s32.totalorder %s28, 0
      %p374 = por %p372, %p373
      %s376 = sadd.s32 %s375, 1
      %p379 = scmp.eq.s32.totalorder %s22, 1
      %p380 = scmp.ne.s32.totalorder %s375, %s377
      %p381 = scmp.eq.s32.totalorder %s22, 0
      %p382 = por %p380, %p381
      %p383 = scmp.ne.s32.totalorder %s375, %s377
      %p384 = scmp.eq.s32.totalorder %s27, 1
      %p385 = por %p383, %p384
      %p386 = scmp.ne.s32.totalorder %s377, %s378
      %p387 = scmp.eq.s32.totalorder %s27, 0
      %p388 = por %p386, %p387
      %p389 = scmp.ne.s32.totalorder %s377, %s378
      %p390 = scmp.eq.s32.totalorder %s28, 1
      %p391 = por %p389, %p390
      %p393 = scmp.ne.s32.totalorder %s378, %s392
      %p394 = scmp.eq.s32.totalorder %s28, 0
      %p395 = por %p393, %p394
      %p396 = scmp.le.s32.totalorder 1, %s22
      %p397 = scmp.lt.s32.totalorder %s22, 3
      %p398 = pnand %p396, %p397
      %p399 = pneg %p398
      // Predicated region
      $region9: #{dualvae_forward.7} parent=5 // pred_check
        _
      $region10: #{dualvae_forward.7} parent=5 // pred_check_branch
        %401 = sbr.rel (%p398) target = $region12
      $region11: #{dualvae_forward.7} parent=5 // pred_region
        %s402 = ssub.s32 %s22, 1
        // Predicated region
        $region13: #{dualvae_forward.7} parent=11 // pred_check
          %p403 = pneg %p95
        $region14: #{dualvae_forward.7} parent=11 // pred_check_branch
          %405 = sbr.rel (%p403) target = $region16
        $region15: #{dualvae_forward.7} parent=11 // pred_region
          _
        $region16: #{dualvae_forward.7} parent=11 // pred_fallthru
          _
        // Predicated region
        $region17: #{dualvae_forward.7} parent=11 // pred_check
          %p406 = pneg %p116
        $region18: #{dualvae_forward.7} parent=11 // pred_check_branch
          %408 = sbr.rel (%p406) target = $region20
        $region19: #{dualvae_forward.7} parent=11 // pred_region
          _
        $region20: #{dualvae_forward.7} parent=11 // pred_fallthru
          _
        // Predicated region
        $region21: #{dualvae_forward.7} parent=11 // pred_check
          %p409 = pneg %p137
        $region22: #{dualvae_forward.7} parent=11 // pred_check_branch
          %411 = sbr.rel (%p409) target = $region24
        $region23: #{dualvae_forward.7} parent=11 // pred_region
          _
        $region24: #{dualvae_forward.7} parent=11 // pred_fallthru
          _
        // Predicated region
        $region25: #{dualvae_forward.7} parent=11 // pred_check
          %p412 = pneg %p158
        $region26: #{dualvae_forward.7} parent=11 // pred_check_branch
          %414 = sbr.rel (%p412) target = $region28
        $region27: #{dualvae_forward.7} parent=11 // pred_region
          _
        $region28: #{dualvae_forward.7} parent=11 // pred_fallthru
          _
        // Predicated region
        $region29: #{dualvae_forward.7} parent=11 // pred_check
          %p415 = pneg %p179
        $region30: #{dualvae_forward.7} parent=11 // pred_check_branch
          %417 = sbr.rel (%p415) target = $region32
        $region31: #{dualvae_forward.7} parent=11 // pred_region
          _
        $region32: #{dualvae_forward.7} parent=11 // pred_fallthru
          _
        // Predicated region
        $region33: #{dualvae_forward.7} parent=11 // pred_check
          %p418 = pneg %p200
        $region34: #{dualvae_forward.7} parent=11 // pred_check_branch
          %420 = sbr.rel (%p418) target = $region36
        $region35: #{dualvae_forward.7} parent=11 // pred_region
          _
        $region36: #{dualvae_forward.7} parent=11 // pred_fallthru
          _
        // Predicated region
        $region37: #{dualvae_forward.7} parent=11 // pred_check
          %p421 = pneg %p221
        $region38: #{dualvae_forward.7} parent=11 // pred_check_branch
          %423 = sbr.rel (%p421) target = $region40
        $region39: #{dualvae_forward.7} parent=11 // pred_region
          _
        $region40: #{dualvae_forward.7} parent=11 // pred_fallthru
          _
        // Predicated region
        $region41: #{dualvae_forward.7} parent=11 // pred_check
          %p424 = pneg %p242
        $region42: #{dualvae_forward.7} parent=11 // pred_check_branch
          %426 = sbr.rel (%p424) target = $region44
        $region43: #{dualvae_forward.7} parent=11 // pred_region
          _
        $region44: #{dualvae_forward.7} parent=11 // pred_fallthru
          _
      $region12: #{dualvae_forward.7} parent=5 // pred_fallthru
        _
      %p427 = scmp.lt.s32.totalorder %s22, 2
      // Predicated region
      $region45: #{dualvae_forward.7} parent=5 // pred_check
        %p428 = pneg %p427
      $region46: #{dualvae_forward.7} parent=5 // pred_check_branch
        %430 = sbr.rel (%p428) target = $region48
      $region47: #{dualvae_forward.7} parent=5 // pred_region
        // Predicated region
        $region49: #{dualvae_forward.7} parent=47 // pred_check
          %p431 = pneg %p42
        $region50: #{dualvae_forward.7} parent=47 // pred_check_branch
          %433 = sbr.rel (%p431) target = $region52
        $region51: #{dualvae_forward.7} parent=47 // pred_region
          %s434 = smul.u32 16, %s22
          %p435 = scmp.lt.s32.totalorder %s434, 31
          %s436 = scalar_select %p435, %s434, 31
          %s437 = smul.addr %s436, 8
          %s438 = scalar_lea.vmem %s0, %s437
          %s439 = smul.u32 16, %s22
        $region52: #{dualvae_forward.7} parent=47 // pred_fallthru
          _
        // Predicated region
        $region53: #{dualvae_forward.7} parent=47 // pred_check
          %p440 = pneg %p68
        $region54: #{dualvae_forward.7} parent=47 // pred_check_branch
          %442 = sbr.rel (%p440) target = $region56
        $region55: #{dualvae_forward.7} parent=47 // pred_region
          %s443 = smul.u32 16, %s22
          %p444 = scmp.lt.s32.totalorder %s443, 31
          %s445 = scalar_select %p444, %s443, 31
          %s446 = smul.addr %s445, 8
          %s447 = scalar_lea.vmem %s1, %s446
          %s448 = smul.u32 16, %s22
        $region56: #{dualvae_forward.7} parent=47 // pred_fallthru
          _
      $region48: #{dualvae_forward.7} parent=5 // pred_fallthru
        _
      %p449 = scmp.le.s32.totalorder 1, %s22
      %p450 = scmp.lt.s32.totalorder %s22, 3
      %p451 = pnand %p449, %p450
      %p452 = pneg %p451
      // Predicated region
      $region57: #{dualvae_forward.7} parent=5 // pred_check
        _
      $region58: #{dualvae_forward.7} parent=5 // pred_check_branch
        %454 = sbr.rel (%p451) target = $region60
      $region59: #{dualvae_forward.7} parent=5 // pred_region
        %s455 = ssub.s32 %s22, 1
        %s456 = smul.u32 16, %s27
        %p457 = scmp.lt.s32.totalorder %s456, 31
        %s458 = scalar_select %p457, %s456, 31
        %s459 = smul.addr %s458, 8
        %s460 = scalar_lea.vmem %s0, %s459
        %p461 = pneg %p48
        %p462 = pneg %p45
        %s463 = smul.u32 16, %s27
        %p464 = scmp.lt.s32.totalorder %s463, 31
        %s465 = scalar_select %p464, %s463, 31
        %s466 = smul.addr %s465, 8
        %s467 = scalar_lea.vmem %s1, %s466
        %p468 = pneg %p74
        %p469 = pneg %p71
        %p470 = pneg %p95
        %p471 = pneg %p92
        %p472 = pneg %p116
        %p473 = pneg %p113
        %p474 = pneg %p137
        %p475 = pneg %p134
        %p476 = pneg %p158
        %p477 = pneg %p155
        %p478 = pneg %p179
        %p479 = pneg %p176
        %p480 = pneg %p200
        %p481 = pneg %p197
        %p482 = pneg %p221
        %p483 = pneg %p218
        %p484 = pneg %p242
        %p485 = pneg %p239
        %p486 = pneg %p268
        %p487 = pneg %p265
        %s488 = smul.u32 16, %s27
        %p489 = scmp.lt.s32.totalorder %s488, 31
        %s490 = scalar_select %p489, %s488, 31
        %s491 = smul.addr %s490, 8
        %s492 = scalar_lea.vmem %s10, %s491
        %p493 = pneg %p294
        %p494 = pneg %p291
        %s495 = smul.u32 16, %s27
        %p496 = scmp.lt.s32.totalorder %s495, 31
        %s497 = scalar_select %p496, %s495, 31
        %s498 = smul.addr %s497, 8
        %s499 = scalar_lea.vmem %s11, %s498
        %p500 = pneg %p320
        %p501 = pneg %p317
        %s502 = smul.u32 16, %s27
        %p503 = scmp.lt.s32.totalorder %s502, 31
        %s504 = scalar_select %p503, %s502, 31
        %s505 = smul.addr %s504, 8
        %s506 = scalar_lea.vmem %s12, %s505
        %p507 = pneg %p346
        %p508 = pneg %p343
        %s509 = sand.u32 %s333, 1
        %s510 = sand.u32 %s333, 1
        %s511 = smul.addr %s510, 256
        %s512 = scalar_lea.vmem [#allocation2], %s511
        %p513 = pneg %p367
        %p514 = pneg %p364
        %p515 = pneg %p388
        %p516 = pneg %p385
        %s517 = smul.u32 16, %s27
        %p518 = scmp.lt.s32.totalorder %s517, 31
        %s519 = scalar_select %p518, %s517, 31
        %s520 = smul.addr %s519, 8
        %s521 = scalar_lea.vmem %s0, %s520
        %s522 = smul.u32 16, %s27
        %s523 = smul.u32 16, %s27
        %p524 = scmp.lt.s32.totalorder %s523, 31
        %s525 = scalar_select %p524, %s523, 31
        %s526 = smul.addr %s525, 8
        %s527 = scalar_lea.vmem %s1, %s526
        %s528 = smul.u32 16, %s27
        %s529 = smul.u32 16, %s27
        %p530 = scmp.lt.s32.totalorder %s529, 31
        %s531 = scalar_select %p530, %s529, 31
        %s532 = smul.addr %s531, 8
        %s533 = scalar_lea.vmem %s10, %s532
        %s534 = smul.u32 16, %s27
        %s535 = smul.u32 16, %s27
        %p536 = scmp.lt.s32.totalorder %s535, 31
        %s537 = scalar_select %p536, %s535, 31
        %s538 = smul.addr %s537, 8
        %s539 = scalar_lea.vmem %s11, %s538
        %s540 = smul.u32 16, %s27
        %s541 = smul.u32 16, %s27
        %p542 = scmp.lt.s32.totalorder %s541, 31
        %s543 = scalar_select %p542, %s541, 31
        %s544 = smul.addr %s543, 8
        %s545 = scalar_lea.vmem %s12, %s544
        %s546 = smul.u32 16, %s27
        %s547 = smul.u32 16, %s27
        %p549 = scmp.eq.s32.totalorder %s27, 0
        // Predicated region
        $region61: #{dualvae_forward.7} parent=59 // pred_check
          %p550 = pneg %p549
        $region62: #{dualvae_forward.7} parent=59 // pred_check_branch
          %552 = sbr.rel (%p550) target = $region64
        $region63: #{dualvae_forward.7} parent=59 // pred_region
          %553 = vst [vmem:[%s14] sm:$0x1] 0.0
          %554 = vst [vmem:[%s14 + $0x1] sm:$0x1] 0.0
          %555 = vst [vmem:[%s15] sm:$0x1] 0.0
          %556 = vst [vmem:[%s15 + $0x1] sm:$0x1] 0.0
        $region64: #{dualvae_forward.7} parent=59 // pred_fallthru
          _
        %v557 = vld [vmem:[%s521] sm:$0xff]
        %v558 = vld [vmem:[%s521 + $0x8] sm:$0xff]
        %v559 = vld [vmem:[%s521 + $0x10] sm:$0xff]
        %v560 = vld [vmem:[%s521 + $0x18] sm:$0xff]
        %v561 = vld [vmem:[%s521 + $0x20] sm:$0xff]
        %v562 = vld [vmem:[%s521 + $0x28] sm:$0xff]
        %v563 = vld [vmem:[%s521 + $0x30] sm:$0xff]
        %v564 = vld [vmem:[%s521 + $0x38] sm:$0xff]
        %v565 = vld [vmem:[%s521 + $0x40] sm:$0xff]
        %v566 = vld [vmem:[%s521 + $0x48] sm:$0xff]
        %v567 = vld [vmem:[%s521 + $0x50] sm:$0xff]
        %v568 = vld [vmem:[%s521 + $0x58] sm:$0xff]
        %v569 = vld [vmem:[%s521 + $0x60] sm:$0xff]
        %v570 = vld [vmem:[%s521 + $0x68] sm:$0xff]
        %v571 = vld [vmem:[%s521 + $0x70] sm:$0xff]
        %v572 = vld [vmem:[%s521 + $0x78] sm:$0xff]
        %v573 = vld [vmem:[%s2] sm:$0x1]
        %v575 = vperm.slane %v573, 0
        %v577 = vmul.f32 %v557, %v575
        %v578 = vmul.f32 %v558, %v575
        %v579 = vmul.f32 %v559, %v575
        %v580 = vmul.f32 %v560, %v575
        %v581 = vmul.f32 %v561, %v575
        %v582 = vmul.f32 %v562, %v575
        %v583 = vmul.f32 %v563, %v575
        %v584 = vmul.f32 %v564, %v575
        %v585 = vmul.f32 %v565, %v575
        %v586 = vmul.f32 %v566, %v575
        %v587 = vmul.f32 %v567, %v575
        %v588 = vmul.f32 %v568, %v575
        %v589 = vmul.f32 %v569, %v575
        %v590 = vmul.f32 %v570, %v575
        %v591 = vmul.f32 %v571, %v575
        %v592 = vmul.f32 %v572, %v575
        %v593 = vld [vmem:[%s3] sm:$0x1]
        %v595 = vperm.slane %v593, 0
        %v597 = vadd.f32 %v577, %v595
        %v598 = vadd.f32 %v578, %v595
        %v599 = vadd.f32 %v579, %v595
        %v600 = vadd.f32 %v580, %v595
        %v601 = vadd.f32 %v581, %v595
        %v602 = vadd.f32 %v582, %v595
        %v603 = vadd.f32 %v583, %v595
        %v604 = vadd.f32 %v584, %v595
        %v605 = vadd.f32 %v585, %v595
        %v606 = vadd.f32 %v586, %v595
        %v607 = vadd.f32 %v587, %v595
        %v608 = vadd.f32 %v588, %v595
        %v609 = vadd.f32 %v589, %v595
        %v610 = vadd.f32 %v590, %v595
        %v611 = vadd.f32 %v591, %v595
        %v612 = vadd.f32 %v592, %v595
        %vm613 = vcmp.gt.f32.partialorder %v597, 0.0
        %vm614 = vcmp.gt.f32.partialorder %v598, 0.0
        %vm615 = vcmp.gt.f32.partialorder %v599, 0.0
        %vm616 = vcmp.gt.f32.partialorder %v600, 0.0
        %vm617 = vcmp.gt.f32.partialorder %v601, 0.0
        %vm618 = vcmp.gt.f32.partialorder %v602, 0.0
        %vm619 = vcmp.gt.f32.partialorder %v603, 0.0
        %vm620 = vcmp.gt.f32.partialorder %v604, 0.0
        %vm621 = vcmp.gt.f32.partialorder %v605, 0.0
        %vm622 = vcmp.gt.f32.partialorder %v606, 0.0
        %vm623 = vcmp.gt.f32.partialorder %v607, 0.0
        %vm624 = vcmp.gt.f32.partialorder %v608, 0.0
        %vm625 = vcmp.gt.f32.partialorder %v609, 0.0
        %vm626 = vcmp.gt.f32.partialorder %v610, 0.0
        %vm627 = vcmp.gt.f32.partialorder %v611, 0.0
        %vm628 = vcmp.gt.f32.partialorder %v612, 0.0
        %v629 = vmul.f32 %v597, 0.1
        %v630 = vmul.f32 %v598, 0.1
        %v631 = vmul.f32 %v599, 0.1
        %v632 = vmul.f32 %v600, 0.1
        %v633 = vmul.f32 %v601, 0.1
        %v634 = vmul.f32 %v602, 0.1
        %v635 = vmul.f32 %v603, 0.1
        %v636 = vmul.f32 %v604, 0.1
        %v637 = vmul.f32 %v605, 0.1
        %v638 = vmul.f32 %v606, 0.1
        %v639 = vmul.f32 %v607, 0.1
        %v640 = vmul.f32 %v608, 0.1
        %v641 = vmul.f32 %v609, 0.1
        %v642 = vmul.f32 %v610, 0.1
        %v643 = vmul.f32 %v611, 0.1
        %v644 = vmul.f32 %v612, 0.1
        %v645 = vsel %vm613, %v597, %v629
        %v646 = vsel %vm614, %v598, %v630
        %v647 = vsel %vm615, %v599, %v631
        %v648 = vsel %vm616, %v600, %v632
        %v649 = vsel %vm617, %v601, %v633
        %v650 = vsel %vm618, %v602, %v634
        %v651 = vsel %vm619, %v603, %v635
        %v652 = vsel %vm620, %v604, %v636
        %v653 = vsel %vm621, %v605, %v637
        %v654 = vsel %vm622, %v606, %v638
        %v655 = vsel %vm623, %v607, %v639
        %v656 = vsel %vm624, %v608, %v640
        %v657 = vsel %vm625, %v609, %v641
        %v658 = vsel %vm626, %v610, %v642
        %v659 = vsel %vm627, %v611, %v643
        %v660 = vsel %vm628, %v612, %v644
        %v661 = vld [vmem:[%s4] sm:$0xff]
        %v662 = vld [vmem:[%s4 + $0x8] sm:$0xff]
        %v663 = vld [vmem:[%s4 + $0x10] sm:$0xff]
        %v664 = vld [vmem:[%s4 + $0x18] sm:$0xff]
        %v665 = vld [vmem:[%s4 + $0x20] sm:$0xff]
        %v666 = vld [vmem:[%s4 + $0x28] sm:$0xff]
        %v667 = vld [vmem:[%s4 + $0x30] sm:$0xff]
        %v668 = vld [vmem:[%s4 + $0x38] sm:$0xff]
        %v669 = vld [vmem:[%s4 + $0x40] sm:$0xff]
        %v670 = vld [vmem:[%s4 + $0x48] sm:$0xff]
        %v671 = vld [vmem:[%s4 + $0x50] sm:$0xff]
        %v672 = vld [vmem:[%s4 + $0x58] sm:$0xff]
        %v673 = vld [vmem:[%s4 + $0x60] sm:$0xff]
        %v674 = vld [vmem:[%s4 + $0x68] sm:$0xff]
        %v675 = vld [vmem:[%s4 + $0x70] sm:$0xff]
        %v676 = vld [vmem:[%s4 + $0x78] sm:$0xff]
        %v677 = vld [vmem:[%s5] sm:$0x1]
        %v679 = vperm.slane %v677, 0
        %681 = vmatpush.msra.mxu0 %v676
        %682 = vmatpush.msra.mxu0 %v675
        %683 = vmatpush.msra.mxu0 %v674
        %684 = vmatpush.msra.mxu0 %v673
        %685 = vmatpush.msra.mxu0 %v672
        %686 = vmatpush.msra.mxu0 %v671
        %687 = vmatpush.msra.mxu0 %v670
        %688 = vmatpush.msra.mxu0 %v669
        %689 = vmatpush.msra.mxu0 %v668
        %690 = vmatpush.msra.mxu0 %v667
        %691 = vmatpush.msra.mxu0 %v666
        %692 = vmatpush.msra.mxu0 %v665
        %693 = vmatpush.msra.mxu0 %v664
        %694 = vmatpush.msra.mxu0 %v663
        %695 = vmatpush.msra.mxu0 %v662
        %696 = vmatpush.msra.mxu0 %v661
        %697 = vmatmul.f32.gmra.mxu0 %v645
        %v698 = vpop.f32.mrf.mxu0
        %v699 = vadd.f32 %v679, %v698
        %700 = vmatmul.f32.gmra.mxu0 %v646
        %v701 = vpop.f32.mrf.mxu0
        %v702 = vadd.f32 %v679, %v701
        %703 = vmatmul.f32.gmra.mxu0 %v647
        %v704 = vpop.f32.mrf.mxu0
        %v705 = vadd.f32 %v679, %v704
        %706 = vmatmul.f32.gmra.mxu0 %v648
        %v707 = vpop.f32.mrf.mxu0
        %v708 = vadd.f32 %v679, %v707
        %709 = vmatmul.f32.gmra.mxu0 %v649
        %v710 = vpop.f32.mrf.mxu0
        %v711 = vadd.f32 %v679, %v710
        %712 = vmatmul.f32.gmra.mxu0 %v650
        %v713 = vpop.f32.mrf.mxu0
        %v714 = vadd.f32 %v679, %v713
        %715 = vmatmul.f32.gmra.mxu0 %v651
        %v716 = vpop.f32.mrf.mxu0
        %v717 = vadd.f32 %v679, %v716
        %718 = vmatmul.f32.gmra.mxu0 %v652
        %v719 = vpop.f32.mrf.mxu0
        %v720 = vadd.f32 %v679, %v719
        %721 = vmatmul.f32.gmra.mxu0 %v653
        %v722 = vpop.f32.mrf.mxu0
        %v723 = vadd.f32 %v679, %v722
        %724 = vmatmul.f32.gmra.mxu0 %v654
        %v725 = vpop.f32.mrf.mxu0
        %v726 = vadd.f32 %v679, %v725
        %727 = vmatmul.f32.gmra.mxu0 %v655
        %v728 = vpop.f32.mrf.mxu0
        %v729 = vadd.f32 %v679, %v728
        %730 = vmatmul.f32.gmra.mxu0 %v656
        %v731 = vpop.f32.mrf.mxu0
        %v732 = vadd.f32 %v679, %v731
        %733 = vmatmul.f32.gmra.mxu0 %v657
        %v734 = vpop.f32.mrf.mxu0
        %v735 = vadd.f32 %v679, %v734
        %736 = vmatmul.f32.gmra.mxu0 %v658
        %v737 = vpop.f32.mrf.mxu0
        %v738 = vadd.f32 %v679, %v737
        %739 = vmatmul.f32.gmra.mxu0 %v659
        %v740 = vpop.f32.mrf.mxu0
        %v741 = vadd.f32 %v679, %v740
        %742 = vmatmul.f32.gmra.mxu0 %v660
        %v743 = vpop.f32.mrf.mxu0
        %v744 = vadd.f32 %v679, %v743
        %745 = vdwg.mxu0
        %v746 = vld [vmem:[%s6] sm:$0xff]
        %v747 = vld [vmem:[%s6 + $0x8] sm:$0xff]
        %v748 = vld [vmem:[%s6 + $0x10] sm:$0xff]
        %v749 = vld [vmem:[%s6 + $0x18] sm:$0xff]
        %v750 = vld [vmem:[%s6 + $0x20] sm:$0xff]
        %v751 = vld [vmem:[%s6 + $0x28] sm:$0xff]
        %v752 = vld [vmem:[%s6 + $0x30] sm:$0xff]
        %v753 = vld [vmem:[%s6 + $0x38] sm:$0xff]
        %v754 = vld [vmem:[%s6 + $0x40] sm:$0xff]
        %v755 = vld [vmem:[%s6 + $0x48] sm:$0xff]
        %v756 = vld [vmem:[%s6 + $0x50] sm:$0xff]
        %v757 = vld [vmem:[%s6 + $0x58] sm:$0xff]
        %v758 = vld [vmem:[%s6 + $0x60] sm:$0xff]
        %v759 = vld [vmem:[%s6 + $0x68] sm:$0xff]
        %v760 = vld [vmem:[%s6 + $0x70] sm:$0xff]
        %v761 = vld [vmem:[%s6 + $0x78] sm:$0xff]
        %v762 = vld [vmem:[%s7] sm:$0x1]
        %v764 = vperm.slane %v762, 0
        %766 = vmatpush.msra.mxu0 %v761
        %767 = vmatpush.msra.mxu0 %v760
        %768 = vmatpush.msra.mxu0 %v759
        %769 = vmatpush.msra.mxu0 %v758
        %770 = vmatpush.msra.mxu0 %v757
        %771 = vmatpush.msra.mxu0 %v756
        %772 = vmatpush.msra.mxu0 %v755
        %773 = vmatpush.msra.mxu0 %v754
        %774 = vmatpush.msra.mxu0 %v753
        %775 = vmatpush.msra.mxu0 %v752
        %776 = vmatpush.msra.mxu0 %v751
        %777 = vmatpush.msra.mxu0 %v750
        %778 = vmatpush.msra.mxu0 %v749
        %779 = vmatpush.msra.mxu0 %v748
        %780 = vmatpush.msra.mxu0 %v747
        %781 = vmatpush.msra.mxu0 %v746
        %782 = vmatmul.f32.gmra.mxu0 %v645
        %v783 = vpop.f32.mrf.mxu0
        %v784 = vadd.f32 %v764, %v783
        %785 = vmatmul.f32.gmra.mxu0 %v646
        %v786 = vpop.f32.mrf.mxu0
        %v787 = vadd.f32 %v764, %v786
        %788 = vmatmul.f32.gmra.mxu0 %v647
        %v789 = vpop.f32.mrf.mxu0
        %v790 = vadd.f32 %v764, %v789
        %791 = vmatmul.f32.gmra.mxu0 %v648
        %v792 = vpop.f32.mrf.mxu0
        %v793 = vadd.f32 %v764, %v792
        %794 = vmatmul.f32.gmra.mxu0 %v649
        %v795 = vpop.f32.mrf.mxu0
        %v796 = vadd.f32 %v764, %v795
        %797 = vmatmul.f32.gmra.mxu0 %v650
        %v798 = vpop.f32.mrf.mxu0
        %v799 = vadd.f32 %v764, %v798
        %800 = vmatmul.f32.gmra.mxu0 %v651
        %v801 = vpop.f32.mrf.mxu0
        %v802 = vadd.f32 %v764, %v801
        %803 = vmatmul.f32.gmra.mxu0 %v652
        %v804 = vpop.f32.mrf.mxu0
        %v805 = vadd.f32 %v764, %v804
        %806 = vmatmul.f32.gmra.mxu0 %v653
        %v807 = vpop.f32.mrf.mxu0
        %v808 = vadd.f32 %v764, %v807
        %809 = vmatmul.f32.gmra.mxu0 %v654
        %v810 = vpop.f32.mrf.mxu0
        %v811 = vadd.f32 %v764, %v810
        %812 = vmatmul.f32.gmra.mxu0 %v655
        %v813 = vpop.f32.mrf.mxu0
        %v814 = vadd.f32 %v764, %v813
        %815 = vmatmul.f32.gmra.mxu0 %v656
        %v816 = vpop.f32.mrf.mxu0
        %v817 = vadd.f32 %v764, %v816
        %818 = vmatmul.f32.gmra.mxu0 %v657
        %v819 = vpop.f32.mrf.mxu0
        %v820 = vadd.f32 %v764, %v819
        %821 = vmatmul.f32.gmra.mxu0 %v658
        %v822 = vpop.f32.mrf.mxu0
        %v823 = vadd.f32 %v764, %v822
        %824 = vmatmul.f32.gmra.mxu0 %v659
        %v825 = vpop.f32.mrf.mxu0
        %v826 = vadd.f32 %v764, %v825
        %827 = vmatmul.f32.gmra.mxu0 %v660
        %v828 = vpop.f32.mrf.mxu0
        %v829 = vadd.f32 %v764, %v828
        %830 = vdwg.mxu0
        %v831 = vld [vmem:[%s527] sm:$0xff]
        %v832 = vld [vmem:[%s527 + $0x8] sm:$0xff]
        %v833 = vld [vmem:[%s527 + $0x10] sm:$0xff]
        %v834 = vld [vmem:[%s527 + $0x18] sm:$0xff]
        %v835 = vld [vmem:[%s527 + $0x20] sm:$0xff]
        %v836 = vld [vmem:[%s527 + $0x28] sm:$0xff]
        %v837 = vld [vmem:[%s527 + $0x30] sm:$0xff]
        %v838 = vld [vmem:[%s527 + $0x38] sm:$0xff]
        %v839 = vld [vmem:[%s527 + $0x40] sm:$0xff]
        %v840 = vld [vmem:[%s527 + $0x48] sm:$0xff]
        %v841 = vld [vmem:[%s527 + $0x50] sm:$0xff]
        %v842 = vld [vmem:[%s527 + $0x58] sm:$0xff]
        %v843 = vld [vmem:[%s527 + $0x60] sm:$0xff]
        %v844 = vld [vmem:[%s527 + $0x68] sm:$0xff]
        %v845 = vld [vmem:[%s527 + $0x70] sm:$0xff]
        %v846 = vld [vmem:[%s527 + $0x78] sm:$0xff]
        %v847 = vmul.f32 %v784, 0.5
        %v848 = vmul.f32 %v787, 0.5
        %v849 = vmul.f32 %v790, 0.5
        %v850 = vmul.f32 %v793, 0.5
        %v851 = vmul.f32 %v796, 0.5
        %v852 = vmul.f32 %v799, 0.5
        %v853 = vmul.f32 %v802, 0.5
        %v854 = vmul.f32 %v805, 0.5
        %v855 = vmul.f32 %v808, 0.5
        %v856 = vmul.f32 %v811, 0.5
        %v857 = vmul.f32 %v814, 0.5
        %v858 = vmul.f32 %v817, 0.5
        %v859 = vmul.f32 %v820, 0.5
        %v860 = vmul.f32 %v823, 0.5
        %v861 = vmul.f32 %v826, 0.5
        %v862 = vmul.f32 %v829, 0.5
        %v863 = vmul.f32 %v847, 1.442695
        %v864 = vpow.pop %v863
        %v865 = vmul.f32 %v848, 1.442695
        %v866 = vpow.pop %v865
        %v867 = vmul.f32 %v849, 1.442695
        %v868 = vpow.pop %v867
        %v869 = vmul.f32 %v850, 1.442695
        %v870 = vpow.pop %v869
        %v871 = vmul.f32 %v851, 1.442695
        %v872 = vpow.pop %v871
        %v873 = vmul.f32 %v852, 1.442695
        %v874 = vpow.pop %v873
        %v875 = vmul.f32 %v853, 1.442695
        %v876 = vpow.pop %v875
        %v877 = vmul.f32 %v854, 1.442695
        %v878 = vpow.pop %v877
        %v879 = vmul.f32 %v855, 1.442695
        %v880 = vpow.pop %v879
        %v881 = vmul.f32 %v856, 1.442695
        %v882 = vpow.pop %v881
        %v883 = vmul.f32 %v857, 1.442695
        %v884 = vpow.pop %v883
        %v885 = vmul.f32 %v858, 1.442695
        %v886 = vpow.pop %v885
        %v887 = vmul.f32 %v859, 1.442695
        %v888 = vpow.pop %v887
        %v889 = vmul.f32 %v860, 1.442695
        %v890 = vpow.pop %v889
        %v891 = vmul.f32 %v861, 1.442695
        %v892 = vpow.pop %v891
        %v893 = vmul.f32 %v862, 1.442695
        %v894 = vpow.pop %v893
        %v895 = vmul.f32 %v831, %v864
        %v896 = vmul.f32 %v832, %v866
        %v897 = vmul.f32 %v833, %v868
        %v898 = vmul.f32 %v834, %v870
        %v899 = vmul.f32 %v835, %v872
        %v900 = vmul.f32 %v836, %v874
        %v901 = vmul.f32 %v837, %v876
        %v902 = vmul.f32 %v838, %v878
        %v903 = vmul.f32 %v839, %v880
        %v904 = vmul.f32 %v840, %v882
        %v905 = vmul.f32 %v841, %v884
        %v906 = vmul.f32 %v842, %v886
        %v907 = vmul.f32 %v843, %v888
        %v908 = vmul.f32 %v844, %v890
        %v909 = vmul.f32 %v845, %v892
        %v910 = vmul.f32 %v846, %v894
        %v911 = vadd.f32 %v699, %v895
        %v912 = vadd.f32 %v702, %v896
        %v913 = vadd.f32 %v705, %v897
        %v914 = vadd.f32 %v708, %v898
        %v915 = vadd.f32 %v711, %v899
        %v916 = vadd.f32 %v714, %v900
        %v917 = vadd.f32 %v717, %v901
        %v918 = vadd.f32 %v720, %v902
        %v919 = vadd.f32 %v723, %v903
        %v920 = vadd.f32 %v726, %v904
        %v921 = vadd.f32 %v729, %v905
        %v922 = vadd.f32 %v732, %v906
        %v923 = vadd.f32 %v735, %v907
        %v924 = vadd.f32 %v738, %v908
        %v925 = vadd.f32 %v741, %v909
        %v926 = vadd.f32 %v744, %v910
        %vm927 = vcmask 261120
        %928 = vst.msk [vmem:[%s533] sm:$0xff] %vm927, %v699
        %929 = vst.msk [vmem:[%s533 + $0x8] sm:$0xff] %vm927, %v702
        %930 = vst.msk [vmem:[%s533 + $0x10] sm:$0xff] %vm927, %v705
        %931 = vst.msk [vmem:[%s533 + $0x18] sm:$0xff] %vm927, %v708
        %932 = vst.msk [vmem:[%s533 + $0x20] sm:$0xff] %vm927, %v711
        %933 = vst.msk [vmem:[%s533 + $0x28] sm:$0xff] %vm927, %v714
        %934 = vst.msk [vmem:[%s533 + $0x30] sm:$0xff] %vm927, %v717
        %935 = vst.msk [vmem:[%s533 + $0x38] sm:$0xff] %vm927, %v720
        %936 = vst.msk [vmem:[%s533 + $0x40] sm:$0xff] %vm927, %v723
        %937 = vst.msk [vmem:[%s533 + $0x48] sm:$0xff] %vm927, %v726
        %938 = vst.msk [vmem:[%s533 + $0x50] sm:$0xff] %vm927, %v729
        %939 = vst.msk [vmem:[%s533 + $0x58] sm:$0xff] %vm927, %v732
        %940 = vst.msk [vmem:[%s533 + $0x60] sm:$0xff] %vm927, %v735
        %941 = vst.msk [vmem:[%s533 + $0x68] sm:$0xff] %vm927, %v738
        %942 = vst.msk [vmem:[%s533 + $0x70] sm:$0xff] %vm927, %v741
        %943 = vst.msk [vmem:[%s533 + $0x78] sm:$0xff] %vm927, %v744
        %944 = vst.msk [vmem:[%s539] sm:$0xff] %vm927, %v911
        %945 = vst.msk [vmem:[%s539 + $0x8] sm:$0xff] %vm927, %v912
        %946 = vst.msk [vmem:[%s539 + $0x10] sm:$0xff] %vm927, %v913
        %947 = vst.msk [vmem:[%s539 + $0x18] sm:$0xff] %vm927, %v914
        %948 = vst.msk [vmem:[%s539 + $0x20] sm:$0xff] %vm927, %v915
        %949 = vst.msk [vmem:[%s539 + $0x28] sm:$0xff] %vm927, %v916
        %950 = vst.msk [vmem:[%s539 + $0x30] sm:$0xff] %vm927, %v917
        %951 = vst.msk [vmem:[%s539 + $0x38] sm:$0xff] %vm927, %v918
        %952 = vst.msk [vmem:[%s539 + $0x40] sm:$0xff] %vm927, %v919
        %953 = vst.msk [vmem:[%s539 + $0x48] sm:$0xff] %vm927, %v920
        %954 = vst.msk [vmem:[%s539 + $0x50] sm:$0xff] %vm927, %v921
        %955 = vst.msk [vmem:[%s539 + $0x58] sm:$0xff] %vm927, %v922
        %956 = vst.msk [vmem:[%s539 + $0x60] sm:$0xff] %vm927, %v923
        %957 = vst.msk [vmem:[%s539 + $0x68] sm:$0xff] %vm927, %v924
        %958 = vst.msk [vmem:[%s539 + $0x70] sm:$0xff] %vm927, %v925
        %959 = vst.msk [vmem:[%s539 + $0x78] sm:$0xff] %vm927, %v926
        %960 = vst.msk [vmem:[%s545] sm:$0xff] %vm927, %v784
        %961 = vst.msk [vmem:[%s545 + $0x8] sm:$0xff] %vm927, %v787
        %962 = vst.msk [vmem:[%s545 + $0x10] sm:$0xff] %vm927, %v790
        %963 = vst.msk [vmem:[%s545 + $0x18] sm:$0xff] %vm927, %v793
        %964 = vst.msk [vmem:[%s545 + $0x20] sm:$0xff] %vm927, %v796
        %965 = vst.msk [vmem:[%s545 + $0x28] sm:$0xff] %vm927, %v799
        %966 = vst.msk [vmem:[%s545 + $0x30] sm:$0xff] %vm927, %v802
        %967 = vst.msk [vmem:[%s545 + $0x38] sm:$0xff] %vm927, %v805
        %968 = vst.msk [vmem:[%s545 + $0x40] sm:$0xff] %vm927, %v808
        %969 = vst.msk [vmem:[%s545 + $0x48] sm:$0xff] %vm927, %v811
        %970 = vst.msk [vmem:[%s545 + $0x50] sm:$0xff] %vm927, %v814
        %971 = vst.msk [vmem:[%s545 + $0x58] sm:$0xff] %vm927, %v817
        %972 = vst.msk [vmem:[%s545 + $0x60] sm:$0xff] %vm927, %v820
        %973 = vst.msk [vmem:[%s545 + $0x68] sm:$0xff] %vm927, %v823
        %974 = vst.msk [vmem:[%s545 + $0x70] sm:$0xff] %vm927, %v826
        %975 = vst.msk [vmem:[%s545 + $0x78] sm:$0xff] %vm927, %v829
        %v976 = vpack.c.bf16 %v702, %v699
        %v977 = vpack.c.bf16 %v708, %v705
        %v978 = vpack.c.bf16 %v714, %v711
        %v979 = vpack.c.bf16 %v720, %v717
        %v980 = vpack.c.bf16 %v726, %v723
        %v981 = vpack.c.bf16 %v732, %v729
        %v982 = vpack.c.bf16 %v738, %v735
        %v983 = vpack.c.bf16 %v744, %v741
        %v984 = vpack.c.bf16 %v912, %v911
        %v985 = vpack.c.bf16 %v914, %v913
        %v986 = vpack.c.bf16 %v916, %v915
        %v987 = vpack.c.bf16 %v918, %v917
        %v988 = vpack.c.bf16 %v920, %v919
        %v989 = vpack.c.bf16 %v922, %v921
        %v990 = vpack.c.bf16 %v924, %v923
        %v991 = vpack.c.bf16 %v926, %v925
        %v992 = vld [vmem:[%s8] sm:$0xf]
        %v993 = vld [vmem:[%s8 + $0x4] sm:$0xf]
        %v994 = vld [vmem:[%s8 + $0x8] sm:$0xf]
        %v995 = vld [vmem:[%s8 + $0xc] sm:$0xf]
        %v996 = vld [vmem:[%s9] sm:$0x1]
        %v998 = vperm.slane %v996, 0
        %v1004 = vunpack.c.l.b16 %v992
        %v1005 = vunpack.c.l.b16 %v993
        %v1006 = vunpack.c.l.b16 %v994
        %v1007 = vunpack.c.l.b16 %v995
        %v1008 = vpack.c.b16 %v1005, %v1004
        %v1009 = vpack.c.b16 %v1007, %v1006
        %v1013 = vsel %vm927, %v976, 0
        %v1016 = vsel %vm927, %v977, 0
        %v1019 = vsel %vm927, %v978, 0
        %v1022 = vsel %vm927, %v979, 0
        %v1025 = vsel %vm927, %v980, 0
        %v1028 = vsel %vm927, %v981, 0
        %v1031 = vsel %vm927, %v982, 0
        %v1034 = vsel %vm927, %v983, 0
        %v1037 = vsel %vm927, %v984, 0
        %v1040 = vsel %vm927, %v985, 0
        %v1043 = vsel %vm927, %v986, 0
        %v1046 = vsel %vm927, %v987, 0
        %v1049 = vsel %vm927, %v988, 0
        %v1052 = vsel %vm927, %v989, 0
        %v1055 = vsel %vm927, %v990, 0
        %v1058 = vsel %vm927, %v991, 0
        %1060 = vmatpush.bf16.msra.mxu0 0
        %1061 = vmatpush.bf16.msra.mxu0 0
        %1062 = vmatpush.bf16.msra.mxu0 0
        %1063 = vmatpush.bf16.msra.mxu0 0
        %1064 = vmatpush.bf16.msra.mxu0 0
        %1065 = vmatpush.bf16.msra.mxu0 0
        %1066 = vmatpush.bf16.msra.mxu0 %v1009
        %1067 = vmatpush.bf16.msra.mxu0 %v1008
        %1068 = vmatmul.bf16.gmra.mxu0 %v1013
        %v1069 = vpop.f32.mrf.mxu0
        %v1070 = vadd.f32 %v998, %v1069
        %v1071 = vpop.f32.mrf.mxu0
        %v1072 = vadd.f32 %v998, %v1071
        %1073 = vmatmul.bf16.gmra.mxu0 %v1016
        %v1074 = vpop.f32.mrf.mxu0
        %v1075 = vadd.f32 %v998, %v1074
        %v1076 = vpop.f32.mrf.mxu0
        %v1077 = vadd.f32 %v998, %v1076
        %1078 = vmatmul.bf16.gmra.mxu0 %v1019
        %v1079 = vpop.f32.mrf.mxu0
        %v1080 = vadd.f32 %v998, %v1079
        %v1081 = vpop.f32.mrf.mxu0
        %v1082 = vadd.f32 %v998, %v1081
        %1083 = vmatmul.bf16.gmra.mxu0 %v1022
        %v1084 = vpop.f32.mrf.mxu0
        %v1085 = vadd.f32 %v998, %v1084
        %v1086 = vpop.f32.mrf.mxu0
        %v1087 = vadd.f32 %v998, %v1086
        %1088 = vmatmul.bf16.gmra.mxu0 %v1025
        %v1089 = vpop.f32.mrf.mxu0
        %v1090 = vadd.f32 %v998, %v1089
        %v1091 = vpop.f32.mrf.mxu0
        %v1092 = vadd.f32 %v998, %v1091
        %1093 = vmatmul.bf16.gmra.mxu0 %v1028
        %v1094 = vpop.f32.mrf.mxu0
        %v1095 = vadd.f32 %v998, %v1094
        %v1096 = vpop.f32.mrf.mxu0
        %v1097 = vadd.f32 %v998, %v1096
        %1098 = vmatmul.bf16.gmra.mxu0 %v1031
        %v1099 = vpop.f32.mrf.mxu0
        %v1100 = vadd.f32 %v998, %v1099
        %v1101 = vpop.f32.mrf.mxu0
        %v1102 = vadd.f32 %v998, %v1101
        %1103 = vmatmul.bf16.gmra.mxu0 %v1034
        %v1104 = vpop.f32.mrf.mxu0
        %v1105 = vadd.f32 %v998, %v1104
        %v1106 = vpop.f32.mrf.mxu0
        %v1107 = vadd.f32 %v998, %v1106
        %1108 = vmatmul.bf16.gmra.mxu0 %v1037
        %v1109 = vpop.f32.mrf.mxu0
        %v1110 = vadd.f32 %v998, %v1109
        %v1111 = vpop.f32.mrf.mxu0
        %v1112 = vadd.f32 %v998, %v1111
        %1113 = vmatmul.bf16.gmra.mxu0 %v1040
        %v1114 = vpop.f32.mrf.mxu0
        %v1115 = vadd.f32 %v998, %v1114
        %v1116 = vpop.f32.mrf.mxu0
        %v1117 = vadd.f32 %v998, %v1116
        %1118 = vmatmul.bf16.gmra.mxu0 %v1043
        %v1119 = vpop.f32.mrf.mxu0
        %v1120 = vadd.f32 %v998, %v1119
        %v1121 = vpop.f32.mrf.mxu0
        %v1122 = vadd.f32 %v998, %v1121
        %1123 = vmatmul.bf16.gmra.mxu0 %v1046
        %v1124 = vpop.f32.mrf.mxu0
        %v1125 = vadd.f32 %v998, %v1124
        %v1126 = vpop.f32.mrf.mxu0
        %v1127 = vadd.f32 %v998, %v1126
        %1128 = vmatmul.bf16.gmra.mxu0 %v1049
        %v1129 = vpop.f32.mrf.mxu0
        %v1130 = vadd.f32 %v998, %v1129
        %v1131 = vpop.f32.mrf.mxu0
        %v1132 = vadd.f32 %v998, %v1131
        %1133 = vmatmul.bf16.gmra.mxu0 %v1052
        %v1134 = vpop.f32.mrf.mxu0
        %v1135 = vadd.f32 %v998, %v1134
        %v1136 = vpop.f32.mrf.mxu0
        %v1137 = vadd.f32 %v998, %v1136
        %1138 = vmatmul.bf16.gmra.mxu0 %v1055
        %v1139 = vpop.f32.mrf.mxu0
        %v1140 = vadd.f32 %v998, %v1139
        %v1141 = vpop.f32.mrf.mxu0
        %v1142 = vadd.f32 %v998, %v1141
        %1143 = vmatmul.bf16.gmra.mxu0 %v1058
        %v1144 = vpop.f32.mrf.mxu0
        %v1145 = vadd.f32 %v998, %v1144
        %v1146 = vpop.f32.mrf.mxu0
        %v1147 = vadd.f32 %v998, %v1146
        %1148 = vdwg.mxu0
        %1149 = vst [vmem:[%s512] sm:$0xff] %v1070
        %1150 = vst [vmem:[%s512 + $0x8] sm:$0xff] %v1072
        %1151 = vst [vmem:[%s512 + $0x10] sm:$0xff] %v1075
        %1152 = vst [vmem:[%s512 + $0x18] sm:$0xff] %v1077
        %1153 = vst [vmem:[%s512 + $0x20] sm:$0xff] %v1080
        %1154 = vst [vmem:[%s512 + $0x28] sm:$0xff] %v1082
        %1155 = vst [vmem:[%s512 + $0x30] sm:$0xff] %v1085
        %1156 = vst [vmem:[%s512 + $0x38] sm:$0xff] %v1087
        %1157 = vst [vmem:[%s512 + $0x40] sm:$0xff] %v1090
        %1158 = vst [vmem:[%s512 + $0x48] sm:$0xff] %v1092
        %1159 = vst [vmem:[%s512 + $0x50] sm:$0xff] %v1095
        %1160 = vst [vmem:[%s512 + $0x58] sm:$0xff] %v1097
        %1161 = vst [vmem:[%s512 + $0x60] sm:$0xff] %v1100
        %1162 = vst [vmem:[%s512 + $0x68] sm:$0xff] %v1102
        %1163 = vst [vmem:[%s512 + $0x70] sm:$0xff] %v1105
        %1164 = vst [vmem:[%s512 + $0x78] sm:$0xff] %v1107
        %s1165 = scalar_lea.vmem %s512, 128 [#allocation2]
        %1166 = vst [vmem:[%s1165] sm:$0xff] %v1110
        %1167 = vst [vmem:[%s1165 + $0x8] sm:$0xff] %v1112
        %1168 = vst [vmem:[%s1165 + $0x10] sm:$0xff] %v1115
        %1169 = vst [vmem:[%s1165 + $0x18] sm:$0xff] %v1117
        %1170 = vst [vmem:[%s1165 + $0x20] sm:$0xff] %v1120
        %1171 = vst [vmem:[%s1165 + $0x28] sm:$0xff] %v1122
        %1172 = vst [vmem:[%s1165 + $0x30] sm:$0xff] %v1125
        %1173 = vst [vmem:[%s1165 + $0x38] sm:$0xff] %v1127
        %1174 = vst [vmem:[%s1165 + $0x40] sm:$0xff] %v1130
        %1175 = vst [vmem:[%s1165 + $0x48] sm:$0xff] %v1132
        %1176 = vst [vmem:[%s1165 + $0x50] sm:$0xff] %v1135
        %1177 = vst [vmem:[%s1165 + $0x58] sm:$0xff] %v1137
        %1178 = vst [vmem:[%s1165 + $0x60] sm:$0xff] %v1140
        %1179 = vst [vmem:[%s1165 + $0x68] sm:$0xff] %v1142
        %1180 = vst [vmem:[%s1165 + $0x70] sm:$0xff] %v1145
        %1181 = vst [vmem:[%s1165 + $0x78] sm:$0xff] %v1147
        %v1182 = vld [vmem:[%s14] sm:$0x1]
        %v1183 = vadd.f32 %v1070, %v1072
        %v1184 = vadd.f32 %v1183, %v1075
        %v1185 = vadd.f32 %v1184, %v1077
        %v1186 = vadd.f32 %v1185, %v1080
        %v1187 = vadd.f32 %v1186, %v1082
        %v1188 = vadd.f32 %v1187, %v1085
        %v1189 = vadd.f32 %v1188, %v1087
        %v1190 = vadd.f32 %v1189, %v1090
        %v1191 = vadd.f32 %v1190, %v1092
        %v1192 = vadd.f32 %v1191, %v1095
        %v1193 = vadd.f32 %v1192, %v1097
        %v1194 = vadd.f32 %v1193, %v1100
        %v1195 = vadd.f32 %v1194, %v1102
        %v1196 = vadd.f32 %v1195, %v1105
        %v1197 = vadd.f32 %v1196, %v1107
        %v1198 = vrot.slane %v1197, 4
        %v1199 = vadd.f32 %v1197, %v1198
        %v1200 = vrot.slane %v1199, 2
        %v1201 = vadd.f32 %v1199, %v1200
        %v1202 = vrot.slane %v1201, 1
        %v1203 = vadd.f32 %v1201, %v1202
        %v1204 = vadd.f32 %v1182, %v1203
        %1205 = vst [vmem:[%s14] sm:$0x1] %v1204
        %s1206 = scalar_lea.vmem %s14, 1
        %v1207 = vld [vmem:[%s1206] sm:$0x1]
        %v1208 = vadd.f32 %v1110, %v1112
        %v1209 = vadd.f32 %v1208, %v1115
        %v1210 = vadd.f32 %v1209, %v1117
        %v1211 = vadd.f32 %v1210, %v1120
        %v1212 = vadd.f32 %v1211, %v1122
        %v1213 = vadd.f32 %v1212, %v1125
        %v1214 = vadd.f32 %v1213, %v1127
        %v1215 = vadd.f32 %v1214, %v1130
        %v1216 = vadd.f32 %v1215, %v1132
        %v1217 = vadd.f32 %v1216, %v1135
        %v1218 = vadd.f32 %v1217, %v1137
        %v1219 = vadd.f32 %v1218, %v1140
        %v1220 = vadd.f32 %v1219, %v1142
        %v1221 = vadd.f32 %v1220, %v1145
        %v1222 = vadd.f32 %v1221, %v1147
        %v1223 = vrot.slane %v1222, 4
        %v1224 = vadd.f32 %v1222, %v1223
        %v1225 = vrot.slane %v1224, 2
        %v1226 = vadd.f32 %v1224, %v1225
        %v1227 = vrot.slane %v1226, 1
        %v1228 = vadd.f32 %v1226, %v1227
        %v1229 = vadd.f32 %v1207, %v1228
        %1230 = vst [vmem:[%s1206] sm:$0x1] %v1229
        %v1231 = vld [vmem:[%s15] sm:$0x1]
        %v1232 = vmul.f32 %v1070, %v1070
        %v1233 = vmul.f32 %v1072, %v1072
        %v1234 = vmul.f32 %v1075, %v1075
        %v1235 = vmul.f32 %v1077, %v1077
        %v1236 = vmul.f32 %v1080, %v1080
        %v1237 = vmul.f32 %v1082, %v1082
        %v1238 = vmul.f32 %v1085, %v1085
        %v1239 = vmul.f32 %v1087, %v1087
        %v1240 = vmul.f32 %v1090, %v1090
        %v1241 = vmul.f32 %v1092, %v1092
        %v1242 = vmul.f32 %v1095, %v1095
        %v1243 = vmul.f32 %v1097, %v1097
        %v1244 = vmul.f32 %v1100, %v1100
        %v1245 = vmul.f32 %v1102, %v1102
        %v1246 = vmul.f32 %v1105, %v1105
        %v1247 = vmul.f32 %v1107, %v1107
        %v1248 = vadd.f32 %v1232, %v1233
        %v1249 = vadd.f32 %v1248, %v1234
        %v1250 = vadd.f32 %v1249, %v1235
        %v1251 = vadd.f32 %v1250, %v1236
        %v1252 = vadd.f32 %v1251, %v1237
        %v1253 = vadd.f32 %v1252, %v1238
        %v1254 = vadd.f32 %v1253, %v1239
        %v1255 = vadd.f32 %v1254, %v1240
        %v1256 = vadd.f32 %v1255, %v1241
        %v1257 = vadd.f32 %v1256, %v1242
        %v1258 = vadd.f32 %v1257, %v1243
        %v1259 = vadd.f32 %v1258, %v1244
        %v1260 = vadd.f32 %v1259, %v1245
        %v1261 = vadd.f32 %v1260, %v1246
        %v1262 = vadd.f32 %v1261, %v1247
        %v1263 = vrot.slane %v1262, 4
        %v1264 = vadd.f32 %v1262, %v1263
        %v1265 = vrot.slane %v1264, 2
        %v1266 = vadd.f32 %v1264, %v1265
        %v1267 = vrot.slane %v1266, 1
        %v1268 = vadd.f32 %v1266, %v1267
        %v1269 = vadd.f32 %v1231, %v1268
        %1270 = vst [vmem:[%s15] sm:$0x1] %v1269
        %s1271 = scalar_lea.vmem %s15, 1
        %v1272 = vld [vmem:[%s1271] sm:$0x1]
        %v1273 = vmul.f32 %v1110, %v1110
        %v1274 = vmul.f32 %v1112, %v1112
        %v1275 = vmul.f32 %v1115, %v1115
        %v1276 = vmul.f32 %v1117, %v1117
        %v1277 = vmul.f32 %v1120, %v1120
        %v1278 = vmul.f32 %v1122, %v1122
        %v1279 = vmul.f32 %v1125, %v1125
        %v1280 = vmul.f32 %v1127, %v1127
        %v1281 = vmul.f32 %v1130, %v1130
        %v1282 = vmul.f32 %v1132, %v1132
        %v1283 = vmul.f32 %v1135, %v1135
        %v1284 = vmul.f32 %v1137, %v1137
        %v1285 = vmul.f32 %v1140, %v1140
        %v1286 = vmul.f32 %v1142, %v1142
        %v1287 = vmul.f32 %v1145, %v1145
        %v1288 = vmul.f32 %v1147, %v1147
        %v1289 = vadd.f32 %v1273, %v1274
        %v1290 = vadd.f32 %v1289, %v1275
        %v1291 = vadd.f32 %v1290, %v1276
        %v1292 = vadd.f32 %v1291, %v1277
        %v1293 = vadd.f32 %v1292, %v1278
        %v1294 = vadd.f32 %v1293, %v1279
        %v1295 = vadd.f32 %v1294, %v1280
        %v1296 = vadd.f32 %v1295, %v1281
        %v1297 = vadd.f32 %v1296, %v1282
        %v1298 = vadd.f32 %v1297, %v1283
        %v1299 = vadd.f32 %v1298, %v1284
        %v1300 = vadd.f32 %v1299, %v1285
        %v1301 = vadd.f32 %v1300, %v1286
        %v1302 = vadd.f32 %v1301, %v1287
        %v1303 = vadd.f32 %v1302, %v1288
        %v1304 = vrot.slane %v1303, 4
        %v1305 = vadd.f32 %v1303, %v1304
        %v1306 = vrot.slane %v1305, 2
        %v1307 = vadd.f32 %v1305, %v1306
        %v1308 = vrot.slane %v1307, 1
        %v1309 = vadd.f32 %v1307, %v1308
        %v1310 = vadd.f32 %v1272, %v1309
        %1311 = vst [vmem:[%s1271] sm:$0x1] %v1310
        %s1312 = smul.u32 16, %s27
        %p1313 = scmp.lt.s32.totalorder %s1312, 31
        %s1314 = scalar_select %p1313, %s1312, 31
        %s1315 = smul.addr %s1314, 8
        %s1316 = scalar_lea.vmem %s10, %s1315
        %s1317 = smul.u32 16, %s27
        %p1318 = scmp.lt.s32.totalorder %s1317, 31
        %s1319 = scalar_select %p1318, %s1317, 31
        %s1320 = smul.addr %s1319, 8
        %s1321 = scalar_lea.vmem %s11, %s1320
        %s1322 = smul.u32 16, %s27
        %p1323 = scmp.lt.s32.totalorder %s1322, 31
        %s1324 = scalar_select %p1323, %s1322, 31
        %s1325 = smul.addr %s1324, 8
        %s1326 = scalar_lea.vmem %s12, %s1325
        %s1327 = sand.u32 %s333, 1
        %s1328 = sand.u32 %s333, 1
        %s1329 = smul.addr %s1328, 256
        %s1330 = scalar_lea.vmem [#allocation2], %s1329
        // Predicated region
        $region65: #{dualvae_forward.7} parent=59 // pred_check
          %p1331 = pneg %p265
        $region66: #{dualvae_forward.7} parent=59 // pred_check_branch
          %1333 = sbr.rel (%p1331) target = $region68
        $region67: #{dualvae_forward.7} parent=59 // pred_region
          %s1334 = smul.u32 16, %s27
        $region68: #{dualvae_forward.7} parent=59 // pred_fallthru
          _
        // Predicated region
        $region69: #{dualvae_forward.7} parent=59 // pred_check
          %p1335 = pneg %p291
        $region70: #{dualvae_forward.7} parent=59 // pred_check_branch
          %1337 = sbr.rel (%p1335) target = $region72
        $region71: #{dualvae_forward.7} parent=59 // pred_region
          %s1338 = smul.u32 16, %s27
        $region72: #{dualvae_forward.7} parent=59 // pred_fallthru
          _
        // Predicated region
        $region73: #{dualvae_forward.7} parent=59 // pred_check
          %p1339 = pneg %p317
        $region74: #{dualvae_forward.7} parent=59 // pred_check_branch
          %1341 = sbr.rel (%p1339) target = $region76
        $region75: #{dualvae_forward.7} parent=59 // pred_region
          %s1342 = smul.u32 16, %s27
        $region76: #{dualvae_forward.7} parent=59 // pred_fallthru
          _
        // Predicated region
        $region77: #{dualvae_forward.7} parent=59 // pred_check
          %p1343 = pneg %p343
        $region78: #{dualvae_forward.7} parent=59 // pred_check_branch
          %1345 = sbr.rel (%p1343) target = $region80
        $region79: #{dualvae_forward.7} parent=59 // pred_region
          %s1346 = smul.u32 16, %s27
          %s1347 = smul.addr %s1346, 8
          %s1348 = scalar_lea.vmem %s13, %s1347
          // Predicated region
          $region81: #{dualvae_forward.7} parent=79 // pred_check
            _
          $region82: #{dualvae_forward.7} parent=79 // pred_check_branch
            %1350 = sbr.rel (0) target = $region84
          $region83: #{dualvae_forward.7} parent=79 // pred_region
            // Predicated region
            $region85: #{dualvae_forward.7} parent=83 // pred_check
              _
            $region86: #{dualvae_forward.7} parent=83 // pred_check_branch
              %1352 = sbr.rel (0) target = $region88
            $region87: #{dualvae_forward.7} parent=83 // pred_region
              // Predicated region
              $region100: #{dualvae_forward.7} parent=87 // pred_check
                _
              $region101: #{dualvae_forward.7} parent=87 // pred_check_branch
                %1430 = sbr.rel (0) target = $region103
              $region102: #{dualvae_forward.7} parent=87 // pred_region
                loop: start=0, step=1, limit=1
                $region104: #{dualvae_forward.7} parent=102 // loop_pre_header
                  _
                $region105: #{dualvae_forward.7} parent=102 // loop_header
                  %s1432 = sphi 0, %s1436
                  %p1433 = scmp.ge.s32.totalorder %s1432, 1
                  %s1437 = sphi %s1330, %s1330
                  %s1438 = sphi %s1348, %s1348
                $region106: #{dualvae_forward.7} parent=102 // loop_header_branch
                  %1435 = sbr.rel (%p1433) target = $region110
                $region107: #{dualvae_forward.7} parent=102 // loop_body
                  %v1439 = vld [vmem:[%s1437] sm:$0xff]
                  %1440 = vst [vmem:[%s1438] sm:$0xff] %v1439
                  %v1441 = vld [vmem:[%s1437 + $0x8] sm:$0xff]
                  %1442 = vst [vmem:[%s1438 + $0x8] sm:$0xff] %v1441
                  %v1443 = vld [vmem:[%s1437 + $0x10] sm:$0xff]
                  %1444 = vst [vmem:[%s1438 + $0x10] sm:$0xff] %v1443
                  %v1445 = vld [vmem:[%s1437 + $0x18] sm:$0xff]
                  %1446 = vst [vmem:[%s1438 + $0x18] sm:$0xff] %v1445
                  %v1447 = vld [vmem:[%s1437 + $0x20] sm:$0xff]
                  %1448 = vst [vmem:[%s1438 + $0x20] sm:$0xff] %v1447
                  %v1449 = vld [vmem:[%s1437 + $0x28] sm:$0xff]
                  %1450 = vst [vmem:[%s1438 + $0x28] sm:$0xff] %v1449
                  %v1451 = vld [vmem:[%s1437 + $0x30] sm:$0xff]
                  %1452 = vst [vmem:[%s1438 + $0x30] sm:$0xff] %v1451
                  %v1453 = vld [vmem:[%s1437 + $0x38] sm:$0xff]
                  %1454 = vst [vmem:[%s1438 + $0x38] sm:$0xff] %v1453
                  %v1455 = vld [vmem:[%s1437 + $0x40] sm:$0xff]
                  %1456 = vst [vmem:[%s1438 + $0x40] sm:$0xff] %v1455
                  %v1457 = vld [vmem:[%s1437 + $0x48] sm:$0xff]
                  %1458 = vst [vmem:[%s1438 + $0x48] sm:$0xff] %v1457
                  %v1459 = vld [vmem:[%s1437 + $0x50] sm:$0xff]
                  %1460 = vst [vmem:[%s1438 + $0x50] sm:$0xff] %v1459
                  %v1461 = vld [vmem:[%s1437 + $0x58] sm:$0xff]
                  %1462 = vst [vmem:[%s1438 + $0x58] sm:$0xff] %v1461
                  %v1463 = vld [vmem:[%s1437 + $0x60] sm:$0xff]
                  %1464 = vst [vmem:[%s1438 + $0x60] sm:$0xff] %v1463
                  %v1465 = vld [vmem:[%s1437 + $0x68] sm:$0xff]
                  %1466 = vst [vmem:[%s1438 + $0x68] sm:$0xff] %v1465
                  %v1467 = vld [vmem:[%s1437 + $0x70] sm:$0xff]
                  %1468 = vst [vmem:[%s1438 + $0x70] sm:$0xff] %v1467
                  %v1469 = vld [vmem:[%s1437 + $0x78] sm:$0xff]
                  %1470 = vst [vmem:[%s1438 + $0x78] sm:$0xff] %v1469
                  %v1471 = vld [vmem:[%s1437 + $0x80] sm:$0xff]
                  %1472 = vst [vmem:[%s1438 + $0x100] sm:$0xff] %v1471
                  %v1473 = vld [vmem:[%s1437 + $0x88] sm:$0xff]
                  %1474 = vst [vmem:[%s1438 + $0x108] sm:$0xff] %v1473
                  %v1475 = vld [vmem:[%s1437 + $0x90] sm:$0xff]
                  %1476 = vst [vmem:[%s1438 + $0x110] sm:$0xff] %v1475
                  %v1477 = vld [vmem:[%s1437 + $0x98] sm:$0xff]
                  %1478 = vst [vmem:[%s1438 + $0x118] sm:$0xff] %v1477
                  %v1479 = vld [vmem:[%s1437 + $0xa0] sm:$0xff]
                  %1480 = vst [vmem:[%s1438 + $0x120] sm:$0xff] %v1479
                  %v1481 = vld [vmem:[%s1437 + $0xa8] sm:$0xff]
                  %1482 = vst [vmem:[%s1438 + $0x128] sm:$0xff] %v1481
                  %v1483 = vld [vmem:[%s1437 + $0xb0] sm:$0xff]
                  %1484 = vst [vmem:[%s1438 + $0x130] sm:$0xff] %v1483
                  %v1485 = vld [vmem:[%s1437 + $0xb8] sm:$0xff]
                  %1486 = vst [vmem:[%s1438 + $0x138] sm:$0xff] %v1485
                  %v1487 = vld [vmem:[%s1437 + $0xc0] sm:$0xff]
                  %1488 = vst [vmem:[%s1438 + $0x140] sm:$0xff] %v1487
                  %v1489 = vld [vmem:[%s1437 + $0xc8] sm:$0xff]
                  %1490 = vst [vmem:[%s1438 + $0x148] sm:$0xff] %v1489
                  %v1491 = vld [vmem:[%s1437 + $0xd0] sm:$0xff]
                  %1492 = vst [vmem:[%s1438 + $0x150] sm:$0xff] %v1491
                  %v1493 = vld [vmem:[%s1437 + $0xd8] sm:$0xff]
                  %1494 = vst [vmem:[%s1438 + $0x158] sm:$0xff] %v1493
                  %v1495 = vld [vmem:[%s1437 + $0xe0] sm:$0xff]
                  %1496 = vst [vmem:[%s1438 + $0x160] sm:$0xff] %v1495
                  %v1497 = vld [vmem:[%s1437 + $0xe8] sm:$0xff]
                  %1498 = vst [vmem:[%s1438 + $0x168] sm:$0xff] %v1497
                  %v1499 = vld [vmem:[%s1437 + $0xf0] sm:$0xff]
                  %1500 = vst [vmem:[%s1438 + $0x170] sm:$0xff] %v1499
                  %v1501 = vld [vmem:[%s1437 + $0xf8] sm:$0xff]
                  %1502 = vst [vmem:[%s1438 + $0x178] sm:$0xff] %v1501
                $region108: #{dualvae_forward.7} parent=102 // loop_footer
                  %s1436 = sadd.s32 1, %s1432
                $region109: #{dualvae_forward.7} parent=102 // loop_footer_branch
                  %1431 = sbr.rel target = $region105
                $region110: #{dualvae_forward.7} parent=102 // loop_exit
                  _
              $region103: #{dualvae_forward.7} parent=87 // pred_fallthru
                _
              // Predicated region
              $region111: #{dualvae_forward.7} parent=87 // pred_check
                _
              $region112: #{dualvae_forward.7} parent=87 // pred_check_branch
                %1504 = sbr.rel target = $region114
              $region113: #{dualvae_forward.7} parent=87 // pred_region
                _
              $region114: #{dualvae_forward.7} parent=87 // pred_fallthru
                _
            $region88: #{dualvae_forward.7} parent=83 // pred_fallthru
              _
            // Predicated region
            $region89: #{dualvae_forward.7} parent=83 // pred_check
              _
            $region90: #{dualvae_forward.7} parent=83 // pred_check_branch
              %1354 = sbr.rel target = $region92
            $region91: #{dualvae_forward.7} parent=83 // pred_region
              %s1356 = ssub.s32 256, 1
              loop: start=0, step=1, limit=1
              $region93: #{dualvae_forward.7} parent=91 // loop_pre_header
                _
              $region94: #{dualvae_forward.7} parent=91 // loop_header
                %s1358 = sphi 0, %s1362
                %p1359 = scmp.ge.s32.totalorder %s1358, 1
                %s1363 = sphi %s1330, %s1330
                %s1364 = sphi %s1348, %s1348
              $region95: #{dualvae_forward.7} parent=91 // loop_header_branch
                %1361 = sbr.rel (%p1359) target = $region99
              $region96: #{dualvae_forward.7} parent=91 // loop_body
                %v1365 = vld [vmem:[%s1363] sm:%s1356]
                %1366 = vst [vmem:[%s1364] sm:%s1356] %v1365
                %v1367 = vld [vmem:[%s1363 + $0x8] sm:%s1356]
                %1368 = vst [vmem:[%s1364 + $0x8] sm:%s1356] %v1367
                %v1369 = vld [vmem:[%s1363 + $0x10] sm:%s1356]
                %1370 = vst [vmem:[%s1364 + $0x10] sm:%s1356] %v1369
                %v1371 = vld [vmem:[%s1363 + $0x18] sm:%s1356]
                %1372 = vst [vmem:[%s1364 + $0x18] sm:%s1356] %v1371
                %v1373 = vld [vmem:[%s1363 + $0x20] sm:%s1356]
                %1374 = vst [vmem:[%s1364 + $0x20] sm:%s1356] %v1373
                %v1375 = vld [vmem:[%s1363 + $0x28] sm:%s1356]
                %1376 = vst [vmem:[%s1364 + $0x28] sm:%s1356] %v1375
                %v1377 = vld [vmem:[%s1363 + $0x30] sm:%s1356]
                %1378 = vst [vmem:[%s1364 + $0x30] sm:%s1356] %v1377
                %v1379 = vld [vmem:[%s1363 + $0x38] sm:%s1356]
                %1380 = vst [vmem:[%s1364 + $0x38] sm:%s1356] %v1379
                %v1381 = vld [vmem:[%s1363 + $0x40] sm:%s1356]
                %1382 = vst [vmem:[%s1364 + $0x40] sm:%s1356] %v1381
                %v1383 = vld [vmem:[%s1363 + $0x48] sm:%s1356]
                %1384 = vst [vmem:[%s1364 + $0x48] sm:%s1356] %v1383
                %v1385 = vld [vmem:[%s1363 + $0x50] sm:%s1356]
                %1386 = vst [vmem:[%s1364 + $0x50] sm:%s1356] %v1385
                %v1387 = vld [vmem:[%s1363 + $0x58] sm:%s1356]
                %1388 = vst [vmem:[%s1364 + $0x58] sm:%s1356] %v1387
                %v1389 = vld [vmem:[%s1363 + $0x60] sm:%s1356]
                %1390 = vst [vmem:[%s1364 + $0x60] sm:%s1356] %v1389
                %v1391 = vld [vmem:[%s1363 + $0x68] sm:%s1356]
                %1392 = vst [vmem:[%s1364 + $0x68] sm:%s1356] %v1391
                %v1393 = vld [vmem:[%s1363 + $0x70] sm:%s1356]
                %1394 = vst [vmem:[%s1364 + $0x70] sm:%s1356] %v1393
                %v1395 = vld [vmem:[%s1363 + $0x78] sm:%s1356]
                %1396 = vst [vmem:[%s1364 + $0x78] sm:%s1356] %v1395
                %v1397 = vld [vmem:[%s1363 + $0x80] sm:%s1356]
                %1398 = vst [vmem:[%s1364 + $0x100] sm:%s1356] %v1397
                %v1399 = vld [vmem:[%s1363 + $0x88] sm:%s1356]
                %1400 = vst [vmem:[%s1364 + $0x108] sm:%s1356] %v1399
                %v1401 = vld [vmem:[%s1363 + $0x90] sm:%s1356]
                %1402 = vst [vmem:[%s1364 + $0x110] sm:%s1356] %v1401
                %v1403 = vld [vmem:[%s1363 + $0x98] sm:%s1356]
                %1404 = vst [vmem:[%s1364 + $0x118] sm:%s1356] %v1403
                %v1405 = vld [vmem:[%s1363 + $0xa0] sm:%s1356]
                %1406 = vst [vmem:[%s1364 + $0x120] sm:%s1356] %v1405
                %v1407 = vld [vmem:[%s1363 + $0xa8] sm:%s1356]
                %1408 = vst [vmem:[%s1364 + $0x128] sm:%s1356] %v1407
                %v1409 = vld [vmem:[%s1363 + $0xb0] sm:%s1356]
                %1410 = vst [vmem:[%s1364 + $0x130] sm:%s1356] %v1409
                %v1411 = vld [vmem:[%s1363 + $0xb8] sm:%s1356]
                %1412 = vst [vmem:[%s1364 + $0x138] sm:%s1356] %v1411
                %v1413 = vld [vmem:[%s1363 + $0xc0] sm:%s1356]
                %1414 = vst [vmem:[%s1364 + $0x140] sm:%s1356] %v1413
                %v1415 = vld [vmem:[%s1363 + $0xc8] sm:%s1356]
                %1416 = vst [vmem:[%s1364 + $0x148] sm:%s1356] %v1415
                %v1417 = vld [vmem:[%s1363 + $0xd0] sm:%s1356]
                %1418 = vst [vmem:[%s1364 + $0x150] sm:%s1356] %v1417
                %v1419 = vld [vmem:[%s1363 + $0xd8] sm:%s1356]
                %1420 = vst [vmem:[%s1364 + $0x158] sm:%s1356] %v1419
                %v1421 = vld [vmem:[%s1363 + $0xe0] sm:%s1356]
                %1422 = vst [vmem:[%s1364 + $0x160] sm:%s1356] %v1421
                %v1423 = vld [vmem:[%s1363 + $0xe8] sm:%s1356]
                %1424 = vst [vmem:[%s1364 + $0x168] sm:%s1356] %v1423
                %v1425 = vld [vmem:[%s1363 + $0xf0] sm:%s1356]
                %1426 = vst [vmem:[%s1364 + $0x170] sm:%s1356] %v1425
                %v1427 = vld [vmem:[%s1363 + $0xf8] sm:%s1356]
                %1428 = vst [vmem:[%s1364 + $0x178] sm:%s1356] %v1427
              $region97: #{dualvae_forward.7} parent=91 // loop_footer
                %s1362 = sadd.s32 1, %s1358
              $region98: #{dualvae_forward.7} parent=91 // loop_footer_branch
                %1357 = sbr.rel target = $region94
              $region99: #{dualvae_forward.7} parent=91 // loop_exit
                _
            $region92: #{dualvae_forward.7} parent=83 // pred_fallthru
              _
          $region84: #{dualvae_forward.7} parent=79 // pred_fallthru
            _
          %1505 = vnop
        $region80: #{dualvae_forward.7} parent=59 // pred_fallthru
          _
        // Predicated region
        $region115: #{dualvae_forward.7} parent=59 // pred_check
          %p1506 = pneg %p364
        $region116: #{dualvae_forward.7} parent=59 // pred_check_branch
          %1508 = sbr.rel (%p1506) target = $region118
        $region117: #{dualvae_forward.7} parent=59 // pred_region
          _
        $region118: #{dualvae_forward.7} parent=59 // pred_fallthru
          _
        // Predicated region
        $region119: #{dualvae_forward.7} parent=59 // pred_check
          %p1509 = pneg %p385
        $region120: #{dualvae_forward.7} parent=59 // pred_check_branch
          %1511 = sbr.rel (%p1509) target = $region122
        $region121: #{dualvae_forward.7} parent=59 // pred_region
          _
        $region122: #{dualvae_forward.7} parent=59 // pred_fallthru
          _
        // Predicated region
        $region123: #{dualvae_forward.7} parent=59 // pred_check
          %p1512 = pneg %p364
        $region124: #{dualvae_forward.7} parent=59 // pred_check_branch
          %1514 = sbr.rel (%p1512) target = $region126
        $region125: #{dualvae_forward.7} parent=59 // pred_region
          _
        $region126: #{dualvae_forward.7} parent=59 // pred_fallthru
          _
        // Predicated region
        $region127: #{dualvae_forward.7} parent=59 // pred_check
          %p1515 = pneg %p385
        $region128: #{dualvae_forward.7} parent=59 // pred_check_branch
          %1517 = sbr.rel (%p1515) target = $region130
        $region129: #{dualvae_forward.7} parent=59 // pred_region
          _
        $region130: #{dualvae_forward.7} parent=59 // pred_fallthru
          _
      $region60: #{dualvae_forward.7} parent=5 // pred_fallthru
        _
      %p1518 = scmp.le.s32.totalorder 2, %s22
      // Predicated region
      $region131: #{dualvae_forward.7} parent=5 // pred_check
        %p1519 = pneg %p1518
      $region132: #{dualvae_forward.7} parent=5 // pred_check_branch
        %1521 = sbr.rel (%p1519) target = $region134
      $region133: #{dualvae_forward.7} parent=5 // pred_region
        %s1522 = ssub.s32 %s22, 2
        // Predicated region
        $region135: #{dualvae_forward.7} parent=133 // pred_check
          %p1523 = pneg %p271
        $region136: #{dualvae_forward.7} parent=133 // pred_check_branch
          %1525 = sbr.rel (%p1523) target = $region138
        $region137: #{dualvae_forward.7} parent=133 // pred_region
          %s1526 = smul.u32 16, %s28
          %p1527 = scmp.lt.s32.totalorder %s1526, 31
          %s1528 = scalar_select %p1527, %s1526, 31
          %s1529 = smul.addr %s1528, 8
          %s1530 = scalar_lea.vmem %s10, %s1529
        $region138: #{dualvae_forward.7} parent=133 // pred_fallthru
          _
        // Predicated region
        $region139: #{dualvae_forward.7} parent=133 // pred_check
          %p1531 = pneg %p297
        $region140: #{dualvae_forward.7} parent=133 // pred_check_branch
          %1533 = sbr.rel (%p1531) target = $region142
        $region141: #{dualvae_forward.7} parent=133 // pred_region
          %s1534 = smul.u32 16, %s28
          %p1535 = scmp.lt.s32.totalorder %s1534, 31
          %s1536 = scalar_select %p1535, %s1534, 31
          %s1537 = smul.addr %s1536, 8
          %s1538 = scalar_lea.vmem %s11, %s1537
        $region142: #{dualvae_forward.7} parent=133 // pred_fallthru
          _
        // Predicated region
        $region143: #{dualvae_forward.7} parent=133 // pred_check
          %p1539 = pneg %p323
        $region144: #{dualvae_forward.7} parent=133 // pred_check_branch
          %1541 = sbr.rel (%p1539) target = $region146
        $region145: #{dualvae_forward.7} parent=133 // pred_region
          %s1542 = smul.u32 16, %s28
          %p1543 = scmp.lt.s32.totalorder %s1542, 31
          %s1544 = scalar_select %p1543, %s1542, 31
          %s1545 = smul.addr %s1544, 8
          %s1546 = scalar_lea.vmem %s12, %s1545
        $region146: #{dualvae_forward.7} parent=133 // pred_fallthru
          _
        // Predicated region
        $region147: #{dualvae_forward.7} parent=133 // pred_check
          %p1547 = pneg %p349
        $region148: #{dualvae_forward.7} parent=133 // pred_check_branch
          %1549 = sbr.rel (%p1547) target = $region150
        $region149: #{dualvae_forward.7} parent=133 // pred_region
          %s1550 = sand.u32 %s334, 1
          %s1551 = sand.u32 %s334, 1
          %s1552 = smul.addr %s1551, 256
          %s1553 = scalar_lea.vmem [#allocation2], %s1552
        $region150: #{dualvae_forward.7} parent=133 // pred_fallthru
          _
      $region134: #{dualvae_forward.7} parent=5 // pred_fallthru
        _
    $region6: #{dualvae_forward.7} parent=1 // loop_footer
      %s26 = sadd.s32 1, %s22
    $region7: #{dualvae_forward.7} parent=1 // loop_footer_branch
      %21 = sbr.rel target = $region3
    $region8: #{dualvae_forward.7} parent=1 // loop_exit
      _

// kernel: dualvae_forward.8
$region0: #{dualvae_forward.8}
  #allocation0 [shape = 'u32[]', space=smem, size = 0x4, offset = 0x4, fixed_abs, tag = 'smem constant byte address 0x4 - core index']
  #allocation1 [shape = 'u32[72,128]{1,0:T(1,128)}', space=vmem, size = 0x9000, scoped, tag = 'internal scratch']
  %s0 = inlined_call_operand.vmem [shape: f32[2,256,128], index: 0, kind: input, shape index: {}]
  %s1 = inlined_call_operand.vmem [shape: f32[2,1,128], index: 1, kind: input, shape index: {}]
  %s2 = inlined_call_operand.vmem [shape: f32[2,1,128], index: 2, kind: input, shape index: {}]
  %s3 = inlined_call_operand.vmem [shape: bf16[128,256], index: 3, kind: input, shape index: {}]
  %s4 = inlined_call_operand.vmem [shape: f32[1,256], index: 4, kind: input, shape index: {}]
  %s5 = inlined_call_operand.vmem [shape: f32[2,256,256], index: 5, kind: output, shape index: {0}]
  %s6 = inlined_call_operand.vmem [shape: f32[2,1,256], index: 6, kind: output, shape index: {1}]
  %s7 = inlined_call_operand.vmem [shape: f32[2,1,256], index: 7, kind: output, shape index: {2}]
  %8 = xla_tuple %s5, %s6, %s7
  %s9 = sld [smem:[#allocation0]]
  $region130: #{dualvae_forward.8} parent=0
    _
  %s11 = ssub.s32 1, %s9
  %s12 = scalar_select 0, %s11, %s9
  $region1: #{dualvae_forward.8} parent=0
    #allocation2 [shape = 'u8[262144]{0}', space=vmem, size = 0x40000, scoped, tag = 'input window, operand 0']
    #allocation3 [shape = 'u8[524288]{0}', space=vmem, size = 0x80000, scoped, tag = 'output window, operand 0']
    loop: start=0, step=1, limit=4
    $region2: #{dualvae_forward.8} parent=1 // loop_pre_header
      _
    $region3: #{dualvae_forward.8} parent=1 // loop_header
      %s14 = sphi 0, %s18
      %p15 = scmp.ge.s32.totalorder %s14, 4
      %s24 = sphi 0, %s26
      %s27 = sphi 0, %s24
      %s28 = sphi 0, %s27
      %s44 = sphi 0, %s28
      %s48 = sphi 0, %s48
      %s50 = sphi 0, %s48
      %s51 = sphi 0, %s50
      %s65 = sphi 0, %s51
      %s69 = sphi 0, %s69
      %s71 = sphi 0, %s69
      %s72 = sphi 0, %s71
      %s86 = sphi 0, %s72
      %s90 = sphi 0, %s90
      %s92 = sphi 0, %s90
      %s93 = sphi 0, %s92
      %s107 = sphi 0, %s93
      %s111 = sphi 0, %s111
      %s113 = sphi 0, %s111
      %s114 = sphi 0, %s113
      %s128 = sphi 0, %s114
      %s134 = sphi 0, %s136
      %s137 = sphi 0, %s134
      %s138 = sphi 0, %s137
      %s154 = sphi 0, %s138
      %s158 = sphi 0, %s158
      %s160 = sphi 0, %s158
      %s161 = sphi 0, %s160
      %s175 = sphi 0, %s161
      %s179 = sphi 0, %s179
      %s181 = sphi 0, %s179
      %s182 = sphi 0, %s181
      %s196 = sphi 0, %s182
    $region4: #{dualvae_forward.8} parent=1 // loop_header_branch
      %17 = sbr.rel (%p15) target = $region8
    $region5: #{dualvae_forward.8} parent=1 // loop_body
      %s19 = ssub.s32 %s14, 1
      %s20 = ssub.s32 %s14, 2
      %s21 = sadd.s32 %s14, 1
      %s22 = ssub.s32 %s14, %s21
      %p23 = scmp.eq.s32.totalorder %s22, 0
      %s25 = sadd.s32 %s24, 1
      %s26 = scalar_select %p23, %s24, %s25
      %p29 = pneg %p23
      %p30 = scmp.eq.s32.totalorder %s14, 1
      %p31 = por %p29, %p30
      %p32 = scmp.ne.s32.totalorder %s24, %s27
      %p33 = scmp.eq.s32.totalorder %s14, 0
      %p34 = por %p32, %p33
      %p35 = scmp.ne.s32.totalorder %s24, %s27
      %p36 = scmp.eq.s32.totalorder %s19, 1
      %p37 = por %p35, %p36
      %p38 = scmp.ne.s32.totalorder %s27, %s28
      %p39 = scmp.eq.s32.totalorder %s19, 0
      %p40 = por %p38, %p39
      %p41 = scmp.ne.s32.totalorder %s27, %s28
      %p42 = scmp.eq.s32.totalorder %s20, 1
      %p43 = por %p41, %p42
      %p45 = scmp.ne.s32.totalorder %s28, %s44
      %p46 = scmp.eq.s32.totalorder %s20, 0
      %p47 = por %p45, %p46
      %s49 = sadd.s32 %s48, 1
      %p52 = scmp.eq.s32.totalorder %s14, 1
      %p53 = scmp.ne.s32.totalorder %s48, %s50
      %p54 = scmp.eq.s32.totalorder %s14, 0
      %p55 = por %p53, %p54
      %p56 = scmp.ne.s32.totalorder %s48, %s50
      %p57 = scmp.eq.s32.totalorder %s19, 1
      %p58 = por %p56, %p57
      %p59 = scmp.ne.s32.totalorder %s50, %s51
      %p60 = scmp.eq.s32.totalorder %s19, 0
      %p61 = por %p59, %p60
      %p62 = scmp.ne.s32.totalorder %s50, %s51
      %p63 = scmp.eq.s32.totalorder %s20, 1
      %p64 = por %p62, %p63
      %p66 = scmp.ne.s32.totalorder %s51, %s65
      %p67 = scmp.eq.s32.totalorder %s20, 0
      %p68 = por %p66, %p67
      %s70 = sadd.s32 %s69, 1
      %p73 = scmp.eq.s32.totalorder %s14, 1
      %p74 = scmp.ne.s32.totalorder %s69, %s71
      %p75 = scmp.eq.s32.totalorder %s14, 0
      %p76 = por %p74, %p75
      %p77 = scmp.ne.s32.totalorder %s69, %s71
      %p78 = scmp.eq.s32.totalorder %s19, 1
      %p79 = por %p77, %p78
      %p80 = scmp.ne.s32.totalorder %s71, %s72
      %p81 = scmp.eq.s32.totalorder %s19, 0
      %p82 = por %p80, %p81
      %p83 = scmp.ne.s32.totalorder %s71, %s72
      %p84 = scmp.eq.s32.totalorder %s20, 1
      %p85 = por %p83, %p84
      %p87 = scmp.ne.s32.totalorder %s72, %s86
      %p88 = scmp.eq.s32.totalorder %s20, 0
      %p89 = por %p87, %p88
      %s91 = sadd.s32 %s90, 1
      %p94 = scmp.eq.s32.totalorder %s14, 1
      %p95 = scmp.ne.s32.totalorder %s90, %s92
      %p96 = scmp.eq.s32.totalorder %s14, 0
      %p97 = por %p95, %p96
      %p98 = scmp.ne.s32.totalorder %s90, %s92
      %p99 = scmp.eq.s32.totalorder %s19, 1
      %p100 = por %p98, %p99
      %p101 = scmp.ne.s32.totalorder %s92, %s93
      %p102 = scmp.eq.s32.totalorder %s19, 0
      %p103 = por %p101, %p102
      %p104 = scmp.ne.s32.totalorder %s92, %s93
      %p105 = scmp.eq.s32.totalorder %s20, 1
      %p106 = por %p104, %p105
      %p108 = scmp.ne.s32.totalorder %s93, %s107
      %p109 = scmp.eq.s32.totalorder %s20, 0
      %p110 = por %p108, %p109
      %s112 = sadd.s32 %s111, 1
      %p115 = scmp.eq.s32.totalorder %s14, 1
      %p116 = scmp.ne.s32.totalorder %s111, %s113
      %p117 = scmp.eq.s32.totalorder %s14, 0
      %p118 = por %p116, %p117
      %p119 = scmp.ne.s32.totalorder %s111, %s113
      %p120 = scmp.eq.s32.totalorder %s19, 1
      %p121 = por %p119, %p120
      %p122 = scmp.ne.s32.totalorder %s113, %s114
      %p123 = scmp.eq.s32.totalorder %s19, 0
      %p124 = por %p122, %p123
      %p125 = scmp.ne.s32.totalorder %s113, %s114
      %p126 = scmp.eq.s32.totalorder %s20, 1
      %p127 = por %p125, %p126
      %p129 = scmp.ne.s32.totalorder %s114, %s128
      %p130 = scmp.eq.s32.totalorder %s20, 0
      %p131 = por %p129, %p130
      %s132 = ssub.s32 %s14, %s21
      %p133 = scmp.eq.s32.totalorder %s132, 0
      %s135 = sadd.s32 %s134, 1
      %s136 = scalar_select %p133, %s134, %s135
      %p139 = pneg %p133
      %p140 = scmp.eq.s32.totalorder %s14, 1
      %p141 = por %p139, %p140
      %p142 = scmp.ne.s32.totalorder %s134, %s137
      %p143 = scmp.eq.s32.totalorder %s14, 0
      %p144 = por %p142, %p143
      %p145 = scmp.ne.s32.totalorder %s134, %s137
      %p146 = scmp.eq.s32.totalorder %s19, 1
      %p147 = por %p145, %p146
      %p148 = scmp.ne.s32.totalorder %s137, %s138
      %p149 = scmp.eq.s32.totalorder %s19, 0
      %p150 = por %p148, %p149
      %p151 = scmp.ne.s32.totalorder %s137, %s138
      %p152 = scmp.eq.s32.totalorder %s20, 1
      %p153 = por %p151, %p152
      %p155 = scmp.ne.s32.totalorder %s138, %s154
      %p156 = scmp.eq.s32.totalorder %s20, 0
      %p157 = por %p155, %p156
      %s159 = sadd.s32 %s158, 1
      %p162 = scmp.eq.s32.totalorder %s14, 1
      %p163 = scmp.ne.s32.totalorder %s158, %s160
      %p164 = scmp.eq.s32.totalorder %s14, 0
      %p165 = por %p163, %p164
      %p166 = scmp.ne.s32.totalorder %s158, %s160
      %p167 = scmp.eq.s32.totalorder %s19, 1
      %p168 = por %p166, %p167
      %p169 = scmp.ne.s32.totalorder %s160, %s161
      %p170 = scmp.eq.s32.totalorder %s19, 0
      %p171 = por %p169, %p170
      %p172 = scmp.ne.s32.totalorder %s160, %s161
      %p173 = scmp.eq.s32.totalorder %s20, 1
      %p174 = por %p172, %p173
      %p176 = scmp.ne.s32.totalorder %s161, %s175
      %p177 = scmp.eq.s32.totalorder %s20, 0
      %p178 = por %p176, %p177
      %s180 = sadd.s32 %s179, 1
      %p183 = scmp.eq.s32.totalorder %s14, 1
      %p184 = scmp.ne.s32.totalorder %s179, %s181
      %p185 = scmp.eq.s32.totalorder %s14, 0
      %p186 = por %p184, %p185
      %p187 = scmp.ne.s32.totalorder %s179, %s181
      %p188 = scmp.eq.s32.totalorder %s19, 1
      %p189 = por %p187, %p188
      %p190 = scmp.ne.s32.totalorder %s181, %s182
      %p191 = scmp.eq.s32.totalorder %s19, 0
      %p192 = por %p190, %p191
      %p193 = scmp.ne.s32.totalorder %s181, %s182
      %p194 = scmp.eq.s32.totalorder %s20, 1
      %p195 = por %p193, %p194
      %p197 = scmp.ne.s32.totalorder %s182, %s196
      %p198 = scmp.eq.s32.totalorder %s20, 0
      %p199 = por %p197, %p198
      %p200 = scmp.le.s32.totalorder 1, %s14
      %p201 = scmp.lt.s32.totalorder %s14, 3
      %p202 = pnand %p200, %p201
      %p203 = pneg %p202
      // Predicated region
      $region9: #{dualvae_forward.8} parent=5 // pred_check
        _
      $region10: #{dualvae_forward.8} parent=5 // pred_check_branch
        %205 = sbr.rel (%p202) target = $region12
      $region11: #{dualvae_forward.8} parent=5 // pred_region
        %s206 = ssub.s32 %s14, 1
        // Predicated region
        $region13: #{dualvae_forward.8} parent=11 // pred_check
          %p207 = pneg %p61
        $region14: #{dualvae_forward.8} parent=11 // pred_check_branch
          %209 = sbr.rel (%p207) target = $region16
        $region15: #{dualvae_forward.8} parent=11 // pred_region
          _
        $region16: #{dualvae_forward.8} parent=11 // pred_fallthru
          _
        // Predicated region
        $region17: #{dualvae_forward.8} parent=11 // pred_check
          %p210 = pneg %p82
        $region18: #{dualvae_forward.8} parent=11 // pred_check_branch
          %212 = sbr.rel (%p210) target = $region20
        $region19: #{dualvae_forward.8} parent=11 // pred_region
          _
        $region20: #{dualvae_forward.8} parent=11 // pred_fallthru
          _
        // Predicated region
        $region21: #{dualvae_forward.8} parent=11 // pred_check
          %p213 = pneg %p103
        $region22: #{dualvae_forward.8} parent=11 // pred_check_branch
          %215 = sbr.rel (%p213) target = $region24
        $region23: #{dualvae_forward.8} parent=11 // pred_region
          _
        $region24: #{dualvae_forward.8} parent=11 // pred_fallthru
          _
        // Predicated region
        $region25: #{dualvae_forward.8} parent=11 // pred_check
          %p216 = pneg %p124
        $region26: #{dualvae_forward.8} parent=11 // pred_check_branch
          %218 = sbr.rel (%p216) target = $region28
        $region27: #{dualvae_forward.8} parent=11 // pred_region
          _
        $region28: #{dualvae_forward.8} parent=11 // pred_fallthru
          _
      $region12: #{dualvae_forward.8} parent=5 // pred_fallthru
        _
      %p219 = scmp.lt.s32.totalorder %s14, 2
      // Predicated region
      $region29: #{dualvae_forward.8} parent=5 // pred_check
        %p220 = pneg %p219
      $region30: #{dualvae_forward.8} parent=5 // pred_check_branch
        %222 = sbr.rel (%p220) target = $region32
      $region31: #{dualvae_forward.8} parent=5 // pred_region
        // Predicated region
        $region33: #{dualvae_forward.8} parent=31 // pred_check
          %p223 = pneg %p34
        $region34: #{dualvae_forward.8} parent=31 // pred_check_branch
          %225 = sbr.rel (%p223) target = $region36
        $region35: #{dualvae_forward.8} parent=31 // pred_region
          %s226 = sand.u32 %s24, 1
          %s227 = sand.u32 %s24, 1
          %s228 = smul.addr %s227, 256
          %s229 = scalar_lea.vmem [#allocation2], %s228
          %s230 = smul.u32 16, %s14
          %s231 = smul.addr %s230, 8
          %s232 = scalar_lea.vmem %s0, %s231
          // Predicated region
          $region37: #{dualvae_forward.8} parent=35 // pred_check
            _
          $region38: #{dualvae_forward.8} parent=35 // pred_check_branch
            %234 = sbr.rel (0) target = $region40
          $region39: #{dualvae_forward.8} parent=35 // pred_region
            // Predicated region
            $region41: #{dualvae_forward.8} parent=39 // pred_check
              _
            $region42: #{dualvae_forward.8} parent=39 // pred_check_branch
              %236 = sbr.rel (0) target = $region44
            $region43: #{dualvae_forward.8} parent=39 // pred_region
              // Predicated region
              $region56: #{dualvae_forward.8} parent=43 // pred_check
                _
              $region57: #{dualvae_forward.8} parent=43 // pred_check_branch
                %314 = sbr.rel (0) target = $region59
              $region58: #{dualvae_forward.8} parent=43 // pred_region
                loop: start=0, step=1, limit=1
                $region60: #{dualvae_forward.8} parent=58 // loop_pre_header
                  _
                $region61: #{dualvae_forward.8} parent=58 // loop_header
                  %s316 = sphi 0, %s320
                  %p317 = scmp.ge.s32.totalorder %s316, 1
                  %s321 = sphi %s232, %s232
                  %s322 = sphi %s229, %s229
                $region62: #{dualvae_forward.8} parent=58 // loop_header_branch
                  %319 = sbr.rel (%p317) target = $region66
                $region63: #{dualvae_forward.8} parent=58 // loop_body
                  %v323 = vld [vmem:[%s321] sm:$0xff]
                  %324 = vst [vmem:[%s322] sm:$0xff] %v323
                  %v325 = vld [vmem:[%s321 + $0x8] sm:$0xff]
                  %326 = vst [vmem:[%s322 + $0x8] sm:$0xff] %v325
                  %v327 = vld [vmem:[%s321 + $0x10] sm:$0xff]
                  %328 = vst [vmem:[%s322 + $0x10] sm:$0xff] %v327
                  %v329 = vld [vmem:[%s321 + $0x18] sm:$0xff]
                  %330 = vst [vmem:[%s322 + $0x18] sm:$0xff] %v329
                  %v331 = vld [vmem:[%s321 + $0x20] sm:$0xff]
                  %332 = vst [vmem:[%s322 + $0x20] sm:$0xff] %v331
                  %v333 = vld [vmem:[%s321 + $0x28] sm:$0xff]
                  %334 = vst [vmem:[%s322 + $0x28] sm:$0xff] %v333
                  %v335 = vld [vmem:[%s321 + $0x30] sm:$0xff]
                  %336 = vst [vmem:[%s322 + $0x30] sm:$0xff] %v335
                  %v337 = vld [vmem:[%s321 + $0x38] sm:$0xff]
                  %338 = vst [vmem:[%s322 + $0x38] sm:$0xff] %v337
                  %v339 = vld [vmem:[%s321 + $0x40] sm:$0xff]
                  %340 = vst [vmem:[%s322 + $0x40] sm:$0xff] %v339
                  %v341 = vld [vmem:[%s321 + $0x48] sm:$0xff]
                  %342 = vst [vmem:[%s322 + $0x48] sm:$0xff] %v341
                  %v343 = vld [vmem:[%s321 + $0x50] sm:$0xff]
                  %344 = vst [vmem:[%s322 + $0x50] sm:$0xff] %v343
                  %v345 = vld [vmem:[%s321 + $0x58] sm:$0xff]
                  %346 = vst [vmem:[%s322 + $0x58] sm:$0xff] %v345
                  %v347 = vld [vmem:[%s321 + $0x60] sm:$0xff]
                  %348 = vst [vmem:[%s322 + $0x60] sm:$0xff] %v347
                  %v349 = vld [vmem:[%s321 + $0x68] sm:$0xff]
                  %350 = vst [vmem:[%s322 + $0x68] sm:$0xff] %v349
                  %v351 = vld [vmem:[%s321 + $0x70] sm:$0xff]
                  %352 = vst [vmem:[%s322 + $0x70] sm:$0xff] %v351
                  %v353 = vld [vmem:[%s321 + $0x78] sm:$0xff]
                  %354 = vst [vmem:[%s322 + $0x78] sm:$0xff] %v353
                  %v355 = vld [vmem:[%s321 + $0x100] sm:$0xff]
                  %356 = vst [vmem:[%s322 + $0x80] sm:$0xff] %v355
                  %v357 = vld [vmem:[%s321 + $0x108] sm:$0xff]
                  %358 = vst [vmem:[%s322 + $0x88] sm:$0xff] %v357
                  %v359 = vld [vmem:[%s321 + $0x110] sm:$0xff]
                  %360 = vst [vmem:[%s322 + $0x90] sm:$0xff] %v359
                  %v361 = vld [vmem:[%s321 + $0x118] sm:$0xff]
                  %362 = vst [vmem:[%s322 + $0x98] sm:$0xff] %v361
                  %v363 = vld [vmem:[%s321 + $0x120] sm:$0xff]
                  %364 = vst [vmem:[%s322 + $0xa0] sm:$0xff] %v363
                  %v365 = vld [vmem:[%s321 + $0x128] sm:$0xff]
                  %366 = vst [vmem:[%s322 + $0xa8] sm:$0xff] %v365
                  %v367 = vld [vmem:[%s321 + $0x130] sm:$0xff]
                  %368 = vst [vmem:[%s322 + $0xb0] sm:$0xff] %v367
                  %v369 = vld [vmem:[%s321 + $0x138] sm:$0xff]
                  %370 = vst [vmem:[%s322 + $0xb8] sm:$0xff] %v369
                  %v371 = vld [vmem:[%s321 + $0x140] sm:$0xff]
                  %372 = vst [vmem:[%s322 + $0xc0] sm:$0xff] %v371
                  %v373 = vld [vmem:[%s321 + $0x148] sm:$0xff]
                  %374 = vst [vmem:[%s322 + $0xc8] sm:$0xff] %v373
                  %v375 = vld [vmem:[%s321 + $0x150] sm:$0xff]
                  %376 = vst [vmem:[%s322 + $0xd0] sm:$0xff] %v375
                  %v377 = vld [vmem:[%s321 + $0x158] sm:$0xff]
                  %378 = vst [vmem:[%s322 + $0xd8] sm:$0xff] %v377
                  %v379 = vld [vmem:[%s321 + $0x160] sm:$0xff]
                  %380 = vst [vmem:[%s322 + $0xe0] sm:$0xff] %v379
                  %v381 = vld [vmem:[%s321 + $0x168] sm:$0xff]
                  %382 = vst [vmem:[%s322 + $0xe8] sm:$0xff] %v381
                  %v383 = vld [vmem:[%s321 + $0x170] sm:$0xff]
                  %384 = vst [vmem:[%s322 + $0xf0] sm:$0xff] %v383
                  %v385 = vld [vmem:[%s321 + $0x178] sm:$0xff]
                  %386 = vst [vmem:[%s322 + $0xf8] sm:$0xff] %v385
                $region64: #{dualvae_forward.8} parent=58 // loop_footer
                  %s320 = sadd.s32 1, %s316
                $region65: #{dualvae_forward.8} parent=58 // loop_footer_branch
                  %315 = sbr.rel target = $region61
                $region66: #{dualvae_forward.8} parent=58 // loop_exit
                  _
              $region59: #{dualvae_forward.8} parent=43 // pred_fallthru
                _
              // Predicated region
              $region67: #{dualvae_forward.8} parent=43 // pred_check
                _
              $region68: #{dualvae_forward.8} parent=43 // pred_check_branch
                %388 = sbr.rel target = $region70
              $region69: #{dualvae_forward.8} parent=43 // pred_region
                _
              $region70: #{dualvae_forward.8} parent=43 // pred_fallthru
                _
            $region44: #{dualvae_forward.8} parent=39 // pred_fallthru
              _
            // Predicated region
            $region45: #{dualvae_forward.8} parent=39 // pred_check
              _
            $region46: #{dualvae_forward.8} parent=39 // pred_check_branch
              %238 = sbr.rel target = $region48
            $region47: #{dualvae_forward.8} parent=39 // pred_region
              %s240 = ssub.s32 256, 1
              loop: start=0, step=1, limit=1
              $region49: #{dualvae_forward.8} parent=47 // loop_pre_header
                _
              $region50: #{dualvae_forward.8} parent=47 // loop_header
                %s242 = sphi 0, %s246
                %p243 = scmp.ge.s32.totalorder %s242, 1
                %s247 = sphi %s232, %s232
                %s248 = sphi %s229, %s229
              $region51: #{dualvae_forward.8} parent=47 // loop_header_branch
                %245 = sbr.rel (%p243) target = $region55
              $region52: #{dualvae_forward.8} parent=47 // loop_body
                %v249 = vld [vmem:[%s247] sm:%s240]
                %250 = vst [vmem:[%s248] sm:%s240] %v249
                %v251 = vld [vmem:[%s247 + $0x8] sm:%s240]
                %252 = vst [vmem:[%s248 + $0x8] sm:%s240] %v251
                %v253 = vld [vmem:[%s247 + $0x10] sm:%s240]
                %254 = vst [vmem:[%s248 + $0x10] sm:%s240] %v253
                %v255 = vld [vmem:[%s247 + $0x18] sm:%s240]
                %256 = vst [vmem:[%s248 + $0x18] sm:%s240] %v255
                %v257 = vld [vmem:[%s247 + $0x20] sm:%s240]
                %258 = vst [vmem:[%s248 + $0x20] sm:%s240] %v257
                %v259 = vld [vmem:[%s247 + $0x28] sm:%s240]
                %260 = vst [vmem:[%s248 + $0x28] sm:%s240] %v259
                %v261 = vld [vmem:[%s247 + $0x30] sm:%s240]
                %262 = vst [vmem:[%s248 + $0x30] sm:%s240] %v261
                %v263 = vld [vmem:[%s247 + $0x38] sm:%s240]
                %264 = vst [vmem:[%s248 + $0x38] sm:%s240] %v263
                %v265 = vld [vmem:[%s247 + $0x40] sm:%s240]
                %266 = vst [vmem:[%s248 + $0x40] sm:%s240] %v265
                %v267 = vld [vmem:[%s247 + $0x48] sm:%s240]
                %268 = vst [vmem:[%s248 + $0x48] sm:%s240] %v267
                %v269 = vld [vmem:[%s247 + $0x50] sm:%s240]
                %270 = vst [vmem:[%s248 + $0x50] sm:%s240] %v269
                %v271 = vld [vmem:[%s247 + $0x58] sm:%s240]
                %272 = vst [vmem:[%s248 + $0x58] sm:%s240] %v271
                %v273 = vld [vmem:[%s247 + $0x60] sm:%s240]
                %274 = vst [vmem:[%s248 + $0x60] sm:%s240] %v273
                %v275 = vld [vmem:[%s247 + $0x68] sm:%s240]
                %276 = vst [vmem:[%s248 + $0x68] sm:%s240] %v275
                %v277 = vld [vmem:[%s247 + $0x70] sm:%s240]
                %278 = vst [vmem:[%s248 + $0x70] sm:%s240] %v277
                %v279 = vld [vmem:[%s247 + $0x78] sm:%s240]
                %280 = vst [vmem:[%s248 + $0x78] sm:%s240] %v279
                %v281 = vld [vmem:[%s247 + $0x100] sm:%s240]
                %282 = vst [vmem:[%s248 + $0x80] sm:%s240] %v281
                %v283 = vld [vmem:[%s247 + $0x108] sm:%s240]
                %284 = vst [vmem:[%s248 + $0x88] sm:%s240] %v283
                %v285 = vld [vmem:[%s247 + $0x110] sm:%s240]
                %286 = vst [vmem:[%s248 + $0x90] sm:%s240] %v285
                %v287 = vld [vmem:[%s247 + $0x118] sm:%s240]
                %288 = vst [vmem:[%s248 + $0x98] sm:%s240] %v287
                %v289 = vld [vmem:[%s247 + $0x120] sm:%s240]
                %290 = vst [vmem:[%s248 + $0xa0] sm:%s240] %v289
                %v291 = vld [vmem:[%s247 + $0x128] sm:%s240]
                %292 = vst [vmem:[%s248 + $0xa8] sm:%s240] %v291
                %v293 = vld [vmem:[%s247 + $0x130] sm:%s240]
                %294 = vst [vmem:[%s248 + $0xb0] sm:%s240] %v293
                %v295 = vld [vmem:[%s247 + $0x138] sm:%s240]
                %296 = vst [vmem:[%s248 + $0xb8] sm:%s240] %v295
                %v297 = vld [vmem:[%s247 + $0x140] sm:%s240]
                %298 = vst [vmem:[%s248 + $0xc0] sm:%s240] %v297
                %v299 = vld [vmem:[%s247 + $0x148] sm:%s240]
                %300 = vst [vmem:[%s248 + $0xc8] sm:%s240] %v299
                %v301 = vld [vmem:[%s247 + $0x150] sm:%s240]
                %302 = vst [vmem:[%s248 + $0xd0] sm:%s240] %v301
                %v303 = vld [vmem:[%s247 + $0x158] sm:%s240]
                %304 = vst [vmem:[%s248 + $0xd8] sm:%s240] %v303
                %v305 = vld [vmem:[%s247 + $0x160] sm:%s240]
                %306 = vst [vmem:[%s248 + $0xe0] sm:%s240] %v305
                %v307 = vld [vmem:[%s247 + $0x168] sm:%s240]
                %308 = vst [vmem:[%s248 + $0xe8] sm:%s240] %v307
                %v309 = vld [vmem:[%s247 + $0x170] sm:%s240]
                %310 = vst [vmem:[%s248 + $0xf0] sm:%s240] %v309
                %v311 = vld [vmem:[%s247 + $0x178] sm:%s240]
                %312 = vst [vmem:[%s248 + $0xf8] sm:%s240] %v311
              $region53: #{dualvae_forward.8} parent=47 // loop_footer
                %s246 = sadd.s32 1, %s242
              $region54: #{dualvae_forward.8} parent=47 // loop_footer_branch
                %241 = sbr.rel target = $region50
              $region55: #{dualvae_forward.8} parent=47 // loop_exit
                _
            $region48: #{dualvae_forward.8} parent=39 // pred_fallthru
              _
          $region40: #{dualvae_forward.8} parent=35 // pred_fallthru
            _
          %389 = vnop
        $region36: #{dualvae_forward.8} parent=31 // pred_fallthru
          _
      $region32: #{dualvae_forward.8} parent=5 // pred_fallthru
        _
      %p390 = scmp.le.s32.totalorder 1, %s14
      %p391 = scmp.lt.s32.totalorder %s14, 3
      %p392 = pnand %p390, %p391
      %p393 = pneg %p392
      // Predicated region
      $region71: #{dualvae_forward.8} parent=5 // pred_check
        _
      $region72: #{dualvae_forward.8} parent=5 // pred_check_branch
        %395 = sbr.rel (%p392) target = $region74
      $region73: #{dualvae_forward.8} parent=5 // pred_region
        %s396 = ssub.s32 %s14, 1
        %s397 = sand.u32 %s27, 1
        %s398 = sand.u32 %s27, 1
        %s399 = smul.addr %s398, 256
        %s400 = scalar_lea.vmem [#allocation2], %s399
        // Predicated region
        $region75: #{dualvae_forward.8} parent=73 // pred_check
          %p401 = pneg %p40
        $region76: #{dualvae_forward.8} parent=73 // pred_check_branch
          %403 = sbr.rel (%p401) target = $region78
        $region77: #{dualvae_forward.8} parent=73 // pred_region
          _
        $region78: #{dualvae_forward.8} parent=73 // pred_fallthru
          _
        %s404 = sand.u32 %s27, 1
        %s405 = sand.u32 %s27, 1
        %s406 = smul.addr %s405, 256
        %s407 = scalar_lea.vmem [#allocation2], %s406
        %p408 = pneg %p40
        %p409 = pneg %p37
        %p410 = pneg %p61
        %p411 = pneg %p58
        %p412 = pneg %p82
        %p413 = pneg %p79
        %p414 = pneg %p103
        %p415 = pneg %p100
        %p416 = pneg %p124
        %p417 = pneg %p121
        %p418 = pneg %p150
        %p419 = pneg %p147
        %s420 = sand.u32 %s137, 1
        %s421 = sand.u32 %s137, 1
        %s422 = smul.addr %s421, 512
        %s423 = scalar_lea.vmem [#allocation3], %s422
        %p424 = pneg %p171
        %p425 = pneg %p168
        %p426 = pneg %p192
        %p427 = pneg %p189
        %s428 = smul.u32 16, %s19
        %s429 = smul.u32 16, %s19
        %p430 = scmp.eq.s32.totalorder %s19, 0
        // Predicated region
        $region79: #{dualvae_forward.8} parent=73 // pred_check
          %p431 = pneg %p430
        $region80: #{dualvae_forward.8} parent=73 // pred_check_branch
          %433 = sbr.rel (%p431) target = $region82
        $region81: #{dualvae_forward.8} parent=73 // pred_region
          %v434 = vlaneseq
          %vm435 = vcmp.ge.s32.totalorder %v434, 0
          %vm436 = vcmp.lt.s32.totalorder %v434, 256
          %vm437 = vmand %vm435, %vm436
          %438 = vst.msk [vmem:[%s6] sm:$0x3] %vm437, 0.0
          %439 = vst.msk [vmem:[%s6 + $0x2] sm:$0x3] %vm437, 0.0
          %440 = vst.msk [vmem:[%s7] sm:$0x3] %vm437, 0.0
          %441 = vst.msk [vmem:[%s7 + $0x2] sm:$0x3] %vm437, 0.0
        $region82: #{dualvae_forward.8} parent=73 // pred_fallthru
          _
        %v442 = vld [vmem:[%s400] sm:$0xff]
        %v443 = vld [vmem:[%s400 + $0x8] sm:$0xff]
        %v444 = vld [vmem:[%s400 + $0x10] sm:$0xff]
        %v445 = vld [vmem:[%s400 + $0x18] sm:$0xff]
        %v446 = vld [vmem:[%s400 + $0x20] sm:$0xff]
        %v447 = vld [vmem:[%s400 + $0x28] sm:$0xff]
        %v448 = vld [vmem:[%s400 + $0x30] sm:$0xff]
        %v449 = vld [vmem:[%s400 + $0x38] sm:$0xff]
        %v450 = vld [vmem:[%s400 + $0x40] sm:$0xff]
        %v451 = vld [vmem:[%s400 + $0x48] sm:$0xff]
        %v452 = vld [vmem:[%s400 + $0x50] sm:$0xff]
        %v453 = vld [vmem:[%s400 + $0x58] sm:$0xff]
        %v454 = vld [vmem:[%s400 + $0x60] sm:$0xff]
        %v455 = vld [vmem:[%s400 + $0x68] sm:$0xff]
        %v456 = vld [vmem:[%s400 + $0x70] sm:$0xff]
        %v457 = vld [vmem:[%s400 + $0x78] sm:$0xff]
        %v458 = vld [vmem:[%s1] sm:$0x1]
        %v460 = vperm.slane %v458, 0
        %v462 = vmul.f32 %v442, %v460
        %v463 = vmul.f32 %v443, %v460
        %v464 = vmul.f32 %v444, %v460
        %v465 = vmul.f32 %v445, %v460
        %v466 = vmul.f32 %v446, %v460
        %v467 = vmul.f32 %v447, %v460
        %v468 = vmul.f32 %v448, %v460
        %v469 = vmul.f32 %v449, %v460
        %v470 = vmul.f32 %v450, %v460
        %v471 = vmul.f32 %v451, %v460
        %v472 = vmul.f32 %v452, %v460
        %v473 = vmul.f32 %v453, %v460
        %v474 = vmul.f32 %v454, %v460
        %v475 = vmul.f32 %v455, %v460
        %v476 = vmul.f32 %v456, %v460
        %v477 = vmul.f32 %v457, %v460
        %v478 = vld [vmem:[%s2] sm:$0x1]
        %v480 = vperm.slane %v478, 0
        %v482 = vadd.f32 %v462, %v480
        %v483 = vadd.f32 %v463, %v480
        %v484 = vadd.f32 %v464, %v480
        %v485 = vadd.f32 %v465, %v480
        %v486 = vadd.f32 %v466, %v480
        %v487 = vadd.f32 %v467, %v480
        %v488 = vadd.f32 %v468, %v480
        %v489 = vadd.f32 %v469, %v480
        %v490 = vadd.f32 %v470, %v480
        %v491 = vadd.f32 %v471, %v480
        %v492 = vadd.f32 %v472, %v480
        %v493 = vadd.f32 %v473, %v480
        %v494 = vadd.f32 %v474, %v480
        %v495 = vadd.f32 %v475, %v480
        %v496 = vadd.f32 %v476, %v480
        %v497 = vadd.f32 %v477, %v480
        %vm498 = vcmp.gt.f32.partialorder %v482, 0.0
        %vm499 = vcmp.gt.f32.partialorder %v483, 0.0
        %vm500 = vcmp.gt.f32.partialorder %v484, 0.0
        %vm501 = vcmp.gt.f32.partialorder %v485, 0.0
        %vm502 = vcmp.gt.f32.partialorder %v486, 0.0
        %vm503 = vcmp.gt.f32.partialorder %v487, 0.0
        %vm504 = vcmp.gt.f32.partialorder %v488, 0.0
        %vm505 = vcmp.gt.f32.partialorder %v489, 0.0
        %vm506 = vcmp.gt.f32.partialorder %v490, 0.0
        %vm507 = vcmp.gt.f32.partialorder %v491, 0.0
        %vm508 = vcmp.gt.f32.partialorder %v492, 0.0
        %vm509 = vcmp.gt.f32.partialorder %v493, 0.0
        %vm510 = vcmp.gt.f32.partialorder %v494, 0.0
        %vm511 = vcmp.gt.f32.partialorder %v495, 0.0
        %vm512 = vcmp.gt.f32.partialorder %v496, 0.0
        %vm513 = vcmp.gt.f32.partialorder %v497, 0.0
        %v514 = vmul.f32 %v482, 0.1
        %v515 = vmul.f32 %v483, 0.1
        %v516 = vmul.f32 %v484, 0.1
        %v517 = vmul.f32 %v485, 0.1
        %v518 = vmul.f32 %v486, 0.1
        %v519 = vmul.f32 %v487, 0.1
        %v520 = vmul.f32 %v488, 0.1
        %v521 = vmul.f32 %v489, 0.1
        %v522 = vmul.f32 %v490, 0.1
        %v523 = vmul.f32 %v491, 0.1
        %v524 = vmul.f32 %v492, 0.1
        %v525 = vmul.f32 %v493, 0.1
        %v526 = vmul.f32 %v494, 0.1
        %v527 = vmul.f32 %v495, 0.1
        %v528 = vmul.f32 %v496, 0.1
        %v529 = vmul.f32 %v497, 0.1
        %v530 = vsel %vm498, %v482, %v514
        %v531 = vsel %vm499, %v483, %v515
        %v532 = vsel %vm500, %v484, %v516
        %v533 = vsel %vm501, %v485, %v517
        %v534 = vsel %vm502, %v486, %v518
        %v535 = vsel %vm503, %v487, %v519
        %v536 = vsel %vm504, %v488, %v520
        %v537 = vsel %vm505, %v489, %v521
        %v538 = vsel %vm506, %v490, %v522
        %v539 = vsel %vm507, %v491, %v523
        %v540 = vsel %vm508, %v492, %v524
        %v541 = vsel %vm509, %v493, %v525
        %v542 = vsel %vm510, %v494, %v526
        %v543 = vsel %vm511, %v495, %v527
        %v544 = vsel %vm512, %v496, %v528
        %v545 = vsel %vm513, %v497, %v529
        %s546 = scalar_lea.vmem %s400, 128 [#allocation2]
        %v547 = vld [vmem:[%s546] sm:$0xff]
        %v548 = vld [vmem:[%s546 + $0x8] sm:$0xff]
        %v549 = vld [vmem:[%s546 + $0x10] sm:$0xff]
        %v550 = vld [vmem:[%s546 + $0x18] sm:$0xff]
        %v551 = vld [vmem:[%s546 + $0x20] sm:$0xff]
        %v552 = vld [vmem:[%s546 + $0x28] sm:$0xff]
        %v553 = vld [vmem:[%s546 + $0x30] sm:$0xff]
        %v554 = vld [vmem:[%s546 + $0x38] sm:$0xff]
        %v555 = vld [vmem:[%s546 + $0x40] sm:$0xff]
        %v556 = vld [vmem:[%s546 + $0x48] sm:$0xff]
        %v557 = vld [vmem:[%s546 + $0x50] sm:$0xff]
        %v558 = vld [vmem:[%s546 + $0x58] sm:$0xff]
        %v559 = vld [vmem:[%s546 + $0x60] sm:$0xff]
        %v560 = vld [vmem:[%s546 + $0x68] sm:$0xff]
        %v561 = vld [vmem:[%s546 + $0x70] sm:$0xff]
        %v562 = vld [vmem:[%s546 + $0x78] sm:$0xff]
        %s563 = scalar_lea.vmem %s1, 1
        %v564 = vld [vmem:[%s563] sm:$0x1]
        %v566 = vperm.slane %v564, 0
        %v568 = vmul.f32 %v547, %v566
        %v569 = vmul.f32 %v548, %v566
        %v570 = vmul.f32 %v549, %v566
        %v571 = vmul.f32 %v550, %v566
        %v572 = vmul.f32 %v551, %v566
        %v573 = vmul.f32 %v552, %v566
        %v574 = vmul.f32 %v553, %v566
        %v575 = vmul.f32 %v554, %v566
        %v576 = vmul.f32 %v555, %v566
        %v577 = vmul.f32 %v556, %v566
        %v578 = vmul.f32 %v557, %v566
        %v579 = vmul.f32 %v558, %v566
        %v580 = vmul.f32 %v559, %v566
        %v581 = vmul.f32 %v560, %v566
        %v582 = vmul.f32 %v561, %v566
        %v583 = vmul.f32 %v562, %v566
        %s584 = scalar_lea.vmem %s2, 1
        %v585 = vld [vmem:[%s584] sm:$0x1]
        %v587 = vperm.slane %v585, 0
        %v589 = vadd.f32 %v568, %v587
        %v590 = vadd.f32 %v569, %v587
        %v591 = vadd.f32 %v570, %v587
        %v592 = vadd.f32 %v571, %v587
        %v593 = vadd.f32 %v572, %v587
        %v594 = vadd.f32 %v573, %v587
        %v595 = vadd.f32 %v574, %v587
        %v596 = vadd.f32 %v575, %v587
        %v597 = vadd.f32 %v576, %v587
        %v598 = vadd.f32 %v577, %v587
        %v599 = vadd.f32 %v578, %v587
        %v600 = vadd.f32 %v579, %v587
        %v601 = vadd.f32 %v580, %v587
        %v602 = vadd.f32 %v581, %v587
        %v603 = vadd.f32 %v582, %v587
        %v604 = vadd.f32 %v583, %v587
        %vm605 = vcmp.gt.f32.partialorder %v589, 0.0
        %vm606 = vcmp.gt.f32.partialorder %v590, 0.0
        %vm607 = vcmp.gt.f32.partialorder %v591, 0.0
        %vm608 = vcmp.gt.f32.partialorder %v592, 0.0
        %vm609 = vcmp.gt.f32.partialorder %v593, 0.0
        %vm610 = vcmp.gt.f32.partialorder %v594, 0.0
        %vm611 = vcmp.gt.f32.partialorder %v595, 0.0
        %vm612 = vcmp.gt.f32.partialorder %v596, 0.0
        %vm613 = vcmp.gt.f32.partialorder %v597, 0.0
        %vm614 = vcmp.gt.f32.partialorder %v598, 0.0
        %vm615 = vcmp.gt.f32.partialorder %v599, 0.0
        %vm616 = vcmp.gt.f32.partialorder %v600, 0.0
        %vm617 = vcmp.gt.f32.partialorder %v601, 0.0
        %vm618 = vcmp.gt.f32.partialorder %v602, 0.0
        %vm619 = vcmp.gt.f32.partialorder %v603, 0.0
        %vm620 = vcmp.gt.f32.partialorder %v604, 0.0
        %v621 = vmul.f32 %v589, 0.1
        %v622 = vmul.f32 %v590, 0.1
        %v623 = vmul.f32 %v591, 0.1
        %v624 = vmul.f32 %v592, 0.1
        %v625 = vmul.f32 %v593, 0.1
        %v626 = vmul.f32 %v594, 0.1
        %v627 = vmul.f32 %v595, 0.1
        %v628 = vmul.f32 %v596, 0.1
        %v629 = vmul.f32 %v597, 0.1
        %v630 = vmul.f32 %v598, 0.1
        %v631 = vmul.f32 %v599, 0.1
        %v632 = vmul.f32 %v600, 0.1
        %v633 = vmul.f32 %v601, 0.1
        %v634 = vmul.f32 %v602, 0.1
        %v635 = vmul.f32 %v603, 0.1
        %v636 = vmul.f32 %v604, 0.1
        %v637 = vsel %vm605, %v589, %v621
        %v638 = vsel %vm606, %v590, %v622
        %v639 = vsel %vm607, %v591, %v623
        %v640 = vsel %vm608, %v592, %v624
        %v641 = vsel %vm609, %v593, %v625
        %v642 = vsel %vm610, %v594, %v626
        %v643 = vsel %vm611, %v595, %v627
        %v644 = vsel %vm612, %v596, %v628
        %v645 = vsel %vm613, %v597, %v629
        %v646 = vsel %vm614, %v598, %v630
        %v647 = vsel %vm615, %v599, %v631
        %v648 = vsel %vm616, %v600, %v632
        %v649 = vsel %vm617, %v601, %v633
        %v650 = vsel %vm618, %v602, %v634
        %v651 = vsel %vm619, %v603, %v635
        %v652 = vsel %vm620, %v604, %v636
        %v653 = vpack.c.bf16 %v531, %v530
        %v654 = vpack.c.bf16 %v533, %v532
        %v655 = vpack.c.bf16 %v535, %v534
        %v656 = vpack.c.bf16 %v537, %v536
        %v657 = vpack.c.bf16 %v539, %v538
        %v658 = vpack.c.bf16 %v541, %v540
        %v659 = vpack.c.bf16 %v543, %v542
        %v660 = vpack.c.bf16 %v545, %v544
        %v661 = vpack.c.bf16 %v638, %v637
        %v662 = vpack.c.bf16 %v640, %v639
        %v663 = vpack.c.bf16 %v642, %v641
        %v664 = vpack.c.bf16 %v644, %v643
        %v665 = vpack.c.bf16 %v646, %v645
        %v666 = vpack.c.bf16 %v648, %v647
        %v667 = vpack.c.bf16 %v650, %v649
        %v668 = vpack.c.bf16 %v652, %v651
        %v669 = vld [vmem:[%s3] sm:$0xff]
        %v670 = vld [vmem:[%s3 + $0x8] sm:$0xff]
        %v671 = vld [vmem:[%s3 + $0x10] sm:$0xff]
        %v672 = vld [vmem:[%s3 + $0x18] sm:$0xff]
        %v673 = vld [vmem:[%s3 + $0x20] sm:$0xff]
        %v674 = vld [vmem:[%s3 + $0x28] sm:$0xff]
        %v675 = vld [vmem:[%s3 + $0x30] sm:$0xff]
        %v676 = vld [vmem:[%s3 + $0x38] sm:$0xff]
        %v677 = vld [vmem:[%s3 + $0x40] sm:$0xff]
        %v678 = vld [vmem:[%s3 + $0x48] sm:$0xff]
        %v679 = vld [vmem:[%s3 + $0x50] sm:$0xff]
        %v680 = vld [vmem:[%s3 + $0x58] sm:$0xff]
        %v681 = vld [vmem:[%s3 + $0x60] sm:$0xff]
        %v682 = vld [vmem:[%s3 + $0x68] sm:$0xff]
        %v683 = vld [vmem:[%s3 + $0x70] sm:$0xff]
        %v684 = vld [vmem:[%s3 + $0x78] sm:$0xff]
        %v685 = vld [vmem:[%s4] sm:$0x3]
        %v687 = vperm.slane %v685, 0
        %v688 = vperm.slane %v685, 1
        %v707 = vunpack.c.l.b16 %v669
        %v708 = vunpack.c.h.b16 %v669
        %v709 = vunpack.c.l.b16 %v670
        %v710 = vunpack.c.h.b16 %v670
        %v711 = vunpack.c.l.b16 %v671
        %v712 = vunpack.c.h.b16 %v671
        %v713 = vunpack.c.l.b16 %v672
        %v714 = vunpack.c.h.b16 %v672
        %v715 = vunpack.c.l.b16 %v673
        %v716 = vunpack.c.h.b16 %v673
        %v717 = vunpack.c.l.b16 %v674
        %v718 = vunpack.c.h.b16 %v674
        %v719 = vunpack.c.l.b16 %v675
        %v720 = vunpack.c.h.b16 %v675
        %v721 = vunpack.c.l.b16 %v676
        %v722 = vunpack.c.h.b16 %v676
        %v723 = vunpack.c.l.b16 %v677
        %v724 = vunpack.c.h.b16 %v677
        %v725 = vunpack.c.l.b16 %v678
        %v726 = vunpack.c.h.b16 %v678
        %v727 = vunpack.c.l.b16 %v679
        %v728 = vunpack.c.h.b16 %v679
        %v729 = vunpack.c.l.b16 %v680
        %v730 = vunpack.c.h.b16 %v680
        %v731 = vunpack.c.l.b16 %v681
        %v732 = vunpack.c.h.b16 %v681
        %v733 = vunpack.c.l.b16 %v682
        %v734 = vunpack.c.h.b16 %v682
        %v735 = vunpack.c.l.b16 %v683
        %v736 = vunpack.c.h.b16 %v683
        %v737 = vunpack.c.l.b16 %v684
        %v738 = vunpack.c.h.b16 %v684
        %v739 = vpack.c.b16 %v709, %v707
        %v740 = vpack.c.b16 %v710, %v708
        %v741 = vpack.c.b16 %v713, %v711
        %v742 = vpack.c.b16 %v714, %v712
        %v743 = vpack.c.b16 %v717, %v715
        %v744 = vpack.c.b16 %v718, %v716
        %v745 = vpack.c.b16 %v721, %v719
        %v746 = vpack.c.b16 %v722, %v720
        %v747 = vpack.c.b16 %v725, %v723
        %v748 = vpack.c.b16 %v726, %v724
        %v749 = vpack.c.b16 %v729, %v727
        %v750 = vpack.c.b16 %v730, %v728
        %v751 = vpack.c.b16 %v733, %v731
        %v752 = vpack.c.b16 %v734, %v732
        %v753 = vpack.c.b16 %v737, %v735
        %v754 = vpack.c.b16 %v738, %v736
        %771 = vmatpush.bf16.msra.mxu0 %v753
        %772 = vmatpush.bf16.msra.mxu0 %v751
        %773 = vmatpush.bf16.msra.mxu0 %v749
        %774 = vmatpush.bf16.msra.mxu0 %v747
        %775 = vmatpush.bf16.msra.mxu0 %v745
        %776 = vmatpush.bf16.msra.mxu0 %v743
        %777 = vmatpush.bf16.msra.mxu0 %v741
        %778 = vmatpush.bf16.msra.mxu0 %v739
        %779 = vmatmul.bf16.gmra.mxu0 %v653
        %v780 = vpop.f32.mrf.mxu0
        %v781 = vadd.f32 %v687, %v780
        %v782 = vpop.f32.mrf.mxu0
        %v783 = vadd.f32 %v687, %v782
        %784 = vmatmul.bf16.gmra.mxu0 %v654
        %v785 = vpop.f32.mrf.mxu0
        %v786 = vadd.f32 %v687, %v785
        %v787 = vpop.f32.mrf.mxu0
        %v788 = vadd.f32 %v687, %v787
        %789 = vmatmul.bf16.gmra.mxu0 %v655
        %v790 = vpop.f32.mrf.mxu0
        %v791 = vadd.f32 %v687, %v790
        %v792 = vpop.f32.mrf.mxu0
        %v793 = vadd.f32 %v687, %v792
        %794 = vmatmul.bf16.gmra.mxu0 %v656
        %v795 = vpop.f32.mrf.mxu0
        %v796 = vadd.f32 %v687, %v795
        %v797 = vpop.f32.mrf.mxu0
        %v798 = vadd.f32 %v687, %v797
        %799 = vmatmul.bf16.gmra.mxu0 %v657
        %v800 = vpop.f32.mrf.mxu0
        %v801 = vadd.f32 %v687, %v800
        %v802 = vpop.f32.mrf.mxu0
        %v803 = vadd.f32 %v687, %v802
        %804 = vmatmul.bf16.gmra.mxu0 %v658
        %v805 = vpop.f32.mrf.mxu0
        %v806 = vadd.f32 %v687, %v805
        %v807 = vpop.f32.mrf.mxu0
        %v808 = vadd.f32 %v687, %v807
        %809 = vmatmul.bf16.gmra.mxu0 %v659
        %v810 = vpop.f32.mrf.mxu0
        %v811 = vadd.f32 %v687, %v810
        %v812 = vpop.f32.mrf.mxu0
        %v813 = vadd.f32 %v687, %v812
        %814 = vmatmul.bf16.gmra.mxu0 %v660
        %v815 = vpop.f32.mrf.mxu0
        %v816 = vadd.f32 %v687, %v815
        %v817 = vpop.f32.mrf.mxu0
        %v818 = vadd.f32 %v687, %v817
        %819 = vmatmul.bf16.gmra.mxu0 %v661
        %v820 = vpop.f32.mrf.mxu0
        %v821 = vadd.f32 %v687, %v820
        %v822 = vpop.f32.mrf.mxu0
        %v823 = vadd.f32 %v687, %v822
        %824 = vmatmul.bf16.gmra.mxu0 %v662
        %v825 = vpop.f32.mrf.mxu0
        %v826 = vadd.f32 %v687, %v825
        %v827 = vpop.f32.mrf.mxu0
        %v828 = vadd.f32 %v687, %v827
        %829 = vmatmul.bf16.gmra.mxu0 %v663
        %v830 = vpop.f32.mrf.mxu0
        %v831 = vadd.f32 %v687, %v830
        %v832 = vpop.f32.mrf.mxu0
        %v833 = vadd.f32 %v687, %v832
        %834 = vmatmul.bf16.gmra.mxu0 %v664
        %v835 = vpop.f32.mrf.mxu0
        %v836 = vadd.f32 %v687, %v835
        %v837 = vpop.f32.mrf.mxu0
        %v838 = vadd.f32 %v687, %v837
        %839 = vmatmul.bf16.gmra.mxu0 %v665
        %v840 = vpop.f32.mrf.mxu0
        %v841 = vadd.f32 %v687, %v840
        %v842 = vpop.f32.mrf.mxu0
        %v843 = vadd.f32 %v687, %v842
        %844 = vmatmul.bf16.gmra.mxu0 %v666
        %v845 = vpop.f32.mrf.mxu0
        %v846 = vadd.f32 %v687, %v845
        %v847 = vpop.f32.mrf.mxu0
        %v848 = vadd.f32 %v687, %v847
        %849 = vmatmul.bf16.gmra.mxu0 %v667
        %v850 = vpop.f32.mrf.mxu0
        %v851 = vadd.f32 %v687, %v850
        %v852 = vpop.f32.mrf.mxu0
        %v853 = vadd.f32 %v687, %v852
        %854 = vmatmul.bf16.gmra.mxu0 %v668
        %v855 = vpop.f32.mrf.mxu0
        %v856 = vadd.f32 %v687, %v855
        %v857 = vpop.f32.mrf.mxu0
        %v858 = vadd.f32 %v687, %v857
        %859 = vdwg.mxu0
        %860 = vmatpush.bf16.msra.mxu0 %v754
        %861 = vmatpush.bf16.msra.mxu0 %v752
        %862 = vmatpush.bf16.msra.mxu0 %v750
        %863 = vmatpush.bf16.msra.mxu0 %v748
        %864 = vmatpush.bf16.msra.mxu0 %v746
        %865 = vmatpush.bf16.msra.mxu0 %v744
        %866 = vmatpush.bf16.msra.mxu0 %v742
        %867 = vmatpush.bf16.msra.mxu0 %v740
        %868 = vmatmul.bf16.gmra.mxu0 %v653
        %v869 = vpop.f32.mrf.mxu0
        %v870 = vadd.f32 %v688, %v869
        %v871 = vpop.f32.mrf.mxu0
        %v872 = vadd.f32 %v688, %v871
        %873 = vmatmul.bf16.gmra.mxu0 %v654
        %v874 = vpop.f32.mrf.mxu0
        %v875 = vadd.f32 %v688, %v874
        %v876 = vpop.f32.mrf.mxu0
        %v877 = vadd.f32 %v688, %v876
        %878 = vmatmul.bf16.gmra.mxu0 %v655
        %v879 = vpop.f32.mrf.mxu0
        %v880 = vadd.f32 %v688, %v879
        %v881 = vpop.f32.mrf.mxu0
        %v882 = vadd.f32 %v688, %v881
        %883 = vmatmul.bf16.gmra.mxu0 %v656
        %v884 = vpop.f32.mrf.mxu0
        %v885 = vadd.f32 %v688, %v884
        %v886 = vpop.f32.mrf.mxu0
        %v887 = vadd.f32 %v688, %v886
        %888 = vmatmul.bf16.gmra.mxu0 %v657
        %v889 = vpop.f32.mrf.mxu0
        %v890 = vadd.f32 %v688, %v889
        %v891 = vpop.f32.mrf.mxu0
        %v892 = vadd.f32 %v688, %v891
        %893 = vmatmul.bf16.gmra.mxu0 %v658
        %v894 = vpop.f32.mrf.mxu0
        %v895 = vadd.f32 %v688, %v894
        %v896 = vpop.f32.mrf.mxu0
        %v897 = vadd.f32 %v688, %v896
        %898 = vmatmul.bf16.gmra.mxu0 %v659
        %v899 = vpop.f32.mrf.mxu0
        %v900 = vadd.f32 %v688, %v899
        %v901 = vpop.f32.mrf.mxu0
        %v902 = vadd.f32 %v688, %v901
        %903 = vmatmul.bf16.gmra.mxu0 %v660
        %v904 = vpop.f32.mrf.mxu0
        %v905 = vadd.f32 %v688, %v904
        %v906 = vpop.f32.mrf.mxu0
        %v907 = vadd.f32 %v688, %v906
        %908 = vmatmul.bf16.gmra.mxu0 %v661
        %v909 = vpop.f32.mrf.mxu0
        %v910 = vadd.f32 %v688, %v909
        %v911 = vpop.f32.mrf.mxu0
        %v912 = vadd.f32 %v688, %v911
        %913 = vmatmul.bf16.gmra.mxu0 %v662
        %v914 = vpop.f32.mrf.mxu0
        %v915 = vadd.f32 %v688, %v914
        %v916 = vpop.f32.mrf.mxu0
        %v917 = vadd.f32 %v688, %v916
        %918 = vmatmul.bf16.gmra.mxu0 %v663
        %v919 = vpop.f32.mrf.mxu0
        %v920 = vadd.f32 %v688, %v919
        %v921 = vpop.f32.mrf.mxu0
        %v922 = vadd.f32 %v688, %v921
        %923 = vmatmul.bf16.gmra.mxu0 %v664
        %v924 = vpop.f32.mrf.mxu0
        %v925 = vadd.f32 %v688, %v924
        %v926 = vpop.f32.mrf.mxu0
        %v927 = vadd.f32 %v688, %v926
        %928 = vmatmul.bf16.gmra.mxu0 %v665
        %v929 = vpop.f32.mrf.mxu0
        %v930 = vadd.f32 %v688, %v929
        %v931 = vpop.f32.mrf.mxu0
        %v932 = vadd.f32 %v688, %v931
        %933 = vmatmul.bf16.gmra.mxu0 %v666
        %v934 = vpop.f32.mrf.mxu0
        %v935 = vadd.f32 %v688, %v934
        %v936 = vpop.f32.mrf.mxu0
        %v937 = vadd.f32 %v688, %v936
        %938 = vmatmul.bf16.gmra.mxu0 %v667
        %v939 = vpop.f32.mrf.mxu0
        %v940 = vadd.f32 %v688, %v939
        %v941 = vpop.f32.mrf.mxu0
        %v942 = vadd.f32 %v688, %v941
        %943 = vmatmul.bf16.gmra.mxu0 %v668
        %v944 = vpop.f32.mrf.mxu0
        %v945 = vadd.f32 %v688, %v944
        %v946 = vpop.f32.mrf.mxu0
        %v947 = vadd.f32 %v688, %v946
        %948 = vdwg.mxu0
        %949 = vst [vmem:[%s423] sm:$0xff] %v781
        %950 = vst [vmem:[%s423 + $0x8] sm:$0xff] %v870
        %951 = vst [vmem:[%s423 + $0x10] sm:$0xff] %v783
        %952 = vst [vmem:[%s423 + $0x18] sm:$0xff] %v872
        %953 = vst [vmem:[%s423 + $0x20] sm:$0xff] %v786
        %954 = vst [vmem:[%s423 + $0x28] sm:$0xff] %v875
        %955 = vst [vmem:[%s423 + $0x30] sm:$0xff] %v788
        %956 = vst [vmem:[%s423 + $0x38] sm:$0xff] %v877
        %957 = vst [vmem:[%s423 + $0x40] sm:$0xff] %v791
        %958 = vst [vmem:[%s423 + $0x48] sm:$0xff] %v880
        %959 = vst [vmem:[%s423 + $0x50] sm:$0xff] %v793
        %960 = vst [vmem:[%s423 + $0x58] sm:$0xff] %v882
        %961 = vst [vmem:[%s423 + $0x60] sm:$0xff] %v796
        %962 = vst [vmem:[%s423 + $0x68] sm:$0xff] %v885
        %963 = vst [vmem:[%s423 + $0x70] sm:$0xff] %v798
        %964 = vst [vmem:[%s423 + $0x78] sm:$0xff] %v887
        %965 = vst [vmem:[%s423 + $0x80] sm:$0xff] %v801
        %966 = vst [vmem:[%s423 + $0x88] sm:$0xff] %v890
        %967 = vst [vmem:[%s423 + $0x90] sm:$0xff] %v803
        %968 = vst [vmem:[%s423 + $0x98] sm:$0xff] %v892
        %969 = vst [vmem:[%s423 + $0xa0] sm:$0xff] %v806
        %970 = vst [vmem:[%s423 + $0xa8] sm:$0xff] %v895
        %971 = vst [vmem:[%s423 + $0xb0] sm:$0xff] %v808
        %972 = vst [vmem:[%s423 + $0xb8] sm:$0xff] %v897
        %973 = vst [vmem:[%s423 + $0xc0] sm:$0xff] %v811
        %974 = vst [vmem:[%s423 + $0xc8] sm:$0xff] %v900
        %975 = vst [vmem:[%s423 + $0xd0] sm:$0xff] %v813
        %976 = vst [vmem:[%s423 + $0xd8] sm:$0xff] %v902
        %977 = vst [vmem:[%s423 + $0xe0] sm:$0xff] %v816
        %978 = vst [vmem:[%s423 + $0xe8] sm:$0xff] %v905
        %979 = vst [vmem:[%s423 + $0xf0] sm:$0xff] %v818
        %980 = vst [vmem:[%s423 + $0xf8] sm:$0xff] %v907
        %s981 = scalar_lea.vmem %s423, 256 [#allocation3]
        %982 = vst [vmem:[%s981] sm:$0xff] %v821
        %983 = vst [vmem:[%s981 + $0x8] sm:$0xff] %v910
        %984 = vst [vmem:[%s981 + $0x10] sm:$0xff] %v823
        %985 = vst [vmem:[%s981 + $0x18] sm:$0xff] %v912
        %986 = vst [vmem:[%s981 + $0x20] sm:$0xff] %v826
        %987 = vst [vmem:[%s981 + $0x28] sm:$0xff] %v915
        %988 = vst [vmem:[%s981 + $0x30] sm:$0xff] %v828
        %989 = vst [vmem:[%s981 + $0x38] sm:$0xff] %v917
        %990 = vst [vmem:[%s981 + $0x40] sm:$0xff] %v831
        %991 = vst [vmem:[%s981 + $0x48] sm:$0xff] %v920
        %992 = vst [vmem:[%s981 + $0x50] sm:$0xff] %v833
        %993 = vst [vmem:[%s981 + $0x58] sm:$0xff] %v922
        %994 = vst [vmem:[%s981 + $0x60] sm:$0xff] %v836
        %995 = vst [vmem:[%s981 + $0x68] sm:$0xff] %v925
        %996 = vst [vmem:[%s981 + $0x70] sm:$0xff] %v838
        %997 = vst [vmem:[%s981 + $0x78] sm:$0xff] %v927
        %998 = vst [vmem:[%s981 + $0x80] sm:$0xff] %v841
        %999 = vst [vmem:[%s981 + $0x88] sm:$0xff] %v930
        %1000 = vst [vmem:[%s981 + $0x90] sm:$0xff] %v843
        %1001 = vst [vmem:[%s981 + $0x98] sm:$0xff] %v932
        %1002 = vst [vmem:[%s981 + $0xa0] sm:$0xff] %v846
        %1003 = vst [vmem:[%s981 + $0xa8] sm:$0xff] %v935
        %1004 = vst [vmem:[%s981 + $0xb0] sm:$0xff] %v848
        %1005 = vst [vmem:[%s981 + $0xb8] sm:$0xff] %v937
        %1006 = vst [vmem:[%s981 + $0xc0] sm:$0xff] %v851
        %1007 = vst [vmem:[%s981 + $0xc8] sm:$0xff] %v940
        %1008 = vst [vmem:[%s981 + $0xd0] sm:$0xff] %v853
        %1009 = vst [vmem:[%s981 + $0xd8] sm:$0xff] %v942
        %1010 = vst [vmem:[%s981 + $0xe0] sm:$0xff] %v856
        %1011 = vst [vmem:[%s981 + $0xe8] sm:$0xff] %v945
        %1012 = vst [vmem:[%s981 + $0xf0] sm:$0xff] %v858
        %1013 = vst [vmem:[%s981 + $0xf8] sm:$0xff] %v947
        %v1014 = vld [vmem:[%s6] sm:$0x3]
        %v1015 = vadd.f32 %v781, %v783
        %v1016 = vadd.f32 %v1015, %v786
        %v1017 = vadd.f32 %v1016, %v788
        %v1018 = vadd.f32 %v1017, %v791
        %v1019 = vadd.f32 %v1018, %v793
        %v1020 = vadd.f32 %v1019, %v796
        %v1021 = vadd.f32 %v1020, %v798
        %v1022 = vadd.f32 %v1021, %v801
        %v1023 = vadd.f32 %v1022, %v803
        %v1024 = vadd.f32 %v1023, %v806
        %v1025 = vadd.f32 %v1024, %v808
        %v1026 = vadd.f32 %v1025, %v811
        %v1027 = vadd.f32 %v1026, %v813
        %v1028 = vadd.f32 %v1027, %v816
        %v1029 = vadd.f32 %v1028, %v818
        %v1030 = vrot.slane %v1029, 4
        %v1031 = vadd.f32 %v1029, %v1030
        %v1032 = vrot.slane %v1031, 2
        %v1033 = vadd.f32 %v1031, %v1032
        %v1034 = vrot.slane %v1033, 1
        %v1035 = vadd.f32 %v1033, %v1034
        %v1036 = vadd.f32 %v870, %v872
        %v1037 = vadd.f32 %v1036, %v875
        %v1038 = vadd.f32 %v1037, %v877
        %v1039 = vadd.f32 %v1038, %v880
        %v1040 = vadd.f32 %v1039, %v882
        %v1041 = vadd.f32 %v1040, %v885
        %v1042 = vadd.f32 %v1041, %v887
        %v1043 = vadd.f32 %v1042, %v890
        %v1044 = vadd.f32 %v1043, %v892
        %v1045 = vadd.f32 %v1044, %v895
        %v1046 = vadd.f32 %v1045, %v897
        %v1047 = vadd.f32 %v1046, %v900
        %v1048 = vadd.f32 %v1047, %v902
        %v1049 = vadd.f32 %v1048, %v905
        %v1050 = vadd.f32 %v1049, %v907
        %v1051 = vrot.slane %v1050, 4
        %v1052 = vadd.f32 %v1050, %v1051
        %v1053 = vrot.slane %v1052, 2
        %v1054 = vadd.f32 %v1052, %v1053
        %v1055 = vrot.slane %v1054, 1
        %v1056 = vadd.f32 %v1054, %v1055
        %v1059 = vrot.slane %v1056, 7
        %vm1060 = vcmask 1040384
        %v1061 = vsel %vm1060, %v1035, %v1059
        %v1063 = vadd.f32 %v1014, %v1061
        %v1064 = vlaneseq
        %vm1065 = vcmp.ge.s32.totalorder %v1064, 0
        %vm1066 = vcmp.lt.s32.totalorder %v1064, 256
        %vm1067 = vmand %vm1065, %vm1066
        %1068 = vst.msk [vmem:[%s6] sm:$0x3] %vm1067, %v1063
        %s1069 = scalar_lea.vmem %s6, 2
        %v1070 = vld [vmem:[%s1069] sm:$0x3]
        %v1071 = vadd.f32 %v821, %v823
        %v1072 = vadd.f32 %v1071, %v826
        %v1073 = vadd.f32 %v1072, %v828
        %v1074 = vadd.f32 %v1073, %v831
        %v1075 = vadd.f32 %v1074, %v833
        %v1076 = vadd.f32 %v1075, %v836
        %v1077 = vadd.f32 %v1076, %v838
        %v1078 = vadd.f32 %v1077, %v841
        %v1079 = vadd.f32 %v1078, %v843
        %v1080 = vadd.f32 %v1079, %v846
        %v1081 = vadd.f32 %v1080, %v848
        %v1082 = vadd.f32 %v1081, %v851
        %v1083 = vadd.f32 %v1082, %v853
        %v1084 = vadd.f32 %v1083, %v856
        %v1085 = vadd.f32 %v1084, %v858
        %v1086 = vrot.slane %v1085, 4
        %v1087 = vadd.f32 %v1085, %v1086
        %v1088 = vrot.slane %v1087, 2
        %v1089 = vadd.f32 %v1087, %v1088
        %v1090 = vrot.slane %v1089, 1
        %v1091 = vadd.f32 %v1089, %v1090
        %v1092 = vadd.f32 %v910, %v912
        %v1093 = vadd.f32 %v1092, %v915
        %v1094 = vadd.f32 %v1093, %v917
        %v1095 = vadd.f32 %v1094, %v920
        %v1096 = vadd.f32 %v1095, %v922
        %v1097 = vadd.f32 %v1096, %v925
        %v1098 = vadd.f32 %v1097, %v927
        %v1099 = vadd.f32 %v1098, %v930
        %v1100 = vadd.f32 %v1099, %v932
        %v1101 = vadd.f32 %v1100, %v935
        %v1102 = vadd.f32 %v1101, %v937
        %v1103 = vadd.f32 %v1102, %v940
        %v1104 = vadd.f32 %v1103, %v942
        %v1105 = vadd.f32 %v1104, %v945
        %v1106 = vadd.f32 %v1105, %v947
        %v1107 = vrot.slane %v1106, 4
        %v1108 = vadd.f32 %v1106, %v1107
        %v1109 = vrot.slane %v1108, 2
        %v1110 = vadd.f32 %v1108, %v1109
        %v1111 = vrot.slane %v1110, 1
        %v1112 = vadd.f32 %v1110, %v1111
        %v1115 = vrot.slane %v1112, 7
        %v1116 = vsel %vm1060, %v1091, %v1115
        %v1118 = vadd.f32 %v1070, %v1116
        %1119 = vst.msk [vmem:[%s1069] sm:$0x3] %vm1067, %v1118
        %v1120 = vld [vmem:[%s7] sm:$0x3]
        %v1121 = vmul.f32 %v781, %v781
        %v1122 = vmul.f32 %v870, %v870
        %v1123 = vmul.f32 %v783, %v783
        %v1124 = vmul.f32 %v872, %v872
        %v1125 = vmul.f32 %v786, %v786
        %v1126 = vmul.f32 %v875, %v875
        %v1127 = vmul.f32 %v788, %v788
        %v1128 = vmul.f32 %v877, %v877
        %v1129 = vmul.f32 %v791, %v791
        %v1130 = vmul.f32 %v880, %v880
        %v1131 = vmul.f32 %v793, %v793
        %v1132 = vmul.f32 %v882, %v882
        %v1133 = vmul.f32 %v796, %v796
        %v1134 = vmul.f32 %v885, %v885
        %v1135 = vmul.f32 %v798, %v798
        %v1136 = vmul.f32 %v887, %v887
        %v1137 = vmul.f32 %v801, %v801
        %v1138 = vmul.f32 %v890, %v890
        %v1139 = vmul.f32 %v803, %v803
        %v1140 = vmul.f32 %v892, %v892
        %v1141 = vmul.f32 %v806, %v806
        %v1142 = vmul.f32 %v895, %v895
        %v1143 = vmul.f32 %v808, %v808
        %v1144 = vmul.f32 %v897, %v897
        %v1145 = vmul.f32 %v811, %v811
        %v1146 = vmul.f32 %v900, %v900
        %v1147 = vmul.f32 %v813, %v813
        %v1148 = vmul.f32 %v902, %v902
        %v1149 = vmul.f32 %v816, %v816
        %v1150 = vmul.f32 %v905, %v905
        %v1151 = vmul.f32 %v818, %v818
        %v1152 = vmul.f32 %v907, %v907
        %v1153 = vadd.f32 %v1121, %v1123
        %v1154 = vadd.f32 %v1153, %v1125
        %v1155 = vadd.f32 %v1154, %v1127
        %v1156 = vadd.f32 %v1155, %v1129
        %v1157 = vadd.f32 %v1156, %v1131
        %v1158 = vadd.f32 %v1157, %v1133
        %v1159 = vadd.f32 %v1158, %v1135
        %v1160 = vadd.f32 %v1159, %v1137
        %v1161 = vadd.f32 %v1160, %v1139
        %v1162 = vadd.f32 %v1161, %v1141
        %v1163 = vadd.f32 %v1162, %v1143
        %v1164 = vadd.f32 %v1163, %v1145
        %v1165 = vadd.f32 %v1164, %v1147
        %v1166 = vadd.f32 %v1165, %v1149
        %v1167 = vadd.f32 %v1166, %v1151
        %v1168 = vrot.slane %v1167, 4
        %v1169 = vadd.f32 %v1167, %v1168
        %v1170 = vrot.slane %v1169, 2
        %v1171 = vadd.f32 %v1169, %v1170
        %v1172 = vrot.slane %v1171, 1
        %v1173 = vadd.f32 %v1171, %v1172
        %v1174 = vadd.f32 %v1122, %v1124
        %v1175 = vadd.f32 %v1174, %v1126
        %v1176 = vadd.f32 %v1175, %v1128
        %v1177 = vadd.f32 %v1176, %v1130
        %v1178 = vadd.f32 %v1177, %v1132
        %v1179 = vadd.f32 %v1178, %v1134
        %v1180 = vadd.f32 %v1179, %v1136
        %v1181 = vadd.f32 %v1180, %v1138
        %v1182 = vadd.f32 %v1181, %v1140
        %v1183 = vadd.f32 %v1182, %v1142
        %v1184 = vadd.f32 %v1183, %v1144
        %v1185 = vadd.f32 %v1184, %v1146
        %v1186 = vadd.f32 %v1185, %v1148
        %v1187 = vadd.f32 %v1186, %v1150
        %v1188 = vadd.f32 %v1187, %v1152
        %v1189 = vrot.slane %v1188, 4
        %v1190 = vadd.f32 %v1188, %v1189
        %v1191 = vrot.slane %v1190, 2
        %v1192 = vadd.f32 %v1190, %v1191
        %v1193 = vrot.slane %v1192, 1
        %v1194 = vadd.f32 %v1192, %v1193
        %v1197 = vrot.slane %v1194, 7
        %v1198 = vsel %vm1060, %v1173, %v1197
        %v1200 = vadd.f32 %v1120, %v1198
        %1201 = vst.msk [vmem:[%s7] sm:$0x3] %vm1067, %v1200
        %s1202 = scalar_lea.vmem %s7, 2
        %v1203 = vld [vmem:[%s1202] sm:$0x3]
        %v1204 = vmul.f32 %v821, %v821
        %v1205 = vmul.f32 %v910, %v910
        %v1206 = vmul.f32 %v823, %v823
        %v1207 = vmul.f32 %v912, %v912
        %v1208 = vmul.f32 %v826, %v826
        %v1209 = vmul.f32 %v915, %v915
        %v1210 = vmul.f32 %v828, %v828
        %v1211 = vmul.f32 %v917, %v917
        %v1212 = vmul.f32 %v831, %v831
        %v1213 = vmul.f32 %v920, %v920
        %v1214 = vmul.f32 %v833, %v833
        %v1215 = vmul.f32 %v922, %v922
        %v1216 = vmul.f32 %v836, %v836
        %v1217 = vmul.f32 %v925, %v925
        %v1218 = vmul.f32 %v838, %v838
        %v1219 = vmul.f32 %v927, %v927
        %v1220 = vmul.f32 %v841, %v841
        %v1221 = vmul.f32 %v930, %v930
        %v1222 = vmul.f32 %v843, %v843
        %v1223 = vmul.f32 %v932, %v932
        %v1224 = vmul.f32 %v846, %v846
        %v1225 = vmul.f32 %v935, %v935
        %v1226 = vmul.f32 %v848, %v848
        %v1227 = vmul.f32 %v937, %v937
        %v1228 = vmul.f32 %v851, %v851
        %v1229 = vmul.f32 %v940, %v940
        %v1230 = vmul.f32 %v853, %v853
        %v1231 = vmul.f32 %v942, %v942
        %v1232 = vmul.f32 %v856, %v856
        %v1233 = vmul.f32 %v945, %v945
        %v1234 = vmul.f32 %v858, %v858
        %v1235 = vmul.f32 %v947, %v947
        %v1236 = vadd.f32 %v1204, %v1206
        %v1237 = vadd.f32 %v1236, %v1208
        %v1238 = vadd.f32 %v1237, %v1210
        %v1239 = vadd.f32 %v1238, %v1212
        %v1240 = vadd.f32 %v1239, %v1214
        %v1241 = vadd.f32 %v1240, %v1216
        %v1242 = vadd.f32 %v1241, %v1218
        %v1243 = vadd.f32 %v1242, %v1220
        %v1244 = vadd.f32 %v1243, %v1222
        %v1245 = vadd.f32 %v1244, %v1224
        %v1246 = vadd.f32 %v1245, %v1226
        %v1247 = vadd.f32 %v1246, %v1228
        %v1248 = vadd.f32 %v1247, %v1230
        %v1249 = vadd.f32 %v1248, %v1232
        %v1250 = vadd.f32 %v1249, %v1234
        %v1251 = vrot.slane %v1250, 4
        %v1252 = vadd.f32 %v1250, %v1251
        %v1253 = vrot.slane %v1252, 2
        %v1254 = vadd.f32 %v1252, %v1253
        %v1255 = vrot.slane %v1254, 1
        %v1256 = vadd.f32 %v1254, %v1255
        %v1257 = vadd.f32 %v1205, %v1207
        %v1258 = vadd.f32 %v1257, %v1209
        %v1259 = vadd.f32 %v1258, %v1211
        %v1260 = vadd.f32 %v1259, %v1213
        %v1261 = vadd.f32 %v1260, %v1215
        %v1262 = vadd.f32 %v1261, %v1217
        %v1263 = vadd.f32 %v1262, %v1219
        %v1264 = vadd.f32 %v1263, %v1221
        %v1265 = vadd.f32 %v1264, %v1223
        %v1266 = vadd.f32 %v1265, %v1225
        %v1267 = vadd.f32 %v1266, %v1227
        %v1268 = vadd.f32 %v1267, %v1229
        %v1269 = vadd.f32 %v1268, %v1231
        %v1270 = vadd.f32 %v1269, %v1233
        %v1271 = vadd.f32 %v1270, %v1235
        %v1272 = vrot.slane %v1271, 4
        %v1273 = vadd.f32 %v1271, %v1272
        %v1274 = vrot.slane %v1273, 2
        %v1275 = vadd.f32 %v1273, %v1274
        %v1276 = vrot.slane %v1275, 1
        %v1277 = vadd.f32 %v1275, %v1276
        %v1280 = vrot.slane %v1277, 7
        %v1281 = vsel %vm1060, %v1256, %v1280
        %v1283 = vadd.f32 %v1203, %v1281
        %1284 = vst.msk [vmem:[%s1202] sm:$0x3] %vm1067, %v1283
        %s1285 = sand.u32 %s137, 1
        %s1286 = sand.u32 %s137, 1
        %s1287 = smul.addr %s1286, 512
        %s1288 = scalar_lea.vmem [#allocation3], %s1287
        // Predicated region
        $region83: #{dualvae_forward.8} parent=73 // pred_check
          %p1289 = pneg %p147
        $region84: #{dualvae_forward.8} parent=73 // pred_check_branch
          %1291 = sbr.rel (%p1289) target = $region86
        $region85: #{dualvae_forward.8} parent=73 // pred_region
          %s1292 = smul.u32 16, %s19
          %s1293 = smul.addr %s1292, 2
          %s1294 = smul.addr %s1293, 8
          %s1295 = scalar_lea.vmem %s5, %s1294
          // Predicated region
          $region87: #{dualvae_forward.8} parent=85 // pred_check
            _
          $region88: #{dualvae_forward.8} parent=85 // pred_check_branch
            %1297 = sbr.rel (0) target = $region90
          $region89: #{dualvae_forward.8} parent=85 // pred_region
            // Predicated region
            $region91: #{dualvae_forward.8} parent=89 // pred_check
              _
            $region92: #{dualvae_forward.8} parent=89 // pred_check_branch
              %1299 = sbr.rel (0) target = $region94
            $region93: #{dualvae_forward.8} parent=89 // pred_region
              loop: start=0, step=1, limit=1
              $region95: #{dualvae_forward.8} parent=93 // loop_pre_header
                _
              $region96: #{dualvae_forward.8} parent=93 // loop_header
                %s1301 = sphi 0, %s1305
                %p1302 = scmp.ge.s32.totalorder %s1301, 1
                %s1306 = sphi %s1288, %s1288
                %s1307 = sphi %s1295, %s1295
              $region97: #{dualvae_forward.8} parent=93 // loop_header_branch
                %1304 = sbr.rel (%p1302) target = $region101
              $region98: #{dualvae_forward.8} parent=93 // loop_body
                %v1308 = vld [vmem:[%s1306] sm:$0xff]
                %1309 = vst [vmem:[%s1307] sm:$0xff] %v1308
                %v1310 = vld [vmem:[%s1306 + $0x8] sm:$0xff]
                %1311 = vst [vmem:[%s1307 + $0x8] sm:$0xff] %v1310
                %v1312 = vld [vmem:[%s1306 + $0x10] sm:$0xff]
                %1313 = vst [vmem:[%s1307 + $0x10] sm:$0xff] %v1312
                %v1314 = vld [vmem:[%s1306 + $0x18] sm:$0xff]
                %1315 = vst [vmem:[%s1307 + $0x18] sm:$0xff] %v1314
                %v1316 = vld [vmem:[%s1306 + $0x20] sm:$0xff]
                %1317 = vst [vmem:[%s1307 + $0x20] sm:$0xff] %v1316
                %v1318 = vld [vmem:[%s1306 + $0x28] sm:$0xff]
                %1319 = vst [vmem:[%s1307 + $0x28] sm:$0xff] %v1318
                %v1320 = vld [vmem:[%s1306 + $0x30] sm:$0xff]
                %1321 = vst [vmem:[%s1307 + $0x30] sm:$0xff] %v1320
                %v1322 = vld [vmem:[%s1306 + $0x38] sm:$0xff]
                %1323 = vst [vmem:[%s1307 + $0x38] sm:$0xff] %v1322
                %v1324 = vld [vmem:[%s1306 + $0x40] sm:$0xff]
                %1325 = vst [vmem:[%s1307 + $0x40] sm:$0xff] %v1324
                %v1326 = vld [vmem:[%s1306 + $0x48] sm:$0xff]
                %1327 = vst [vmem:[%s1307 + $0x48] sm:$0xff] %v1326
                %v1328 = vld [vmem:[%s1306 + $0x50] sm:$0xff]
                %1329 = vst [vmem:[%s1307 + $0x50] sm:$0xff] %v1328
                %v1330 = vld [vmem:[%s1306 + $0x58] sm:$0xff]
                %1331 = vst [vmem:[%s1307 + $0x58] sm:$0xff] %v1330
                %v1332 = vld [vmem:[%s1306 + $0x60] sm:$0xff]
                %1333 = vst [vmem:[%s1307 + $0x60] sm:$0xff] %v1332
                %v1334 = vld [vmem:[%s1306 + $0x68] sm:$0xff]
                %1335 = vst [vmem:[%s1307 + $0x68] sm:$0xff] %v1334
                %v1336 = vld [vmem:[%s1306 + $0x70] sm:$0xff]
                %1337 = vst [vmem:[%s1307 + $0x70] sm:$0xff] %v1336
                %v1338 = vld [vmem:[%s1306 + $0x78] sm:$0xff]
                %1339 = vst [vmem:[%s1307 + $0x78] sm:$0xff] %v1338
                %v1340 = vld [vmem:[%s1306 + $0x80] sm:$0xff]
                %1341 = vst [vmem:[%s1307 + $0x80] sm:$0xff] %v1340
                %v1342 = vld [vmem:[%s1306 + $0x88] sm:$0xff]
                %1343 = vst [vmem:[%s1307 + $0x88] sm:$0xff] %v1342
                %v1344 = vld [vmem:[%s1306 + $0x90] sm:$0xff]
                %1345 = vst [vmem:[%s1307 + $0x90] sm:$0xff] %v1344
                %v1346 = vld [vmem:[%s1306 + $0x98] sm:$0xff]
                %1347 = vst [vmem:[%s1307 + $0x98] sm:$0xff] %v1346
                %v1348 = vld [vmem:[%s1306 + $0xa0] sm:$0xff]
                %1349 = vst [vmem:[%s1307 + $0xa0] sm:$0xff] %v1348
                %v1350 = vld [vmem:[%s1306 + $0xa8] sm:$0xff]
                %1351 = vst [vmem:[%s1307 + $0xa8] sm:$0xff] %v1350
                %v1352 = vld [vmem:[%s1306 + $0xb0] sm:$0xff]
                %1353 = vst [vmem:[%s1307 + $0xb0] sm:$0xff] %v1352
                %v1354 = vld [vmem:[%s1306 + $0xb8] sm:$0xff]
                %1355 = vst [vmem:[%s1307 + $0xb8] sm:$0xff] %v1354
                %v1356 = vld [vmem:[%s1306 + $0xc0] sm:$0xff]
                %1357 = vst [vmem:[%s1307 + $0xc0] sm:$0xff] %v1356
                %v1358 = vld [vmem:[%s1306 + $0xc8] sm:$0xff]
                %1359 = vst [vmem:[%s1307 + $0xc8] sm:$0xff] %v1358
                %v1360 = vld [vmem:[%s1306 + $0xd0] sm:$0xff]
                %1361 = vst [vmem:[%s1307 + $0xd0] sm:$0xff] %v1360
                %v1362 = vld [vmem:[%s1306 + $0xd8] sm:$0xff]
                %1363 = vst [vmem:[%s1307 + $0xd8] sm:$0xff] %v1362
                %v1364 = vld [vmem:[%s1306 + $0xe0] sm:$0xff]
                %1365 = vst [vmem:[%s1307 + $0xe0] sm:$0xff] %v1364
                %v1366 = vld [vmem:[%s1306 + $0xe8] sm:$0xff]
                %1367 = vst [vmem:[%s1307 + $0xe8] sm:$0xff] %v1366
                %v1368 = vld [vmem:[%s1306 + $0xf0] sm:$0xff]
                %1369 = vst [vmem:[%s1307 + $0xf0] sm:$0xff] %v1368
                %v1370 = vld [vmem:[%s1306 + $0xf8] sm:$0xff]
                %1371 = vst [vmem:[%s1307 + $0xf8] sm:$0xff] %v1370
                %v1372 = vld [vmem:[%s1306 + $0x100] sm:$0xff]
                %1373 = vst [vmem:[%s1307 + $0x200] sm:$0xff] %v1372
                %v1374 = vld [vmem:[%s1306 + $0x108] sm:$0xff]
                %1375 = vst [vmem:[%s1307 + $0x208] sm:$0xff] %v1374
                %v1376 = vld [vmem:[%s1306 + $0x110] sm:$0xff]
                %1377 = vst [vmem:[%s1307 + $0x210] sm:$0xff] %v1376
                %v1378 = vld [vmem:[%s1306 + $0x118] sm:$0xff]
                %1379 = vst [vmem:[%s1307 + $0x218] sm:$0xff] %v1378
                %v1380 = vld [vmem:[%s1306 + $0x120] sm:$0xff]
                %1381 = vst [vmem:[%s1307 + $0x220] sm:$0xff] %v1380
                %v1382 = vld [vmem:[%s1306 + $0x128] sm:$0xff]
                %1383 = vst [vmem:[%s1307 + $0x228] sm:$0xff] %v1382
                %v1384 = vld [vmem:[%s1306 + $0x130] sm:$0xff]
                %1385 = vst [vmem:[%s1307 + $0x230] sm:$0xff] %v1384
                %v1386 = vld [vmem:[%s1306 + $0x138] sm:$0xff]
                %1387 = vst [vmem:[%s1307 + $0x238] sm:$0xff] %v1386
                %v1388 = vld [vmem:[%s1306 + $0x140] sm:$0xff]
                %1389 = vst [vmem:[%s1307 + $0x240] sm:$0xff] %v1388
                %v1390 = vld [vmem:[%s1306 + $0x148] sm:$0xff]
                %1391 = vst [vmem:[%s1307 + $0x248] sm:$0xff] %v1390
                %v1392 = vld [vmem:[%s1306 + $0x150] sm:$0xff]
                %1393 = vst [vmem:[%s1307 + $0x250] sm:$0xff] %v1392
                %v1394 = vld [vmem:[%s1306 + $0x158] sm:$0xff]
                %1395 = vst [vmem:[%s1307 + $0x258] sm:$0xff] %v1394
                %v1396 = vld [vmem:[%s1306 + $0x160] sm:$0xff]
                %1397 = vst [vmem:[%s1307 + $0x260] sm:$0xff] %v1396
                %v1398 = vld [vmem:[%s1306 + $0x168] sm:$0xff]
                %1399 = vst [vmem:[%s1307 + $0x268] sm:$0xff] %v1398
                %v1400 = vld [vmem:[%s1306 + $0x170] sm:$0xff]
                %1401 = vst [vmem:[%s1307 + $0x270] sm:$0xff] %v1400
                %v1402 = vld [vmem:[%s1306 + $0x178] sm:$0xff]
                %1403 = vst [vmem:[%s1307 + $0x278] sm:$0xff] %v1402
                %v1404 = vld [vmem:[%s1306 + $0x180] sm:$0xff]
                %1405 = vst [vmem:[%s1307 + $0x280] sm:$0xff] %v1404
                %v1406 = vld [vmem:[%s1306 + $0x188] sm:$0xff]
                %1407 = vst [vmem:[%s1307 + $0x288] sm:$0xff] %v1406
                %v1408 = vld [vmem:[%s1306 + $0x190] sm:$0xff]
                %1409 = vst [vmem:[%s1307 + $0x290] sm:$0xff] %v1408
                %v1410 = vld [vmem:[%s1306 + $0x198] sm:$0xff]
                %1411 = vst [vmem:[%s1307 + $0x298] sm:$0xff] %v1410
                %v1412 = vld [vmem:[%s1306 + $0x1a0] sm:$0xff]
                %1413 = vst [vmem:[%s1307 + $0x2a0] sm:$0xff] %v1412
                %v1414 = vld [vmem:[%s1306 + $0x1a8] sm:$0xff]
                %1415 = vst [vmem:[%s1307 + $0x2a8] sm:$0xff] %v1414
                %v1416 = vld [vmem:[%s1306 + $0x1b0] sm:$0xff]
                %1417 = vst [vmem:[%s1307 + $0x2b0] sm:$0xff] %v1416
                %v1418 = vld [vmem:[%s1306 + $0x1b8] sm:$0xff]
                %1419 = vst [vmem:[%s1307 + $0x2b8] sm:$0xff] %v1418
                %v1420 = vld [vmem:[%s1306 + $0x1c0] sm:$0xff]
                %1421 = vst [vmem:[%s1307 + $0x2c0] sm:$0xff] %v1420
                %v1422 = vld [vmem:[%s1306 + $0x1c8] sm:$0xff]
                %1423 = vst [vmem:[%s1307 + $0x2c8] sm:$0xff] %v1422
                %v1424 = vld [vmem:[%s1306 + $0x1d0] sm:$0xff]
                %1425 = vst [vmem:[%s1307 + $0x2d0] sm:$0xff] %v1424
                %v1426 = vld [vmem:[%s1306 + $0x1d8] sm:$0xff]
                %1427 = vst [vmem:[%s1307 + $0x2d8] sm:$0xff] %v1426
                %v1428 = vld [vmem:[%s1306 + $0x1e0] sm:$0xff]
                %1429 = vst [vmem:[%s1307 + $0x2e0] sm:$0xff] %v1428
                %v1430 = vld [vmem:[%s1306 + $0x1e8] sm:$0xff]
                %1431 = vst [vmem:[%s1307 + $0x2e8] sm:$0xff] %v1430
                %v1432 = vld [vmem:[%s1306 + $0x1f0] sm:$0xff]
                %1433 = vst [vmem:[%s1307 + $0x2f0] sm:$0xff] %v1432
                %v1434 = vld [vmem:[%s1306 + $0x1f8] sm:$0xff]
                %1435 = vst [vmem:[%s1307 + $0x2f8] sm:$0xff] %v1434
              $region99: #{dualvae_forward.8} parent=93 // loop_footer
                %s1305 = sadd.s32 1, %s1301
              $region100: #{dualvae_forward.8} parent=93 // loop_footer_branch
                %1300 = sbr.rel target = $region96
              $region101: #{dualvae_forward.8} parent=93 // loop_exit
                _
            $region94: #{dualvae_forward.8} parent=89 // pred_fallthru
              _
            // Predicated region
            $region102: #{dualvae_forward.8} parent=89 // pred_check
              _
            $region103: #{dualvae_forward.8} parent=89 // pred_check_branch
              %1437 = sbr.rel target = $region105
            $region104: #{dualvae_forward.8} parent=89 // pred_region
              _
            $region105: #{dualvae_forward.8} parent=89 // pred_fallthru
              _
          $region90: #{dualvae_forward.8} parent=85 // pred_fallthru
            _
          %1438 = vnop
        $region86: #{dualvae_forward.8} parent=73 // pred_fallthru
          _
        // Predicated region
        $region106: #{dualvae_forward.8} parent=73 // pred_check
          %p1439 = pneg %p168
        $region107: #{dualvae_forward.8} parent=73 // pred_check_branch
          %1441 = sbr.rel (%p1439) target = $region109
        $region108: #{dualvae_forward.8} parent=73 // pred_region
          _
        $region109: #{dualvae_forward.8} parent=73 // pred_fallthru
          _
        // Predicated region
        $region110: #{dualvae_forward.8} parent=73 // pred_check
          %p1442 = pneg %p189
        $region111: #{dualvae_forward.8} parent=73 // pred_check_branch
          %1444 = sbr.rel (%p1442) target = $region113
        $region112: #{dualvae_forward.8} parent=73 // pred_region
          _
        $region113: #{dualvae_forward.8} parent=73 // pred_fallthru
          _
        // Predicated region
        $region114: #{dualvae_forward.8} parent=73 // pred_check
          %p1445 = pneg %p168
        $region115: #{dualvae_forward.8} parent=73 // pred_check_branch
          %1447 = sbr.rel (%p1445) target = $region117
        $region116: #{dualvae_forward.8} parent=73 // pred_region
          _
        $region117: #{dualvae_forward.8} parent=73 // pred_fallthru
          _
        // Predicated region
        $region118: #{dualvae_forward.8} parent=73 // pred_check
          %p1448 = pneg %p189
        $region119: #{dualvae_forward.8} parent=73 // pred_check_branch
          %1450 = sbr.rel (%p1448) target = $region121
        $region120: #{dualvae_forward.8} parent=73 // pred_region
          _
        $region121: #{dualvae_forward.8} parent=73 // pred_fallthru
          _
      $region74: #{dualvae_forward.8} parent=5 // pred_fallthru
        _
      %p1451 = scmp.le.s32.totalorder 2, %s14
      // Predicated region
      $region122: #{dualvae_forward.8} parent=5 // pred_check
        %p1452 = pneg %p1451
      $region123: #{dualvae_forward.8} parent=5 // pred_check_branch
        %1454 = sbr.rel (%p1452) target = $region125
      $region124: #{dualvae_forward.8} parent=5 // pred_region
        %s1455 = ssub.s32 %s14, 2
        // Predicated region
        $region126: #{dualvae_forward.8} parent=124 // pred_check
          %p1456 = pneg %p153
        $region127: #{dualvae_forward.8} parent=124 // pred_check_branch
          %1458 = sbr.rel (%p1456) target = $region129
        $region128: #{dualvae_forward.8} parent=124 // pred_region
          %s1459 = sand.u32 %s138, 1
          %s1460 = sand.u32 %s138, 1
          %s1461 = smul.addr %s1460, 512
          %s1462 = scalar_lea.vmem [#allocation3], %s1461
        $region129: #{dualvae_forward.8} parent=124 // pred_fallthru
          _
      $region125: #{dualvae_forward.8} parent=5 // pred_fallthru
        _
    $region6: #{dualvae_forward.8} parent=1 // loop_footer
      %s18 = sadd.s32 1, %s14
    $region7: #{dualvae_forward.8} parent=1 // loop_footer_branch
      %13 = sbr.rel target = $region3
    $region8: #{dualvae_forward.8} parent=1 // loop_exit
      _

// kernel: dualvae_forward.9
$region0: #{dualvae_forward.9}
  #allocation0 [shape = 'u32[]', space=smem, size = 0x4, offset = 0x4, fixed_abs, tag = 'smem constant byte address 0x4 - core index']
  #allocation1 [shape = 'u32[72,128]{1,0:T(1,128)}', space=vmem, size = 0x9000, scoped, tag = 'internal scratch']
  %s0 = inlined_call_operand.vmem [shape: f32[2,256,256], index: 0, kind: input, shape index: {}]
  %s1 = inlined_call_operand.vmem [shape: f32[2,1,256], index: 1, kind: input, shape index: {}]
  %s2 = inlined_call_operand.vmem [shape: f32[2,1,256], index: 2, kind: input, shape index: {}]
  %s3 = inlined_call_operand.vmem [shape: bf16[256,256], index: 3, kind: input, shape index: {}]
  %s4 = inlined_call_operand.vmem [shape: f32[1,256], index: 4, kind: input, shape index: {}]
  %s5 = inlined_call_operand.hbm [shape: f32[256,256], index: 5, kind: output, shape index: {0}]
  %s6 = inlined_call_operand.hbm [shape: f32[256,256], index: 6, kind: output, shape index: {1}]
  %7 = xla_tuple %s5, %s6
  %s8 = sld [smem:[#allocation0]]
  $region84: #{dualvae_forward.9} parent=0
    _
  %s10 = ssub.s32 1, %s8
  %s11 = scalar_select 0, %s10, %s8
  $region1: #{dualvae_forward.9} parent=0
    #allocation2 [shape = 'u8[524288]{0}', space=vmem, size = 0x80000, scoped, tag = 'input window, operand 0']
    #allocation3 [shape = 'u8[262144]{0}', space=vmem, size = 0x40000, scoped, tag = 'output window, operand 0']
    #allocation4 [shape = 's32[2]{0}', space=sflag, size = 0x8, scoped, tag = 'scoped memory for dualvae_forward.9']
    #allocation5 [shape = 'u8[262144]{0}', space=vmem, size = 0x40000, scoped, tag = 'output window, operand 1']
    #allocation6 [shape = 's32[2]{0}', space=sflag, size = 0x8, scoped, tag = 'scoped memory for dualvae_forward.9']
    %12 = vsyncpa [#allocation4], 0
    %s13 = scalar_lea.sflag [#allocation4], 1
    %14 = vsyncpa %s13, 0
    %15 = vsyncpa [#allocation6], 0
    %s16 = scalar_lea.sflag [#allocation6], 1
    %17 = vsyncpa %s16, 0
    loop: start=0, step=1, limit=4
    $region2: #{dualvae_forward.9} parent=1 // loop_pre_header
      _
    $region3: #{dualvae_forward.9} parent=1 // loop_header
      %s19 = sphi 0, %s23
      %p20 = scmp.ge.s32.totalorder %s19, 4
      %s29 = sphi 0, %s31
      %s32 = sphi 0, %s29
      %s33 = sphi 0, %s32
      %s49 = sphi 0, %s33
      %s53 = sphi 0, %s53
      %s55 = sphi 0, %s53
      %s56 = sphi 0, %s55
      %s70 = sphi 0, %s56
      %s74 = sphi 0, %s74
      %s76 = sphi 0, %s74
      %s77 = sphi 0, %s76
      %s91 = sphi 0, %s77
      %s95 = sphi 0, %s95
      %s97 = sphi 0, %s95
      %s98 = sphi 0, %s97
      %s112 = sphi 0, %s98
      %s116 = sphi 0, %s116
      %s118 = sphi 0, %s116
      %s119 = sphi 0, %s118
      %s133 = sphi 0, %s119
      %s139 = sphi 0, %s141
      %s142 = sphi 0, %s139
      %s143 = sphi 0, %s142
      %s159 = sphi 0, %s143
      %s165 = sphi 0, %s167
      %s168 = sphi 0, %s165
      %s169 = sphi 0, %s168
      %s185 = sphi 0, %s169
    $region4: #{dualvae_forward.9} parent=1 // loop_header_branch
      %22 = sbr.rel (%p20) target = $region8
    $region5: #{dualvae_forward.9} parent=1 // loop_body
      %s24 = ssub.s32 %s19, 1
      %s25 = ssub.s32 %s19, 2
      %s26 = sadd.s32 %s19, 1
      %s27 = ssub.s32 %s19, %s26
      %p28 = scmp.eq.s32.totalorder %s27, 0
      %s30 = sadd.s32 %s29, 1
      %s31 = scalar_select %p28, %s29, %s30
      %p34 = pneg %p28
      %p35 = scmp.eq.s32.totalorder %s19, 1
      %p36 = por %p34, %p35
      %p37 = scmp.ne.s32.totalorder %s29, %s32
      %p38 = scmp.eq.s32.totalorder %s19, 0
      %p39 = por %p37, %p38
      %p40 = scmp.ne.s32.totalorder %s29, %s32
      %p41 = scmp.eq.s32.totalorder %s24, 1
      %p42 = por %p40, %p41
      %p43 = scmp.ne.s32.totalorder %s32, %s33
      %p44 = scmp.eq.s32.totalorder %s24, 0
      %p45 = por %p43, %p44
      %p46 = scmp.ne.s32.totalorder %s32, %s33
      %p47 = scmp.eq.s32.totalorder %s25, 1
      %p48 = por %p46, %p47
      %p50 = scmp.ne.s32.totalorder %s33, %s49
      %p51 = scmp.eq.s32.totalorder %s25, 0
      %p52 = por %p50, %p51
      %s54 = sadd.s32 %s53, 1
      %p57 = scmp.eq.s32.totalorder %s19, 1
      %p58 = scmp.ne.s32.totalorder %s53, %s55
      %p59 = scmp.eq.s32.totalorder %s19, 0
      %p60 = por %p58, %p59
      %p61 = scmp.ne.s32.totalorder %s53, %s55
      %p62 = scmp.eq.s32.totalorder %s24, 1
      %p63 = por %p61, %p62
      %p64 = scmp.ne.s32.totalorder %s55, %s56
      %p65 = scmp.eq.s32.totalorder %s24, 0
      %p66 = por %p64, %p65
      %p67 = scmp.ne.s32.totalorder %s55, %s56
      %p68 = scmp.eq.s32.totalorder %s25, 1
      %p69 = por %p67, %p68
      %p71 = scmp.ne.s32.totalorder %s56, %s70
      %p72 = scmp.eq.s32.totalorder %s25, 0
      %p73 = por %p71, %p72
      %s75 = sadd.s32 %s74, 1
      %p78 = scmp.eq.s32.totalorder %s19, 1
      %p79 = scmp.ne.s32.totalorder %s74, %s76
      %p80 = scmp.eq.s32.totalorder %s19, 0
      %p81 = por %p79, %p80
      %p82 = scmp.ne.s32.totalorder %s74, %s76
      %p83 = scmp.eq.s32.totalorder %s24, 1
      %p84 = por %p82, %p83
      %p85 = scmp.ne.s32.totalorder %s76, %s77
      %p86 = scmp.eq.s32.totalorder %s24, 0
      %p87 = por %p85, %p86
      %p88 = scmp.ne.s32.totalorder %s76, %s77
      %p89 = scmp.eq.s32.totalorder %s25, 1
      %p90 = por %p88, %p89
      %p92 = scmp.ne.s32.totalorder %s77, %s91
      %p93 = scmp.eq.s32.totalorder %s25, 0
      %p94 = por %p92, %p93
      %s96 = sadd.s32 %s95, 1
      %p99 = scmp.eq.s32.totalorder %s19, 1
      %p100 = scmp.ne.s32.totalorder %s95, %s97
      %p101 = scmp.eq.s32.totalorder %s19, 0
      %p102 = por %p100, %p101
      %p103 = scmp.ne.s32.totalorder %s95, %s97
      %p104 = scmp.eq.s32.totalorder %s24, 1
      %p105 = por %p103, %p104
      %p106 = scmp.ne.s32.totalorder %s97, %s98
      %p107 = scmp.eq.s32.totalorder %s24, 0
      %p108 = por %p106, %p107
      %p109 = scmp.ne.s32.totalorder %s97, %s98
      %p110 = scmp.eq.s32.totalorder %s25, 1
      %p111 = por %p109, %p110
      %p113 = scmp.ne.s32.totalorder %s98, %s112
      %p114 = scmp.eq.s32.totalorder %s25, 0
      %p115 = por %p113, %p114
      %s117 = sadd.s32 %s116, 1
      %p120 = scmp.eq.s32.totalorder %s19, 1
      %p121 = scmp.ne.s32.totalorder %s116, %s118
      %p122 = scmp.eq.s32.totalorder %s19, 0
      %p123 = por %p121, %p122
      %p124 = scmp.ne.s32.totalorder %s116, %s118
      %p125 = scmp.eq.s32.totalorder %s24, 1
      %p126 = por %p124, %p125
      %p127 = scmp.ne.s32.totalorder %s118, %s119
      %p128 = scmp.eq.s32.totalorder %s24, 0
      %p129 = por %p127, %p128
      %p130 = scmp.ne.s32.totalorder %s118, %s119
      %p131 = scmp.eq.s32.totalorder %s25, 1
      %p132 = por %p130, %p131
      %p134 = scmp.ne.s32.totalorder %s119, %s133
      %p135 = scmp.eq.s32.totalorder %s25, 0
      %p136 = por %p134, %p135
      %s137 = ssub.s32 %s19, %s26
      %p138 = scmp.eq.s32.totalorder %s137, 0
      %s140 = sadd.s32 %s139, 1
      %s141 = scalar_select %p138, %s139, %s140
      %p144 = pneg %p138
      %p145 = scmp.eq.s32.totalorder %s19, 1
      %p146 = por %p144, %p145
      %p147 = scmp.ne.s32.totalorder %s139, %s142
      %p148 = scmp.eq.s32.totalorder %s19, 0
      %p149 = por %p147, %p148
      %p150 = scmp.ne.s32.totalorder %s139, %s142
      %p151 = scmp.eq.s32.totalorder %s24, 1
      %p152 = por %p150, %p151
      %p153 = scmp.ne.s32.totalorder %s142, %s143
      %p154 = scmp.eq.s32.totalorder %s24, 0
      %p155 = por %p153, %p154
      %p156 = scmp.ne.s32.totalorder %s142, %s143
      %p157 = scmp.eq.s32.totalorder %s25, 1
      %p158 = por %p156, %p157
      %p160 = scmp.ne.s32.totalorder %s143, %s159
      %p161 = scmp.eq.s32.totalorder %s25, 0
      %p162 = por %p160, %p161
      %s163 = ssub.s32 %s19, %s26
      %p164 = scmp.eq.s32.totalorder %s163, 0
      %s166 = sadd.s32 %s165, 1
      %s167 = scalar_select %p164, %s165, %s166
      %p170 = pneg %p164
      %p171 = scmp.eq.s32.totalorder %s19, 1
      %p172 = por %p170, %p171
      %p173 = scmp.ne.s32.totalorder %s165, %s168
      %p174 = scmp.eq.s32.totalorder %s19, 0
      %p175 = por %p173, %p174
      %p176 = scmp.ne.s32.totalorder %s165, %s168
      %p177 = scmp.eq.s32.totalorder %s24, 1
      %p178 = por %p176, %p177
      %p179 = scmp.ne.s32.totalorder %s168, %s169
      %p180 = scmp.eq.s32.totalorder %s24, 0
      %p181 = por %p179, %p180
      %p182 = scmp.ne.s32.totalorder %s168, %s169
      %p183 = scmp.eq.s32.totalorder %s25, 1
      %p184 = por %p182, %p183
      %p186 = scmp.ne.s32.totalorder %s169, %s185
      %p187 = scmp.eq.s32.totalorder %s25, 0
      %p188 = por %p186, %p187
      %p189 = scmp.le.s32.totalorder 1, %s19
      %p190 = scmp.lt.s32.totalorder %s19, 3
      %p191 = pnand %p189, %p190
      %p192 = pneg %p191
      // Predicated region
      $region9: #{dualvae_forward.9} parent=5 // pred_check
        _
      $region10: #{dualvae_forward.9} parent=5 // pred_check_branch
        %194 = sbr.rel (%p191) target = $region12
      $region11: #{dualvae_forward.9} parent=5 // pred_region
        %s195 = ssub.s32 %s19, 1
        // Predicated region
        $region13: #{dualvae_forward.9} parent=11 // pred_check
          %p196 = pneg %p66
        $region14: #{dualvae_forward.9} parent=11 // pred_check_branch
          %198 = sbr.rel (%p196) target = $region16
        $region15: #{dualvae_forward.9} parent=11 // pred_region
          _
        $region16: #{dualvae_forward.9} parent=11 // pred_fallthru
          _
        // Predicated region
        $region17: #{dualvae_forward.9} parent=11 // pred_check
          %p199 = pneg %p87
        $region18: #{dualvae_forward.9} parent=11 // pred_check_branch
          %201 = sbr.rel (%p199) target = $region20
        $region19: #{dualvae_forward.9} parent=11 // pred_region
          _
        $region20: #{dualvae_forward.9} parent=11 // pred_fallthru
          _
        // Predicated region
        $region21: #{dualvae_forward.9} parent=11 // pred_check
          %p202 = pneg %p108
        $region22: #{dualvae_forward.9} parent=11 // pred_check_branch
          %204 = sbr.rel (%p202) target = $region24
        $region23: #{dualvae_forward.9} parent=11 // pred_region
          _
        $region24: #{dualvae_forward.9} parent=11 // pred_fallthru
          _
        // Predicated region
        $region25: #{dualvae_forward.9} parent=11 // pred_check
          %p205 = pneg %p129
        $region26: #{dualvae_forward.9} parent=11 // pred_check_branch
          %207 = sbr.rel (%p205) target = $region28
        $region27: #{dualvae_forward.9} parent=11 // pred_region
          _
        $region28: #{dualvae_forward.9} parent=11 // pred_fallthru
          _
      $region12: #{dualvae_forward.9} parent=5 // pred_fallthru
        _
      %p208 = scmp.lt.s32.totalorder %s19, 2
      // Predicated region
      $region29: #{dualvae_forward.9} parent=5 // pred_check
        %p209 = pneg %p208
      $region30: #{dualvae_forward.9} parent=5 // pred_check_branch
        %211 = sbr.rel (%p209) target = $region32
      $region31: #{dualvae_forward.9} parent=5 // pred_region
        // Predicated region
        $region33: #{dualvae_forward.9} parent=31 // pred_check
          %p212 = pneg %p39
        $region34: #{dualvae_forward.9} parent=31 // pred_check_branch
          %214 = sbr.rel (%p212) target = $region36
        $region35: #{dualvae_forward.9} parent=31 // pred_region
          %s215 = sand.u32 %s29, 1
          %s216 = sand.u32 %s29, 1
          %s217 = smul.addr %s216, 512
          %s218 = scalar_lea.vmem [#allocation2], %s217
          %s219 = smul.u32 16, %s19
          %s220 = smul.addr %s219, 2
          %s221 = smul.addr %s220, 8
          %s222 = scalar_lea.vmem %s0, %s221
          // Predicated region
          $region37: #{dualvae_forward.9} parent=35 // pred_check
            _
          $region38: #{dualvae_forward.9} parent=35 // pred_check_branch
            %224 = sbr.rel (0) target = $region40
          $region39: #{dualvae_forward.9} parent=35 // pred_region
            // Predicated region
            $region41: #{dualvae_forward.9} parent=39 // pred_check
              _
            $region42: #{dualvae_forward.9} parent=39 // pred_check_branch
              %226 = sbr.rel (0) target = $region44
            $region43: #{dualvae_forward.9} parent=39 // pred_region
              loop: start=0, step=1, limit=1
              $region45: #{dualvae_forward.9} parent=43 // loop_pre_header
                _
              $region46: #{dualvae_forward.9} parent=43 // loop_header
                %s228 = sphi 0, %s232
                %p229 = scmp.ge.s32.totalorder %s228, 1
                %s233 = sphi %s222, %s222
                %s234 = sphi %s218, %s218
              $region47: #{dualvae_forward.9} parent=43 // loop_header_branch
                %231 = sbr.rel (%p229) target = $region51
              $region48: #{dualvae_forward.9} parent=43 // loop_body
                %v235 = vld [vmem:[%s233] sm:$0xff]
                %236 = vst [vmem:[%s234] sm:$0xff] %v235
                %v237 = vld [vmem:[%s233 + $0x8] sm:$0xff]
                %238 = vst [vmem:[%s234 + $0x8] sm:$0xff] %v237
                %v239 = vld [vmem:[%s233 + $0x10] sm:$0xff]
                %240 = vst [vmem:[%s234 + $0x10] sm:$0xff] %v239
                %v241 = vld [vmem:[%s233 + $0x18] sm:$0xff]
                %242 = vst [vmem:[%s234 + $0x18] sm:$0xff] %v241
                %v243 = vld [vmem:[%s233 + $0x20] sm:$0xff]
                %244 = vst [vmem:[%s234 + $0x20] sm:$0xff] %v243
                %v245 = vld [vmem:[%s233 + $0x28] sm:$0xff]
                %246 = vst [vmem:[%s234 + $0x28] sm:$0xff] %v245
                %v247 = vld [vmem:[%s233 + $0x30] sm:$0xff]
                %248 = vst [vmem:[%s234 + $0x30] sm:$0xff] %v247
                %v249 = vld [vmem:[%s233 + $0x38] sm:$0xff]
                %250 = vst [vmem:[%s234 + $0x38] sm:$0xff] %v249
                %v251 = vld [vmem:[%s233 + $0x40] sm:$0xff]
                %252 = vst [vmem:[%s234 + $0x40] sm:$0xff] %v251
                %v253 = vld [vmem:[%s233 + $0x48] sm:$0xff]
                %254 = vst [vmem:[%s234 + $0x48] sm:$0xff] %v253
                %v255 = vld [vmem:[%s233 + $0x50] sm:$0xff]
                %256 = vst [vmem:[%s234 + $0x50] sm:$0xff] %v255
                %v257 = vld [vmem:[%s233 + $0x58] sm:$0xff]
                %258 = vst [vmem:[%s234 + $0x58] sm:$0xff] %v257
                %v259 = vld [vmem:[%s233 + $0x60] sm:$0xff]
                %260 = vst [vmem:[%s234 + $0x60] sm:$0xff] %v259
                %v261 = vld [vmem:[%s233 + $0x68] sm:$0xff]
                %262 = vst [vmem:[%s234 + $0x68] sm:$0xff] %v261
                %v263 = vld [vmem:[%s233 + $0x70] sm:$0xff]
                %264 = vst [vmem:[%s234 + $0x70] sm:$0xff] %v263
                %v265 = vld [vmem:[%s233 + $0x78] sm:$0xff]
                %266 = vst [vmem:[%s234 + $0x78] sm:$0xff] %v265
                %v267 = vld [vmem:[%s233 + $0x80] sm:$0xff]
                %268 = vst [vmem:[%s234 + $0x80] sm:$0xff] %v267
                %v269 = vld [vmem:[%s233 + $0x88] sm:$0xff]
                %270 = vst [vmem:[%s234 + $0x88] sm:$0xff] %v269
                %v271 = vld [vmem:[%s233 + $0x90] sm:$0xff]
                %272 = vst [vmem:[%s234 + $0x90] sm:$0xff] %v271
                %v273 = vld [vmem:[%s233 + $0x98] sm:$0xff]
                %274 = vst [vmem:[%s234 + $0x98] sm:$0xff] %v273
                %v275 = vld [vmem:[%s233 + $0xa0] sm:$0xff]
                %276 = vst [vmem:[%s234 + $0xa0] sm:$0xff] %v275
                %v277 = vld [vmem:[%s233 + $0xa8] sm:$0xff]
                %278 = vst [vmem:[%s234 + $0xa8] sm:$0xff] %v277
                %v279 = vld [vmem:[%s233 + $0xb0] sm:$0xff]
                %280 = vst [vmem:[%s234 + $0xb0] sm:$0xff] %v279
                %v281 = vld [vmem:[%s233 + $0xb8] sm:$0xff]
                %282 = vst [vmem:[%s234 + $0xb8] sm:$0xff] %v281
                %v283 = vld [vmem:[%s233 + $0xc0] sm:$0xff]
                %284 = vst [vmem:[%s234 + $0xc0] sm:$0xff] %v283
                %v285 = vld [vmem:[%s233 + $0xc8] sm:$0xff]
                %286 = vst [vmem:[%s234 + $0xc8] sm:$0xff] %v285
                %v287 = vld [vmem:[%s233 + $0xd0] sm:$0xff]
                %288 = vst [vmem:[%s234 + $0xd0] sm:$0xff] %v287
                %v289 = vld [vmem:[%s233 + $0xd8] sm:$0xff]
                %290 = vst [vmem:[%s234 + $0xd8] sm:$0xff] %v289
                %v291 = vld [vmem:[%s233 + $0xe0] sm:$0xff]
                %292 = vst [vmem:[%s234 + $0xe0] sm:$0xff] %v291
                %v293 = vld [vmem:[%s233 + $0xe8] sm:$0xff]
                %294 = vst [vmem:[%s234 + $0xe8] sm:$0xff] %v293
                %v295 = vld [vmem:[%s233 + $0xf0] sm:$0xff]
                %296 = vst [vmem:[%s234 + $0xf0] sm:$0xff] %v295
                %v297 = vld [vmem:[%s233 + $0xf8] sm:$0xff]
                %298 = vst [vmem:[%s234 + $0xf8] sm:$0xff] %v297
                %v299 = vld [vmem:[%s233 + $0x200] sm:$0xff]
                %300 = vst [vmem:[%s234 + $0x100] sm:$0xff] %v299
                %v301 = vld [vmem:[%s233 + $0x208] sm:$0xff]
                %302 = vst [vmem:[%s234 + $0x108] sm:$0xff] %v301
                %v303 = vld [vmem:[%s233 + $0x210] sm:$0xff]
                %304 = vst [vmem:[%s234 + $0x110] sm:$0xff] %v303
                %v305 = vld [vmem:[%s233 + $0x218] sm:$0xff]
                %306 = vst [vmem:[%s234 + $0x118] sm:$0xff] %v305
                %v307 = vld [vmem:[%s233 + $0x220] sm:$0xff]
                %308 = vst [vmem:[%s234 + $0x120] sm:$0xff] %v307
                %v309 = vld [vmem:[%s233 + $0x228] sm:$0xff]
                %310 = vst [vmem:[%s234 + $0x128] sm:$0xff] %v309
                %v311 = vld [vmem:[%s233 + $0x230] sm:$0xff]
                %312 = vst [vmem:[%s234 + $0x130] sm:$0xff] %v311
                %v313 = vld [vmem:[%s233 + $0x238] sm:$0xff]
                %314 = vst [vmem:[%s234 + $0x138] sm:$0xff] %v313
                %v315 = vld [vmem:[%s233 + $0x240] sm:$0xff]
                %316 = vst [vmem:[%s234 + $0x140] sm:$0xff] %v315
                %v317 = vld [vmem:[%s233 + $0x248] sm:$0xff]
                %318 = vst [vmem:[%s234 + $0x148] sm:$0xff] %v317
                %v319 = vld [vmem:[%s233 + $0x250] sm:$0xff]
                %320 = vst [vmem:[%s234 + $0x150] sm:$0xff] %v319
                %v321 = vld [vmem:[%s233 + $0x258] sm:$0xff]
                %322 = vst [vmem:[%s234 + $0x158] sm:$0xff] %v321
                %v323 = vld [vmem:[%s233 + $0x260] sm:$0xff]
                %324 = vst [vmem:[%s234 + $0x160] sm:$0xff] %v323
                %v325 = vld [vmem:[%s233 + $0x268] sm:$0xff]
                %326 = vst [vmem:[%s234 + $0x168] sm:$0xff] %v325
                %v327 = vld [vmem:[%s233 + $0x270] sm:$0xff]
                %328 = vst [vmem:[%s234 + $0x170] sm:$0xff] %v327
                %v329 = vld [vmem:[%s233 + $0x278] sm:$0xff]
                %330 = vst [vmem:[%s234 + $0x178] sm:$0xff] %v329
                %v331 = vld [vmem:[%s233 + $0x280] sm:$0xff]
                %332 = vst [vmem:[%s234 + $0x180] sm:$0xff] %v331
                %v333 = vld [vmem:[%s233 + $0x288] sm:$0xff]
                %334 = vst [vmem:[%s234 + $0x188] sm:$0xff] %v333
                %v335 = vld [vmem:[%s233 + $0x290] sm:$0xff]
                %336 = vst [vmem:[%s234 + $0x190] sm:$0xff] %v335
                %v337 = vld [vmem:[%s233 + $0x298] sm:$0xff]
                %338 = vst [vmem:[%s234 + $0x198] sm:$0xff] %v337
                %v339 = vld [vmem:[%s233 + $0x2a0] sm:$0xff]
                %340 = vst [vmem:[%s234 + $0x1a0] sm:$0xff] %v339
                %v341 = vld [vmem:[%s233 + $0x2a8] sm:$0xff]
                %342 = vst [vmem:[%s234 + $0x1a8] sm:$0xff] %v341
                %v343 = vld [vmem:[%s233 + $0x2b0] sm:$0xff]
                %344 = vst [vmem:[%s234 + $0x1b0] sm:$0xff] %v343
                %v345 = vld [vmem:[%s233 + $0x2b8] sm:$0xff]
                %346 = vst [vmem:[%s234 + $0x1b8] sm:$0xff] %v345
                %v347 = vld [vmem:[%s233 + $0x2c0] sm:$0xff]
                %348 = vst [vmem:[%s234 + $0x1c0] sm:$0xff] %v347
                %v349 = vld [vmem:[%s233 + $0x2c8] sm:$0xff]
                %350 = vst [vmem:[%s234 + $0x1c8] sm:$0xff] %v349
                %v351 = vld [vmem:[%s233 + $0x2d0] sm:$0xff]
                %352 = vst [vmem:[%s234 + $0x1d0] sm:$0xff] %v351
                %v353 = vld [vmem:[%s233 + $0x2d8] sm:$0xff]
                %354 = vst [vmem:[%s234 + $0x1d8] sm:$0xff] %v353
                %v355 = vld [vmem:[%s233 + $0x2e0] sm:$0xff]
                %356 = vst [vmem:[%s234 + $0x1e0] sm:$0xff] %v355
                %v357 = vld [vmem:[%s233 + $0x2e8] sm:$0xff]
                %358 = vst [vmem:[%s234 + $0x1e8] sm:$0xff] %v357
                %v359 = vld [vmem:[%s233 + $0x2f0] sm:$0xff]
                %360 = vst [vmem:[%s234 + $0x1f0] sm:$0xff] %v359
                %v361 = vld [vmem:[%s233 + $0x2f8] sm:$0xff]
                %362 = vst [vmem:[%s234 + $0x1f8] sm:$0xff] %v361
              $region49: #{dualvae_forward.9} parent=43 // loop_footer
                %s232 = sadd.s32 1, %s228
              $region50: #{dualvae_forward.9} parent=43 // loop_footer_branch
                %227 = sbr.rel target = $region46
              $region51: #{dualvae_forward.9} parent=43 // loop_exit
                _
            $region44: #{dualvae_forward.9} parent=39 // pred_fallthru
              _
            // Predicated region
            $region52: #{dualvae_forward.9} parent=39 // pred_check
              _
            $region53: #{dualvae_forward.9} parent=39 // pred_check_branch
              %364 = sbr.rel target = $region55
            $region54: #{dualvae_forward.9} parent=39 // pred_region
              _
            $region55: #{dualvae_forward.9} parent=39 // pred_fallthru
              _
          $region40: #{dualvae_forward.9} parent=35 // pred_fallthru
            _
          %365 = vnop
        $region36: #{dualvae_forward.9} parent=31 // pred_fallthru
          _
      $region32: #{dualvae_forward.9} parent=5 // pred_fallthru
        _
      %p366 = scmp.le.s32.totalorder 1, %s19
      %p367 = scmp.lt.s32.totalorder %s19, 3
      %p368 = pnand %p366, %p367
      %p369 = pneg %p368
      // Predicated region
      $region56: #{dualvae_forward.9} parent=5 // pred_check
        _
      $region57: #{dualvae_forward.9} parent=5 // pred_check_branch
        %371 = sbr.rel (%p368) target = $region59
      $region58: #{dualvae_forward.9} parent=5 // pred_region
        %s372 = ssub.s32 %s19, 1
        %s373 = sand.u32 %s32, 1
        %s374 = sand.u32 %s32, 1
        %s375 = smul.addr %s374, 512
        %s376 = scalar_lea.vmem [#allocation2], %s375
        // Predicated region
        $region60: #{dualvae_forward.9} parent=58 // pred_check
          %p377 = pneg %p45
        $region61: #{dualvae_forward.9} parent=58 // pred_check_branch
          %379 = sbr.rel (%p377) target = $region63
        $region62: #{dualvae_forward.9} parent=58 // pred_region
          _
        $region63: #{dualvae_forward.9} parent=58 // pred_fallthru
          _
        %s380 = sand.u32 %s32, 1
        %s381 = sand.u32 %s32, 1
        %s382 = smul.addr %s381, 512
        %s383 = scalar_lea.vmem [#allocation2], %s382
        %p384 = pneg %p45
        %p385 = pneg %p42
        %p386 = pneg %p66
        %p387 = pneg %p63
        %p388 = pneg %p87
        %p389 = pneg %p84
        %p390 = pneg %p108
        %p391 = pneg %p105
        %p392 = pneg %p129
        %p393 = pneg %p126
        %p394 = pneg %p155
        %p395 = pneg %p152
        %s396 = sand.u32 %s142, 1
        %s397 = scalar_lea.sflag [#allocation4], %s396
        %s398 = sand.u32 %s142, 1
        %s399 = smul.addr %s398, 256
        %s400 = scalar_lea.vmem [#allocation3], %s399
        %p401 = pneg %p181
        %p402 = pneg %p178
        %s403 = sand.u32 %s168, 1
        %s404 = scalar_lea.sflag [#allocation6], %s403
        %s405 = sand.u32 %s168, 1
        %s406 = smul.addr %s405, 256
        %s407 = scalar_lea.vmem [#allocation5], %s406
        %s408 = smul.u32 16, %s24
        %s409 = smul.u32 16, %s24
        %s410 = smul.u32 16, %s24
        %v411 = vld [vmem:[%s376] sm:$0xff]
        %v412 = vld [vmem:[%s376 + $0x8] sm:$0xff]
        %v413 = vld [vmem:[%s376 + $0x10] sm:$0xff]
        %v414 = vld [vmem:[%s376 + $0x18] sm:$0xff]
        %v415 = vld [vmem:[%s376 + $0x20] sm:$0xff]
        %v416 = vld [vmem:[%s376 + $0x28] sm:$0xff]
        %v417 = vld [vmem:[%s376 + $0x30] sm:$0xff]
        %v418 = vld [vmem:[%s376 + $0x38] sm:$0xff]
        %v419 = vld [vmem:[%s376 + $0x40] sm:$0xff]
        %v420 = vld [vmem:[%s376 + $0x48] sm:$0xff]
        %v421 = vld [vmem:[%s376 + $0x50] sm:$0xff]
        %v422 = vld [vmem:[%s376 + $0x58] sm:$0xff]
        %v423 = vld [vmem:[%s376 + $0x60] sm:$0xff]
        %v424 = vld [vmem:[%s376 + $0x68] sm:$0xff]
        %v425 = vld [vmem:[%s376 + $0x70] sm:$0xff]
        %v426 = vld [vmem:[%s376 + $0x78] sm:$0xff]
        %v427 = vld [vmem:[%s376 + $0x80] sm:$0xff]
        %v428 = vld [vmem:[%s376 + $0x88] sm:$0xff]
        %v429 = vld [vmem:[%s376 + $0x90] sm:$0xff]
        %v430 = vld [vmem:[%s376 + $0x98] sm:$0xff]
        %v431 = vld [vmem:[%s376 + $0xa0] sm:$0xff]
        %v432 = vld [vmem:[%s376 + $0xa8] sm:$0xff]
        %v433 = vld [vmem:[%s376 + $0xb0] sm:$0xff]
        %v434 = vld [vmem:[%s376 + $0xb8] sm:$0xff]
        %v435 = vld [vmem:[%s376 + $0xc0] sm:$0xff]
        %v436 = vld [vmem:[%s376 + $0xc8] sm:$0xff]
        %v437 = vld [vmem:[%s376 + $0xd0] sm:$0xff]
        %v438 = vld [vmem:[%s376 + $0xd8] sm:$0xff]
        %v439 = vld [vmem:[%s376 + $0xe0] sm:$0xff]
        %v440 = vld [vmem:[%s376 + $0xe8] sm:$0xff]
        %v441 = vld [vmem:[%s376 + $0xf0] sm:$0xff]
        %v442 = vld [vmem:[%s376 + $0xf8] sm:$0xff]
        %v443 = vld [vmem:[%s1] sm:$0x3]
        %v445 = vperm.slane %v443, 0
        %v446 = vperm.slane %v443, 1
        %v449 = vmul.f32 %v411, %v445
        %v450 = vmul.f32 %v412, %v446
        %v451 = vmul.f32 %v413, %v445
        %v452 = vmul.f32 %v414, %v446
        %v453 = vmul.f32 %v415, %v445
        %v454 = vmul.f32 %v416, %v446
        %v455 = vmul.f32 %v417, %v445
        %v456 = vmul.f32 %v418, %v446
        %v457 = vmul.f32 %v419, %v445
        %v458 = vmul.f32 %v420, %v446
        %v459 = vmul.f32 %v421, %v445
        %v460 = vmul.f32 %v422, %v446
        %v461 = vmul.f32 %v423, %v445
        %v462 = vmul.f32 %v424, %v446
        %v463 = vmul.f32 %v425, %v445
        %v464 = vmul.f32 %v426, %v446
        %v465 = vmul.f32 %v427, %v445
        %v466 = vmul.f32 %v428, %v446
        %v467 = vmul.f32 %v429, %v445
        %v468 = vmul.f32 %v430, %v446
        %v469 = vmul.f32 %v431, %v445
        %v470 = vmul.f32 %v432, %v446
        %v471 = vmul.f32 %v433, %v445
        %v472 = vmul.f32 %v434, %v446
        %v473 = vmul.f32 %v435, %v445
        %v474 = vmul.f32 %v436, %v446
        %v475 = vmul.f32 %v437, %v445
        %v476 = vmul.f32 %v438, %v446
        %v477 = vmul.f32 %v439, %v445
        %v478 = vmul.f32 %v440, %v446
        %v479 = vmul.f32 %v441, %v445
        %v480 = vmul.f32 %v442, %v446
        %v481 = vld [vmem:[%s2] sm:$0x3]
        %v483 = vperm.slane %v481, 0
        %v484 = vperm.slane %v481, 1
        %v487 = vadd.f32 %v449, %v483
        %v488 = vadd.f32 %v450, %v484
        %v489 = vadd.f32 %v451, %v483
        %v490 = vadd.f32 %v452, %v484
        %v491 = vadd.f32 %v453, %v483
        %v492 = vadd.f32 %v454, %v484
        %v493 = vadd.f32 %v455, %v483
        %v494 = vadd.f32 %v456, %v484
        %v495 = vadd.f32 %v457, %v483
        %v496 = vadd.f32 %v458, %v484
        %v497 = vadd.f32 %v459, %v483
        %v498 = vadd.f32 %v460, %v484
        %v499 = vadd.f32 %v461, %v483
        %v500 = vadd.f32 %v462, %v484
        %v501 = vadd.f32 %v463, %v483
        %v502 = vadd.f32 %v464, %v484
        %v503 = vadd.f32 %v465, %v483
        %v504 = vadd.f32 %v466, %v484
        %v505 = vadd.f32 %v467, %v483
        %v506 = vadd.f32 %v468, %v484
        %v507 = vadd.f32 %v469, %v483
        %v508 = vadd.f32 %v470, %v484
        %v509 = vadd.f32 %v471, %v483
        %v510 = vadd.f32 %v472, %v484
        %v511 = vadd.f32 %v473, %v483
        %v512 = vadd.f32 %v474, %v484
        %v513 = vadd.f32 %v475, %v483
        %v514 = vadd.f32 %v476, %v484
        %v515 = vadd.f32 %v477, %v483
        %v516 = vadd.f32 %v478, %v484
        %v517 = vadd.f32 %v479, %v483
        %v518 = vadd.f32 %v480, %v484
        %vm519 = vcmp.gt.f32.partialorder %v487, 0.0
        %vm520 = vcmp.gt.f32.partialorder %v488, 0.0
        %vm521 = vcmp.gt.f32.partialorder %v489, 0.0
        %vm522 = vcmp.gt.f32.partialorder %v490, 0.0
        %vm523 = vcmp.gt.f32.partialorder %v491, 0.0
        %vm524 = vcmp.gt.f32.partialorder %v492, 0.0
        %vm525 = vcmp.gt.f32.partialorder %v493, 0.0
        %vm526 = vcmp.gt.f32.partialorder %v494, 0.0
        %vm527 = vcmp.gt.f32.partialorder %v495, 0.0
        %vm528 = vcmp.gt.f32.partialorder %v496, 0.0
        %vm529 = vcmp.gt.f32.partialorder %v497, 0.0
        %vm530 = vcmp.gt.f32.partialorder %v498, 0.0
        %vm531 = vcmp.gt.f32.partialorder %v499, 0.0
        %vm532 = vcmp.gt.f32.partialorder %v500, 0.0
        %vm533 = vcmp.gt.f32.partialorder %v501, 0.0
        %vm534 = vcmp.gt.f32.partialorder %v502, 0.0
        %vm535 = vcmp.gt.f32.partialorder %v503, 0.0
        %vm536 = vcmp.gt.f32.partialorder %v504, 0.0
        %vm537 = vcmp.gt.f32.partialorder %v505, 0.0
        %vm538 = vcmp.gt.f32.partialorder %v506, 0.0
        %vm539 = vcmp.gt.f32.partialorder %v507, 0.0
        %vm540 = vcmp.gt.f32.partialorder %v508, 0.0
        %vm541 = vcmp.gt.f32.partialorder %v509, 0.0
        %vm542 = vcmp.gt.f32.partialorder %v510, 0.0
        %vm543 = vcmp.gt.f32.partialorder %v511, 0.0
        %vm544 = vcmp.gt.f32.partialorder %v512, 0.0
        %vm545 = vcmp.gt.f32.partialorder %v513, 0.0
        %vm546 = vcmp.gt.f32.partialorder %v514, 0.0
        %vm547 = vcmp.gt.f32.partialorder %v515, 0.0
        %vm548 = vcmp.gt.f32.partialorder %v516, 0.0
        %vm549 = vcmp.gt.f32.partialorder %v517, 0.0
        %vm550 = vcmp.gt.f32.partialorder %v518, 0.0
        %v551 = vmul.f32 %v487, 0.1
        %v552 = vmul.f32 %v488, 0.1
        %v553 = vmul.f32 %v489, 0.1
        %v554 = vmul.f32 %v490, 0.1
        %v555 = vmul.f32 %v491, 0.1
        %v556 = vmul.f32 %v492, 0.1
        %v557 = vmul.f32 %v493, 0.1
        %v558 = vmul.f32 %v494, 0.1
        %v559 = vmul.f32 %v495, 0.1
        %v560 = vmul.f32 %v496, 0.1
        %v561 = vmul.f32 %v497, 0.1
        %v562 = vmul.f32 %v498, 0.1
        %v563 = vmul.f32 %v499, 0.1
        %v564 = vmul.f32 %v500, 0.1
        %v565 = vmul.f32 %v501, 0.1
        %v566 = vmul.f32 %v502, 0.1
        %v567 = vmul.f32 %v503, 0.1
        %v568 = vmul.f32 %v504, 0.1
        %v569 = vmul.f32 %v505, 0.1
        %v570 = vmul.f32 %v506, 0.1
        %v571 = vmul.f32 %v507, 0.1
        %v572 = vmul.f32 %v508, 0.1
        %v573 = vmul.f32 %v509, 0.1
        %v574 = vmul.f32 %v510, 0.1
        %v575 = vmul.f32 %v511, 0.1
        %v576 = vmul.f32 %v512, 0.1
        %v577 = vmul.f32 %v513, 0.1
        %v578 = vmul.f32 %v514, 0.1
        %v579 = vmul.f32 %v515, 0.1
        %v580 = vmul.f32 %v516, 0.1
        %v581 = vmul.f32 %v517, 0.1
        %v582 = vmul.f32 %v518, 0.1
        %v583 = vsel %vm519, %v487, %v551
        %v584 = vsel %vm520, %v488, %v552
        %v585 = vsel %vm521, %v489, %v553
        %v586 = vsel %vm522, %v490, %v554
        %v587 = vsel %vm523, %v491, %v555
        %v588 = vsel %vm524, %v492, %v556
        %v589 = vsel %vm525, %v493, %v557
        %v590 = vsel %vm526, %v494, %v558
        %v591 = vsel %vm527, %v495, %v559
        %v592 = vsel %vm528, %v496, %v560
        %v593 = vsel %vm529, %v497, %v561
        %v594 = vsel %vm530, %v498, %v562
        %v595 = vsel %vm531, %v499, %v563
        %v596 = vsel %vm532, %v500, %v564
        %v597 = vsel %vm533, %v501, %v565
        %v598 = vsel %vm534, %v502, %v566
        %v599 = vsel %vm535, %v503, %v567
        %v600 = vsel %vm536, %v504, %v568
        %v601 = vsel %vm537, %v505, %v569
        %v602 = vsel %vm538, %v506, %v570
        %v603 = vsel %vm539, %v507, %v571
        %v604 = vsel %vm540, %v508, %v572
        %v605 = vsel %vm541, %v509, %v573
        %v606 = vsel %vm542, %v510, %v574
        %v607 = vsel %vm543, %v511, %v575
        %v608 = vsel %vm544, %v512, %v576
        %v609 = vsel %vm545, %v513, %v577
        %v610 = vsel %vm546, %v514, %v578
        %v611 = vsel %vm547, %v515, %v579
        %v612 = vsel %vm548, %v516, %v580
        %v613 = vsel %vm549, %v517, %v581
        %v614 = vsel %vm550, %v518, %v582
        %s615 = scalar_lea.vmem %s376, 256 [#allocation2]
        %v616 = vld [vmem:[%s615] sm:$0xff]
        %v617 = vld [vmem:[%s615 + $0x8] sm:$0xff]
        %v618 = vld [vmem:[%s615 + $0x10] sm:$0xff]
        %v619 = vld [vmem:[%s615 + $0x18] sm:$0xff]
        %v620 = vld [vmem:[%s615 + $0x20] sm:$0xff]
        %v621 = vld [vmem:[%s615 + $0x28] sm:$0xff]
        %v622 = vld [vmem:[%s615 + $0x30] sm:$0xff]
        %v623 = vld [vmem:[%s615 + $0x38] sm:$0xff]
        %v624 = vld [vmem:[%s615 + $0x40] sm:$0xff]
        %v625 = vld [vmem:[%s615 + $0x48] sm:$0xff]
        %v626 = vld [vmem:[%s615 + $0x50] sm:$0xff]
        %v627 = vld [vmem:[%s615 + $0x58] sm:$0xff]
        %v628 = vld [vmem:[%s615 + $0x60] sm:$0xff]
        %v629 = vld [vmem:[%s615 + $0x68] sm:$0xff]
        %v630 = vld [vmem:[%s615 + $0x70] sm:$0xff]
        %v631 = vld [vmem:[%s615 + $0x78] sm:$0xff]
        %v632 = vld [vmem:[%s615 + $0x80] sm:$0xff]
        %v633 = vld [vmem:[%s615 + $0x88] sm:$0xff]
        %v634 = vld [vmem:[%s615 + $0x90] sm:$0xff]
        %v635 = vld [vmem:[%s615 + $0x98] sm:$0xff]
        %v636 = vld [vmem:[%s615 + $0xa0] sm:$0xff]
        %v637 = vld [vmem:[%s615 + $0xa8] sm:$0xff]
        %v638 = vld [vmem:[%s615 + $0xb0] sm:$0xff]
        %v639 = vld [vmem:[%s615 + $0xb8] sm:$0xff]
        %v640 = vld [vmem:[%s615 + $0xc0] sm:$0xff]
        %v641 = vld [vmem:[%s615 + $0xc8] sm:$0xff]
        %v642 = vld [vmem:[%s615 + $0xd0] sm:$0xff]
        %v643 = vld [vmem:[%s615 + $0xd8] sm:$0xff]
        %v644 = vld [vmem:[%s615 + $0xe0] sm:$0xff]
        %v645 = vld [vmem:[%s615 + $0xe8] sm:$0xff]
        %v646 = vld [vmem:[%s615 + $0xf0] sm:$0xff]
        %v647 = vld [vmem:[%s615 + $0xf8] sm:$0xff]
        %s648 = scalar_lea.vmem %s1, 2
        %v649 = vld [vmem:[%s648] sm:$0x3]
        %v651 = vperm.slane %v649, 0
        %v652 = vperm.slane %v649, 1
        %v655 = vmul.f32 %v616, %v651
        %v656 = vmul.f32 %v617, %v652
        %v657 = vmul.f32 %v618, %v651
        %v658 = vmul.f32 %v619, %v652
        %v659 = vmul.f32 %v620, %v651
        %v660 = vmul.f32 %v621, %v652
        %v661 = vmul.f32 %v622, %v651
        %v662 = vmul.f32 %v623, %v652
        %v663 = vmul.f32 %v624, %v651
        %v664 = vmul.f32 %v625, %v652
        %v665 = vmul.f32 %v626, %v651
        %v666 = vmul.f32 %v627, %v652
        %v667 = vmul.f32 %v628, %v651
        %v668 = vmul.f32 %v629, %v652
        %v669 = vmul.f32 %v630, %v651
        %v670 = vmul.f32 %v631, %v652
        %v671 = vmul.f32 %v632, %v651
        %v672 = vmul.f32 %v633, %v652
        %v673 = vmul.f32 %v634, %v651
        %v674 = vmul.f32 %v635, %v652
        %v675 = vmul.f32 %v636, %v651
        %v676 = vmul.f32 %v637, %v652
        %v677 = vmul.f32 %v638, %v651
        %v678 = vmul.f32 %v639, %v652
        %v679 = vmul.f32 %v640, %v651
        %v680 = vmul.f32 %v641, %v652
        %v681 = vmul.f32 %v642, %v651
        %v682 = vmul.f32 %v643, %v652
        %v683 = vmul.f32 %v644, %v651
        %v684 = vmul.f32 %v645, %v652
        %v685 = vmul.f32 %v646, %v651
        %v686 = vmul.f32 %v647, %v652
        %s687 = scalar_lea.vmem %s2, 2
        %v688 = vld [vmem:[%s687] sm:$0x3]
        %v690 = vperm.slane %v688, 0
        %v691 = vperm.slane %v688, 1
        %v694 = vadd.f32 %v655, %v690
        %v695 = vadd.f32 %v656, %v691
        %v696 = vadd.f32 %v657, %v690
        %v697 = vadd.f32 %v658, %v691
        %v698 = vadd.f32 %v659, %v690
        %v699 = vadd.f32 %v660, %v691
        %v700 = vadd.f32 %v661, %v690
        %v701 = vadd.f32 %v662, %v691
        %v702 = vadd.f32 %v663, %v690
        %v703 = vadd.f32 %v664, %v691
        %v704 = vadd.f32 %v665, %v690
        %v705 = vadd.f32 %v666, %v691
        %v706 = vadd.f32 %v667, %v690
        %v707 = vadd.f32 %v668, %v691
        %v708 = vadd.f32 %v669, %v690
        %v709 = vadd.f32 %v670, %v691
        %v710 = vadd.f32 %v671, %v690
        %v711 = vadd.f32 %v672, %v691
        %v712 = vadd.f32 %v673, %v690
        %v713 = vadd.f32 %v674, %v691
        %v714 = vadd.f32 %v675, %v690
        %v715 = vadd.f32 %v676, %v691
        %v716 = vadd.f32 %v677, %v690
        %v717 = vadd.f32 %v678, %v691
        %v718 = vadd.f32 %v679, %v690
        %v719 = vadd.f32 %v680, %v691
        %v720 = vadd.f32 %v681, %v690
        %v721 = vadd.f32 %v682, %v691
        %v722 = vadd.f32 %v683, %v690
        %v723 = vadd.f32 %v684, %v691
        %v724 = vadd.f32 %v685, %v690
        %v725 = vadd.f32 %v686, %v691
        %vm726 = vcmp.gt.f32.partialorder %v694, 0.0
        %vm727 = vcmp.gt.f32.partialorder %v695, 0.0
        %vm728 = vcmp.gt.f32.partialorder %v696, 0.0
        %vm729 = vcmp.gt.f32.partialorder %v697, 0.0
        %vm730 = vcmp.gt.f32.partialorder %v698, 0.0
        %vm731 = vcmp.gt.f32.partialorder %v699, 0.0
        %vm732 = vcmp.gt.f32.partialorder %v700, 0.0
        %vm733 = vcmp.gt.f32.partialorder %v701, 0.0
        %vm734 = vcmp.gt.f32.partialorder %v702, 0.0
        %vm735 = vcmp.gt.f32.partialorder %v703, 0.0
        %vm736 = vcmp.gt.f32.partialorder %v704, 0.0
        %vm737 = vcmp.gt.f32.partialorder %v705, 0.0
        %vm738 = vcmp.gt.f32.partialorder %v706, 0.0
        %vm739 = vcmp.gt.f32.partialorder %v707, 0.0
        %vm740 = vcmp.gt.f32.partialorder %v708, 0.0
        %vm741 = vcmp.gt.f32.partialorder %v709, 0.0
        %vm742 = vcmp.gt.f32.partialorder %v710, 0.0
        %vm743 = vcmp.gt.f32.partialorder %v711, 0.0
        %vm744 = vcmp.gt.f32.partialorder %v712, 0.0
        %vm745 = vcmp.gt.f32.partialorder %v713, 0.0
        %vm746 = vcmp.gt.f32.partialorder %v714, 0.0
        %vm747 = vcmp.gt.f32.partialorder %v715, 0.0
        %vm748 = vcmp.gt.f32.partialorder %v716, 0.0
        %vm749 = vcmp.gt.f32.partialorder %v717, 0.0
        %vm750 = vcmp.gt.f32.partialorder %v718, 0.0
        %vm751 = vcmp.gt.f32.partialorder %v719, 0.0
        %vm752 = vcmp.gt.f32.partialorder %v720, 0.0
        %vm753 = vcmp.gt.f32.partialorder %v721, 0.0
        %vm754 = vcmp.gt.f32.partialorder %v722, 0.0
        %vm755 = vcmp.gt.f32.partialorder %v723, 0.0
        %vm756 = vcmp.gt.f32.partialorder %v724, 0.0
        %vm757 = vcmp.gt.f32.partialorder %v725, 0.0
        %v758 = vmul.f32 %v694, 0.1
        %v759 = vmul.f32 %v695, 0.1
        %v760 = vmul.f32 %v696, 0.1
        %v761 = vmul.f32 %v697, 0.1
        %v762 = vmul.f32 %v698, 0.1
        %v763 = vmul.f32 %v699, 0.1
        %v764 = vmul.f32 %v700, 0.1
        %v765 = vmul.f32 %v701, 0.1
        %v766 = vmul.f32 %v702, 0.1
        %v767 = vmul.f32 %v703, 0.1
        %v768 = vmul.f32 %v704, 0.1
        %v769 = vmul.f32 %v705, 0.1
        %v770 = vmul.f32 %v706, 0.1
        %v771 = vmul.f32 %v707, 0.1
        %v772 = vmul.f32 %v708, 0.1
        %v773 = vmul.f32 %v709, 0.1
        %v774 = vmul.f32 %v710, 0.1
        %v775 = vmul.f32 %v711, 0.1
        %v776 = vmul.f32 %v712, 0.1
        %v777 = vmul.f32 %v713, 0.1
        %v778 = vmul.f32 %v714, 0.1
        %v779 = vmul.f32 %v715, 0.1
        %v780 = vmul.f32 %v716, 0.1
        %v781 = vmul.f32 %v717, 0.1
        %v782 = vmul.f32 %v718, 0.1
        %v783 = vmul.f32 %v719, 0.1
        %v784 = vmul.f32 %v720, 0.1
        %v785 = vmul.f32 %v721, 0.1
        %v786 = vmul.f32 %v722, 0.1
        %v787 = vmul.f32 %v723, 0.1
        %v788 = vmul.f32 %v724, 0.1
        %v789 = vmul.f32 %v725, 0.1
        %v790 = vsel %vm726, %v694, %v758
        %v791 = vsel %vm727, %v695, %v759
        %v792 = vsel %vm728, %v696, %v760
        %v793 = vsel %vm729, %v697, %v761
        %v794 = vsel %vm730, %v698, %v762
        %v795 = vsel %vm731, %v699, %v763
        %v796 = vsel %vm732, %v700, %v764
        %v797 = vsel %vm733, %v701, %v765
        %v798 = vsel %vm734, %v702, %v766
        %v799 = vsel %vm735, %v703, %v767
        %v800 = vsel %vm736, %v704, %v768
        %v801 = vsel %vm737, %v705, %v769
        %v802 = vsel %vm738, %v706, %v770
        %v803 = vsel %vm739, %v707, %v771
        %v804 = vsel %vm740, %v708, %v772
        %v805 = vsel %vm741, %v709, %v773
        %v806 = vsel %vm742, %v710, %v774
        %v807 = vsel %vm743, %v711, %v775
        %v808 = vsel %vm744, %v712, %v776
        %v809 = vsel %vm745, %v713, %v777
        %v810 = vsel %vm746, %v714, %v778
        %v811 = vsel %vm747, %v715, %v779
        %v812 = vsel %vm748, %v716, %v780
        %v813 = vsel %vm749, %v717, %v781
        %v814 = vsel %vm750, %v718, %v782
        %v815 = vsel %vm751, %v719, %v783
        %v816 = vsel %vm752, %v720, %v784
        %v817 = vsel %vm753, %v721, %v785
        %v818 = vsel %vm754, %v722, %v786
        %v819 = vsel %vm755, %v723, %v787
        %v820 = vsel %vm756, %v724, %v788
        %v821 = vsel %vm757, %v725, %v789
        %v822 = vpack.c.bf16 %v585, %v583
        %v823 = vpack.c.bf16 %v586, %v584
        %v824 = vpack.c.bf16 %v589, %v587
        %v825 = vpack.c.bf16 %v590, %v588
        %v826 = vpack.c.bf16 %v593, %v591
        %v827 = vpack.c.bf16 %v594, %v592
        %v828 = vpack.c.bf16 %v597, %v595
        %v829 = vpack.c.bf16 %v598, %v596
        %v830 = vpack.c.bf16 %v601, %v599
        %v831 = vpack.c.bf16 %v602, %v600
        %v832 = vpack.c.bf16 %v605, %v603
        %v833 = vpack.c.bf16 %v606, %v604
        %v834 = vpack.c.bf16 %v609, %v607
        %v835 = vpack.c.bf16 %v610, %v608
        %v836 = vpack.c.bf16 %v613, %v611
        %v837 = vpack.c.bf16 %v614, %v612
        %v838 = vpack.c.bf16 %v792, %v790
        %v839 = vpack.c.bf16 %v793, %v791
        %v840 = vpack.c.bf16 %v796, %v794
        %v841 = vpack.c.bf16 %v797, %v795
        %v842 = vpack.c.bf16 %v800, %v798
        %v843 = vpack.c.bf16 %v801, %v799
        %v844 = vpack.c.bf16 %v804, %v802
        %v845 = vpack.c.bf16 %v805, %v803
        %v846 = vpack.c.bf16 %v808, %v806
        %v847 = vpack.c.bf16 %v809, %v807
        %v848 = vpack.c.bf16 %v812, %v810
        %v849 = vpack.c.bf16 %v813, %v811
        %v850 = vpack.c.bf16 %v816, %v814
        %v851 = vpack.c.bf16 %v817, %v815
        %v852 = vpack.c.bf16 %v820, %v818
        %v853 = vpack.c.bf16 %v821, %v819
        %v854 = vld [vmem:[%s3] sm:$0xff]
        %v855 = vld [vmem:[%s3 + $0x8] sm:$0xff]
        %v856 = vld [vmem:[%s3 + $0x10] sm:$0xff]
        %v857 = vld [vmem:[%s3 + $0x18] sm:$0xff]
        %v858 = vld [vmem:[%s3 + $0x20] sm:$0xff]
        %v859 = vld [vmem:[%s3 + $0x28] sm:$0xff]
        %v860 = vld [vmem:[%s3 + $0x30] sm:$0xff]
        %v861 = vld [vmem:[%s3 + $0x38] sm:$0xff]
        %v862 = vld [vmem:[%s3 + $0x40] sm:$0xff]
        %v863 = vld [vmem:[%s3 + $0x48] sm:$0xff]
        %v864 = vld [vmem:[%s3 + $0x50] sm:$0xff]
        %v865 = vld [vmem:[%s3 + $0x58] sm:$0xff]
        %v866 = vld [vmem:[%s3 + $0x60] sm:$0xff]
        %v867 = vld [vmem:[%s3 + $0x68] sm:$0xff]
        %v868 = vld [vmem:[%s3 + $0x70] sm:$0xff]
        %v869 = vld [vmem:[%s3 + $0x78] sm:$0xff]
        %v870 = vld [vmem:[%s3 + $0x80] sm:$0xff]
        %v871 = vld [vmem:[%s3 + $0x88] sm:$0xff]
        %v872 = vld [vmem:[%s3 + $0x90] sm:$0xff]
        %v873 = vld [vmem:[%s3 + $0x98] sm:$0xff]
        %v874 = vld [vmem:[%s3 + $0xa0] sm:$0xff]
        %v875 = vld [vmem:[%s3 + $0xa8] sm:$0xff]
        %v876 = vld [vmem:[%s3 + $0xb0] sm:$0xff]
        %v877 = vld [vmem:[%s3 + $0xb8] sm:$0xff]
        %v878 = vld [vmem:[%s3 + $0xc0] sm:$0xff]
        %v879 = vld [vmem:[%s3 + $0xc8] sm:$0xff]
        %v880 = vld [vmem:[%s3 + $0xd0] sm:$0xff]
        %v881 = vld [vmem:[%s3 + $0xd8] sm:$0xff]
        %v882 = vld [vmem:[%s3 + $0xe0] sm:$0xff]
        %v883 = vld [vmem:[%s3 + $0xe8] sm:$0xff]
        %v884 = vld [vmem:[%s3 + $0xf0] sm:$0xff]
        %v885 = vld [vmem:[%s3 + $0xf8] sm:$0xff]
        %v886 = vld [vmem:[%s4] sm:$0x3]
        %v888 = vperm.slane %v886, 0
        %v889 = vperm.slane %v886, 1
        %v924 = vunpack.c.l.b16 %v854
        %v925 = vunpack.c.h.b16 %v854
        %v926 = vunpack.c.l.b16 %v855
        %v927 = vunpack.c.h.b16 %v855
        %v928 = vunpack.c.l.b16 %v856
        %v929 = vunpack.c.h.b16 %v856
        %v930 = vunpack.c.l.b16 %v857
        %v931 = vunpack.c.h.b16 %v857
        %v932 = vunpack.c.l.b16 %v858
        %v933 = vunpack.c.h.b16 %v858
        %v934 = vunpack.c.l.b16 %v859
        %v935 = vunpack.c.h.b16 %v859
        %v936 = vunpack.c.l.b16 %v860
        %v937 = vunpack.c.h.b16 %v860
        %v938 = vunpack.c.l.b16 %v861
        %v939 = vunpack.c.h.b16 %v861
        %v940 = vunpack.c.l.b16 %v862
        %v941 = vunpack.c.h.b16 %v862
        %v942 = vunpack.c.l.b16 %v863
        %v943 = vunpack.c.h.b16 %v863
        %v944 = vunpack.c.l.b16 %v864
        %v945 = vunpack.c.h.b16 %v864
        %v946 = vunpack.c.l.b16 %v865
        %v947 = vunpack.c.h.b16 %v865
        %v948 = vunpack.c.l.b16 %v866
        %v949 = vunpack.c.h.b16 %v866
        %v950 = vunpack.c.l.b16 %v867
        %v951 = vunpack.c.h.b16 %v867
        %v952 = vunpack.c.l.b16 %v868
        %v953 = vunpack.c.h.b16 %v868
        %v954 = vunpack.c.l.b16 %v869
        %v955 = vunpack.c.h.b16 %v869
        %v956 = vunpack.c.l.b16 %v870
        %v957 = vunpack.c.h.b16 %v870
        %v958 = vunpack.c.l.b16 %v871
        %v959 = vunpack.c.h.b16 %v871
        %v960 = vunpack.c.l.b16 %v872
        %v961 = vunpack.c.h.b16 %v872
        %v962 = vunpack.c.l.b16 %v873
        %v963 = vunpack.c.h.b16 %v873
        %v964 = vunpack.c.l.b16 %v874
        %v965 = vunpack.c.h.b16 %v874
        %v966 = vunpack.c.l.b16 %v875
        %v967 = vunpack.c.h.b16 %v875
        %v968 = vunpack.c.l.b16 %v876
        %v969 = vunpack.c.h.b16 %v876
        %v970 = vunpack.c.l.b16 %v877
        %v971 = vunpack.c.h.b16 %v877
        %v972 = vunpack.c.l.b16 %v878
        %v973 = vunpack.c.h.b16 %v878
        %v974 = vunpack.c.l.b16 %v879
        %v975 = vunpack.c.h.b16 %v879
        %v976 = vunpack.c.l.b16 %v880
        %v977 = vunpack.c.h.b16 %v880
        %v978 = vunpack.c.l.b16 %v881
        %v979 = vunpack.c.h.b16 %v881
        %v980 = vunpack.c.l.b16 %v882
        %v981 = vunpack.c.h.b16 %v882
        %v982 = vunpack.c.l.b16 %v883
        %v983 = vunpack.c.h.b16 %v883
        %v984 = vunpack.c.l.b16 %v884
        %v985 = vunpack.c.h.b16 %v884
        %v986 = vunpack.c.l.b16 %v885
        %v987 = vunpack.c.h.b16 %v885
        %v988 = vpack.c.b16 %v926, %v924
        %v989 = vpack.c.b16 %v927, %v925
        %v990 = vpack.c.b16 %v930, %v928
        %v991 = vpack.c.b16 %v931, %v929
        %v992 = vpack.c.b16 %v934, %v932
        %v993 = vpack.c.b16 %v935, %v933
        %v994 = vpack.c.b16 %v938, %v936
        %v995 = vpack.c.b16 %v939, %v937
        %v996 = vpack.c.b16 %v942, %v940
        %v997 = vpack.c.b16 %v943, %v941
        %v998 = vpack.c.b16 %v946, %v944
        %v999 = vpack.c.b16 %v947, %v945
        %v1000 = vpack.c.b16 %v950, %v948
        %v1001 = vpack.c.b16 %v951, %v949
        %v1002 = vpack.c.b16 %v954, %v952
        %v1003 = vpack.c.b16 %v955, %v953
        %v1004 = vpack.c.b16 %v958, %v956
        %v1005 = vpack.c.b16 %v959, %v957
        %v1006 = vpack.c.b16 %v962, %v960
        %v1007 = vpack.c.b16 %v963, %v961
        %v1008 = vpack.c.b16 %v966, %v964
        %v1009 = vpack.c.b16 %v967, %v965
        %v1010 = vpack.c.b16 %v970, %v968
        %v1011 = vpack.c.b16 %v971, %v969
        %v1012 = vpack.c.b16 %v974, %v972
        %v1013 = vpack.c.b16 %v975, %v973
        %v1014 = vpack.c.b16 %v978, %v976
        %v1015 = vpack.c.b16 %v979, %v977
        %v1016 = vpack.c.b16 %v982, %v980
        %v1017 = vpack.c.b16 %v983, %v981
        %v1018 = vpack.c.b16 %v986, %v984
        %v1019 = vpack.c.b16 %v987, %v985
        %1052 = vmatpush.bf16.msra.mxu0 %v1002
        %1053 = vmatpush.bf16.msra.mxu0 %v1000
        %1054 = vmatpush.bf16.msra.mxu0 %v998
        %1055 = vmatpush.bf16.msra.mxu0 %v996
        %1056 = vmatpush.bf16.msra.mxu0 %v994
        %1057 = vmatpush.bf16.msra.mxu0 %v992
        %1058 = vmatpush.bf16.msra.mxu0 %v990
        %1059 = vmatpush.bf16.msra.mxu0 %v988
        %1060 = vmatmul.bf16.gmra.mxu0 %v822
        %v1061 = vpop.f32.mrf.mxu0
        %v1062 = vadd.f32 %v888, %v1061
        %v1063 = vpop.f32.mrf.mxu0
        %v1064 = vadd.f32 %v888, %v1063
        %1065 = vmatmul.bf16.gmra.mxu0 %v824
        %v1066 = vpop.f32.mrf.mxu0
        %v1067 = vadd.f32 %v888, %v1066
        %v1068 = vpop.f32.mrf.mxu0
        %v1069 = vadd.f32 %v888, %v1068
        %1070 = vmatmul.bf16.gmra.mxu0 %v826
        %v1071 = vpop.f32.mrf.mxu0
        %v1072 = vadd.f32 %v888, %v1071
        %v1073 = vpop.f32.mrf.mxu0
        %v1074 = vadd.f32 %v888, %v1073
        %1075 = vmatmul.bf16.gmra.mxu0 %v828
        %v1076 = vpop.f32.mrf.mxu0
        %v1077 = vadd.f32 %v888, %v1076
        %v1078 = vpop.f32.mrf.mxu0
        %v1079 = vadd.f32 %v888, %v1078
        %1080 = vmatmul.bf16.gmra.mxu0 %v830
        %v1081 = vpop.f32.mrf.mxu0
        %v1082 = vadd.f32 %v888, %v1081
        %v1083 = vpop.f32.mrf.mxu0
        %v1084 = vadd.f32 %v888, %v1083
        %1085 = vmatmul.bf16.gmra.mxu0 %v832
        %v1086 = vpop.f32.mrf.mxu0
        %v1087 = vadd.f32 %v888, %v1086
        %v1088 = vpop.f32.mrf.mxu0
        %v1089 = vadd.f32 %v888, %v1088
        %1090 = vmatmul.bf16.gmra.mxu0 %v834
        %v1091 = vpop.f32.mrf.mxu0
        %v1092 = vadd.f32 %v888, %v1091
        %v1093 = vpop.f32.mrf.mxu0
        %v1094 = vadd.f32 %v888, %v1093
        %1095 = vmatmul.bf16.gmra.mxu0 %v836
        %v1096 = vpop.f32.mrf.mxu0
        %v1097 = vadd.f32 %v888, %v1096
        %v1098 = vpop.f32.mrf.mxu0
        %v1099 = vadd.f32 %v888, %v1098
        %1100 = vmatmul.bf16.gmra.mxu0 %v838
        %v1101 = vpop.f32.mrf.mxu0
        %v1102 = vadd.f32 %v888, %v1101
        %v1103 = vpop.f32.mrf.mxu0
        %v1104 = vadd.f32 %v888, %v1103
        %1105 = vmatmul.bf16.gmra.mxu0 %v840
        %v1106 = vpop.f32.mrf.mxu0
        %v1107 = vadd.f32 %v888, %v1106
        %v1108 = vpop.f32.mrf.mxu0
        %v1109 = vadd.f32 %v888, %v1108
        %1110 = vmatmul.bf16.gmra.mxu0 %v842
        %v1111 = vpop.f32.mrf.mxu0
        %v1112 = vadd.f32 %v888, %v1111
        %v1113 = vpop.f32.mrf.mxu0
        %v1114 = vadd.f32 %v888, %v1113
        %1115 = vmatmul.bf16.gmra.mxu0 %v844
        %v1116 = vpop.f32.mrf.mxu0
        %v1117 = vadd.f32 %v888, %v1116
        %v1118 = vpop.f32.mrf.mxu0
        %v1119 = vadd.f32 %v888, %v1118
        %1120 = vmatmul.bf16.gmra.mxu0 %v846
        %v1121 = vpop.f32.mrf.mxu0
        %v1122 = vadd.f32 %v888, %v1121
        %v1123 = vpop.f32.mrf.mxu0
        %v1124 = vadd.f32 %v888, %v1123
        %1125 = vmatmul.bf16.gmra.mxu0 %v848
        %v1126 = vpop.f32.mrf.mxu0
        %v1127 = vadd.f32 %v888, %v1126
        %v1128 = vpop.f32.mrf.mxu0
        %v1129 = vadd.f32 %v888, %v1128
        %1130 = vmatmul.bf16.gmra.mxu0 %v850
        %v1131 = vpop.f32.mrf.mxu0
        %v1132 = vadd.f32 %v888, %v1131
        %v1133 = vpop.f32.mrf.mxu0
        %v1134 = vadd.f32 %v888, %v1133
        %1135 = vmatmul.bf16.gmra.mxu0 %v852
        %v1136 = vpop.f32.mrf.mxu0
        %v1137 = vadd.f32 %v888, %v1136
        %v1138 = vpop.f32.mrf.mxu0
        %v1139 = vadd.f32 %v888, %v1138
        %1140 = vdwg.mxu0
        %1141 = vmatpush.bf16.msra.mxu0 %v1018
        %1142 = vmatpush.bf16.msra.mxu0 %v1016
        %1143 = vmatpush.bf16.msra.mxu0 %v1014
        %1144 = vmatpush.bf16.msra.mxu0 %v1012
        %1145 = vmatpush.bf16.msra.mxu0 %v1010
        %1146 = vmatpush.bf16.msra.mxu0 %v1008
        %1147 = vmatpush.bf16.msra.mxu0 %v1006
        %1148 = vmatpush.bf16.msra.mxu0 %v1004
        %1149 = vmatmul.bf16.gmra.mxu0 %v823
        %v1150 = vpop.f32.mrf.mxu0
        %v1151 = vadd.f32 %v1062, %v1150
        %v1152 = vpop.f32.mrf.mxu0
        %v1153 = vadd.f32 %v1064, %v1152
        %1154 = vmatmul.bf16.gmra.mxu0 %v825
        %v1155 = vpop.f32.mrf.mxu0
        %v1156 = vadd.f32 %v1067, %v1155
        %v1157 = vpop.f32.mrf.mxu0
        %v1158 = vadd.f32 %v1069, %v1157
        %1159 = vmatmul.bf16.gmra.mxu0 %v827
        %v1160 = vpop.f32.mrf.mxu0
        %v1161 = vadd.f32 %v1072, %v1160
        %v1162 = vpop.f32.mrf.mxu0
        %v1163 = vadd.f32 %v1074, %v1162
        %1164 = vmatmul.bf16.gmra.mxu0 %v829
        %v1165 = vpop.f32.mrf.mxu0
        %v1166 = vadd.f32 %v1077, %v1165
        %v1167 = vpop.f32.mrf.mxu0
        %v1168 = vadd.f32 %v1079, %v1167
        %1169 = vmatmul.bf16.gmra.mxu0 %v831
        %v1170 = vpop.f32.mrf.mxu0
        %v1171 = vadd.f32 %v1082, %v1170
        %v1172 = vpop.f32.mrf.mxu0
        %v1173 = vadd.f32 %v1084, %v1172
        %1174 = vmatmul.bf16.gmra.mxu0 %v833
        %v1175 = vpop.f32.mrf.mxu0
        %v1176 = vadd.f32 %v1087, %v1175
        %v1177 = vpop.f32.mrf.mxu0
        %v1178 = vadd.f32 %v1089, %v1177
        %1179 = vmatmul.bf16.gmra.mxu0 %v835
        %v1180 = vpop.f32.mrf.mxu0
        %v1181 = vadd.f32 %v1092, %v1180
        %v1182 = vpop.f32.mrf.mxu0
        %v1183 = vadd.f32 %v1094, %v1182
        %1184 = vmatmul.bf16.gmra.mxu0 %v837
        %v1185 = vpop.f32.mrf.mxu0
        %v1186 = vadd.f32 %v1097, %v1185
        %v1187 = vpop.f32.mrf.mxu0
        %v1188 = vadd.f32 %v1099, %v1187
        %1189 = vmatmul.bf16.gmra.mxu0 %v839
        %v1190 = vpop.f32.mrf.mxu0
        %v1191 = vadd.f32 %v1102, %v1190
        %v1192 = vpop.f32.mrf.mxu0
        %v1193 = vadd.f32 %v1104, %v1192
        %1194 = vmatmul.bf16.gmra.mxu0 %v841
        %v1195 = vpop.f32.mrf.mxu0
        %v1196 = vadd.f32 %v1107, %v1195
        %v1197 = vpop.f32.mrf.mxu0
        %v1198 = vadd.f32 %v1109, %v1197
        %1199 = vmatmul.bf16.gmra.mxu0 %v843
        %v1200 = vpop.f32.mrf.mxu0
        %v1201 = vadd.f32 %v1112, %v1200
        %v1202 = vpop.f32.mrf.mxu0
        %v1203 = vadd.f32 %v1114, %v1202
        %1204 = vmatmul.bf16.gmra.mxu0 %v845
        %v1205 = vpop.f32.mrf.mxu0
        %v1206 = vadd.f32 %v1117, %v1205
        %v1207 = vpop.f32.mrf.mxu0
        %v1208 = vadd.f32 %v1119, %v1207
        %1209 = vmatmul.bf16.gmra.mxu0 %v847
        %v1210 = vpop.f32.mrf.mxu0
        %v1211 = vadd.f32 %v1122, %v1210
        %v1212 = vpop.f32.mrf.mxu0
        %v1213 = vadd.f32 %v1124, %v1212
        %1214 = vmatmul.bf16.gmra.mxu0 %v849
        %v1215 = vpop.f32.mrf.mxu0
        %v1216 = vadd.f32 %v1127, %v1215
        %v1217 = vpop.f32.mrf.mxu0
        %v1218 = vadd.f32 %v1129, %v1217
        %1219 = vmatmul.bf16.gmra.mxu0 %v851
        %v1220 = vpop.f32.mrf.mxu0
        %v1221 = vadd.f32 %v1132, %v1220
        %v1222 = vpop.f32.mrf.mxu0
        %v1223 = vadd.f32 %v1134, %v1222
        %1224 = vmatmul.bf16.gmra.mxu0 %v853
        %v1225 = vpop.f32.mrf.mxu0
        %v1226 = vadd.f32 %v1137, %v1225
        %v1227 = vpop.f32.mrf.mxu0
        %v1228 = vadd.f32 %v1139, %v1227
        %1229 = vdwg.mxu0
        %1230 = vmatpush.bf16.msra.mxu0 %v1003
        %1231 = vmatpush.bf16.msra.mxu0 %v1001
        %1232 = vmatpush.bf16.msra.mxu0 %v999
        %1233 = vmatpush.bf16.msra.mxu0 %v997
        %1234 = vmatpush.bf16.msra.mxu0 %v995
        %1235 = vmatpush.bf16.msra.mxu0 %v993
        %1236 = vmatpush.bf16.msra.mxu0 %v991
        %1237 = vmatpush.bf16.msra.mxu0 %v989
        %1238 = vmatmul.bf16.gmra.mxu0 %v822
        %v1239 = vpop.f32.mrf.mxu0
        %v1240 = vadd.f32 %v889, %v1239
        %v1241 = vpop.f32.mrf.mxu0
        %v1242 = vadd.f32 %v889, %v1241
        %1243 = vmatmul.bf16.gmra.mxu0 %v824
        %v1244 = vpop.f32.mrf.mxu0
        %v1245 = vadd.f32 %v889, %v1244
        %v1246 = vpop.f32.mrf.mxu0
        %v1247 = vadd.f32 %v889, %v1246
        %1248 = vmatmul.bf16.gmra.mxu0 %v826
        %v1249 = vpop.f32.mrf.mxu0
        %v1250 = vadd.f32 %v889, %v1249
        %v1251 = vpop.f32.mrf.mxu0
        %v1252 = vadd.f32 %v889, %v1251
        %1253 = vmatmul.bf16.gmra.mxu0 %v828
        %v1254 = vpop.f32.mrf.mxu0
        %v1255 = vadd.f32 %v889, %v1254
        %v1256 = vpop.f32.mrf.mxu0
        %v1257 = vadd.f32 %v889, %v1256
        %1258 = vmatmul.bf16.gmra.mxu0 %v830
        %v1259 = vpop.f32.mrf.mxu0
        %v1260 = vadd.f32 %v889, %v1259
        %v1261 = vpop.f32.mrf.mxu0
        %v1262 = vadd.f32 %v889, %v1261
        %1263 = vmatmul.bf16.gmra.mxu0 %v832
        %v1264 = vpop.f32.mrf.mxu0
        %v1265 = vadd.f32 %v889, %v1264
        %v1266 = vpop.f32.mrf.mxu0
        %v1267 = vadd.f32 %v889, %v1266
        %1268 = vmatmul.bf16.gmra.mxu0 %v834
        %v1269 = vpop.f32.mrf.mxu0
        %v1270 = vadd.f32 %v889, %v1269
        %v1271 = vpop.f32.mrf.mxu0
        %v1272 = vadd.f32 %v889, %v1271
        %1273 = vmatmul.bf16.gmra.mxu0 %v836
        %v1274 = vpop.f32.mrf.mxu0
        %v1275 = vadd.f32 %v889, %v1274
        %v1276 = vpop.f32.mrf.mxu0
        %v1277 = vadd.f32 %v889, %v1276
        %1278 = vmatmul.bf16.gmra.mxu0 %v838
        %v1279 = vpop.f32.mrf.mxu0
        %v1280 = vadd.f32 %v889, %v1279
        %v1281 = vpop.f32.mrf.mxu0
        %v1282 = vadd.f32 %v889, %v1281
        %1283 = vmatmul.bf16.gmra.mxu0 %v840
        %v1284 = vpop.f32.mrf.mxu0
        %v1285 = vadd.f32 %v889, %v1284
        %v1286 = vpop.f32.mrf.mxu0
        %v1287 = vadd.f32 %v889, %v1286
        %1288 = vmatmul.bf16.gmra.mxu0 %v842
        %v1289 = vpop.f32.mrf.mxu0
        %v1290 = vadd.f32 %v889, %v1289
        %v1291 = vpop.f32.mrf.mxu0
        %v1292 = vadd.f32 %v889, %v1291
        %1293 = vmatmul.bf16.gmra.mxu0 %v844
        %v1294 = vpop.f32.mrf.mxu0
        %v1295 = vadd.f32 %v889, %v1294
        %v1296 = vpop.f32.mrf.mxu0
        %v1297 = vadd.f32 %v889, %v1296
        %1298 = vmatmul.bf16.gmra.mxu0 %v846
        %v1299 = vpop.f32.mrf.mxu0
        %v1300 = vadd.f32 %v889, %v1299
        %v1301 = vpop.f32.mrf.mxu0
        %v1302 = vadd.f32 %v889, %v1301
        %1303 = vmatmul.bf16.gmra.mxu0 %v848
        %v1304 = vpop.f32.mrf.mxu0
        %v1305 = vadd.f32 %v889, %v1304
        %v1306 = vpop.f32.mrf.mxu0
        %v1307 = vadd.f32 %v889, %v1306
        %1308 = vmatmul.bf16.gmra.mxu0 %v850
        %v1309 = vpop.f32.mrf.mxu0
        %v1310 = vadd.f32 %v889, %v1309
        %v1311 = vpop.f32.mrf.mxu0
        %v1312 = vadd.f32 %v889, %v1311
        %1313 = vmatmul.bf16.gmra.mxu0 %v852
        %v1314 = vpop.f32.mrf.mxu0
        %v1315 = vadd.f32 %v889, %v1314
        %v1316 = vpop.f32.mrf.mxu0
        %v1317 = vadd.f32 %v889, %v1316
        %1318 = vdwg.mxu0
        %1319 = vmatpush.bf16.msra.mxu0 %v1019
        %1320 = vmatpush.bf16.msra.mxu0 %v1017
        %1321 = vmatpush.bf16.msra.mxu0 %v1015
        %1322 = vmatpush.bf16.msra.mxu0 %v1013
        %1323 = vmatpush.bf16.msra.mxu0 %v1011
        %1324 = vmatpush.bf16.msra.mxu0 %v1009
        %1325 = vmatpush.bf16.msra.mxu0 %v1007
        %1326 = vmatpush.bf16.msra.mxu0 %v1005
        %1327 = vmatmul.bf16.gmra.mxu0 %v823
        %v1328 = vpop.f32.mrf.mxu0
        %v1329 = vadd.f32 %v1240, %v1328
        %v1330 = vpop.f32.mrf.mxu0
        %v1331 = vadd.f32 %v1242, %v1330
        %1332 = vmatmul.bf16.gmra.mxu0 %v825
        %v1333 = vpop.f32.mrf.mxu0
        %v1334 = vadd.f32 %v1245, %v1333
        %v1335 = vpop.f32.mrf.mxu0
        %v1336 = vadd.f32 %v1247, %v1335
        %1337 = vmatmul.bf16.gmra.mxu0 %v827
        %v1338 = vpop.f32.mrf.mxu0
        %v1339 = vadd.f32 %v1250, %v1338
        %v1340 = vpop.f32.mrf.mxu0
        %v1341 = vadd.f32 %v1252, %v1340
        %1342 = vmatmul.bf16.gmra.mxu0 %v829
        %v1343 = vpop.f32.mrf.mxu0
        %v1344 = vadd.f32 %v1255, %v1343
        %v1345 = vpop.f32.mrf.mxu0
        %v1346 = vadd.f32 %v1257, %v1345
        %1347 = vmatmul.bf16.gmra.mxu0 %v831
        %v1348 = vpop.f32.mrf.mxu0
        %v1349 = vadd.f32 %v1260, %v1348
        %v1350 = vpop.f32.mrf.mxu0
        %v1351 = vadd.f32 %v1262, %v1350
        %1352 = vmatmul.bf16.gmra.mxu0 %v833
        %v1353 = vpop.f32.mrf.mxu0
        %v1354 = vadd.f32 %v1265, %v1353
        %v1355 = vpop.f32.mrf.mxu0
        %v1356 = vadd.f32 %v1267, %v1355
        %1357 = vmatmul.bf16.gmra.mxu0 %v835
        %v1358 = vpop.f32.mrf.mxu0
        %v1359 = vadd.f32 %v1270, %v1358
        %v1360 = vpop.f32.mrf.mxu0
        %v1361 = vadd.f32 %v1272, %v1360
        %1362 = vmatmul.bf16.gmra.mxu0 %v837
        %v1363 = vpop.f32.mrf.mxu0
        %v1364 = vadd.f32 %v1275, %v1363
        %v1365 = vpop.f32.mrf.mxu0
        %v1366 = vadd.f32 %v1277, %v1365
        %1367 = vmatmul.bf16.gmra.mxu0 %v839
        %v1368 = vpop.f32.mrf.mxu0
        %v1369 = vadd.f32 %v1280, %v1368
        %v1370 = vpop.f32.mrf.mxu0
        %v1371 = vadd.f32 %v1282, %v1370
        %1372 = vmatmul.bf16.gmra.mxu0 %v841
        %v1373 = vpop.f32.mrf.mxu0
        %v1374 = vadd.f32 %v1285, %v1373
        %v1375 = vpop.f32.mrf.mxu0
        %v1376 = vadd.f32 %v1287, %v1375
        %1377 = vmatmul.bf16.gmra.mxu0 %v843
        %v1378 = vpop.f32.mrf.mxu0
        %v1379 = vadd.f32 %v1290, %v1378
        %v1380 = vpop.f32.mrf.mxu0
        %v1381 = vadd.f32 %v1292, %v1380
        %1382 = vmatmul.bf16.gmra.mxu0 %v845
        %v1383 = vpop.f32.mrf.mxu0
        %v1384 = vadd.f32 %v1295, %v1383
        %v1385 = vpop.f32.mrf.mxu0
        %v1386 = vadd.f32 %v1297, %v1385
        %1387 = vmatmul.bf16.gmra.mxu0 %v847
        %v1388 = vpop.f32.mrf.mxu0
        %v1389 = vadd.f32 %v1300, %v1388
        %v1390 = vpop.f32.mrf.mxu0
        %v1391 = vadd.f32 %v1302, %v1390
        %1392 = vmatmul.bf16.gmra.mxu0 %v849
        %v1393 = vpop.f32.mrf.mxu0
        %v1394 = vadd.f32 %v1305, %v1393
        %v1395 = vpop.f32.mrf.mxu0
        %v1396 = vadd.f32 %v1307, %v1395
        %1397 = vmatmul.bf16.gmra.mxu0 %v851
        %v1398 = vpop.f32.mrf.mxu0
        %v1399 = vadd.f32 %v1310, %v1398
        %v1400 = vpop.f32.mrf.mxu0
        %v1401 = vadd.f32 %v1312, %v1400
        %1402 = vmatmul.bf16.gmra.mxu0 %v853
        %v1403 = vpop.f32.mrf.mxu0
        %v1404 = vadd.f32 %v1315, %v1403
        %v1405 = vpop.f32.mrf.mxu0
        %v1406 = vadd.f32 %v1317, %v1405
        %1407 = vdwg.mxu0
        %1408 = vst [vmem:[%s407] sm:$0xff] %v1151
        %1409 = vst [vmem:[%s407 + $0x8] sm:$0xff] %v1329
        %1410 = vst [vmem:[%s407 + $0x10] sm:$0xff] %v1153
        %1411 = vst [vmem:[%s407 + $0x18] sm:$0xff] %v1331
        %1412 = vst [vmem:[%s407 + $0x20] sm:$0xff] %v1156
        %1413 = vst [vmem:[%s407 + $0x28] sm:$0xff] %v1334
        %1414 = vst [vmem:[%s407 + $0x30] sm:$0xff] %v1158
        %1415 = vst [vmem:[%s407 + $0x38] sm:$0xff] %v1336
        %1416 = vst [vmem:[%s407 + $0x40] sm:$0xff] %v1161
        %1417 = vst [vmem:[%s407 + $0x48] sm:$0xff] %v1339
        %1418 = vst [vmem:[%s407 + $0x50] sm:$0xff] %v1163
        %1419 = vst [vmem:[%s407 + $0x58] sm:$0xff] %v1341
        %1420 = vst [vmem:[%s407 + $0x60] sm:$0xff] %v1166
        %1421 = vst [vmem:[%s407 + $0x68] sm:$0xff] %v1344
        %1422 = vst [vmem:[%s407 + $0x70] sm:$0xff] %v1168
        %1423 = vst [vmem:[%s407 + $0x78] sm:$0xff] %v1346
        %1424 = vst [vmem:[%s407 + $0x80] sm:$0xff] %v1171
        %1425 = vst [vmem:[%s407 + $0x88] sm:$0xff] %v1349
        %1426 = vst [vmem:[%s407 + $0x90] sm:$0xff] %v1173
        %1427 = vst [vmem:[%s407 + $0x98] sm:$0xff] %v1351
        %1428 = vst [vmem:[%s407 + $0xa0] sm:$0xff] %v1176
        %1429 = vst [vmem:[%s407 + $0xa8] sm:$0xff] %v1354
        %1430 = vst [vmem:[%s407 + $0xb0] sm:$0xff] %v1178
        %1431 = vst [vmem:[%s407 + $0xb8] sm:$0xff] %v1356
        %1432 = vst [vmem:[%s407 + $0xc0] sm:$0xff] %v1181
        %1433 = vst [vmem:[%s407 + $0xc8] sm:$0xff] %v1359
        %1434 = vst [vmem:[%s407 + $0xd0] sm:$0xff] %v1183
        %1435 = vst [vmem:[%s407 + $0xd8] sm:$0xff] %v1361
        %1436 = vst [vmem:[%s407 + $0xe0] sm:$0xff] %v1186
        %1437 = vst [vmem:[%s407 + $0xe8] sm:$0xff] %v1364
        %1438 = vst [vmem:[%s407 + $0xf0] sm:$0xff] %v1188
        %1439 = vst [vmem:[%s407 + $0xf8] sm:$0xff] %v1366
        %1440 = vst [vmem:[%s400] sm:$0xff] %v1191
        %1441 = vst [vmem:[%s400 + $0x8] sm:$0xff] %v1369
        %1442 = vst [vmem:[%s400 + $0x10] sm:$0xff] %v1193
        %1443 = vst [vmem:[%s400 + $0x18] sm:$0xff] %v1371
        %1444 = vst [vmem:[%s400 + $0x20] sm:$0xff] %v1196
        %1445 = vst [vmem:[%s400 + $0x28] sm:$0xff] %v1374
        %1446 = vst [vmem:[%s400 + $0x30] sm:$0xff] %v1198
        %1447 = vst [vmem:[%s400 + $0x38] sm:$0xff] %v1376
        %1448 = vst [vmem:[%s400 + $0x40] sm:$0xff] %v1201
        %1449 = vst [vmem:[%s400 + $0x48] sm:$0xff] %v1379
        %1450 = vst [vmem:[%s400 + $0x50] sm:$0xff] %v1203
        %1451 = vst [vmem:[%s400 + $0x58] sm:$0xff] %v1381
        %1452 = vst [vmem:[%s400 + $0x60] sm:$0xff] %v1206
        %1453 = vst [vmem:[%s400 + $0x68] sm:$0xff] %v1384
        %1454 = vst [vmem:[%s400 + $0x70] sm:$0xff] %v1208
        %1455 = vst [vmem:[%s400 + $0x78] sm:$0xff] %v1386
        %1456 = vst [vmem:[%s400 + $0x80] sm:$0xff] %v1211
        %1457 = vst [vmem:[%s400 + $0x88] sm:$0xff] %v1389
        %1458 = vst [vmem:[%s400 + $0x90] sm:$0xff] %v1213
        %1459 = vst [vmem:[%s400 + $0x98] sm:$0xff] %v1391
        %1460 = vst [vmem:[%s400 + $0xa0] sm:$0xff] %v1216
        %1461 = vst [vmem:[%s400 + $0xa8] sm:$0xff] %v1394
        %1462 = vst [vmem:[%s400 + $0xb0] sm:$0xff] %v1218
        %1463 = vst [vmem:[%s400 + $0xb8] sm:$0xff] %v1396
        %1464 = vst [vmem:[%s400 + $0xc0] sm:$0xff] %v1221
        %1465 = vst [vmem:[%s400 + $0xc8] sm:$0xff] %v1399
        %1466 = vst [vmem:[%s400 + $0xd0] sm:$0xff] %v1223
        %1467 = vst [vmem:[%s400 + $0xd8] sm:$0xff] %v1401
        %1468 = vst [vmem:[%s400 + $0xe0] sm:$0xff] %v1226
        %1469 = vst [vmem:[%s400 + $0xe8] sm:$0xff] %v1404
        %1470 = vst [vmem:[%s400 + $0xf0] sm:$0xff] %v1228
        %1471 = vst [vmem:[%s400 + $0xf8] sm:$0xff] %v1406
        %s1472 = sand.u32 %s142, 1
        %s1473 = scalar_lea.sflag [#allocation4], %s1472
        %s1474 = sand.u32 %s142, 1
        %s1475 = smul.addr %s1474, 256
        %s1476 = scalar_lea.vmem [#allocation3], %s1475
        %s1477 = sand.u32 %s168, 1
        %s1478 = scalar_lea.sflag [#allocation6], %s1477
        %s1479 = sand.u32 %s168, 1
        %s1480 = smul.addr %s1479, 256
        %s1481 = scalar_lea.vmem [#allocation5], %s1480
        // Predicated region
        $region64: #{dualvae_forward.9} parent=58 // pred_check
          %p1482 = pneg %p152
        $region65: #{dualvae_forward.9} parent=58 // pred_check_branch
          %1484 = sbr.rel (%p1482) target = $region67
        $region66: #{dualvae_forward.9} parent=58 // pred_region
          %s1485 = smul.u32 16, %s24
          %1487 = vsyncadd %s1473, 0
          %s1488 = smul.addr %s1485, 2
          %s1489 = smul.addr %s1488, 8
          %s1490 = scalar_lea.hbm %s5, %s1489
          %s1491 = sshll.u32 %s1476, 4
          %s1492 = int_to_ptr.vmem [resolvable:$true] %s1491
          %s1493 = sshll.u32 %s1490, 4
          %s1494 = int_to_ptr.hbm [resolvable:$true] %s1493
          %1499 = dma.vmem_to_hbm [thread:$0]  %s1492, 4096, %s1494, %s1473, 256, 256, 16
        $region67: #{dualvae_forward.9} parent=58 // pred_fallthru
          _
        // Predicated region
        $region68: #{dualvae_forward.9} parent=58 // pred_check
          %p1500 = pneg %p178
        $region69: #{dualvae_forward.9} parent=58 // pred_check_branch
          %1502 = sbr.rel (%p1500) target = $region71
        $region70: #{dualvae_forward.9} parent=58 // pred_region
          %s1503 = smul.u32 16, %s24
          %1505 = vsyncadd %s1478, 0
          %s1506 = smul.addr %s1503, 2
          %s1507 = smul.addr %s1506, 8
          %s1508 = scalar_lea.hbm %s6, %s1507
          %s1509 = sshll.u32 %s1481, 4
          %s1510 = int_to_ptr.vmem [resolvable:$true] %s1509
          %s1511 = sshll.u32 %s1508, 4
          %s1512 = int_to_ptr.hbm [resolvable:$true] %s1511
          %1517 = dma.vmem_to_hbm [thread:$0]  %s1510, 4096, %s1512, %s1478, 256, 256, 16
        $region71: #{dualvae_forward.9} parent=58 // pred_fallthru
          _
      $region59: #{dualvae_forward.9} parent=5 // pred_fallthru
        _
      %p1518 = scmp.le.s32.totalorder 2, %s19
      // Predicated region
      $region72: #{dualvae_forward.9} parent=5 // pred_check
        %p1519 = pneg %p1518
      $region73: #{dualvae_forward.9} parent=5 // pred_check_branch
        %1521 = sbr.rel (%p1519) target = $region75
      $region74: #{dualvae_forward.9} parent=5 // pred_region
        %s1522 = ssub.s32 %s19, 2
        // Predicated region
        $region76: #{dualvae_forward.9} parent=74 // pred_check
          %p1523 = pneg %p158
        $region77: #{dualvae_forward.9} parent=74 // pred_check_branch
          %1525 = sbr.rel (%p1523) target = $region79
        $region78: #{dualvae_forward.9} parent=74 // pred_region
          %s1526 = sand.u32 %s143, 1
          %s1527 = scalar_lea.sflag [#allocation4], %s1526
          %s1528 = sand.u32 %s143, 1
          %s1529 = smul.addr %s1528, 256
          %s1530 = scalar_lea.vmem [#allocation3], %s1529
          %1532 = dma.done %s1527, 4096
        $region79: #{dualvae_forward.9} parent=74 // pred_fallthru
          _
        // Predicated region
        $region80: #{dualvae_forward.9} parent=74 // pred_check
          %p1533 = pneg %p184
        $region81: #{dualvae_forward.9} parent=74 // pred_check_branch
          %1535 = sbr.rel (%p1533) target = $region83
        $region82: #{dualvae_forward.9} parent=74 // pred_region
          %s1536 = sand.u32 %s169, 1
          %s1537 = scalar_lea.sflag [#allocation6], %s1536
          %s1538 = sand.u32 %s169, 1
          %s1539 = smul.addr %s1538, 256
          %s1540 = scalar_lea.vmem [#allocation5], %s1539
          %1542 = dma.done %s1537, 4096
        $region83: #{dualvae_forward.9} parent=74 // pred_fallthru
          _
      $region75: #{dualvae_forward.9} parent=5 // pred_fallthru
        _
    $region6: #{dualvae_forward.9} parent=1 // loop_footer
      %s23 = sadd.s32 1, %s19
    $region7: #{dualvae_forward.9} parent=1 // loop_footer_branch
      %18 = sbr.rel target = $region3
    $region8: #{dualvae_forward.9} parent=1 // loop_exit
      _
    %1543 = vsyncpa [#allocation4], 1
    %s1544 = scalar_lea.sflag [#allocation4], 1
    %1545 = vsyncpa %s1544, 1
    %1546 = vsyncpa [#allocation6], 1
    %s1547 = scalar_lea.sflag [#allocation6], 1
    %1548 = vsyncpa %s1547, 1

</llo_original>
